<compile_context>
chip_gen: v5e
topology: v5e:2x2
jax: 0.10.0
libtpu: 0.0.40
codegen_flags: <defaults>
</compile_context>

<pallas_src>
import functools

import jax
import jax.numpy as jnp
from jax.experimental import pallas as pl
from jax.experimental.pallas import tpu as pltpu


def _decoder_kernel(x_ref, w1_ref, b1_ref, wcat_ref, bcat_ref,
                    dino_ref, cls_ref, part_ref):
    # conv1 (1x1) + ReLU. bf16 operands -> MXU, f32 accumulation; bias/ReLU f32.
    f = jnp.dot(x_ref[...], w1_ref[...], preferred_element_type=jnp.float32)
    f = jnp.maximum(f + b1_ref[...], 0.0)

    # Single fused head matmul over [Wd | Wp | Wp@Wc]  (256 x 1408).
    y = jnp.dot(f.astype(jnp.bfloat16), wcat_ref[...],
                preferred_element_type=jnp.float32) + bcat_ref[...]

    # Lane-tile-aligned slices (384 = 3*128, 1152 = 9*128): free splits.
    dino_ref[...] = y[:, :384].astype(dino_ref.dtype)
    part_ref[...] = y[:, 384:1152].astype(part_ref.dtype)
    cls_ref[...] = y[:, 1152:].astype(cls_ref.dtype)


def _weight_norm(v, g):
    # v: (C_out, C_in), g: (C_out,)  -> W = g * v / ||v||_row  (PyTorch dim=0)
    norm = jnp.sqrt(jnp.sum(v * v, axis=1, keepdims=True))
    return g[:, None] * v / norm


@functools.partial(jax.jit, static_argnames=("tm", "out_dtype"))
def skip_feat_class_decoder_fwd_flat(x_flat, params, tm=512, out_dtype=jnp.float32):
    """Core entry: x_flat is (M, C_in) 'pixels x channels' (no layout changes).

    Returns (dino, cls, part) as (M, 384), (M, 256), (M, 768).
    """
    M, Cin = x_flat.shape

    # ---- plain-JAX weight prep (tiny): weight-norm, class-conv fusion, concat.
    w1 = _weight_norm(params["v1"], params["g1"]).T        # (Cin, 256)
    wd = _weight_norm(params["vd"], params["gd"]).T        # (256, 384)
    wp = _weight_norm(params["vp"], params["gp"]).T        # (256, 768)
    wc = _weight_norm(params["vc"], params["gc"]).T        # (768, 256)
    w_pc = wp @ wc                                         # (256, 256) exact fusion
    b_pc = params["bp"] @ wc + params["bc"]                # (256,)
    wcat = jnp.concatenate([wd, wp, w_pc], axis=1)         # (256, 1408)
    bcat = jnp.concatenate([params["bd"], params["bp"], b_pc])[None, :]  # (1, 1408)
    b1 = params["b1"][None, :]                             # (1, 256)

    # bf16 MXU operands (f32 accumulation happens in-kernel).
    w1 = w1.astype(jnp.bfloat16)
    wcat = wcat.astype(jnp.bfloat16)
    x_bf16 = x_flat.astype(jnp.bfloat16)

    # Pad rows up to a multiple of the tile; padded rows are discarded below.
    Mp = -(-M // tm) * tm
    if Mp != M:
        x_bf16 = jnp.pad(x_bf16, ((0, Mp - M), (0, 0)))

    grid = (Mp // tm,)
    const = lambda i: (0, 0)   # grid-invariant (weights / biases)

    out_shapes = (
        jax.ShapeDtypeStruct((Mp, 384), out_dtype),   # dino
        jax.ShapeDtypeStruct((Mp, 256), out_dtype),   # class
        jax.ShapeDtypeStruct((Mp, 768), out_dtype),   # part
    )

    dino, cls, part = pl.pallas_call(
        _decoder_kernel,
        out_shape=out_shapes,
        grid_spec=pltpu.PrefetchScalarGridSpec(
            num_scalar_prefetch=0,
            grid=grid,
            in_specs=[
                pl.BlockSpec((tm, Cin), lambda i: (i, 0)),     # x tile (bf16)
                pl.BlockSpec(w1.shape, const),                 # W1   (bf16)
                pl.BlockSpec(b1.shape, const),                 # b1   (f32)
                pl.BlockSpec(wcat.shape, const),               # Wcat (bf16)
                pl.BlockSpec(bcat.shape, const),               # bcat (f32)
            ],
            out_specs=[
                pl.BlockSpec((tm, 384), lambda i: (i, 0)),
                pl.BlockSpec((tm, 256), lambda i: (i, 0)),
                pl.BlockSpec((tm, 768), lambda i: (i, 0)),
            ],
        ),
        compiler_params=pltpu.CompilerParams(
            dimension_semantics=("parallel",),     # lets v7x shard tiles over 2 TCs
            vmem_limit_bytes=48 * 1024 * 1024,     # ~14 MiB used at tm=512; headroom for tm up to 1024
        ),
    )(x_bf16, w1, b1, wcat, bcat)

    if Mp != M:
        dino, cls, part = dino[:M], cls[:M], part[:M]
    return dino, cls, part


@functools.partial(jax.jit, static_argnames=("tm", "out_dtype"))
def skip_feat_class_decoder_fwd(x_nchw, params, tm=512, out_dtype=jnp.float32):
    """NCHW wrapper for PyTorch parity: x_nchw (N, C_in, H, W) -> NCHW outputs.

    Prefer skip_feat_class_decoder_fwd_flat if the caller can use a flat
    channels-last layout (avoids the NCHW<->NHWC transposes entirely).
    """
    N, Cin, H, W = x_nchw.shape
    # Cast before the transpose so the layout shuffle moves half the bytes.
    x = jnp.transpose(x_nchw.astype(jnp.bfloat16), (0, 2, 3, 1)).reshape(N * H * W, Cin)
    dino, cls, part = skip_feat_class_decoder_fwd_flat(
        x, params, tm=tm, out_dtype=out_dtype)
    to_nchw = lambda a: jnp.transpose(a.reshape(N, H, W, -1), (0, 3, 1, 2))
    return to_nchw(dino), to_nchw(cls), to_nchw(part)


def init_params(key, input_dim):
    ks = jax.random.split(key, 8)
    p = {}
    # conv1: (256, input_dim)
    p["v1"] = jax.random.normal(ks[0], (256, input_dim), jnp.float32)
    p["g1"] = jnp.sqrt(jnp.sum(p["v1"] ** 2, axis=1))  # g = ||v|| at init (PyTorch weight_norm)
    p["b1"] = jax.random.normal(ks[1], (256,), jnp.float32)
    # dino_conv: (384, 256)
    p["vd"] = jax.random.normal(ks[2], (384, 256), jnp.float32)
    p["gd"] = jnp.sqrt(jnp.sum(p["vd"] ** 2, axis=1))
    p["bd"] = jax.random.normal(ks[3], (384,), jnp.float32)
    # part_conv1: (768, 256)
    p["vp"] = jax.random.normal(ks[4], (768, 256), jnp.float32)
    p["gp"] = jnp.sqrt(jnp.sum(p["vp"] ** 2, axis=1))
    p["bp"] = jax.random.normal(ks[5], (768,), jnp.float32)
    # class_conv1: (256, 768)
    p["vc"] = jax.random.normal(ks[6], (256, 768), jnp.float32)
    p["gc"] = jnp.sqrt(jnp.sum(p["vc"] ** 2, axis=1))
    p["bc"] = jax.random.normal(ks[7], (256,), jnp.float32)
    return p


def _reference(x_nchw, params):
    """Pure-JAX f32 reference, unfused (faithful to the PyTorch module)."""
    N, Cin, H, W = x_nchw.shape
    x = jnp.transpose(x_nchw, (0, 2, 3, 1)).reshape(-1, Cin)
    w1 = _weight_norm(params["v1"], params["g1"]).T
    wd = _weight_norm(params["vd"], params["gd"]).T
    wp = _weight_norm(params["vp"], params["gp"]).T
    wc = _weight_norm(params["vc"], params["gc"]).T
    f = jnp.maximum(x @ w1 + params["b1"][None], 0.0)
    dino = f @ wd + params["bd"][None]
    part = f @ wp + params["bp"][None]
    cls = part @ wc + params["bc"][None]
    to_nchw = lambda a: jnp.transpose(a.reshape(N, H, W, -1), (0, 3, 1, 2))
    return to_nchw(dino), to_nchw(cls), to_nchw(part)


if __name__ == "__main__":
    key = jax.random.PRNGKey(0)
    k_x, k_p = jax.random.split(key)

    input_dim = 128
    N, H, W = 2, 16, 32          # M = N*H*W = 1024 -> 2 grid steps at tm=512
    x = jax.random.normal(k_x, (N, input_dim, H, W), jnp.float32)
    params = init_params(k_p, input_dim)

    dino, cls, part = skip_feat_class_decoder_fwd(x, params)
    jax.block_until_ready((dino, cls, part))

    # sanity check against pure-f32 JAX reference (bf16 MXU operands -> relaxed tol)
    rd, rc, rp = _reference(x, params)
    assert dino.shape == (N, 384, H, W)
    assert cls.shape == (N, 256, H, W)
    assert part.shape == (N, 768, H, W)

    def nrel(a, b):
        return float(jnp.max(jnp.abs(a - b)) / (jnp.max(jnp.abs(b)) + 1e-12))

    assert nrel(dino, rd) < 3e-2, ("dino", nrel(dino, rd))
    assert nrel(part, rp) < 3e-2, ("part", nrel(part, rp))
    assert nrel(cls, rc) < 3e-2, ("cls", nrel(cls, rc))

    print("KERNEL_OK")
</pallas_src>

<mosaic_0001>
module attributes {stable_mosaic.version = 11 : i64} {
  func.func @_decoder_kernel(%arg0: i32, %arg1: memref<512x128xbf16, #tpu.memory_space<vmem>>, %arg2: memref<128x256xbf16, #tpu.memory_space<vmem>>, %arg3: memref<1x256xf32, #tpu.memory_space<vmem>>, %arg4: memref<256x1408xbf16, #tpu.memory_space<vmem>>, %arg5: memref<1x1408xf32, #tpu.memory_space<vmem>>, %arg6: memref<512x384xf32, #tpu.memory_space<vmem>>, %arg7: memref<512x256xf32, #tpu.memory_space<vmem>>, %arg8: memref<512x768xf32, #tpu.memory_space<vmem>>) attributes {dimension_semantics = [#tpu.dimension_semantics<parallel>], iteration_bounds = array<i64: 2>, scalar_prefetch = 0 : i64, scratch_operands = 0 : i64, tpu.core_type = #tpu.core_type<tc>, window_params = [{transform_indices = @transform_0, window_bounds = array<i64: 512, 128>}, {pipeline_mode = #tpu.pipeline_mode<synchronous>, transform_indices = @transform_1, window_bounds = array<i64: 128, 256>}, {pipeline_mode = #tpu.pipeline_mode<synchronous>, transform_indices = @transform_2, window_bounds = array<i64: 1, 256>}, {pipeline_mode = #tpu.pipeline_mode<synchronous>, transform_indices = @transform_3, window_bounds = array<i64: 256, 1408>}, {pipeline_mode = #tpu.pipeline_mode<synchronous>, transform_indices = @transform_4, window_bounds = array<i64: 1, 1408>}, {transform_indices = @transform_5, window_bounds = array<i64: 512, 384>}, {transform_indices = @transform_6, window_bounds = array<i64: 512, 256>}, {transform_indices = @transform_7, window_bounds = array<i64: 512, 768>}]} {
    %c0 = arith.constant 0 : index
    %c0_0 = arith.constant 0 : index
    %0 = vector.load %arg1[%c0, %c0_0] : memref<512x128xbf16, #tpu.memory_space<vmem>>, vector<512x128xbf16>
    %c0_1 = arith.constant 0 : index
    %c0_2 = arith.constant 0 : index
    %1 = vector.load %arg2[%c0_1, %c0_2] : memref<128x256xbf16, #tpu.memory_space<vmem>>, vector<128x256xbf16>
    %cst = arith.constant dense<0.000000e+00> : vector<512x256xf32>
    %2 = tpu.matmul %0, %1, %cst {dimension_numbers = #tpu.dot_dimension_numbers<[1], [0], [0], [1], [0, 0, 1, 1], [], []>} : vector<512x128xbf16>, vector<128x256xbf16>, vector<512x256xf32> -> vector<512x256xf32>
    %c0_3 = arith.constant 0 : index
    %c0_4 = arith.constant 0 : index
    %3 = vector.load %arg3[%c0_3, %c0_4] : memref<1x256xf32, #tpu.memory_space<vmem>>, vector<1x256xf32>
    %4 = vector.broadcast %3 : vector<1x256xf32> to vector<512x256xf32>
    %5 = arith.addf %2, %4 : vector<512x256xf32>
    %cst_5 = arith.constant 0.000000e+00 : f32
    %6 = vector.broadcast %cst_5 : f32 to vector<512x256xf32>
    %7 = arith.maximumf %5, %6 : vector<512x256xf32>
    %8 = arith.truncf %7 : vector<512x256xf32> to vector<512x256xbf16>
    %c0_6 = arith.constant 0 : index
    %c0_7 = arith.constant 0 : index
    %9 = vector.load %arg4[%c0_6, %c0_7] : memref<256x1408xbf16, #tpu.memory_space<vmem>>, vector<256x1408xbf16>
    %cst_8 = arith.constant dense<0.000000e+00> : vector<512x1408xf32>
    %10 = tpu.matmul %8, %9, %cst_8 {dimension_numbers = #tpu.dot_dimension_numbers<[1], [0], [0], [1], [0, 0, 1, 1], [], []>} : vector<512x256xbf16>, vector<256x1408xbf16>, vector<512x1408xf32> -> vector<512x1408xf32>
    %c0_9 = arith.constant 0 : index
    %c0_10 = arith.constant 0 : index
    %11 = vector.load %arg5[%c0_9, %c0_10] : memref<1x1408xf32, #tpu.memory_space<vmem>>, vector<1x1408xf32>
    %12 = vector.broadcast %11 : vector<1x1408xf32> to vector<512x1408xf32>
    %13 = arith.addf %10, %12 : vector<512x1408xf32>
    %14 = vector.extract_strided_slice %13 {offsets = [0, 0], sizes = [512, 384], strides = [1, 1]} : vector<512x1408xf32> to vector<512x384xf32>
    %c0_11 = arith.constant 0 : index
    %c0_12 = arith.constant 0 : index
    %15 = vector.load %arg6[%c0_11, %c0_12] : memref<512x384xf32, #tpu.memory_space<vmem>>, vector<512x384xf32>
    tpu.vector_store %arg6[%c0_11, %c0_12], %14 {strides = array<i32>} : memref<512x384xf32, #tpu.memory_space<vmem>>, vector<512x384xf32>,
    %16 = vector.extract_strided_slice %13 {offsets = [0, 384], sizes = [512, 768], strides = [1, 1]} : vector<512x1408xf32> to vector<512x768xf32>
    %c0_13 = arith.constant 0 : index
    %c0_14 = arith.constant 0 : index
    %17 = vector.load %arg8[%c0_13, %c0_14] : memref<512x768xf32, #tpu.memory_space<vmem>>, vector<512x768xf32>
    tpu.vector_store %arg8[%c0_13, %c0_14], %16 {strides = array<i32>} : memref<512x768xf32, #tpu.memory_space<vmem>>, vector<512x768xf32>,
    %18 = vector.extract_strided_slice %13 {offsets = [0, 1152], sizes = [512, 256], strides = [1, 1]} : vector<512x1408xf32> to vector<512x256xf32>
    %c0_15 = arith.constant 0 : index
    %c0_16 = arith.constant 0 : index
    %19 = vector.load %arg7[%c0_15, %c0_16] : memref<512x256xf32, #tpu.memory_space<vmem>>, vector<512x256xf32>
    tpu.vector_store %arg7[%c0_15, %c0_16], %18 {strides = array<i32>} : memref<512x256xf32, #tpu.memory_space<vmem>>, vector<512x256xf32>,
    return
  }
  func.func @transform_0(%arg0: i32) -> (i32, i32) {
    %c0_i32 = arith.constant 0 : i32
    %c0_i32_0 = arith.constant 0 : i32
    return %arg0, %c0_i32 : i32, i32
  }
  func.func @transform_1(%arg0: i32) -> (i32, i32) {
    %c0_i32 = arith.constant 0 : i32
    %c0_i32_0 = arith.constant 0 : i32
    %c0_i32_1 = arith.constant 0 : i32
    return %c0_i32, %c0_i32_0 : i32, i32
  }
  func.func @transform_2(%arg0: i32) -> (i32, i32) {
    %c0_i32 = arith.constant 0 : i32
    %c0_i32_0 = arith.constant 0 : i32
    %c0_i32_1 = arith.constant 0 : i32
    return %c0_i32, %c0_i32_0 : i32, i32
  }
  func.func @transform_3(%arg0: i32) -> (i32, i32) {
    %c0_i32 = arith.constant 0 : i32
    %c0_i32_0 = arith.constant 0 : i32
    %c0_i32_1 = arith.constant 0 : i32
    return %c0_i32, %c0_i32_0 : i32, i32
  }
  func.func @transform_4(%arg0: i32) -> (i32, i32) {
    %c0_i32 = arith.constant 0 : i32
    %c0_i32_0 = arith.constant 0 : i32
    %c0_i32_1 = arith.constant 0 : i32
    return %c0_i32, %c0_i32_0 : i32, i32
  }
  func.func @transform_5(%arg0: i32) -> (i32, i32) {
    %c0_i32 = arith.constant 0 : i32
    %c0_i32_0 = arith.constant 0 : i32
    return %arg0, %c0_i32 : i32, i32
  }
  func.func @transform_6(%arg0: i32) -> (i32, i32) {
    %c0_i32 = arith.constant 0 : i32
    %c0_i32_0 = arith.constant 0 : i32
    return %arg0, %c0_i32 : i32, i32
  }
  func.func @transform_7(%arg0: i32) -> (i32, i32) {
    %c0_i32 = arith.constant 0 : i32
    %c0_i32_0 = arith.constant 0 : i32
    return %arg0, %c0_i32 : i32, i32
  }
}

</mosaic_0001>

<llo_original>
// kernel: skip_feat_class_decoder_fwd_flat.1
$region0: #{skip_feat_class_decoder_fwd_flat.1}
  #allocation0 [shape = 'u32[]', space=smem, size = 0x4, offset = 0x4, fixed_abs, tag = 'smem constant byte address 0x4 - core index']
  #allocation1 [shape = 'u32[72,128]{1,0:T(1,128)}', space=vmem, size = 0x9000, scoped, tag = 'internal scratch']
  %s0 = inlined_call_operand.vmem [shape: bf16[1024,128], index: 0, kind: input, shape index: {}]
  %s1 = inlined_call_operand.vmem [shape: bf16[128,256], index: 1, kind: input, shape index: {}]
  %s2 = inlined_call_operand.vmem [shape: f32[1,256], index: 2, kind: input, shape index: {}]
  %s3 = inlined_call_operand.vmem [shape: bf16[256,1408], index: 3, kind: input, shape index: {}]
  %s4 = inlined_call_operand.vmem [shape: f32[1,1408], index: 4, kind: input, shape index: {}]
  %s5 = inlined_call_operand.hbm [shape: f32[1024,384], index: 5, kind: output, shape index: {0}]
  %s6 = inlined_call_operand.hbm [shape: f32[1024,256], index: 6, kind: output, shape index: {1}]
  %s7 = inlined_call_operand.hbm [shape: f32[1024,768], index: 7, kind: output, shape index: {2}]
  %8 = xla_tuple %s5, %s6, %s7
  %s9 = sld [smem:[#allocation0]]
  $region69: #{skip_feat_class_decoder_fwd_flat.1} parent=0
    _
  %s11 = ssub.s32 1, %s9
  %s12 = scalar_select 0, %s11, %s9
  $region1: #{skip_feat_class_decoder_fwd_flat.1} parent=0
    #allocation2 [shape = 'u8[1572864]{0}', space=vmem, size = 0x180000, scoped, tag = 'output window, operand 0']
    #allocation3 [shape = 's32[2]{0}', space=sflag, size = 0x8, scoped, tag = 'scoped memory for skip_feat_class_decoder_fwd_flat.1']
    #allocation4 [shape = 'u8[1048576]{0}', space=vmem, size = 0x100000, scoped, tag = 'output window, operand 1']
    #allocation5 [shape = 's32[2]{0}', space=sflag, size = 0x8, scoped, tag = 'scoped memory for skip_feat_class_decoder_fwd_flat.1']
    #allocation6 [shape = 'u8[3145728]{0}', space=vmem, size = 0x300000, scoped, tag = 'output window, operand 2']
    %13 = vsyncpa [#allocation3], 0
    %s14 = scalar_lea.sflag [#allocation3], 1
    %15 = vsyncpa %s14, 0
    %16 = vsyncpa [#allocation5], 0
    %s17 = scalar_lea.sflag [#allocation5], 1
    %18 = vsyncpa %s17, 0
    loop: start=0, step=1, limit=4
    $region2: #{skip_feat_class_decoder_fwd_flat.1} parent=1 // loop_pre_header
      _
    $region3: #{skip_feat_class_decoder_fwd_flat.1} parent=1 // loop_header
      %s20 = sphi 0, %s24
      %p21 = scmp.ge.s32.totalorder %s20, 4
      %s30 = sphi 0, %s32
      %s33 = sphi 0, %s30
      %s34 = sphi 0, %s33
      %s50 = sphi 0, %s34
      %s54 = sphi 0, %s54
      %s56 = sphi 0, %s54
      %s57 = sphi 0, %s56
      %s71 = sphi 0, %s57
      %s75 = sphi 0, %s75
      %s77 = sphi 0, %s75
      %s78 = sphi 0, %s77
      %s92 = sphi 0, %s78
      %s96 = sphi 0, %s96
      %s98 = sphi 0, %s96
      %s99 = sphi 0, %s98
      %s113 = sphi 0, %s99
      %s117 = sphi 0, %s117
      %s119 = sphi 0, %s117
      %s120 = sphi 0, %s119
      %s134 = sphi 0, %s120
      %s140 = sphi 0, %s142
      %s143 = sphi 0, %s140
      %s144 = sphi 0, %s143
      %s160 = sphi 0, %s144
      %s166 = sphi 0, %s168
      %s169 = sphi 0, %s166
      %s170 = sphi 0, %s169
      %s186 = sphi 0, %s170
      %s192 = sphi 0, %s194
      %s195 = sphi 0, %s192
      %s196 = sphi 0, %s195
      %s212 = sphi 0, %s196
    $region4: #{skip_feat_class_decoder_fwd_flat.1} parent=1 // loop_header_branch
      %23 = sbr.rel (%p21) target = $region8
    $region5: #{skip_feat_class_decoder_fwd_flat.1} parent=1 // loop_body
      %s25 = ssub.s32 %s20, 1
      %s26 = ssub.s32 %s20, 2
      %s27 = sadd.s32 %s20, 1
      %s28 = ssub.s32 %s20, %s27
      %p29 = scmp.eq.s32.totalorder %s28, 0
      %s31 = sadd.s32 %s30, 1
      %s32 = scalar_select %p29, %s30, %s31
      %p35 = pneg %p29
      %p36 = scmp.eq.s32.totalorder %s20, 1
      %p37 = por %p35, %p36
      %p38 = scmp.ne.s32.totalorder %s30, %s33
      %p39 = scmp.eq.s32.totalorder %s20, 0
      %p40 = por %p38, %p39
      %p41 = scmp.ne.s32.totalorder %s30, %s33
      %p42 = scmp.eq.s32.totalorder %s25, 1
      %p43 = por %p41, %p42
      %p44 = scmp.ne.s32.totalorder %s33, %s34
      %p45 = scmp.eq.s32.totalorder %s25, 0
      %p46 = por %p44, %p45
      %p47 = scmp.ne.s32.totalorder %s33, %s34
      %p48 = scmp.eq.s32.totalorder %s26, 1
      %p49 = por %p47, %p48
      %p51 = scmp.ne.s32.totalorder %s34, %s50
      %p52 = scmp.eq.s32.totalorder %s26, 0
      %p53 = por %p51, %p52
      %s55 = sadd.s32 %s54, 1
      %p58 = scmp.eq.s32.totalorder %s20, 1
      %p59 = scmp.ne.s32.totalorder %s54, %s56
      %p60 = scmp.eq.s32.totalorder %s20, 0
      %p61 = por %p59, %p60
      %p62 = scmp.ne.s32.totalorder %s54, %s56
      %p63 = scmp.eq.s32.totalorder %s25, 1
      %p64 = por %p62, %p63
      %p65 = scmp.ne.s32.totalorder %s56, %s57
      %p66 = scmp.eq.s32.totalorder %s25, 0
      %p67 = por %p65, %p66
      %p68 = scmp.ne.s32.totalorder %s56, %s57
      %p69 = scmp.eq.s32.totalorder %s26, 1
      %p70 = por %p68, %p69
      %p72 = scmp.ne.s32.totalorder %s57, %s71
      %p73 = scmp.eq.s32.totalorder %s26, 0
      %p74 = por %p72, %p73
      %s76 = sadd.s32 %s75, 1
      %p79 = scmp.eq.s32.totalorder %s20, 1
      %p80 = scmp.ne.s32.totalorder %s75, %s77
      %p81 = scmp.eq.s32.totalorder %s20, 0
      %p82 = por %p80, %p81
      %p83 = scmp.ne.s32.totalorder %s75, %s77
      %p84 = scmp.eq.s32.totalorder %s25, 1
      %p85 = por %p83, %p84
      %p86 = scmp.ne.s32.totalorder %s77, %s78
      %p87 = scmp.eq.s32.totalorder %s25, 0
      %p88 = por %p86, %p87
      %p89 = scmp.ne.s32.totalorder %s77, %s78
      %p90 = scmp.eq.s32.totalorder %s26, 1
      %p91 = por %p89, %p90
      %p93 = scmp.ne.s32.totalorder %s78, %s92
      %p94 = scmp.eq.s32.totalorder %s26, 0
      %p95 = por %p93, %p94
      %s97 = sadd.s32 %s96, 1
      %p100 = scmp.eq.s32.totalorder %s20, 1
      %p101 = scmp.ne.s32.totalorder %s96, %s98
      %p102 = scmp.eq.s32.totalorder %s20, 0
      %p103 = por %p101, %p102
      %p104 = scmp.ne.s32.totalorder %s96, %s98
      %p105 = scmp.eq.s32.totalorder %s25, 1
      %p106 = por %p104, %p105
      %p107 = scmp.ne.s32.totalorder %s98, %s99
      %p108 = scmp.eq.s32.totalorder %s25, 0
      %p109 = por %p107, %p108
      %p110 = scmp.ne.s32.totalorder %s98, %s99
      %p111 = scmp.eq.s32.totalorder %s26, 1
      %p112 = por %p110, %p111
      %p114 = scmp.ne.s32.totalorder %s99, %s113
      %p115 = scmp.eq.s32.totalorder %s26, 0
      %p116 = por %p114, %p115
      %s118 = sadd.s32 %s117, 1
      %p121 = scmp.eq.s32.totalorder %s20, 1
      %p122 = scmp.ne.s32.totalorder %s117, %s119
      %p123 = scmp.eq.s32.totalorder %s20, 0
      %p124 = por %p122, %p123
      %p125 = scmp.ne.s32.totalorder %s117, %s119
      %p126 = scmp.eq.s32.totalorder %s25, 1
      %p127 = por %p125, %p126
      %p128 = scmp.ne.s32.totalorder %s119, %s120
      %p129 = scmp.eq.s32.totalorder %s25, 0
      %p130 = por %p128, %p129
      %p131 = scmp.ne.s32.totalorder %s119, %s120
      %p132 = scmp.eq.s32.totalorder %s26, 1
      %p133 = por %p131, %p132
      %p135 = scmp.ne.s32.totalorder %s120, %s134
      %p136 = scmp.eq.s32.totalorder %s26, 0
      %p137 = por %p135, %p136
      %s138 = ssub.s32 %s20, %s27
      %p139 = scmp.eq.s32.totalorder %s138, 0
      %s141 = sadd.s32 %s140, 1
      %s142 = scalar_select %p139, %s140, %s141
      %p145 = pneg %p139
      %p146 = scmp.eq.s32.totalorder %s20, 1
      %p147 = por %p145, %p146
      %p148 = scmp.ne.s32.totalorder %s140, %s143
      %p149 = scmp.eq.s32.totalorder %s20, 0
      %p150 = por %p148, %p149
      %p151 = scmp.ne.s32.totalorder %s140, %s143
      %p152 = scmp.eq.s32.totalorder %s25, 1
      %p153 = por %p151, %p152
      %p154 = scmp.ne.s32.totalorder %s143, %s144
      %p155 = scmp.eq.s32.totalorder %s25, 0
      %p156 = por %p154, %p155
      %p157 = scmp.ne.s32.totalorder %s143, %s144
      %p158 = scmp.eq.s32.totalorder %s26, 1
      %p159 = por %p157, %p158
      %p161 = scmp.ne.s32.totalorder %s144, %s160
      %p162 = scmp.eq.s32.totalorder %s26, 0
      %p163 = por %p161, %p162
      %s164 = ssub.s32 %s20, %s27
      %p165 = scmp.eq.s32.totalorder %s164, 0
      %s167 = sadd.s32 %s166, 1
      %s168 = scalar_select %p165, %s166, %s167
      %p171 = pneg %p165
      %p172 = scmp.eq.s32.totalorder %s20, 1
      %p173 = por %p171, %p172
      %p174 = scmp.ne.s32.totalorder %s166, %s169
      %p175 = scmp.eq.s32.totalorder %s20, 0
      %p176 = por %p174, %p175
      %p177 = scmp.ne.s32.totalorder %s166, %s169
      %p178 = scmp.eq.s32.totalorder %s25, 1
      %p179 = por %p177, %p178
      %p180 = scmp.ne.s32.totalorder %s169, %s170
      %p181 = scmp.eq.s32.totalorder %s25, 0
      %p182 = por %p180, %p181
      %p183 = scmp.ne.s32.totalorder %s169, %s170
      %p184 = scmp.eq.s32.totalorder %s26, 1
      %p185 = por %p183, %p184
      %p187 = scmp.ne.s32.totalorder %s170, %s186
      %p188 = scmp.eq.s32.totalorder %s26, 0
      %p189 = por %p187, %p188
      %s190 = ssub.s32 %s20, %s27
      %p191 = scmp.eq.s32.totalorder %s190, 0
      %s193 = sadd.s32 %s192, 1
      %s194 = scalar_select %p191, %s192, %s193
      %p197 = pneg %p191
      %p198 = scmp.eq.s32.totalorder %s20, 1
      %p199 = por %p197, %p198
      %p200 = scmp.ne.s32.totalorder %s192, %s195
      %p201 = scmp.eq.s32.totalorder %s20, 0
      %p202 = por %p200, %p201
      %p203 = scmp.ne.s32.totalorder %s192, %s195
      %p204 = scmp.eq.s32.totalorder %s25, 1
      %p205 = por %p203, %p204
      %p206 = scmp.ne.s32.totalorder %s195, %s196
      %p207 = scmp.eq.s32.totalorder %s25, 0
      %p208 = por %p206, %p207
      %p209 = scmp.ne.s32.totalorder %s195, %s196
      %p210 = scmp.eq.s32.totalorder %s26, 1
      %p211 = por %p209, %p210
      %p213 = scmp.ne.s32.totalorder %s196, %s212
      %p214 = scmp.eq.s32.totalorder %s26, 0
      %p215 = por %p213, %p214
      %p216 = scmp.le.s32.totalorder 1, %s20
      %p217 = scmp.lt.s32.totalorder %s20, 3
      %p218 = pnand %p216, %p217
      %p219 = pneg %p218
      // Predicated region
      $region9: #{skip_feat_class_decoder_fwd_flat.1} parent=5 // pred_check
        _
      $region10: #{skip_feat_class_decoder_fwd_flat.1} parent=5 // pred_check_branch
        %221 = sbr.rel (%p218) target = $region12
      $region11: #{skip_feat_class_decoder_fwd_flat.1} parent=5 // pred_region
        %s222 = ssub.s32 %s20, 1
        // Predicated region
        $region13: #{skip_feat_class_decoder_fwd_flat.1} parent=11 // pred_check
          %p223 = pneg %p67
        $region14: #{skip_feat_class_decoder_fwd_flat.1} parent=11 // pred_check_branch
          %225 = sbr.rel (%p223) target = $region16
        $region15: #{skip_feat_class_decoder_fwd_flat.1} parent=11 // pred_region
          _
        $region16: #{skip_feat_class_decoder_fwd_flat.1} parent=11 // pred_fallthru
          _
        // Predicated region
        $region17: #{skip_feat_class_decoder_fwd_flat.1} parent=11 // pred_check
          %p226 = pneg %p88
        $region18: #{skip_feat_class_decoder_fwd_flat.1} parent=11 // pred_check_branch
          %228 = sbr.rel (%p226) target = $region20
        $region19: #{skip_feat_class_decoder_fwd_flat.1} parent=11 // pred_region
          _
        $region20: #{skip_feat_class_decoder_fwd_flat.1} parent=11 // pred_fallthru
          _
        // Predicated region
        $region21: #{skip_feat_class_decoder_fwd_flat.1} parent=11 // pred_check
          %p229 = pneg %p109
        $region22: #{skip_feat_class_decoder_fwd_flat.1} parent=11 // pred_check_branch
          %231 = sbr.rel (%p229) target = $region24
        $region23: #{skip_feat_class_decoder_fwd_flat.1} parent=11 // pred_region
          _
        $region24: #{skip_feat_class_decoder_fwd_flat.1} parent=11 // pred_fallthru
          _
        // Predicated region
        $region25: #{skip_feat_class_decoder_fwd_flat.1} parent=11 // pred_check
          %p232 = pneg %p130
        $region26: #{skip_feat_class_decoder_fwd_flat.1} parent=11 // pred_check_branch
          %234 = sbr.rel (%p232) target = $region28
        $region27: #{skip_feat_class_decoder_fwd_flat.1} parent=11 // pred_region
          _
        $region28: #{skip_feat_class_decoder_fwd_flat.1} parent=11 // pred_fallthru
          _
      $region12: #{skip_feat_class_decoder_fwd_flat.1} parent=5 // pred_fallthru
        _
      %p235 = scmp.lt.s32.totalorder %s20, 2
      // Predicated region
      $region29: #{skip_feat_class_decoder_fwd_flat.1} parent=5 // pred_check
        %p236 = pneg %p235
      $region30: #{skip_feat_class_decoder_fwd_flat.1} parent=5 // pred_check_branch
        %238 = sbr.rel (%p236) target = $region32
      $region31: #{skip_feat_class_decoder_fwd_flat.1} parent=5 // pred_region
        // Predicated region
        $region33: #{skip_feat_class_decoder_fwd_flat.1} parent=31 // pred_check
          %p239 = pneg %p40
        $region34: #{skip_feat_class_decoder_fwd_flat.1} parent=31 // pred_check_branch
          %241 = sbr.rel (%p239) target = $region36
        $region35: #{skip_feat_class_decoder_fwd_flat.1} parent=31 // pred_region
          %s242 = smul.u32 64, %s20
          %p243 = scmp.lt.s32.totalorder %s242, 127
          %s244 = scalar_select %p243, %s242, 127
          %s245 = smul.addr %s244, 4
          %s246 = scalar_lea.vmem %s0, %s245
          %s247 = smul.u32 64, %s20
        $region36: #{skip_feat_class_decoder_fwd_flat.1} parent=31 // pred_fallthru
          _
      $region32: #{skip_feat_class_decoder_fwd_flat.1} parent=5 // pred_fallthru
        _
      %p248 = scmp.le.s32.totalorder 1, %s20
      %p249 = scmp.lt.s32.totalorder %s20, 3
      %p250 = pnand %p248, %p249
      %p251 = pneg %p250
      // Predicated region
      $region37: #{skip_feat_class_decoder_fwd_flat.1} parent=5 // pred_check
        _
      $region38: #{skip_feat_class_decoder_fwd_flat.1} parent=5 // pred_check_branch
        %253 = sbr.rel (%p250) target = $region40
      $region39: #{skip_feat_class_decoder_fwd_flat.1} parent=5 // pred_region
        %s254 = ssub.s32 %s20, 1
        %s255 = smul.u32 64, %s25
        %p256 = scmp.lt.s32.totalorder %s255, 127
        %s257 = scalar_select %p256, %s255, 127
        %s258 = smul.addr %s257, 4
        %s259 = scalar_lea.vmem %s0, %s258
        %p260 = pneg %p46
        %p261 = pneg %p43
        %p262 = pneg %p67
        %p263 = pneg %p64
        %p264 = pneg %p88
        %p265 = pneg %p85
        %p266 = pneg %p109
        %p267 = pneg %p106
        %p268 = pneg %p130
        %p269 = pneg %p127
        %p270 = pneg %p156
        %p271 = pneg %p153
        %s272 = sand.u32 %s143, 1
        %s273 = scalar_lea.sflag [#allocation3], %s272
        %s274 = sand.u32 %s143, 1
        %s275 = smul.addr %s274, 1536
        %s276 = scalar_lea.vmem [#allocation2], %s275
        %p277 = pneg %p182
        %p278 = pneg %p179
        %s279 = sand.u32 %s25, 1
        %s280 = scalar_lea.sflag [#allocation5], %s279
        %s281 = sand.u32 %s169, 1
        %s282 = smul.addr %s281, 1024
        %s283 = scalar_lea.vmem [#allocation4], %s282
        %p284 = pneg %p208
        %p285 = pneg %p205
        %s286 = sand.u32 %s25, 1
        %s287 = scalar_lea.sflag [#allocation5], %s286
        %s288 = sand.u32 %s195, 1
        %s289 = smul.addr %s288, 3072
        %s290 = scalar_lea.vmem [#allocation6], %s289
        %s291 = smul.u32 64, %s25
        %p292 = scmp.lt.s32.totalorder %s291, 127
        %s293 = scalar_select %p292, %s291, 127
        %s294 = smul.addr %s293, 4
        %s295 = scalar_lea.vmem %s0, %s294
        %s296 = smul.u32 64, %s25
        %s297 = smul.u32 64, %s25
        %s298 = smul.u32 64, %s25
        %s299 = smul.u32 64, %s25
        %v300 = vld [vmem:[%s295] sm:$0xf]
        %v301 = vld [vmem:[%s295 + $0x4] sm:$0xf]
        %v302 = vld [vmem:[%s295 + $0x8] sm:$0xf]
        %v303 = vld [vmem:[%s295 + $0xc] sm:$0xf]
        %v304 = vld [vmem:[%s295 + $0x10] sm:$0xf]
        %v305 = vld [vmem:[%s295 + $0x14] sm:$0xf]
        %v306 = vld [vmem:[%s295 + $0x18] sm:$0xf]
        %v307 = vld [vmem:[%s295 + $0x1c] sm:$0xf]
        %v308 = vld [vmem:[%s295 + $0x20] sm:$0xf]
        %v309 = vld [vmem:[%s295 + $0x24] sm:$0xf]
        %v310 = vld [vmem:[%s295 + $0x28] sm:$0xf]
        %v311 = vld [vmem:[%s295 + $0x2c] sm:$0xf]
        %v312 = vld [vmem:[%s295 + $0x30] sm:$0xf]
        %v313 = vld [vmem:[%s295 + $0x34] sm:$0xf]
        %v314 = vld [vmem:[%s295 + $0x38] sm:$0xf]
        %v315 = vld [vmem:[%s295 + $0x3c] sm:$0xf]
        %v316 = vld [vmem:[%s295 + $0x40] sm:$0xf]
        %v317 = vld [vmem:[%s295 + $0x44] sm:$0xf]
        %v318 = vld [vmem:[%s295 + $0x48] sm:$0xf]
        %v319 = vld [vmem:[%s295 + $0x4c] sm:$0xf]
        %v320 = vld [vmem:[%s295 + $0x50] sm:$0xf]
        %v321 = vld [vmem:[%s295 + $0x54] sm:$0xf]
        %v322 = vld [vmem:[%s295 + $0x58] sm:$0xf]
        %v323 = vld [vmem:[%s295 + $0x5c] sm:$0xf]
        %v324 = vld [vmem:[%s295 + $0x60] sm:$0xf]
        %v325 = vld [vmem:[%s295 + $0x64] sm:$0xf]
        %v326 = vld [vmem:[%s295 + $0x68] sm:$0xf]
        %v327 = vld [vmem:[%s295 + $0x6c] sm:$0xf]
        %v328 = vld [vmem:[%s295 + $0x70] sm:$0xf]
        %v329 = vld [vmem:[%s295 + $0x74] sm:$0xf]
        %v330 = vld [vmem:[%s295 + $0x78] sm:$0xf]
        %v331 = vld [vmem:[%s295 + $0x7c] sm:$0xf]
        %v332 = vld [vmem:[%s295 + $0x80] sm:$0xf]
        %v333 = vld [vmem:[%s295 + $0x84] sm:$0xf]
        %v334 = vld [vmem:[%s295 + $0x88] sm:$0xf]
        %v335 = vld [vmem:[%s295 + $0x8c] sm:$0xf]
        %v336 = vld [vmem:[%s295 + $0x90] sm:$0xf]
        %v337 = vld [vmem:[%s295 + $0x94] sm:$0xf]
        %v338 = vld [vmem:[%s295 + $0x98] sm:$0xf]
        %v339 = vld [vmem:[%s295 + $0x9c] sm:$0xf]
        %v340 = vld [vmem:[%s295 + $0xa0] sm:$0xf]
        %v341 = vld [vmem:[%s295 + $0xa4] sm:$0xf]
        %v342 = vld [vmem:[%s295 + $0xa8] sm:$0xf]
        %v343 = vld [vmem:[%s295 + $0xac] sm:$0xf]
        %v344 = vld [vmem:[%s295 + $0xb0] sm:$0xf]
        %v345 = vld [vmem:[%s295 + $0xb4] sm:$0xf]
        %v346 = vld [vmem:[%s295 + $0xb8] sm:$0xf]
        %v347 = vld [vmem:[%s295 + $0xbc] sm:$0xf]
        %v348 = vld [vmem:[%s295 + $0xc0] sm:$0xf]
        %v349 = vld [vmem:[%s295 + $0xc4] sm:$0xf]
        %v350 = vld [vmem:[%s295 + $0xc8] sm:$0xf]
        %v351 = vld [vmem:[%s295 + $0xcc] sm:$0xf]
        %v352 = vld [vmem:[%s295 + $0xd0] sm:$0xf]
        %v353 = vld [vmem:[%s295 + $0xd4] sm:$0xf]
        %v354 = vld [vmem:[%s295 + $0xd8] sm:$0xf]
        %v355 = vld [vmem:[%s295 + $0xdc] sm:$0xf]
        %v356 = vld [vmem:[%s295 + $0xe0] sm:$0xf]
        %v357 = vld [vmem:[%s295 + $0xe4] sm:$0xf]
        %v358 = vld [vmem:[%s295 + $0xe8] sm:$0xf]
        %v359 = vld [vmem:[%s295 + $0xec] sm:$0xf]
        %v360 = vld [vmem:[%s295 + $0xf0] sm:$0xf]
        %v361 = vld [vmem:[%s295 + $0xf4] sm:$0xf]
        %v362 = vld [vmem:[%s295 + $0xf8] sm:$0xf]
        %v363 = vld [vmem:[%s295 + $0xfc] sm:$0xf]
        %v364 = vld [vmem:[%s1] sm:$0xff]
        %v365 = vld [vmem:[%s1 + $0x8] sm:$0xff]
        %v366 = vld [vmem:[%s1 + $0x10] sm:$0xff]
        %v367 = vld [vmem:[%s1 + $0x18] sm:$0xff]
        %v368 = vld [vmem:[%s1 + $0x20] sm:$0xff]
        %v369 = vld [vmem:[%s1 + $0x28] sm:$0xff]
        %v370 = vld [vmem:[%s1 + $0x30] sm:$0xff]
        %v371 = vld [vmem:[%s1 + $0x38] sm:$0xff]
        %v372 = vld [vmem:[%s1 + $0x40] sm:$0xff]
        %v373 = vld [vmem:[%s1 + $0x48] sm:$0xff]
        %v374 = vld [vmem:[%s1 + $0x50] sm:$0xff]
        %v375 = vld [vmem:[%s1 + $0x58] sm:$0xff]
        %v376 = vld [vmem:[%s1 + $0x60] sm:$0xff]
        %v377 = vld [vmem:[%s1 + $0x68] sm:$0xff]
        %v378 = vld [vmem:[%s1 + $0x70] sm:$0xff]
        %v379 = vld [vmem:[%s1 + $0x78] sm:$0xff]
        %v380 = vld [vmem:[%s2] sm:$0x3]
        %v382 = vperm.slane %v380, 0
        %v383 = vperm.slane %v380, 1
        %v450 = vunpack.c.l.b16 %v300
        %v451 = vunpack.c.l.b16 %v301
        %v452 = vunpack.c.l.b16 %v302
        %v453 = vunpack.c.l.b16 %v303
        %v454 = vunpack.c.l.b16 %v304
        %v455 = vunpack.c.l.b16 %v305
        %v456 = vunpack.c.l.b16 %v306
        %v457 = vunpack.c.l.b16 %v307
        %v458 = vunpack.c.l.b16 %v308
        %v459 = vunpack.c.l.b16 %v309
        %v460 = vunpack.c.l.b16 %v310
        %v461 = vunpack.c.l.b16 %v311
        %v462 = vunpack.c.l.b16 %v312
        %v463 = vunpack.c.l.b16 %v313
        %v464 = vunpack.c.l.b16 %v314
        %v465 = vunpack.c.l.b16 %v315
        %v466 = vunpack.c.l.b16 %v316
        %v467 = vunpack.c.l.b16 %v317
        %v468 = vunpack.c.l.b16 %v318
        %v469 = vunpack.c.l.b16 %v319
        %v470 = vunpack.c.l.b16 %v320
        %v471 = vunpack.c.l.b16 %v321
        %v472 = vunpack.c.l.b16 %v322
        %v473 = vunpack.c.l.b16 %v323
        %v474 = vunpack.c.l.b16 %v324
        %v475 = vunpack.c.l.b16 %v325
        %v476 = vunpack.c.l.b16 %v326
        %v477 = vunpack.c.l.b16 %v327
        %v478 = vunpack.c.l.b16 %v328
        %v479 = vunpack.c.l.b16 %v329
        %v480 = vunpack.c.l.b16 %v330
        %v481 = vunpack.c.l.b16 %v331
        %v482 = vunpack.c.l.b16 %v332
        %v483 = vunpack.c.l.b16 %v333
        %v484 = vunpack.c.l.b16 %v334
        %v485 = vunpack.c.l.b16 %v335
        %v486 = vunpack.c.l.b16 %v336
        %v487 = vunpack.c.l.b16 %v337
        %v488 = vunpack.c.l.b16 %v338
        %v489 = vunpack.c.l.b16 %v339
        %v490 = vunpack.c.l.b16 %v340
        %v491 = vunpack.c.l.b16 %v341
        %v492 = vunpack.c.l.b16 %v342
        %v493 = vunpack.c.l.b16 %v343
        %v494 = vunpack.c.l.b16 %v344
        %v495 = vunpack.c.l.b16 %v345
        %v496 = vunpack.c.l.b16 %v346
        %v497 = vunpack.c.l.b16 %v347
        %v498 = vunpack.c.l.b16 %v348
        %v499 = vunpack.c.l.b16 %v349
        %v500 = vunpack.c.l.b16 %v350
        %v501 = vunpack.c.l.b16 %v351
        %v502 = vunpack.c.l.b16 %v352
        %v503 = vunpack.c.l.b16 %v353
        %v504 = vunpack.c.l.b16 %v354
        %v505 = vunpack.c.l.b16 %v355
        %v506 = vunpack.c.l.b16 %v356
        %v507 = vunpack.c.l.b16 %v357
        %v508 = vunpack.c.l.b16 %v358
        %v509 = vunpack.c.l.b16 %v359
        %v510 = vunpack.c.l.b16 %v360
        %v511 = vunpack.c.l.b16 %v361
        %v512 = vunpack.c.l.b16 %v362
        %v513 = vunpack.c.l.b16 %v363
        %v514 = vpack.c.b16 %v451, %v450
        %v515 = vpack.c.b16 %v453, %v452
        %v516 = vpack.c.b16 %v455, %v454
        %v517 = vpack.c.b16 %v457, %v456
        %v518 = vpack.c.b16 %v459, %v458
        %v519 = vpack.c.b16 %v461, %v460
        %v520 = vpack.c.b16 %v463, %v462
        %v521 = vpack.c.b16 %v465, %v464
        %v522 = vpack.c.b16 %v467, %v466
        %v523 = vpack.c.b16 %v469, %v468
        %v524 = vpack.c.b16 %v471, %v470
        %v525 = vpack.c.b16 %v473, %v472
        %v526 = vpack.c.b16 %v475, %v474
        %v527 = vpack.c.b16 %v477, %v476
        %v528 = vpack.c.b16 %v479, %v478
        %v529 = vpack.c.b16 %v481, %v480
        %v530 = vpack.c.b16 %v483, %v482
        %v531 = vpack.c.b16 %v485, %v484
        %v532 = vpack.c.b16 %v487, %v486
        %v533 = vpack.c.b16 %v489, %v488
        %v534 = vpack.c.b16 %v491, %v490
        %v535 = vpack.c.b16 %v493, %v492
        %v536 = vpack.c.b16 %v495, %v494
        %v537 = vpack.c.b16 %v497, %v496
        %v538 = vpack.c.b16 %v499, %v498
        %v539 = vpack.c.b16 %v501, %v500
        %v540 = vpack.c.b16 %v503, %v502
        %v541 = vpack.c.b16 %v505, %v504
        %v542 = vpack.c.b16 %v507, %v506
        %v543 = vpack.c.b16 %v509, %v508
        %v544 = vpack.c.b16 %v511, %v510
        %v545 = vpack.c.b16 %v513, %v512
        %v594 = vunpack.c.l.b16 %v364
        %v595 = vunpack.c.h.b16 %v364
        %v596 = vunpack.c.l.b16 %v365
        %v597 = vunpack.c.h.b16 %v365
        %v598 = vunpack.c.l.b16 %v366
        %v599 = vunpack.c.h.b16 %v366
        %v600 = vunpack.c.l.b16 %v367
        %v601 = vunpack.c.h.b16 %v367
        %v602 = vunpack.c.l.b16 %v368
        %v603 = vunpack.c.h.b16 %v368
        %v604 = vunpack.c.l.b16 %v369
        %v605 = vunpack.c.h.b16 %v369
        %v606 = vunpack.c.l.b16 %v370
        %v607 = vunpack.c.h.b16 %v370
        %v608 = vunpack.c.l.b16 %v371
        %v609 = vunpack.c.h.b16 %v371
        %v610 = vunpack.c.l.b16 %v372
        %v611 = vunpack.c.h.b16 %v372
        %v612 = vunpack.c.l.b16 %v373
        %v613 = vunpack.c.h.b16 %v373
        %v614 = vunpack.c.l.b16 %v374
        %v615 = vunpack.c.h.b16 %v374
        %v616 = vunpack.c.l.b16 %v375
        %v617 = vunpack.c.h.b16 %v375
        %v618 = vunpack.c.l.b16 %v376
        %v619 = vunpack.c.h.b16 %v376
        %v620 = vunpack.c.l.b16 %v377
        %v621 = vunpack.c.h.b16 %v377
        %v622 = vunpack.c.l.b16 %v378
        %v623 = vunpack.c.h.b16 %v378
        %v624 = vunpack.c.l.b16 %v379
        %v625 = vunpack.c.h.b16 %v379
        %v626 = vpack.c.b16 %v596, %v594
        %v627 = vpack.c.b16 %v597, %v595
        %v628 = vpack.c.b16 %v600, %v598
        %v629 = vpack.c.b16 %v601, %v599
        %v630 = vpack.c.b16 %v604, %v602
        %v631 = vpack.c.b16 %v605, %v603
        %v632 = vpack.c.b16 %v608, %v606
        %v633 = vpack.c.b16 %v609, %v607
        %v634 = vpack.c.b16 %v612, %v610
        %v635 = vpack.c.b16 %v613, %v611
        %v636 = vpack.c.b16 %v616, %v614
        %v637 = vpack.c.b16 %v617, %v615
        %v638 = vpack.c.b16 %v620, %v618
        %v639 = vpack.c.b16 %v621, %v619
        %v640 = vpack.c.b16 %v624, %v622
        %v641 = vpack.c.b16 %v625, %v623
        %658 = vmatpush.bf16.msra.mxu0 %v640
        %659 = vmatpush.bf16.msra.mxu0 %v638
        %660 = vmatpush.bf16.msra.mxu0 %v636
        %661 = vmatpush.bf16.msra.mxu0 %v634
        %662 = vmatpush.bf16.msra.mxu0 %v632
        %663 = vmatpush.bf16.msra.mxu0 %v630
        %664 = vmatpush.bf16.msra.mxu0 %v628
        %665 = vmatpush.bf16.msra.mxu0 %v626
        %666 = vmatmul.bf16.gmra.mxu0 %v514
        %v667 = vpop.f32.mrf.mxu0
        %v668 = vadd.f32 %v382, %v667
        %v669 = vpop.f32.mrf.mxu0
        %v670 = vadd.f32 %v382, %v669
        %671 = vmatmul.bf16.gmra.mxu0 %v515
        %v672 = vpop.f32.mrf.mxu0
        %v673 = vadd.f32 %v382, %v672
        %v674 = vpop.f32.mrf.mxu0
        %v675 = vadd.f32 %v382, %v674
        %676 = vmatmul.bf16.gmra.mxu0 %v516
        %v677 = vpop.f32.mrf.mxu0
        %v678 = vadd.f32 %v382, %v677
        %v679 = vpop.f32.mrf.mxu0
        %v680 = vadd.f32 %v382, %v679
        %681 = vmatmul.bf16.gmra.mxu0 %v517
        %v682 = vpop.f32.mrf.mxu0
        %v683 = vadd.f32 %v382, %v682
        %v684 = vpop.f32.mrf.mxu0
        %v685 = vadd.f32 %v382, %v684
        %686 = vmatmul.bf16.gmra.mxu0 %v518
        %v687 = vpop.f32.mrf.mxu0
        %v688 = vadd.f32 %v382, %v687
        %v689 = vpop.f32.mrf.mxu0
        %v690 = vadd.f32 %v382, %v689
        %691 = vmatmul.bf16.gmra.mxu0 %v519
        %v692 = vpop.f32.mrf.mxu0
        %v693 = vadd.f32 %v382, %v692
        %v694 = vpop.f32.mrf.mxu0
        %v695 = vadd.f32 %v382, %v694
        %696 = vmatmul.bf16.gmra.mxu0 %v520
        %v697 = vpop.f32.mrf.mxu0
        %v698 = vadd.f32 %v382, %v697
        %v699 = vpop.f32.mrf.mxu0
        %v700 = vadd.f32 %v382, %v699
        %701 = vmatmul.bf16.gmra.mxu0 %v521
        %v702 = vpop.f32.mrf.mxu0
        %v703 = vadd.f32 %v382, %v702
        %v704 = vpop.f32.mrf.mxu0
        %v705 = vadd.f32 %v382, %v704
        %706 = vmatmul.bf16.gmra.mxu0 %v522
        %v707 = vpop.f32.mrf.mxu0
        %v708 = vadd.f32 %v382, %v707
        %v709 = vpop.f32.mrf.mxu0
        %v710 = vadd.f32 %v382, %v709
        %711 = vmatmul.bf16.gmra.mxu0 %v523
        %v712 = vpop.f32.mrf.mxu0
        %v713 = vadd.f32 %v382, %v712
        %v714 = vpop.f32.mrf.mxu0
        %v715 = vadd.f32 %v382, %v714
        %716 = vmatmul.bf16.gmra.mxu0 %v524
        %v717 = vpop.f32.mrf.mxu0
        %v718 = vadd.f32 %v382, %v717
        %v719 = vpop.f32.mrf.mxu0
        %v720 = vadd.f32 %v382, %v719
        %721 = vmatmul.bf16.gmra.mxu0 %v525
        %v722 = vpop.f32.mrf.mxu0
        %v723 = vadd.f32 %v382, %v722
        %v724 = vpop.f32.mrf.mxu0
        %v725 = vadd.f32 %v382, %v724
        %726 = vmatmul.bf16.gmra.mxu0 %v526
        %v727 = vpop.f32.mrf.mxu0
        %v728 = vadd.f32 %v382, %v727
        %v729 = vpop.f32.mrf.mxu0
        %v730 = vadd.f32 %v382, %v729
        %731 = vmatmul.bf16.gmra.mxu0 %v527
        %v732 = vpop.f32.mrf.mxu0
        %v733 = vadd.f32 %v382, %v732
        %v734 = vpop.f32.mrf.mxu0
        %v735 = vadd.f32 %v382, %v734
        %736 = vmatmul.bf16.gmra.mxu0 %v528
        %v737 = vpop.f32.mrf.mxu0
        %v738 = vadd.f32 %v382, %v737
        %v739 = vpop.f32.mrf.mxu0
        %v740 = vadd.f32 %v382, %v739
        %741 = vmatmul.bf16.gmra.mxu0 %v529
        %v742 = vpop.f32.mrf.mxu0
        %v743 = vadd.f32 %v382, %v742
        %v744 = vpop.f32.mrf.mxu0
        %v745 = vadd.f32 %v382, %v744
        %746 = vmatmul.bf16.gmra.mxu0 %v530
        %v747 = vpop.f32.mrf.mxu0
        %v748 = vadd.f32 %v382, %v747
        %v749 = vpop.f32.mrf.mxu0
        %v750 = vadd.f32 %v382, %v749
        %751 = vmatmul.bf16.gmra.mxu0 %v531
        %v752 = vpop.f32.mrf.mxu0
        %v753 = vadd.f32 %v382, %v752
        %v754 = vpop.f32.mrf.mxu0
        %v755 = vadd.f32 %v382, %v754
        %756 = vmatmul.bf16.gmra.mxu0 %v532
        %v757 = vpop.f32.mrf.mxu0
        %v758 = vadd.f32 %v382, %v757
        %v759 = vpop.f32.mrf.mxu0
        %v760 = vadd.f32 %v382, %v759
        %761 = vmatmul.bf16.gmra.mxu0 %v533
        %v762 = vpop.f32.mrf.mxu0
        %v763 = vadd.f32 %v382, %v762
        %v764 = vpop.f32.mrf.mxu0
        %v765 = vadd.f32 %v382, %v764
        %766 = vmatmul.bf16.gmra.mxu0 %v534
        %v767 = vpop.f32.mrf.mxu0
        %v768 = vadd.f32 %v382, %v767
        %v769 = vpop.f32.mrf.mxu0
        %v770 = vadd.f32 %v382, %v769
        %771 = vmatmul.bf16.gmra.mxu0 %v535
        %v772 = vpop.f32.mrf.mxu0
        %v773 = vadd.f32 %v382, %v772
        %v774 = vpop.f32.mrf.mxu0
        %v775 = vadd.f32 %v382, %v774
        %776 = vmatmul.bf16.gmra.mxu0 %v536
        %v777 = vpop.f32.mrf.mxu0
        %v778 = vadd.f32 %v382, %v777
        %v779 = vpop.f32.mrf.mxu0
        %v780 = vadd.f32 %v382, %v779
        %781 = vmatmul.bf16.gmra.mxu0 %v537
        %v782 = vpop.f32.mrf.mxu0
        %v783 = vadd.f32 %v382, %v782
        %v784 = vpop.f32.mrf.mxu0
        %v785 = vadd.f32 %v382, %v784
        %786 = vmatmul.bf16.gmra.mxu0 %v538
        %v787 = vpop.f32.mrf.mxu0
        %v788 = vadd.f32 %v382, %v787
        %v789 = vpop.f32.mrf.mxu0
        %v790 = vadd.f32 %v382, %v789
        %791 = vmatmul.bf16.gmra.mxu0 %v539
        %v792 = vpop.f32.mrf.mxu0
        %v793 = vadd.f32 %v382, %v792
        %v794 = vpop.f32.mrf.mxu0
        %v795 = vadd.f32 %v382, %v794
        %796 = vmatmul.bf16.gmra.mxu0 %v540
        %v797 = vpop.f32.mrf.mxu0
        %v798 = vadd.f32 %v382, %v797
        %v799 = vpop.f32.mrf.mxu0
        %v800 = vadd.f32 %v382, %v799
        %801 = vmatmul.bf16.gmra.mxu0 %v541
        %v802 = vpop.f32.mrf.mxu0
        %v803 = vadd.f32 %v382, %v802
        %v804 = vpop.f32.mrf.mxu0
        %v805 = vadd.f32 %v382, %v804
        %806 = vmatmul.bf16.gmra.mxu0 %v542
        %v807 = vpop.f32.mrf.mxu0
        %v808 = vadd.f32 %v382, %v807
        %v809 = vpop.f32.mrf.mxu0
        %v810 = vadd.f32 %v382, %v809
        %811 = vmatmul.bf16.gmra.mxu0 %v543
        %v812 = vpop.f32.mrf.mxu0
        %v813 = vadd.f32 %v382, %v812
        %v814 = vpop.f32.mrf.mxu0
        %v815 = vadd.f32 %v382, %v814
        %816 = vmatmul.bf16.gmra.mxu0 %v544
        %v817 = vpop.f32.mrf.mxu0
        %v818 = vadd.f32 %v382, %v817
        %v819 = vpop.f32.mrf.mxu0
        %v820 = vadd.f32 %v382, %v819
        %821 = vmatmul.bf16.gmra.mxu0 %v545
        %v822 = vpop.f32.mrf.mxu0
        %v823 = vadd.f32 %v382, %v822
        %v824 = vpop.f32.mrf.mxu0
        %v825 = vadd.f32 %v382, %v824
        %826 = vdwg.mxu0
        %827 = vmatpush.bf16.msra.mxu0 %v641
        %828 = vmatpush.bf16.msra.mxu0 %v639
        %829 = vmatpush.bf16.msra.mxu0 %v637
        %830 = vmatpush.bf16.msra.mxu0 %v635
        %831 = vmatpush.bf16.msra.mxu0 %v633
        %832 = vmatpush.bf16.msra.mxu0 %v631
        %833 = vmatpush.bf16.msra.mxu0 %v629
        %834 = vmatpush.bf16.msra.mxu0 %v627
        %835 = vmatmul.bf16.gmra.mxu0 %v514
        %v836 = vpop.f32.mrf.mxu0
        %v837 = vadd.f32 %v383, %v836
        %v838 = vpop.f32.mrf.mxu0
        %v839 = vadd.f32 %v383, %v838
        %840 = vmatmul.bf16.gmra.mxu0 %v515
        %v841 = vpop.f32.mrf.mxu0
        %v842 = vadd.f32 %v383, %v841
        %v843 = vpop.f32.mrf.mxu0
        %v844 = vadd.f32 %v383, %v843
        %845 = vmatmul.bf16.gmra.mxu0 %v516
        %v846 = vpop.f32.mrf.mxu0
        %v847 = vadd.f32 %v383, %v846
        %v848 = vpop.f32.mrf.mxu0
        %v849 = vadd.f32 %v383, %v848
        %850 = vmatmul.bf16.gmra.mxu0 %v517
        %v851 = vpop.f32.mrf.mxu0
        %v852 = vadd.f32 %v383, %v851
        %v853 = vpop.f32.mrf.mxu0
        %v854 = vadd.f32 %v383, %v853
        %855 = vmatmul.bf16.gmra.mxu0 %v518
        %v856 = vpop.f32.mrf.mxu0
        %v857 = vadd.f32 %v383, %v856
        %v858 = vpop.f32.mrf.mxu0
        %v859 = vadd.f32 %v383, %v858
        %860 = vmatmul.bf16.gmra.mxu0 %v519
        %v861 = vpop.f32.mrf.mxu0
        %v862 = vadd.f32 %v383, %v861
        %v863 = vpop.f32.mrf.mxu0
        %v864 = vadd.f32 %v383, %v863
        %865 = vmatmul.bf16.gmra.mxu0 %v520
        %v866 = vpop.f32.mrf.mxu0
        %v867 = vadd.f32 %v383, %v866
        %v868 = vpop.f32.mrf.mxu0
        %v869 = vadd.f32 %v383, %v868
        %870 = vmatmul.bf16.gmra.mxu0 %v521
        %v871 = vpop.f32.mrf.mxu0
        %v872 = vadd.f32 %v383, %v871
        %v873 = vpop.f32.mrf.mxu0
        %v874 = vadd.f32 %v383, %v873
        %875 = vmatmul.bf16.gmra.mxu0 %v522
        %v876 = vpop.f32.mrf.mxu0
        %v877 = vadd.f32 %v383, %v876
        %v878 = vpop.f32.mrf.mxu0
        %v879 = vadd.f32 %v383, %v878
        %880 = vmatmul.bf16.gmra.mxu0 %v523
        %v881 = vpop.f32.mrf.mxu0
        %v882 = vadd.f32 %v383, %v881
        %v883 = vpop.f32.mrf.mxu0
        %v884 = vadd.f32 %v383, %v883
        %885 = vmatmul.bf16.gmra.mxu0 %v524
        %v886 = vpop.f32.mrf.mxu0
        %v887 = vadd.f32 %v383, %v886
        %v888 = vpop.f32.mrf.mxu0
        %v889 = vadd.f32 %v383, %v888
        %890 = vmatmul.bf16.gmra.mxu0 %v525
        %v891 = vpop.f32.mrf.mxu0
        %v892 = vadd.f32 %v383, %v891
        %v893 = vpop.f32.mrf.mxu0
        %v894 = vadd.f32 %v383, %v893
        %895 = vmatmul.bf16.gmra.mxu0 %v526
        %v896 = vpop.f32.mrf.mxu0
        %v897 = vadd.f32 %v383, %v896
        %v898 = vpop.f32.mrf.mxu0
        %v899 = vadd.f32 %v383, %v898
        %900 = vmatmul.bf16.gmra.mxu0 %v527
        %v901 = vpop.f32.mrf.mxu0
        %v902 = vadd.f32 %v383, %v901
        %v903 = vpop.f32.mrf.mxu0
        %v904 = vadd.f32 %v383, %v903
        %905 = vmatmul.bf16.gmra.mxu0 %v528
        %v906 = vpop.f32.mrf.mxu0
        %v907 = vadd.f32 %v383, %v906
        %v908 = vpop.f32.mrf.mxu0
        %v909 = vadd.f32 %v383, %v908
        %910 = vmatmul.bf16.gmra.mxu0 %v529
        %v911 = vpop.f32.mrf.mxu0
        %v912 = vadd.f32 %v383, %v911
        %v913 = vpop.f32.mrf.mxu0
        %v914 = vadd.f32 %v383, %v913
        %915 = vmatmul.bf16.gmra.mxu0 %v530
        %v916 = vpop.f32.mrf.mxu0
        %v917 = vadd.f32 %v383, %v916
        %v918 = vpop.f32.mrf.mxu0
        %v919 = vadd.f32 %v383, %v918
        %920 = vmatmul.bf16.gmra.mxu0 %v531
        %v921 = vpop.f32.mrf.mxu0
        %v922 = vadd.f32 %v383, %v921
        %v923 = vpop.f32.mrf.mxu0
        %v924 = vadd.f32 %v383, %v923
        %925 = vmatmul.bf16.gmra.mxu0 %v532
        %v926 = vpop.f32.mrf.mxu0
        %v927 = vadd.f32 %v383, %v926
        %v928 = vpop.f32.mrf.mxu0
        %v929 = vadd.f32 %v383, %v928
        %930 = vmatmul.bf16.gmra.mxu0 %v533
        %v931 = vpop.f32.mrf.mxu0
        %v932 = vadd.f32 %v383, %v931
        %v933 = vpop.f32.mrf.mxu0
        %v934 = vadd.f32 %v383, %v933
        %935 = vmatmul.bf16.gmra.mxu0 %v534
        %v936 = vpop.f32.mrf.mxu0
        %v937 = vadd.f32 %v383, %v936
        %v938 = vpop.f32.mrf.mxu0
        %v939 = vadd.f32 %v383, %v938
        %940 = vmatmul.bf16.gmra.mxu0 %v535
        %v941 = vpop.f32.mrf.mxu0
        %v942 = vadd.f32 %v383, %v941
        %v943 = vpop.f32.mrf.mxu0
        %v944 = vadd.f32 %v383, %v943
        %945 = vmatmul.bf16.gmra.mxu0 %v536
        %v946 = vpop.f32.mrf.mxu0
        %v947 = vadd.f32 %v383, %v946
        %v948 = vpop.f32.mrf.mxu0
        %v949 = vadd.f32 %v383, %v948
        %950 = vmatmul.bf16.gmra.mxu0 %v537
        %v951 = vpop.f32.mrf.mxu0
        %v952 = vadd.f32 %v383, %v951
        %v953 = vpop.f32.mrf.mxu0
        %v954 = vadd.f32 %v383, %v953
        %955 = vmatmul.bf16.gmra.mxu0 %v538
        %v956 = vpop.f32.mrf.mxu0
        %v957 = vadd.f32 %v383, %v956
        %v958 = vpop.f32.mrf.mxu0
        %v959 = vadd.f32 %v383, %v958
        %960 = vmatmul.bf16.gmra.mxu0 %v539
        %v961 = vpop.f32.mrf.mxu0
        %v962 = vadd.f32 %v383, %v961
        %v963 = vpop.f32.mrf.mxu0
        %v964 = vadd.f32 %v383, %v963
        %965 = vmatmul.bf16.gmra.mxu0 %v540
        %v966 = vpop.f32.mrf.mxu0
        %v967 = vadd.f32 %v383, %v966
        %v968 = vpop.f32.mrf.mxu0
        %v969 = vadd.f32 %v383, %v968
        %970 = vmatmul.bf16.gmra.mxu0 %v541
        %v971 = vpop.f32.mrf.mxu0
        %v972 = vadd.f32 %v383, %v971
        %v973 = vpop.f32.mrf.mxu0
        %v974 = vadd.f32 %v383, %v973
        %975 = vmatmul.bf16.gmra.mxu0 %v542
        %v976 = vpop.f32.mrf.mxu0
        %v977 = vadd.f32 %v383, %v976
        %v978 = vpop.f32.mrf.mxu0
        %v979 = vadd.f32 %v383, %v978
        %980 = vmatmul.bf16.gmra.mxu0 %v543
        %v981 = vpop.f32.mrf.mxu0
        %v982 = vadd.f32 %v383, %v981
        %v983 = vpop.f32.mrf.mxu0
        %v984 = vadd.f32 %v383, %v983
        %985 = vmatmul.bf16.gmra.mxu0 %v544
        %v986 = vpop.f32.mrf.mxu0
        %v987 = vadd.f32 %v383, %v986
        %v988 = vpop.f32.mrf.mxu0
        %v989 = vadd.f32 %v383, %v988
        %990 = vmatmul.bf16.gmra.mxu0 %v545
        %v991 = vpop.f32.mrf.mxu0
        %v992 = vadd.f32 %v383, %v991
        %v993 = vpop.f32.mrf.mxu0
        %v994 = vadd.f32 %v383, %v993
        %995 = vdwg.mxu0
        %v996 = vmax.f32 %v668, 0.0
        %v997 = vmax.f32 %v837, 0.0
        %v998 = vmax.f32 %v670, 0.0
        %v999 = vmax.f32 %v839, 0.0
        %v1000 = vmax.f32 %v673, 0.0
        %v1001 = vmax.f32 %v842, 0.0
        %v1002 = vmax.f32 %v675, 0.0
        %v1003 = vmax.f32 %v844, 0.0
        %v1004 = vmax.f32 %v678, 0.0
        %v1005 = vmax.f32 %v847, 0.0
        %v1006 = vmax.f32 %v680, 0.0
        %v1007 = vmax.f32 %v849, 0.0
        %v1008 = vmax.f32 %v683, 0.0
        %v1009 = vmax.f32 %v852, 0.0
        %v1010 = vmax.f32 %v685, 0.0
        %v1011 = vmax.f32 %v854, 0.0
        %v1012 = vmax.f32 %v688, 0.0
        %v1013 = vmax.f32 %v857, 0.0
        %v1014 = vmax.f32 %v690, 0.0
        %v1015 = vmax.f32 %v859, 0.0
        %v1016 = vmax.f32 %v693, 0.0
        %v1017 = vmax.f32 %v862, 0.0
        %v1018 = vmax.f32 %v695, 0.0
        %v1019 = vmax.f32 %v864, 0.0
        %v1020 = vmax.f32 %v698, 0.0
        %v1021 = vmax.f32 %v867, 0.0
        %v1022 = vmax.f32 %v700, 0.0
        %v1023 = vmax.f32 %v869, 0.0
        %v1024 = vmax.f32 %v703, 0.0
        %v1025 = vmax.f32 %v872, 0.0
        %v1026 = vmax.f32 %v705, 0.0
        %v1027 = vmax.f32 %v874, 0.0
        %v1028 = vmax.f32 %v708, 0.0
        %v1029 = vmax.f32 %v877, 0.0
        %v1030 = vmax.f32 %v710, 0.0
        %v1031 = vmax.f32 %v879, 0.0
        %v1032 = vmax.f32 %v713, 0.0
        %v1033 = vmax.f32 %v882, 0.0
        %v1034 = vmax.f32 %v715, 0.0
        %v1035 = vmax.f32 %v884, 0.0
        %v1036 = vmax.f32 %v718, 0.0
        %v1037 = vmax.f32 %v887, 0.0
        %v1038 = vmax.f32 %v720, 0.0
        %v1039 = vmax.f32 %v889, 0.0
        %v1040 = vmax.f32 %v723, 0.0
        %v1041 = vmax.f32 %v892, 0.0
        %v1042 = vmax.f32 %v725, 0.0
        %v1043 = vmax.f32 %v894, 0.0
        %v1044 = vmax.f32 %v728, 0.0
        %v1045 = vmax.f32 %v897, 0.0
        %v1046 = vmax.f32 %v730, 0.0
        %v1047 = vmax.f32 %v899, 0.0
        %v1048 = vmax.f32 %v733, 0.0
        %v1049 = vmax.f32 %v902, 0.0
        %v1050 = vmax.f32 %v735, 0.0
        %v1051 = vmax.f32 %v904, 0.0
        %v1052 = vmax.f32 %v738, 0.0
        %v1053 = vmax.f32 %v907, 0.0
        %v1054 = vmax.f32 %v740, 0.0
        %v1055 = vmax.f32 %v909, 0.0
        %v1056 = vmax.f32 %v743, 0.0
        %v1057 = vmax.f32 %v912, 0.0
        %v1058 = vmax.f32 %v745, 0.0
        %v1059 = vmax.f32 %v914, 0.0
        %v1060 = vmax.f32 %v748, 0.0
        %v1061 = vmax.f32 %v917, 0.0
        %v1062 = vmax.f32 %v750, 0.0
        %v1063 = vmax.f32 %v919, 0.0
        %v1064 = vmax.f32 %v753, 0.0
        %v1065 = vmax.f32 %v922, 0.0
        %v1066 = vmax.f32 %v755, 0.0
        %v1067 = vmax.f32 %v924, 0.0
        %v1068 = vmax.f32 %v758, 0.0
        %v1069 = vmax.f32 %v927, 0.0
        %v1070 = vmax.f32 %v760, 0.0
        %v1071 = vmax.f32 %v929, 0.0
        %v1072 = vmax.f32 %v763, 0.0
        %v1073 = vmax.f32 %v932, 0.0
        %v1074 = vmax.f32 %v765, 0.0
        %v1075 = vmax.f32 %v934, 0.0
        %v1076 = vmax.f32 %v768, 0.0
        %v1077 = vmax.f32 %v937, 0.0
        %v1078 = vmax.f32 %v770, 0.0
        %v1079 = vmax.f32 %v939, 0.0
        %v1080 = vmax.f32 %v773, 0.0
        %v1081 = vmax.f32 %v942, 0.0
        %v1082 = vmax.f32 %v775, 0.0
        %v1083 = vmax.f32 %v944, 0.0
        %v1084 = vmax.f32 %v778, 0.0
        %v1085 = vmax.f32 %v947, 0.0
        %v1086 = vmax.f32 %v780, 0.0
        %v1087 = vmax.f32 %v949, 0.0
        %v1088 = vmax.f32 %v783, 0.0
        %v1089 = vmax.f32 %v952, 0.0
        %v1090 = vmax.f32 %v785, 0.0
        %v1091 = vmax.f32 %v954, 0.0
        %v1092 = vmax.f32 %v788, 0.0
        %v1093 = vmax.f32 %v957, 0.0
        %v1094 = vmax.f32 %v790, 0.0
        %v1095 = vmax.f32 %v959, 0.0
        %v1096 = vmax.f32 %v793, 0.0
        %v1097 = vmax.f32 %v962, 0.0
        %v1098 = vmax.f32 %v795, 0.0
        %v1099 = vmax.f32 %v964, 0.0
        %v1100 = vmax.f32 %v798, 0.0
        %v1101 = vmax.f32 %v967, 0.0
        %v1102 = vmax.f32 %v800, 0.0
        %v1103 = vmax.f32 %v969, 0.0
        %v1104 = vmax.f32 %v803, 0.0
        %v1105 = vmax.f32 %v972, 0.0
        %v1106 = vmax.f32 %v805, 0.0
        %v1107 = vmax.f32 %v974, 0.0
        %v1108 = vmax.f32 %v808, 0.0
        %v1109 = vmax.f32 %v977, 0.0
        %v1110 = vmax.f32 %v810, 0.0
        %v1111 = vmax.f32 %v979, 0.0
        %v1112 = vmax.f32 %v813, 0.0
        %v1113 = vmax.f32 %v982, 0.0
        %v1114 = vmax.f32 %v815, 0.0
        %v1115 = vmax.f32 %v984, 0.0
        %v1116 = vmax.f32 %v818, 0.0
        %v1117 = vmax.f32 %v987, 0.0
        %v1118 = vmax.f32 %v820, 0.0
        %v1119 = vmax.f32 %v989, 0.0
        %v1120 = vmax.f32 %v823, 0.0
        %v1121 = vmax.f32 %v992, 0.0
        %v1122 = vmax.f32 %v825, 0.0
        %v1123 = vmax.f32 %v994, 0.0
        %v1124 = vpack.c.bf16 %v998, %v996
        %v1125 = vpack.c.bf16 %v999, %v997
        %v1126 = vpack.c.bf16 %v1002, %v1000
        %v1127 = vpack.c.bf16 %v1003, %v1001
        %v1128 = vpack.c.bf16 %v1006, %v1004
        %v1129 = vpack.c.bf16 %v1007, %v1005
        %v1130 = vpack.c.bf16 %v1010, %v1008
        %v1131 = vpack.c.bf16 %v1011, %v1009
        %v1132 = vpack.c.bf16 %v1014, %v1012
        %v1133 = vpack.c.bf16 %v1015, %v1013
        %v1134 = vpack.c.bf16 %v1018, %v1016
        %v1135 = vpack.c.bf16 %v1019, %v1017
        %v1136 = vpack.c.bf16 %v1022, %v1020
        %v1137 = vpack.c.bf16 %v1023, %v1021
        %v1138 = vpack.c.bf16 %v1026, %v1024
        %v1139 = vpack.c.bf16 %v1027, %v1025
        %v1140 = vpack.c.bf16 %v1030, %v1028
        %v1141 = vpack.c.bf16 %v1031, %v1029
        %v1142 = vpack.c.bf16 %v1034, %v1032
        %v1143 = vpack.c.bf16 %v1035, %v1033
        %v1144 = vpack.c.bf16 %v1038, %v1036
        %v1145 = vpack.c.bf16 %v1039, %v1037
        %v1146 = vpack.c.bf16 %v1042, %v1040
        %v1147 = vpack.c.bf16 %v1043, %v1041
        %v1148 = vpack.c.bf16 %v1046, %v1044
        %v1149 = vpack.c.bf16 %v1047, %v1045
        %v1150 = vpack.c.bf16 %v1050, %v1048
        %v1151 = vpack.c.bf16 %v1051, %v1049
        %v1152 = vpack.c.bf16 %v1054, %v1052
        %v1153 = vpack.c.bf16 %v1055, %v1053
        %v1154 = vpack.c.bf16 %v1058, %v1056
        %v1155 = vpack.c.bf16 %v1059, %v1057
        %v1156 = vpack.c.bf16 %v1062, %v1060
        %v1157 = vpack.c.bf16 %v1063, %v1061
        %v1158 = vpack.c.bf16 %v1066, %v1064
        %v1159 = vpack.c.bf16 %v1067, %v1065
        %v1160 = vpack.c.bf16 %v1070, %v1068
        %v1161 = vpack.c.bf16 %v1071, %v1069
        %v1162 = vpack.c.bf16 %v1074, %v1072
        %v1163 = vpack.c.bf16 %v1075, %v1073
        %v1164 = vpack.c.bf16 %v1078, %v1076
        %v1165 = vpack.c.bf16 %v1079, %v1077
        %v1166 = vpack.c.bf16 %v1082, %v1080
        %v1167 = vpack.c.bf16 %v1083, %v1081
        %v1168 = vpack.c.bf16 %v1086, %v1084
        %v1169 = vpack.c.bf16 %v1087, %v1085
        %v1170 = vpack.c.bf16 %v1090, %v1088
        %v1171 = vpack.c.bf16 %v1091, %v1089
        %v1172 = vpack.c.bf16 %v1094, %v1092
        %v1173 = vpack.c.bf16 %v1095, %v1093
        %v1174 = vpack.c.bf16 %v1098, %v1096
        %v1175 = vpack.c.bf16 %v1099, %v1097
        %v1176 = vpack.c.bf16 %v1102, %v1100
        %v1177 = vpack.c.bf16 %v1103, %v1101
        %v1178 = vpack.c.bf16 %v1106, %v1104
        %v1179 = vpack.c.bf16 %v1107, %v1105
        %v1180 = vpack.c.bf16 %v1110, %v1108
        %v1181 = vpack.c.bf16 %v1111, %v1109
        %v1182 = vpack.c.bf16 %v1114, %v1112
        %v1183 = vpack.c.bf16 %v1115, %v1113
        %v1184 = vpack.c.bf16 %v1118, %v1116
        %v1185 = vpack.c.bf16 %v1119, %v1117
        %v1186 = vpack.c.bf16 %v1122, %v1120
        %v1187 = vpack.c.bf16 %v1123, %v1121
        %v1188 = vld [vmem:[%s3] sm:$0xff]
        %v1189 = vld [vmem:[%s3 + $0x8] sm:$0xff]
        %v1190 = vld [vmem:[%s3 + $0x10] sm:$0xff]
        %v1191 = vld [vmem:[%s3 + $0x18] sm:$0xff]
        %v1192 = vld [vmem:[%s3 + $0x20] sm:$0xff]
        %v1193 = vld [vmem:[%s3 + $0x28] sm:$0xf]
        %v1194 = vld [vmem:[%s3 + $0x2c] sm:$0xff]
        %v1195 = vld [vmem:[%s3 + $0x34] sm:$0xff]
        %v1196 = vld [vmem:[%s3 + $0x3c] sm:$0xff]
        %v1197 = vld [vmem:[%s3 + $0x44] sm:$0xff]
        %v1198 = vld [vmem:[%s3 + $0x4c] sm:$0xff]
        %v1199 = vld [vmem:[%s3 + $0x54] sm:$0xf]
        %v1200 = vld [vmem:[%s3 + $0x58] sm:$0xff]
        %v1201 = vld [vmem:[%s3 + $0x60] sm:$0xff]
        %v1202 = vld [vmem:[%s3 + $0x68] sm:$0xff]
        %v1203 = vld [vmem:[%s3 + $0x70] sm:$0xff]
        %v1204 = vld [vmem:[%s3 + $0x78] sm:$0xff]
        %v1205 = vld [vmem:[%s3 + $0x80] sm:$0xf]
        %v1206 = vld [vmem:[%s3 + $0x84] sm:$0xff]
        %v1207 = vld [vmem:[%s3 + $0x8c] sm:$0xff]
        %v1208 = vld [vmem:[%s3 + $0x94] sm:$0xff]
        %v1209 = vld [vmem:[%s3 + $0x9c] sm:$0xff]
        %v1210 = vld [vmem:[%s3 + $0xa4] sm:$0xff]
        %v1211 = vld [vmem:[%s3 + $0xac] sm:$0xf]
        %v1212 = vld [vmem:[%s3 + $0xb0] sm:$0xff]
        %v1213 = vld [vmem:[%s3 + $0xb8] sm:$0xff]
        %v1214 = vld [vmem:[%s3 + $0xc0] sm:$0xff]
        %v1215 = vld [vmem:[%s3 + $0xc8] sm:$0xff]
        %v1216 = vld [vmem:[%s3 + $0xd0] sm:$0xff]
        %v1217 = vld [vmem:[%s3 + $0xd8] sm:$0xf]
        %v1218 = vld [vmem:[%s3 + $0xdc] sm:$0xff]
        %v1219 = vld [vmem:[%s3 + $0xe4] sm:$0xff]
        %v1220 = vld [vmem:[%s3 + $0xec] sm:$0xff]
        %v1221 = vld [vmem:[%s3 + $0xf4] sm:$0xff]
        %v1222 = vld [vmem:[%s3 + $0xfc] sm:$0xff]
        %v1223 = vld [vmem:[%s3 + $0x104] sm:$0xf]
        %v1224 = vld [vmem:[%s3 + $0x108] sm:$0xff]
        %v1225 = vld [vmem:[%s3 + $0x110] sm:$0xff]
        %v1226 = vld [vmem:[%s3 + $0x118] sm:$0xff]
        %v1227 = vld [vmem:[%s3 + $0x120] sm:$0xff]
        %v1228 = vld [vmem:[%s3 + $0x128] sm:$0xff]
        %v1229 = vld [vmem:[%s3 + $0x130] sm:$0xf]
        %v1230 = vld [vmem:[%s3 + $0x134] sm:$0xff]
        %v1231 = vld [vmem:[%s3 + $0x13c] sm:$0xff]
        %v1232 = vld [vmem:[%s3 + $0x144] sm:$0xff]
        %v1233 = vld [vmem:[%s3 + $0x14c] sm:$0xff]
        %v1234 = vld [vmem:[%s3 + $0x154] sm:$0xff]
        %v1235 = vld [vmem:[%s3 + $0x15c] sm:$0xf]
        %v1236 = vld [vmem:[%s3 + $0x160] sm:$0xff]
        %v1237 = vld [vmem:[%s3 + $0x168] sm:$0xff]
        %v1238 = vld [vmem:[%s3 + $0x170] sm:$0xff]
        %v1239 = vld [vmem:[%s3 + $0x178] sm:$0xff]
        %v1240 = vld [vmem:[%s3 + $0x180] sm:$0xff]
        %v1241 = vld [vmem:[%s3 + $0x188] sm:$0xf]
        %v1242 = vld [vmem:[%s3 + $0x18c] sm:$0xff]
        %v1243 = vld [vmem:[%s3 + $0x194] sm:$0xff]
        %v1244 = vld [vmem:[%s3 + $0x19c] sm:$0xff]
        %v1245 = vld [vmem:[%s3 + $0x1a4] sm:$0xff]
        %v1246 = vld [vmem:[%s3 + $0x1ac] sm:$0xff]
        %v1247 = vld [vmem:[%s3 + $0x1b4] sm:$0xf]
        %v1248 = vld [vmem:[%s3 + $0x1b8] sm:$0xff]
        %v1249 = vld [vmem:[%s3 + $0x1c0] sm:$0xff]
        %v1250 = vld [vmem:[%s3 + $0x1c8] sm:$0xff]
        %v1251 = vld [vmem:[%s3 + $0x1d0] sm:$0xff]
        %v1252 = vld [vmem:[%s3 + $0x1d8] sm:$0xff]
        %v1253 = vld [vmem:[%s3 + $0x1e0] sm:$0xf]
        %v1254 = vld [vmem:[%s3 + $0x1e4] sm:$0xff]
        %v1255 = vld [vmem:[%s3 + $0x1ec] sm:$0xff]
        %v1256 = vld [vmem:[%s3 + $0x1f4] sm:$0xff]
        %v1257 = vld [vmem:[%s3 + $0x1fc] sm:$0xff]
        %v1258 = vld [vmem:[%s3 + $0x204] sm:$0xff]
        %v1259 = vld [vmem:[%s3 + $0x20c] sm:$0xf]
        %v1260 = vld [vmem:[%s3 + $0x210] sm:$0xff]
        %v1261 = vld [vmem:[%s3 + $0x218] sm:$0xff]
        %v1262 = vld [vmem:[%s3 + $0x220] sm:$0xff]
        %v1263 = vld [vmem:[%s3 + $0x228] sm:$0xff]
        %v1264 = vld [vmem:[%s3 + $0x230] sm:$0xff]
        %v1265 = vld [vmem:[%s3 + $0x238] sm:$0xf]
        %v1266 = vld [vmem:[%s3 + $0x23c] sm:$0xff]
        %v1267 = vld [vmem:[%s3 + $0x244] sm:$0xff]
        %v1268 = vld [vmem:[%s3 + $0x24c] sm:$0xff]
        %v1269 = vld [vmem:[%s3 + $0x254] sm:$0xff]
        %v1270 = vld [vmem:[%s3 + $0x25c] sm:$0xff]
        %v1271 = vld [vmem:[%s3 + $0x264] sm:$0xf]
        %v1272 = vld [vmem:[%s3 + $0x268] sm:$0xff]
        %v1273 = vld [vmem:[%s3 + $0x270] sm:$0xff]
        %v1274 = vld [vmem:[%s3 + $0x278] sm:$0xff]
        %v1275 = vld [vmem:[%s3 + $0x280] sm:$0xff]
        %v1276 = vld [vmem:[%s3 + $0x288] sm:$0xff]
        %v1277 = vld [vmem:[%s3 + $0x290] sm:$0xf]
        %v1278 = vld [vmem:[%s3 + $0x294] sm:$0xff]
        %v1279 = vld [vmem:[%s3 + $0x29c] sm:$0xff]
        %v1280 = vld [vmem:[%s3 + $0x2a4] sm:$0xff]
        %v1281 = vld [vmem:[%s3 + $0x2ac] sm:$0xff]
        %v1282 = vld [vmem:[%s3 + $0x2b4] sm:$0xff]
        %v1283 = vld [vmem:[%s3 + $0x2bc] sm:$0xf]
        %v1284 = vld [vmem:[%s3 + $0x2c0] sm:$0xff]
        %v1285 = vld [vmem:[%s3 + $0x2c8] sm:$0xff]
        %v1286 = vld [vmem:[%s3 + $0x2d0] sm:$0xff]
        %v1287 = vld [vmem:[%s3 + $0x2d8] sm:$0xff]
        %v1288 = vld [vmem:[%s3 + $0x2e0] sm:$0xff]
        %v1289 = vld [vmem:[%s3 + $0x2e8] sm:$0xf]
        %v1290 = vld [vmem:[%s3 + $0x2ec] sm:$0xff]
        %v1291 = vld [vmem:[%s3 + $0x2f4] sm:$0xff]
        %v1292 = vld [vmem:[%s3 + $0x2fc] sm:$0xff]
        %v1293 = vld [vmem:[%s3 + $0x304] sm:$0xff]
        %v1294 = vld [vmem:[%s3 + $0x30c] sm:$0xff]
        %v1295 = vld [vmem:[%s3 + $0x314] sm:$0xf]
        %v1296 = vld [vmem:[%s3 + $0x318] sm:$0xff]
        %v1297 = vld [vmem:[%s3 + $0x320] sm:$0xff]
        %v1298 = vld [vmem:[%s3 + $0x328] sm:$0xff]
        %v1299 = vld [vmem:[%s3 + $0x330] sm:$0xff]
        %v1300 = vld [vmem:[%s3 + $0x338] sm:$0xff]
        %v1301 = vld [vmem:[%s3 + $0x340] sm:$0xf]
        %v1302 = vld [vmem:[%s3 + $0x344] sm:$0xff]
        %v1303 = vld [vmem:[%s3 + $0x34c] sm:$0xff]
        %v1304 = vld [vmem:[%s3 + $0x354] sm:$0xff]
        %v1305 = vld [vmem:[%s3 + $0x35c] sm:$0xff]
        %v1306 = vld [vmem:[%s3 + $0x364] sm:$0xff]
        %v1307 = vld [vmem:[%s3 + $0x36c] sm:$0xf]
        %v1308 = vld [vmem:[%s3 + $0x370] sm:$0xff]
        %v1309 = vld [vmem:[%s3 + $0x378] sm:$0xff]
        %v1310 = vld [vmem:[%s3 + $0x380] sm:$0xff]
        %v1311 = vld [vmem:[%s3 + $0x388] sm:$0xff]
        %v1312 = vld [vmem:[%s3 + $0x390] sm:$0xff]
        %v1313 = vld [vmem:[%s3 + $0x398] sm:$0xf]
        %v1314 = vld [vmem:[%s3 + $0x39c] sm:$0xff]
        %v1315 = vld [vmem:[%s3 + $0x3a4] sm:$0xff]
        %v1316 = vld [vmem:[%s3 + $0x3ac] sm:$0xff]
        %v1317 = vld [vmem:[%s3 + $0x3b4] sm:$0xff]
        %v1318 = vld [vmem:[%s3 + $0x3bc] sm:$0xff]
        %v1319 = vld [vmem:[%s3 + $0x3c4] sm:$0xf]
        %v1320 = vld [vmem:[%s3 + $0x3c8] sm:$0xff]
        %v1321 = vld [vmem:[%s3 + $0x3d0] sm:$0xff]
        %v1322 = vld [vmem:[%s3 + $0x3d8] sm:$0xff]
        %v1323 = vld [vmem:[%s3 + $0x3e0] sm:$0xff]
        %v1324 = vld [vmem:[%s3 + $0x3e8] sm:$0xff]
        %v1325 = vld [vmem:[%s3 + $0x3f0] sm:$0xf]
        %v1326 = vld [vmem:[%s3 + $0x3f4] sm:$0xff]
        %v1327 = vld [vmem:[%s3 + $0x3fc] sm:$0xff]
        %v1328 = vld [vmem:[%s3 + $0x404] sm:$0xff]
        %v1329 = vld [vmem:[%s3 + $0x40c] sm:$0xff]
        %v1330 = vld [vmem:[%s3 + $0x414] sm:$0xff]
        %v1331 = vld [vmem:[%s3 + $0x41c] sm:$0xf]
        %v1332 = vld [vmem:[%s3 + $0x420] sm:$0xff]
        %v1333 = vld [vmem:[%s3 + $0x428] sm:$0xff]
        %v1334 = vld [vmem:[%s3 + $0x430] sm:$0xff]
        %v1335 = vld [vmem:[%s3 + $0x438] sm:$0xff]
        %v1336 = vld [vmem:[%s3 + $0x440] sm:$0xff]
        %v1337 = vld [vmem:[%s3 + $0x448] sm:$0xf]
        %v1338 = vld [vmem:[%s3 + $0x44c] sm:$0xff]
        %v1339 = vld [vmem:[%s3 + $0x454] sm:$0xff]
        %v1340 = vld [vmem:[%s3 + $0x45c] sm:$0xff]
        %v1341 = vld [vmem:[%s3 + $0x464] sm:$0xff]
        %v1342 = vld [vmem:[%s3 + $0x46c] sm:$0xff]
        %v1343 = vld [vmem:[%s3 + $0x474] sm:$0xf]
        %v1344 = vld [vmem:[%s3 + $0x478] sm:$0xff]
        %v1345 = vld [vmem:[%s3 + $0x480] sm:$0xff]
        %v1346 = vld [vmem:[%s3 + $0x488] sm:$0xff]
        %v1347 = vld [vmem:[%s3 + $0x490] sm:$0xff]
        %v1348 = vld [vmem:[%s3 + $0x498] sm:$0xff]
        %v1349 = vld [vmem:[%s3 + $0x4a0] sm:$0xf]
        %v1350 = vld [vmem:[%s3 + $0x4a4] sm:$0xff]
        %v1351 = vld [vmem:[%s3 + $0x4ac] sm:$0xff]
        %v1352 = vld [vmem:[%s3 + $0x4b4] sm:$0xff]
        %v1353 = vld [vmem:[%s3 + $0x4bc] sm:$0xff]
        %v1354 = vld [vmem:[%s3 + $0x4c4] sm:$0xff]
        %v1355 = vld [vmem:[%s3 + $0x4cc] sm:$0xf]
        %v1356 = vld [vmem:[%s3 + $0x4d0] sm:$0xff]
        %v1357 = vld [vmem:[%s3 + $0x4d8] sm:$0xff]
        %v1358 = vld [vmem:[%s3 + $0x4e0] sm:$0xff]
        %v1359 = vld [vmem:[%s3 + $0x4e8] sm:$0xff]
        %v1360 = vld [vmem:[%s3 + $0x4f0] sm:$0xff]
        %v1361 = vld [vmem:[%s3 + $0x4f8] sm:$0xf]
        %v1362 = vld [vmem:[%s3 + $0x4fc] sm:$0xff]
        %v1363 = vld [vmem:[%s3 + $0x504] sm:$0xff]
        %v1364 = vld [vmem:[%s3 + $0x50c] sm:$0xff]
        %v1365 = vld [vmem:[%s3 + $0x514] sm:$0xff]
        %v1366 = vld [vmem:[%s3 + $0x51c] sm:$0xff]
        %v1367 = vld [vmem:[%s3 + $0x524] sm:$0xf]
        %v1368 = vld [vmem:[%s3 + $0x528] sm:$0xff]
        %v1369 = vld [vmem:[%s3 + $0x530] sm:$0xff]
        %v1370 = vld [vmem:[%s3 + $0x538] sm:$0xff]
        %v1371 = vld [vmem:[%s3 + $0x540] sm:$0xff]
        %v1372 = vld [vmem:[%s3 + $0x548] sm:$0xff]
        %v1373 = vld [vmem:[%s3 + $0x550] sm:$0xf]
        %v1374 = vld [vmem:[%s3 + $0x554] sm:$0xff]
        %v1375 = vld [vmem:[%s3 + $0x55c] sm:$0xff]
        %v1376 = vld [vmem:[%s3 + $0x564] sm:$0xff]
        %v1377 = vld [vmem:[%s3 + $0x56c] sm:$0xff]
        %v1378 = vld [vmem:[%s3 + $0x574] sm:$0xff]
        %v1379 = vld [vmem:[%s3 + $0x57c] sm:$0xf]
        %v1380 = vld [vmem:[%s4] sm:$0xff]
        %v1381 = vld [vmem:[%s4 + $0x8] sm:$0x7]
        %v1384 = vperm.slane %v1380, 0
        %v1385 = vperm.slane %v1380, 1
        %v1386 = vperm.slane %v1380, 2
        %v1387 = vperm.slane %v1380, 3
        %v1388 = vperm.slane %v1380, 4
        %v1389 = vperm.slane %v1380, 5
        %v1390 = vperm.slane %v1380, 6
        %v1391 = vperm.slane %v1380, 7
        %v1392 = vperm.slane %v1381, 0
        %v1393 = vperm.slane %v1381, 1
        %v1394 = vperm.slane %v1381, 2
        %v1598 = vunpack.c.l.b16 %v1188
        %v1599 = vunpack.c.h.b16 %v1188
        %v1600 = vunpack.c.l.b16 %v1189
        %v1601 = vunpack.c.h.b16 %v1189
        %v1602 = vunpack.c.l.b16 %v1190
        %v1603 = vunpack.c.h.b16 %v1190
        %v1604 = vunpack.c.l.b16 %v1191
        %v1605 = vunpack.c.h.b16 %v1191
        %v1606 = vunpack.c.l.b16 %v1192
        %v1607 = vunpack.c.h.b16 %v1192
        %v1608 = vunpack.c.l.b16 %v1193
        %v1609 = vunpack.c.l.b16 %v1194
        %v1610 = vunpack.c.h.b16 %v1194
        %v1611 = vunpack.c.l.b16 %v1195
        %v1612 = vunpack.c.h.b16 %v1195
        %v1613 = vunpack.c.l.b16 %v1196
        %v1614 = vunpack.c.h.b16 %v1196
        %v1615 = vunpack.c.l.b16 %v1197
        %v1616 = vunpack.c.h.b16 %v1197
        %v1617 = vunpack.c.l.b16 %v1198
        %v1618 = vunpack.c.h.b16 %v1198
        %v1619 = vunpack.c.l.b16 %v1199
        %v1620 = vunpack.c.l.b16 %v1200
        %v1621 = vunpack.c.h.b16 %v1200
        %v1622 = vunpack.c.l.b16 %v1201
        %v1623 = vunpack.c.h.b16 %v1201
        %v1624 = vunpack.c.l.b16 %v1202
        %v1625 = vunpack.c.h.b16 %v1202
        %v1626 = vunpack.c.l.b16 %v1203
        %v1627 = vunpack.c.h.b16 %v1203
        %v1628 = vunpack.c.l.b16 %v1204
        %v1629 = vunpack.c.h.b16 %v1204
        %v1630 = vunpack.c.l.b16 %v1205
        %v1631 = vunpack.c.l.b16 %v1206
        %v1632 = vunpack.c.h.b16 %v1206
        %v1633 = vunpack.c.l.b16 %v1207
        %v1634 = vunpack.c.h.b16 %v1207
        %v1635 = vunpack.c.l.b16 %v1208
        %v1636 = vunpack.c.h.b16 %v1208
        %v1637 = vunpack.c.l.b16 %v1209
        %v1638 = vunpack.c.h.b16 %v1209
        %v1639 = vunpack.c.l.b16 %v1210
        %v1640 = vunpack.c.h.b16 %v1210
        %v1641 = vunpack.c.l.b16 %v1211
        %v1642 = vunpack.c.l.b16 %v1212
        %v1643 = vunpack.c.h.b16 %v1212
        %v1644 = vunpack.c.l.b16 %v1213
        %v1645 = vunpack.c.h.b16 %v1213
        %v1646 = vunpack.c.l.b16 %v1214
        %v1647 = vunpack.c.h.b16 %v1214
        %v1648 = vunpack.c.l.b16 %v1215
        %v1649 = vunpack.c.h.b16 %v1215
        %v1650 = vunpack.c.l.b16 %v1216
        %v1651 = vunpack.c.h.b16 %v1216
        %v1652 = vunpack.c.l.b16 %v1217
        %v1653 = vunpack.c.l.b16 %v1218
        %v1654 = vunpack.c.h.b16 %v1218
        %v1655 = vunpack.c.l.b16 %v1219
        %v1656 = vunpack.c.h.b16 %v1219
        %v1657 = vunpack.c.l.b16 %v1220
        %v1658 = vunpack.c.h.b16 %v1220
        %v1659 = vunpack.c.l.b16 %v1221
        %v1660 = vunpack.c.h.b16 %v1221
        %v1661 = vunpack.c.l.b16 %v1222
        %v1662 = vunpack.c.h.b16 %v1222
        %v1663 = vunpack.c.l.b16 %v1223
        %v1664 = vunpack.c.l.b16 %v1224
        %v1665 = vunpack.c.h.b16 %v1224
        %v1666 = vunpack.c.l.b16 %v1225
        %v1667 = vunpack.c.h.b16 %v1225
        %v1668 = vunpack.c.l.b16 %v1226
        %v1669 = vunpack.c.h.b16 %v1226
        %v1670 = vunpack.c.l.b16 %v1227
        %v1671 = vunpack.c.h.b16 %v1227
        %v1672 = vunpack.c.l.b16 %v1228
        %v1673 = vunpack.c.h.b16 %v1228
        %v1674 = vunpack.c.l.b16 %v1229
        %v1675 = vunpack.c.l.b16 %v1230
        %v1676 = vunpack.c.h.b16 %v1230
        %v1677 = vunpack.c.l.b16 %v1231
        %v1678 = vunpack.c.h.b16 %v1231
        %v1679 = vunpack.c.l.b16 %v1232
        %v1680 = vunpack.c.h.b16 %v1232
        %v1681 = vunpack.c.l.b16 %v1233
        %v1682 = vunpack.c.h.b16 %v1233
        %v1683 = vunpack.c.l.b16 %v1234
        %v1684 = vunpack.c.h.b16 %v1234
        %v1685 = vunpack.c.l.b16 %v1235
        %v1686 = vunpack.c.l.b16 %v1236
        %v1687 = vunpack.c.h.b16 %v1236
        %v1688 = vunpack.c.l.b16 %v1237
        %v1689 = vunpack.c.h.b16 %v1237
        %v1690 = vunpack.c.l.b16 %v1238
        %v1691 = vunpack.c.h.b16 %v1238
        %v1692 = vunpack.c.l.b16 %v1239
        %v1693 = vunpack.c.h.b16 %v1239
        %v1694 = vunpack.c.l.b16 %v1240
        %v1695 = vunpack.c.h.b16 %v1240
        %v1696 = vunpack.c.l.b16 %v1241
        %v1697 = vunpack.c.l.b16 %v1242
        %v1698 = vunpack.c.h.b16 %v1242
        %v1699 = vunpack.c.l.b16 %v1243
        %v1700 = vunpack.c.h.b16 %v1243
        %v1701 = vunpack.c.l.b16 %v1244
        %v1702 = vunpack.c.h.b16 %v1244
        %v1703 = vunpack.c.l.b16 %v1245
        %v1704 = vunpack.c.h.b16 %v1245
        %v1705 = vunpack.c.l.b16 %v1246
        %v1706 = vunpack.c.h.b16 %v1246
        %v1707 = vunpack.c.l.b16 %v1247
        %v1708 = vunpack.c.l.b16 %v1248
        %v1709 = vunpack.c.h.b16 %v1248
        %v1710 = vunpack.c.l.b16 %v1249
        %v1711 = vunpack.c.h.b16 %v1249
        %v1712 = vunpack.c.l.b16 %v1250
        %v1713 = vunpack.c.h.b16 %v1250
        %v1714 = vunpack.c.l.b16 %v1251
        %v1715 = vunpack.c.h.b16 %v1251
        %v1716 = vunpack.c.l.b16 %v1252
        %v1717 = vunpack.c.h.b16 %v1252
        %v1718 = vunpack.c.l.b16 %v1253
        %v1719 = vunpack.c.l.b16 %v1254
        %v1720 = vunpack.c.h.b16 %v1254
        %v1721 = vunpack.c.l.b16 %v1255
        %v1722 = vunpack.c.h.b16 %v1255
        %v1723 = vunpack.c.l.b16 %v1256
        %v1724 = vunpack.c.h.b16 %v1256
        %v1725 = vunpack.c.l.b16 %v1257
        %v1726 = vunpack.c.h.b16 %v1257
        %v1727 = vunpack.c.l.b16 %v1258
        %v1728 = vunpack.c.h.b16 %v1258
        %v1729 = vunpack.c.l.b16 %v1259
        %v1730 = vunpack.c.l.b16 %v1260
        %v1731 = vunpack.c.h.b16 %v1260
        %v1732 = vunpack.c.l.b16 %v1261
        %v1733 = vunpack.c.h.b16 %v1261
        %v1734 = vunpack.c.l.b16 %v1262
        %v1735 = vunpack.c.h.b16 %v1262
        %v1736 = vunpack.c.l.b16 %v1263
        %v1737 = vunpack.c.h.b16 %v1263
        %v1738 = vunpack.c.l.b16 %v1264
        %v1739 = vunpack.c.h.b16 %v1264
        %v1740 = vunpack.c.l.b16 %v1265
        %v1741 = vunpack.c.l.b16 %v1266
        %v1742 = vunpack.c.h.b16 %v1266
        %v1743 = vunpack.c.l.b16 %v1267
        %v1744 = vunpack.c.h.b16 %v1267
        %v1745 = vunpack.c.l.b16 %v1268
        %v1746 = vunpack.c.h.b16 %v1268
        %v1747 = vunpack.c.l.b16 %v1269
        %v1748 = vunpack.c.h.b16 %v1269
        %v1749 = vunpack.c.l.b16 %v1270
        %v1750 = vunpack.c.h.b16 %v1270
        %v1751 = vunpack.c.l.b16 %v1271
        %v1752 = vunpack.c.l.b16 %v1272
        %v1753 = vunpack.c.h.b16 %v1272
        %v1754 = vunpack.c.l.b16 %v1273
        %v1755 = vunpack.c.h.b16 %v1273
        %v1756 = vunpack.c.l.b16 %v1274
        %v1757 = vunpack.c.h.b16 %v1274
        %v1758 = vunpack.c.l.b16 %v1275
        %v1759 = vunpack.c.h.b16 %v1275
        %v1760 = vunpack.c.l.b16 %v1276
        %v1761 = vunpack.c.h.b16 %v1276
        %v1762 = vunpack.c.l.b16 %v1277
        %v1763 = vunpack.c.l.b16 %v1278
        %v1764 = vunpack.c.h.b16 %v1278
        %v1765 = vunpack.c.l.b16 %v1279
        %v1766 = vunpack.c.h.b16 %v1279
        %v1767 = vunpack.c.l.b16 %v1280
        %v1768 = vunpack.c.h.b16 %v1280
        %v1769 = vunpack.c.l.b16 %v1281
        %v1770 = vunpack.c.h.b16 %v1281
        %v1771 = vunpack.c.l.b16 %v1282
        %v1772 = vunpack.c.h.b16 %v1282
        %v1773 = vunpack.c.l.b16 %v1283
        %v1774 = vunpack.c.l.b16 %v1284
        %v1775 = vunpack.c.h.b16 %v1284
        %v1776 = vunpack.c.l.b16 %v1285
        %v1777 = vunpack.c.h.b16 %v1285
        %v1778 = vunpack.c.l.b16 %v1286
        %v1779 = vunpack.c.h.b16 %v1286
        %v1780 = vunpack.c.l.b16 %v1287
        %v1781 = vunpack.c.h.b16 %v1287
        %v1782 = vunpack.c.l.b16 %v1288
        %v1783 = vunpack.c.h.b16 %v1288
        %v1784 = vunpack.c.l.b16 %v1289
        %v1785 = vunpack.c.l.b16 %v1290
        %v1786 = vunpack.c.h.b16 %v1290
        %v1787 = vunpack.c.l.b16 %v1291
        %v1788 = vunpack.c.h.b16 %v1291
        %v1789 = vunpack.c.l.b16 %v1292
        %v1790 = vunpack.c.h.b16 %v1292
        %v1791 = vunpack.c.l.b16 %v1293
        %v1792 = vunpack.c.h.b16 %v1293
        %v1793 = vunpack.c.l.b16 %v1294
        %v1794 = vunpack.c.h.b16 %v1294
        %v1795 = vunpack.c.l.b16 %v1295
        %v1796 = vunpack.c.l.b16 %v1296
        %v1797 = vunpack.c.h.b16 %v1296
        %v1798 = vunpack.c.l.b16 %v1297
        %v1799 = vunpack.c.h.b16 %v1297
        %v1800 = vunpack.c.l.b16 %v1298
        %v1801 = vunpack.c.h.b16 %v1298
        %v1802 = vunpack.c.l.b16 %v1299
        %v1803 = vunpack.c.h.b16 %v1299
        %v1804 = vunpack.c.l.b16 %v1300
        %v1805 = vunpack.c.h.b16 %v1300
        %v1806 = vunpack.c.l.b16 %v1301
        %v1807 = vunpack.c.l.b16 %v1302
        %v1808 = vunpack.c.h.b16 %v1302
        %v1809 = vunpack.c.l.b16 %v1303
        %v1810 = vunpack.c.h.b16 %v1303
        %v1811 = vunpack.c.l.b16 %v1304
        %v1812 = vunpack.c.h.b16 %v1304
        %v1813 = vunpack.c.l.b16 %v1305
        %v1814 = vunpack.c.h.b16 %v1305
        %v1815 = vunpack.c.l.b16 %v1306
        %v1816 = vunpack.c.h.b16 %v1306
        %v1817 = vunpack.c.l.b16 %v1307
        %v1818 = vunpack.c.l.b16 %v1308
        %v1819 = vunpack.c.h.b16 %v1308
        %v1820 = vunpack.c.l.b16 %v1309
        %v1821 = vunpack.c.h.b16 %v1309
        %v1822 = vunpack.c.l.b16 %v1310
        %v1823 = vunpack.c.h.b16 %v1310
        %v1824 = vunpack.c.l.b16 %v1311
        %v1825 = vunpack.c.h.b16 %v1311
        %v1826 = vunpack.c.l.b16 %v1312
        %v1827 = vunpack.c.h.b16 %v1312
        %v1828 = vunpack.c.l.b16 %v1313
        %v1829 = vunpack.c.l.b16 %v1314
        %v1830 = vunpack.c.h.b16 %v1314
        %v1831 = vunpack.c.l.b16 %v1315
        %v1832 = vunpack.c.h.b16 %v1315
        %v1833 = vunpack.c.l.b16 %v1316
        %v1834 = vunpack.c.h.b16 %v1316
        %v1835 = vunpack.c.l.b16 %v1317
        %v1836 = vunpack.c.h.b16 %v1317
        %v1837 = vunpack.c.l.b16 %v1318
        %v1838 = vunpack.c.h.b16 %v1318
        %v1839 = vunpack.c.l.b16 %v1319
        %v1840 = vunpack.c.l.b16 %v1320
        %v1841 = vunpack.c.h.b16 %v1320
        %v1842 = vunpack.c.l.b16 %v1321
        %v1843 = vunpack.c.h.b16 %v1321
        %v1844 = vunpack.c.l.b16 %v1322
        %v1845 = vunpack.c.h.b16 %v1322
        %v1846 = vunpack.c.l.b16 %v1323
        %v1847 = vunpack.c.h.b16 %v1323
        %v1848 = vunpack.c.l.b16 %v1324
        %v1849 = vunpack.c.h.b16 %v1324
        %v1850 = vunpack.c.l.b16 %v1325
        %v1851 = vunpack.c.l.b16 %v1326
        %v1852 = vunpack.c.h.b16 %v1326
        %v1853 = vunpack.c.l.b16 %v1327
        %v1854 = vunpack.c.h.b16 %v1327
        %v1855 = vunpack.c.l.b16 %v1328
        %v1856 = vunpack.c.h.b16 %v1328
        %v1857 = vunpack.c.l.b16 %v1329
        %v1858 = vunpack.c.h.b16 %v1329
        %v1859 = vunpack.c.l.b16 %v1330
        %v1860 = vunpack.c.h.b16 %v1330
        %v1861 = vunpack.c.l.b16 %v1331
        %v1862 = vunpack.c.l.b16 %v1332
        %v1863 = vunpack.c.h.b16 %v1332
        %v1864 = vunpack.c.l.b16 %v1333
        %v1865 = vunpack.c.h.b16 %v1333
        %v1866 = vunpack.c.l.b16 %v1334
        %v1867 = vunpack.c.h.b16 %v1334
        %v1868 = vunpack.c.l.b16 %v1335
        %v1869 = vunpack.c.h.b16 %v1335
        %v1870 = vunpack.c.l.b16 %v1336
        %v1871 = vunpack.c.h.b16 %v1336
        %v1872 = vunpack.c.l.b16 %v1337
        %v1873 = vunpack.c.l.b16 %v1338
        %v1874 = vunpack.c.h.b16 %v1338
        %v1875 = vunpack.c.l.b16 %v1339
        %v1876 = vunpack.c.h.b16 %v1339
        %v1877 = vunpack.c.l.b16 %v1340
        %v1878 = vunpack.c.h.b16 %v1340
        %v1879 = vunpack.c.l.b16 %v1341
        %v1880 = vunpack.c.h.b16 %v1341
        %v1881 = vunpack.c.l.b16 %v1342
        %v1882 = vunpack.c.h.b16 %v1342
        %v1883 = vunpack.c.l.b16 %v1343
        %v1884 = vunpack.c.l.b16 %v1344
        %v1885 = vunpack.c.h.b16 %v1344
        %v1886 = vunpack.c.l.b16 %v1345
        %v1887 = vunpack.c.h.b16 %v1345
        %v1888 = vunpack.c.l.b16 %v1346
        %v1889 = vunpack.c.h.b16 %v1346
        %v1890 = vunpack.c.l.b16 %v1347
        %v1891 = vunpack.c.h.b16 %v1347
        %v1892 = vunpack.c.l.b16 %v1348
        %v1893 = vunpack.c.h.b16 %v1348
        %v1894 = vunpack.c.l.b16 %v1349
        %v1895 = vunpack.c.l.b16 %v1350
        %v1896 = vunpack.c.h.b16 %v1350
        %v1897 = vunpack.c.l.b16 %v1351
        %v1898 = vunpack.c.h.b16 %v1351
        %v1899 = vunpack.c.l.b16 %v1352
        %v1900 = vunpack.c.h.b16 %v1352
        %v1901 = vunpack.c.l.b16 %v1353
        %v1902 = vunpack.c.h.b16 %v1353
        %v1903 = vunpack.c.l.b16 %v1354
        %v1904 = vunpack.c.h.b16 %v1354
        %v1905 = vunpack.c.l.b16 %v1355
        %v1906 = vunpack.c.l.b16 %v1356
        %v1907 = vunpack.c.h.b16 %v1356
        %v1908 = vunpack.c.l.b16 %v1357
        %v1909 = vunpack.c.h.b16 %v1357
        %v1910 = vunpack.c.l.b16 %v1358
        %v1911 = vunpack.c.h.b16 %v1358
        %v1912 = vunpack.c.l.b16 %v1359
        %v1913 = vunpack.c.h.b16 %v1359
        %v1914 = vunpack.c.l.b16 %v1360
        %v1915 = vunpack.c.h.b16 %v1360
        %v1916 = vunpack.c.l.b16 %v1361
        %v1917 = vunpack.c.l.b16 %v1362
        %v1918 = vunpack.c.h.b16 %v1362
        %v1919 = vunpack.c.l.b16 %v1363
        %v1920 = vunpack.c.h.b16 %v1363
        %v1921 = vunpack.c.l.b16 %v1364
        %v1922 = vunpack.c.h.b16 %v1364
        %v1923 = vunpack.c.l.b16 %v1365
        %v1924 = vunpack.c.h.b16 %v1365
        %v1925 = vunpack.c.l.b16 %v1366
        %v1926 = vunpack.c.h.b16 %v1366
        %v1927 = vunpack.c.l.b16 %v1367
        %v1928 = vunpack.c.l.b16 %v1368
        %v1929 = vunpack.c.h.b16 %v1368
        %v1930 = vunpack.c.l.b16 %v1369
        %v1931 = vunpack.c.h.b16 %v1369
        %v1932 = vunpack.c.l.b16 %v1370
        %v1933 = vunpack.c.h.b16 %v1370
        %v1934 = vunpack.c.l.b16 %v1371
        %v1935 = vunpack.c.h.b16 %v1371
        %v1936 = vunpack.c.l.b16 %v1372
        %v1937 = vunpack.c.h.b16 %v1372
        %v1938 = vunpack.c.l.b16 %v1373
        %v1939 = vunpack.c.l.b16 %v1374
        %v1940 = vunpack.c.h.b16 %v1374
        %v1941 = vunpack.c.l.b16 %v1375
        %v1942 = vunpack.c.h.b16 %v1375
        %v1943 = vunpack.c.l.b16 %v1376
        %v1944 = vunpack.c.h.b16 %v1376
        %v1945 = vunpack.c.l.b16 %v1377
        %v1946 = vunpack.c.h.b16 %v1377
        %v1947 = vunpack.c.l.b16 %v1378
        %v1948 = vunpack.c.h.b16 %v1378
        %v1949 = vunpack.c.l.b16 %v1379
        %v1950 = vpack.c.b16 %v1609, %v1598
        %v1951 = vpack.c.b16 %v1610, %v1599
        %v1952 = vpack.c.b16 %v1611, %v1600
        %v1953 = vpack.c.b16 %v1612, %v1601
        %v1954 = vpack.c.b16 %v1613, %v1602
        %v1955 = vpack.c.b16 %v1614, %v1603
        %v1956 = vpack.c.b16 %v1615, %v1604
        %v1957 = vpack.c.b16 %v1616, %v1605
        %v1958 = vpack.c.b16 %v1617, %v1606
        %v1959 = vpack.c.b16 %v1618, %v1607
        %v1960 = vpack.c.b16 %v1619, %v1608
        %v1961 = vpack.c.b16 %v1631, %v1620
        %v1962 = vpack.c.b16 %v1632, %v1621
        %v1963 = vpack.c.b16 %v1633, %v1622
        %v1964 = vpack.c.b16 %v1634, %v1623
        %v1965 = vpack.c.b16 %v1635, %v1624
        %v1966 = vpack.c.b16 %v1636, %v1625
        %v1967 = vpack.c.b16 %v1637, %v1626
        %v1968 = vpack.c.b16 %v1638, %v1627
        %v1969 = vpack.c.b16 %v1639, %v1628
        %v1970 = vpack.c.b16 %v1640, %v1629
        %v1971 = vpack.c.b16 %v1641, %v1630
        %v1972 = vpack.c.b16 %v1653, %v1642
        %v1973 = vpack.c.b16 %v1654, %v1643
        %v1974 = vpack.c.b16 %v1655, %v1644
        %v1975 = vpack.c.b16 %v1656, %v1645
        %v1976 = vpack.c.b16 %v1657, %v1646
        %v1977 = vpack.c.b16 %v1658, %v1647
        %v1978 = vpack.c.b16 %v1659, %v1648
        %v1979 = vpack.c.b16 %v1660, %v1649
        %v1980 = vpack.c.b16 %v1661, %v1650
        %v1981 = vpack.c.b16 %v1662, %v1651
        %v1982 = vpack.c.b16 %v1663, %v1652
        %v1983 = vpack.c.b16 %v1675, %v1664
        %v1984 = vpack.c.b16 %v1676, %v1665
        %v1985 = vpack.c.b16 %v1677, %v1666
        %v1986 = vpack.c.b16 %v1678, %v1667
        %v1987 = vpack.c.b16 %v1679, %v1668
        %v1988 = vpack.c.b16 %v1680, %v1669
        %v1989 = vpack.c.b16 %v1681, %v1670
        %v1990 = vpack.c.b16 %v1682, %v1671
        %v1991 = vpack.c.b16 %v1683, %v1672
        %v1992 = vpack.c.b16 %v1684, %v1673
        %v1993 = vpack.c.b16 %v1685, %v1674
        %v1994 = vpack.c.b16 %v1697, %v1686
        %v1995 = vpack.c.b16 %v1698, %v1687
        %v1996 = vpack.c.b16 %v1699, %v1688
        %v1997 = vpack.c.b16 %v1700, %v1689
        %v1998 = vpack.c.b16 %v1701, %v1690
        %v1999 = vpack.c.b16 %v1702, %v1691
        %v2000 = vpack.c.b16 %v1703, %v1692
        %v2001 = vpack.c.b16 %v1704, %v1693
        %v2002 = vpack.c.b16 %v1705, %v1694
        %v2003 = vpack.c.b16 %v1706, %v1695
        %v2004 = vpack.c.b16 %v1707, %v1696
        %v2005 = vpack.c.b16 %v1719, %v1708
        %v2006 = vpack.c.b16 %v1720, %v1709
        %v2007 = vpack.c.b16 %v1721, %v1710
        %v2008 = vpack.c.b16 %v1722, %v1711
        %v2009 = vpack.c.b16 %v1723, %v1712
        %v2010 = vpack.c.b16 %v1724, %v1713
        %v2011 = vpack.c.b16 %v1725, %v1714
        %v2012 = vpack.c.b16 %v1726, %v1715
        %v2013 = vpack.c.b16 %v1727, %v1716
        %v2014 = vpack.c.b16 %v1728, %v1717
        %v2015 = vpack.c.b16 %v1729, %v1718
        %v2016 = vpack.c.b16 %v1741, %v1730
        %v2017 = vpack.c.b16 %v1742, %v1731
        %v2018 = vpack.c.b16 %v1743, %v1732
        %v2019 = vpack.c.b16 %v1744, %v1733
        %v2020 = vpack.c.b16 %v1745, %v1734
        %v2021 = vpack.c.b16 %v1746, %v1735
        %v2022 = vpack.c.b16 %v1747, %v1736
        %v2023 = vpack.c.b16 %v1748, %v1737
        %v2024 = vpack.c.b16 %v1749, %v1738
        %v2025 = vpack.c.b16 %v1750, %v1739
        %v2026 = vpack.c.b16 %v1751, %v1740
        %v2027 = vpack.c.b16 %v1763, %v1752
        %v2028 = vpack.c.b16 %v1764, %v1753
        %v2029 = vpack.c.b16 %v1765, %v1754
        %v2030 = vpack.c.b16 %v1766, %v1755
        %v2031 = vpack.c.b16 %v1767, %v1756
        %v2032 = vpack.c.b16 %v1768, %v1757
        %v2033 = vpack.c.b16 %v1769, %v1758
        %v2034 = vpack.c.b16 %v1770, %v1759
        %v2035 = vpack.c.b16 %v1771, %v1760
        %v2036 = vpack.c.b16 %v1772, %v1761
        %v2037 = vpack.c.b16 %v1773, %v1762
        %v2038 = vpack.c.b16 %v1785, %v1774
        %v2039 = vpack.c.b16 %v1786, %v1775
        %v2040 = vpack.c.b16 %v1787, %v1776
        %v2041 = vpack.c.b16 %v1788, %v1777
        %v2042 = vpack.c.b16 %v1789, %v1778
        %v2043 = vpack.c.b16 %v1790, %v1779
        %v2044 = vpack.c.b16 %v1791, %v1780
        %v2045 = vpack.c.b16 %v1792, %v1781
        %v2046 = vpack.c.b16 %v1793, %v1782
        %v2047 = vpack.c.b16 %v1794, %v1783
        %v2048 = vpack.c.b16 %v1795, %v1784
        %v2049 = vpack.c.b16 %v1807, %v1796
        %v2050 = vpack.c.b16 %v1808, %v1797
        %v2051 = vpack.c.b16 %v1809, %v1798
        %v2052 = vpack.c.b16 %v1810, %v1799
        %v2053 = vpack.c.b16 %v1811, %v1800
        %v2054 = vpack.c.b16 %v1812, %v1801
        %v2055 = vpack.c.b16 %v1813, %v1802
        %v2056 = vpack.c.b16 %v1814, %v1803
        %v2057 = vpack.c.b16 %v1815, %v1804
        %v2058 = vpack.c.b16 %v1816, %v1805
        %v2059 = vpack.c.b16 %v1817, %v1806
        %v2060 = vpack.c.b16 %v1829, %v1818
        %v2061 = vpack.c.b16 %v1830, %v1819
        %v2062 = vpack.c.b16 %v1831, %v1820
        %v2063 = vpack.c.b16 %v1832, %v1821
        %v2064 = vpack.c.b16 %v1833, %v1822
        %v2065 = vpack.c.b16 %v1834, %v1823
        %v2066 = vpack.c.b16 %v1835, %v1824
        %v2067 = vpack.c.b16 %v1836, %v1825
        %v2068 = vpack.c.b16 %v1837, %v1826
        %v2069 = vpack.c.b16 %v1838, %v1827
        %v2070 = vpack.c.b16 %v1839, %v1828
        %v2071 = vpack.c.b16 %v1851, %v1840
        %v2072 = vpack.c.b16 %v1852, %v1841
        %v2073 = vpack.c.b16 %v1853, %v1842
        %v2074 = vpack.c.b16 %v1854, %v1843
        %v2075 = vpack.c.b16 %v1855, %v1844
        %v2076 = vpack.c.b16 %v1856, %v1845
        %v2077 = vpack.c.b16 %v1857, %v1846
        %v2078 = vpack.c.b16 %v1858, %v1847
        %v2079 = vpack.c.b16 %v1859, %v1848
        %v2080 = vpack.c.b16 %v1860, %v1849
        %v2081 = vpack.c.b16 %v1861, %v1850
        %v2082 = vpack.c.b16 %v1873, %v1862
        %v2083 = vpack.c.b16 %v1874, %v1863
        %v2084 = vpack.c.b16 %v1875, %v1864
        %v2085 = vpack.c.b16 %v1876, %v1865
        %v2086 = vpack.c.b16 %v1877, %v1866
        %v2087 = vpack.c.b16 %v1878, %v1867
        %v2088 = vpack.c.b16 %v1879, %v1868
        %v2089 = vpack.c.b16 %v1880, %v1869
        %v2090 = vpack.c.b16 %v1881, %v1870
        %v2091 = vpack.c.b16 %v1882, %v1871
        %v2092 = vpack.c.b16 %v1883, %v1872
        %v2093 = vpack.c.b16 %v1895, %v1884
        %v2094 = vpack.c.b16 %v1896, %v1885
        %v2095 = vpack.c.b16 %v1897, %v1886
        %v2096 = vpack.c.b16 %v1898, %v1887
        %v2097 = vpack.c.b16 %v1899, %v1888
        %v2098 = vpack.c.b16 %v1900, %v1889
        %v2099 = vpack.c.b16 %v1901, %v1890
        %v2100 = vpack.c.b16 %v1902, %v1891
        %v2101 = vpack.c.b16 %v1903, %v1892
        %v2102 = vpack.c.b16 %v1904, %v1893
        %v2103 = vpack.c.b16 %v1905, %v1894
        %v2104 = vpack.c.b16 %v1917, %v1906
        %v2105 = vpack.c.b16 %v1918, %v1907
        %v2106 = vpack.c.b16 %v1919, %v1908
        %v2107 = vpack.c.b16 %v1920, %v1909
        %v2108 = vpack.c.b16 %v1921, %v1910
        %v2109 = vpack.c.b16 %v1922, %v1911
        %v2110 = vpack.c.b16 %v1923, %v1912
        %v2111 = vpack.c.b16 %v1924, %v1913
        %v2112 = vpack.c.b16 %v1925, %v1914
        %v2113 = vpack.c.b16 %v1926, %v1915
        %v2114 = vpack.c.b16 %v1927, %v1916
        %v2115 = vpack.c.b16 %v1939, %v1928
        %v2116 = vpack.c.b16 %v1940, %v1929
        %v2117 = vpack.c.b16 %v1941, %v1930
        %v2118 = vpack.c.b16 %v1942, %v1931
        %v2119 = vpack.c.b16 %v1943, %v1932
        %v2120 = vpack.c.b16 %v1944, %v1933
        %v2121 = vpack.c.b16 %v1945, %v1934
        %v2122 = vpack.c.b16 %v1946, %v1935
        %v2123 = vpack.c.b16 %v1947, %v1936
        %v2124 = vpack.c.b16 %v1948, %v1937
        %v2125 = vpack.c.b16 %v1949, %v1938
        %2302 = vmatpush.bf16.msra.mxu0 %v2027
        %2303 = vmatpush.bf16.msra.mxu0 %v2016
        %2304 = vmatpush.bf16.msra.mxu0 %v2005
        %2305 = vmatpush.bf16.msra.mxu0 %v1994
        %2306 = vmatpush.bf16.msra.mxu0 %v1983
        %2307 = vmatpush.bf16.msra.mxu0 %v1972
        %2308 = vmatpush.bf16.msra.mxu0 %v1961
        %2309 = vmatpush.bf16.msra.mxu0 %v1950
        %2310 = vmatmul.bf16.gmra.mxu0 %v1124
        %v2311 = vpop.f32.mrf.mxu0
        %v2312 = vadd.f32 %v1384, %v2311
        %v2313 = vpop.f32.mrf.mxu0
        %v2314 = vadd.f32 %v1384, %v2313
        %2315 = vmatmul.bf16.gmra.mxu0 %v1126
        %v2316 = vpop.f32.mrf.mxu0
        %v2317 = vadd.f32 %v1384, %v2316
        %v2318 = vpop.f32.mrf.mxu0
        %v2319 = vadd.f32 %v1384, %v2318
        %2320 = vmatmul.bf16.gmra.mxu0 %v1128
        %v2321 = vpop.f32.mrf.mxu0
        %v2322 = vadd.f32 %v1384, %v2321
        %v2323 = vpop.f32.mrf.mxu0
        %v2324 = vadd.f32 %v1384, %v2323
        %2325 = vmatmul.bf16.gmra.mxu0 %v1130
        %v2326 = vpop.f32.mrf.mxu0
        %v2327 = vadd.f32 %v1384, %v2326
        %v2328 = vpop.f32.mrf.mxu0
        %v2329 = vadd.f32 %v1384, %v2328
        %2330 = vmatmul.bf16.gmra.mxu0 %v1132
        %v2331 = vpop.f32.mrf.mxu0
        %v2332 = vadd.f32 %v1384, %v2331
        %v2333 = vpop.f32.mrf.mxu0
        %v2334 = vadd.f32 %v1384, %v2333
        %2335 = vmatmul.bf16.gmra.mxu0 %v1134
        %v2336 = vpop.f32.mrf.mxu0
        %v2337 = vadd.f32 %v1384, %v2336
        %v2338 = vpop.f32.mrf.mxu0
        %v2339 = vadd.f32 %v1384, %v2338
        %2340 = vmatmul.bf16.gmra.mxu0 %v1136
        %v2341 = vpop.f32.mrf.mxu0
        %v2342 = vadd.f32 %v1384, %v2341
        %v2343 = vpop.f32.mrf.mxu0
        %v2344 = vadd.f32 %v1384, %v2343
        %2345 = vmatmul.bf16.gmra.mxu0 %v1138
        %v2346 = vpop.f32.mrf.mxu0
        %v2347 = vadd.f32 %v1384, %v2346
        %v2348 = vpop.f32.mrf.mxu0
        %v2349 = vadd.f32 %v1384, %v2348
        %2350 = vmatmul.bf16.gmra.mxu0 %v1140
        %v2351 = vpop.f32.mrf.mxu0
        %v2352 = vadd.f32 %v1384, %v2351
        %v2353 = vpop.f32.mrf.mxu0
        %v2354 = vadd.f32 %v1384, %v2353
        %2355 = vmatmul.bf16.gmra.mxu0 %v1142
        %v2356 = vpop.f32.mrf.mxu0
        %v2357 = vadd.f32 %v1384, %v2356
        %v2358 = vpop.f32.mrf.mxu0
        %v2359 = vadd.f32 %v1384, %v2358
        %2360 = vmatmul.bf16.gmra.mxu0 %v1144
        %v2361 = vpop.f32.mrf.mxu0
        %v2362 = vadd.f32 %v1384, %v2361
        %v2363 = vpop.f32.mrf.mxu0
        %v2364 = vadd.f32 %v1384, %v2363
        %2365 = vmatmul.bf16.gmra.mxu0 %v1146
        %v2366 = vpop.f32.mrf.mxu0
        %v2367 = vadd.f32 %v1384, %v2366
        %v2368 = vpop.f32.mrf.mxu0
        %v2369 = vadd.f32 %v1384, %v2368
        %2370 = vmatmul.bf16.gmra.mxu0 %v1148
        %v2371 = vpop.f32.mrf.mxu0
        %v2372 = vadd.f32 %v1384, %v2371
        %v2373 = vpop.f32.mrf.mxu0
        %v2374 = vadd.f32 %v1384, %v2373
        %2375 = vmatmul.bf16.gmra.mxu0 %v1150
        %v2376 = vpop.f32.mrf.mxu0
        %v2377 = vadd.f32 %v1384, %v2376
        %v2378 = vpop.f32.mrf.mxu0
        %v2379 = vadd.f32 %v1384, %v2378
        %2380 = vmatmul.bf16.gmra.mxu0 %v1152
        %v2381 = vpop.f32.mrf.mxu0
        %v2382 = vadd.f32 %v1384, %v2381
        %v2383 = vpop.f32.mrf.mxu0
        %v2384 = vadd.f32 %v1384, %v2383
        %2385 = vmatmul.bf16.gmra.mxu0 %v1154
        %v2386 = vpop.f32.mrf.mxu0
        %v2387 = vadd.f32 %v1384, %v2386
        %v2388 = vpop.f32.mrf.mxu0
        %v2389 = vadd.f32 %v1384, %v2388
        %2390 = vmatmul.bf16.gmra.mxu0 %v1156
        %v2391 = vpop.f32.mrf.mxu0
        %v2392 = vadd.f32 %v1384, %v2391
        %v2393 = vpop.f32.mrf.mxu0
        %v2394 = vadd.f32 %v1384, %v2393
        %2395 = vmatmul.bf16.gmra.mxu0 %v1158
        %v2396 = vpop.f32.mrf.mxu0
        %v2397 = vadd.f32 %v1384, %v2396
        %v2398 = vpop.f32.mrf.mxu0
        %v2399 = vadd.f32 %v1384, %v2398
        %2400 = vmatmul.bf16.gmra.mxu0 %v1160
        %v2401 = vpop.f32.mrf.mxu0
        %v2402 = vadd.f32 %v1384, %v2401
        %v2403 = vpop.f32.mrf.mxu0
        %v2404 = vadd.f32 %v1384, %v2403
        %2405 = vmatmul.bf16.gmra.mxu0 %v1162
        %v2406 = vpop.f32.mrf.mxu0
        %v2407 = vadd.f32 %v1384, %v2406
        %v2408 = vpop.f32.mrf.mxu0
        %v2409 = vadd.f32 %v1384, %v2408
        %2410 = vmatmul.bf16.gmra.mxu0 %v1164
        %v2411 = vpop.f32.mrf.mxu0
        %v2412 = vadd.f32 %v1384, %v2411
        %v2413 = vpop.f32.mrf.mxu0
        %v2414 = vadd.f32 %v1384, %v2413
        %2415 = vmatmul.bf16.gmra.mxu0 %v1166
        %v2416 = vpop.f32.mrf.mxu0
        %v2417 = vadd.f32 %v1384, %v2416
        %v2418 = vpop.f32.mrf.mxu0
        %v2419 = vadd.f32 %v1384, %v2418
        %2420 = vmatmul.bf16.gmra.mxu0 %v1168
        %v2421 = vpop.f32.mrf.mxu0
        %v2422 = vadd.f32 %v1384, %v2421
        %v2423 = vpop.f32.mrf.mxu0
        %v2424 = vadd.f32 %v1384, %v2423
        %2425 = vmatmul.bf16.gmra.mxu0 %v1170
        %v2426 = vpop.f32.mrf.mxu0
        %v2427 = vadd.f32 %v1384, %v2426
        %v2428 = vpop.f32.mrf.mxu0
        %v2429 = vadd.f32 %v1384, %v2428
        %2430 = vmatmul.bf16.gmra.mxu0 %v1172
        %v2431 = vpop.f32.mrf.mxu0
        %v2432 = vadd.f32 %v1384, %v2431
        %v2433 = vpop.f32.mrf.mxu0
        %v2434 = vadd.f32 %v1384, %v2433
        %2435 = vmatmul.bf16.gmra.mxu0 %v1174
        %v2436 = vpop.f32.mrf.mxu0
        %v2437 = vadd.f32 %v1384, %v2436
        %v2438 = vpop.f32.mrf.mxu0
        %v2439 = vadd.f32 %v1384, %v2438
        %2440 = vmatmul.bf16.gmra.mxu0 %v1176
        %v2441 = vpop.f32.mrf.mxu0
        %v2442 = vadd.f32 %v1384, %v2441
        %v2443 = vpop.f32.mrf.mxu0
        %v2444 = vadd.f32 %v1384, %v2443
        %2445 = vmatmul.bf16.gmra.mxu0 %v1178
        %v2446 = vpop.f32.mrf.mxu0
        %v2447 = vadd.f32 %v1384, %v2446
        %v2448 = vpop.f32.mrf.mxu0
        %v2449 = vadd.f32 %v1384, %v2448
        %2450 = vmatmul.bf16.gmra.mxu0 %v1180
        %v2451 = vpop.f32.mrf.mxu0
        %v2452 = vadd.f32 %v1384, %v2451
        %v2453 = vpop.f32.mrf.mxu0
        %v2454 = vadd.f32 %v1384, %v2453
        %2455 = vmatmul.bf16.gmra.mxu0 %v1182
        %v2456 = vpop.f32.mrf.mxu0
        %v2457 = vadd.f32 %v1384, %v2456
        %v2458 = vpop.f32.mrf.mxu0
        %v2459 = vadd.f32 %v1384, %v2458
        %2460 = vmatmul.bf16.gmra.mxu0 %v1184
        %v2461 = vpop.f32.mrf.mxu0
        %v2462 = vadd.f32 %v1384, %v2461
        %v2463 = vpop.f32.mrf.mxu0
        %v2464 = vadd.f32 %v1384, %v2463
        %2465 = vmatmul.bf16.gmra.mxu0 %v1186
        %v2466 = vpop.f32.mrf.mxu0
        %v2467 = vadd.f32 %v1384, %v2466
        %v2468 = vpop.f32.mrf.mxu0
        %v2469 = vadd.f32 %v1384, %v2468
        %2470 = vdwg.mxu0
        %2471 = vmatpush.bf16.msra.mxu0 %v2115
        %2472 = vmatpush.bf16.msra.mxu0 %v2104
        %2473 = vmatpush.bf16.msra.mxu0 %v2093
        %2474 = vmatpush.bf16.msra.mxu0 %v2082
        %2475 = vmatpush.bf16.msra.mxu0 %v2071
        %2476 = vmatpush.bf16.msra.mxu0 %v2060
        %2477 = vmatpush.bf16.msra.mxu0 %v2049
        %2478 = vmatpush.bf16.msra.mxu0 %v2038
        %2479 = vmatmul.bf16.gmra.mxu0 %v1125
        %v2480 = vpop.f32.mrf.mxu0
        %v2481 = vadd.f32 %v2312, %v2480
        %v2482 = vpop.f32.mrf.mxu0
        %v2483 = vadd.f32 %v2314, %v2482
        %2484 = vmatmul.bf16.gmra.mxu0 %v1127
        %v2485 = vpop.f32.mrf.mxu0
        %v2486 = vadd.f32 %v2317, %v2485
        %v2487 = vpop.f32.mrf.mxu0
        %v2488 = vadd.f32 %v2319, %v2487
        %2489 = vmatmul.bf16.gmra.mxu0 %v1129
        %v2490 = vpop.f32.mrf.mxu0
        %v2491 = vadd.f32 %v2322, %v2490
        %v2492 = vpop.f32.mrf.mxu0
        %v2493 = vadd.f32 %v2324, %v2492
        %2494 = vmatmul.bf16.gmra.mxu0 %v1131
        %v2495 = vpop.f32.mrf.mxu0
        %v2496 = vadd.f32 %v2327, %v2495
        %v2497 = vpop.f32.mrf.mxu0
        %v2498 = vadd.f32 %v2329, %v2497
        %2499 = vmatmul.bf16.gmra.mxu0 %v1133
        %v2500 = vpop.f32.mrf.mxu0
        %v2501 = vadd.f32 %v2332, %v2500
        %v2502 = vpop.f32.mrf.mxu0
        %v2503 = vadd.f32 %v2334, %v2502
        %2504 = vmatmul.bf16.gmra.mxu0 %v1135
        %v2505 = vpop.f32.mrf.mxu0
        %v2506 = vadd.f32 %v2337, %v2505
        %v2507 = vpop.f32.mrf.mxu0
        %v2508 = vadd.f32 %v2339, %v2507
        %2509 = vmatmul.bf16.gmra.mxu0 %v1137
        %v2510 = vpop.f32.mrf.mxu0
        %v2511 = vadd.f32 %v2342, %v2510
        %v2512 = vpop.f32.mrf.mxu0
        %v2513 = vadd.f32 %v2344, %v2512
        %2514 = vmatmul.bf16.gmra.mxu0 %v1139
        %v2515 = vpop.f32.mrf.mxu0
        %v2516 = vadd.f32 %v2347, %v2515
        %v2517 = vpop.f32.mrf.mxu0
        %v2518 = vadd.f32 %v2349, %v2517
        %2519 = vmatmul.bf16.gmra.mxu0 %v1141
        %v2520 = vpop.f32.mrf.mxu0
        %v2521 = vadd.f32 %v2352, %v2520
        %v2522 = vpop.f32.mrf.mxu0
        %v2523 = vadd.f32 %v2354, %v2522
        %2524 = vmatmul.bf16.gmra.mxu0 %v1143
        %v2525 = vpop.f32.mrf.mxu0
        %v2526 = vadd.f32 %v2357, %v2525
        %v2527 = vpop.f32.mrf.mxu0
        %v2528 = vadd.f32 %v2359, %v2527
        %2529 = vmatmul.bf16.gmra.mxu0 %v1145
        %v2530 = vpop.f32.mrf.mxu0
        %v2531 = vadd.f32 %v2362, %v2530
        %v2532 = vpop.f32.mrf.mxu0
        %v2533 = vadd.f32 %v2364, %v2532
        %2534 = vmatmul.bf16.gmra.mxu0 %v1147
        %v2535 = vpop.f32.mrf.mxu0
        %v2536 = vadd.f32 %v2367, %v2535
        %v2537 = vpop.f32.mrf.mxu0
        %v2538 = vadd.f32 %v2369, %v2537
        %2539 = vmatmul.bf16.gmra.mxu0 %v1149
        %v2540 = vpop.f32.mrf.mxu0
        %v2541 = vadd.f32 %v2372, %v2540
        %v2542 = vpop.f32.mrf.mxu0
        %v2543 = vadd.f32 %v2374, %v2542
        %2544 = vmatmul.bf16.gmra.mxu0 %v1151
        %v2545 = vpop.f32.mrf.mxu0
        %v2546 = vadd.f32 %v2377, %v2545
        %v2547 = vpop.f32.mrf.mxu0
        %v2548 = vadd.f32 %v2379, %v2547
        %2549 = vmatmul.bf16.gmra.mxu0 %v1153
        %v2550 = vpop.f32.mrf.mxu0
        %v2551 = vadd.f32 %v2382, %v2550
        %v2552 = vpop.f32.mrf.mxu0
        %v2553 = vadd.f32 %v2384, %v2552
        %2554 = vmatmul.bf16.gmra.mxu0 %v1155
        %v2555 = vpop.f32.mrf.mxu0
        %v2556 = vadd.f32 %v2387, %v2555
        %v2557 = vpop.f32.mrf.mxu0
        %v2558 = vadd.f32 %v2389, %v2557
        %2559 = vmatmul.bf16.gmra.mxu0 %v1157
        %v2560 = vpop.f32.mrf.mxu0
        %v2561 = vadd.f32 %v2392, %v2560
        %v2562 = vpop.f32.mrf.mxu0
        %v2563 = vadd.f32 %v2394, %v2562
        %2564 = vmatmul.bf16.gmra.mxu0 %v1159
        %v2565 = vpop.f32.mrf.mxu0
        %v2566 = vadd.f32 %v2397, %v2565
        %v2567 = vpop.f32.mrf.mxu0
        %v2568 = vadd.f32 %v2399, %v2567
        %2569 = vmatmul.bf16.gmra.mxu0 %v1161
        %v2570 = vpop.f32.mrf.mxu0
        %v2571 = vadd.f32 %v2402, %v2570
        %v2572 = vpop.f32.mrf.mxu0
        %v2573 = vadd.f32 %v2404, %v2572
        %2574 = vmatmul.bf16.gmra.mxu0 %v1163
        %v2575 = vpop.f32.mrf.mxu0
        %v2576 = vadd.f32 %v2407, %v2575
        %v2577 = vpop.f32.mrf.mxu0
        %v2578 = vadd.f32 %v2409, %v2577
        %2579 = vmatmul.bf16.gmra.mxu0 %v1165
        %v2580 = vpop.f32.mrf.mxu0
        %v2581 = vadd.f32 %v2412, %v2580
        %v2582 = vpop.f32.mrf.mxu0
        %v2583 = vadd.f32 %v2414, %v2582
        %2584 = vmatmul.bf16.gmra.mxu0 %v1167
        %v2585 = vpop.f32.mrf.mxu0
        %v2586 = vadd.f32 %v2417, %v2585
        %v2587 = vpop.f32.mrf.mxu0
        %v2588 = vadd.f32 %v2419, %v2587
        %2589 = vmatmul.bf16.gmra.mxu0 %v1169
        %v2590 = vpop.f32.mrf.mxu0
        %v2591 = vadd.f32 %v2422, %v2590
        %v2592 = vpop.f32.mrf.mxu0
        %v2593 = vadd.f32 %v2424, %v2592
        %2594 = vmatmul.bf16.gmra.mxu0 %v1171
        %v2595 = vpop.f32.mrf.mxu0
        %v2596 = vadd.f32 %v2427, %v2595
        %v2597 = vpop.f32.mrf.mxu0
        %v2598 = vadd.f32 %v2429, %v2597
        %2599 = vmatmul.bf16.gmra.mxu0 %v1173
        %v2600 = vpop.f32.mrf.mxu0
        %v2601 = vadd.f32 %v2432, %v2600
        %v2602 = vpop.f32.mrf.mxu0
        %v2603 = vadd.f32 %v2434, %v2602
        %2604 = vmatmul.bf16.gmra.mxu0 %v1175
        %v2605 = vpop.f32.mrf.mxu0
        %v2606 = vadd.f32 %v2437, %v2605
        %v2607 = vpop.f32.mrf.mxu0
        %v2608 = vadd.f32 %v2439, %v2607
        %2609 = vmatmul.bf16.gmra.mxu0 %v1177
        %v2610 = vpop.f32.mrf.mxu0
        %v2611 = vadd.f32 %v2442, %v2610
        %v2612 = vpop.f32.mrf.mxu0
        %v2613 = vadd.f32 %v2444, %v2612
        %2614 = vmatmul.bf16.gmra.mxu0 %v1179
        %v2615 = vpop.f32.mrf.mxu0
        %v2616 = vadd.f32 %v2447, %v2615
        %v2617 = vpop.f32.mrf.mxu0
        %v2618 = vadd.f32 %v2449, %v2617
        %2619 = vmatmul.bf16.gmra.mxu0 %v1181
        %v2620 = vpop.f32.mrf.mxu0
        %v2621 = vadd.f32 %v2452, %v2620
        %v2622 = vpop.f32.mrf.mxu0
        %v2623 = vadd.f32 %v2454, %v2622
        %2624 = vmatmul.bf16.gmra.mxu0 %v1183
        %v2625 = vpop.f32.mrf.mxu0
        %v2626 = vadd.f32 %v2457, %v2625
        %v2627 = vpop.f32.mrf.mxu0
        %v2628 = vadd.f32 %v2459, %v2627
        %2629 = vmatmul.bf16.gmra.mxu0 %v1185
        %v2630 = vpop.f32.mrf.mxu0
        %v2631 = vadd.f32 %v2462, %v2630
        %v2632 = vpop.f32.mrf.mxu0
        %v2633 = vadd.f32 %v2464, %v2632
        %2634 = vmatmul.bf16.gmra.mxu0 %v1187
        %v2635 = vpop.f32.mrf.mxu0
        %v2636 = vadd.f32 %v2467, %v2635
        %v2637 = vpop.f32.mrf.mxu0
        %v2638 = vadd.f32 %v2469, %v2637
        %2639 = vdwg.mxu0
        %2640 = vmatpush.bf16.msra.mxu0 %v2028
        %2641 = vmatpush.bf16.msra.mxu0 %v2017
        %2642 = vmatpush.bf16.msra.mxu0 %v2006
        %2643 = vmatpush.bf16.msra.mxu0 %v1995
        %2644 = vmatpush.bf16.msra.mxu0 %v1984
        %2645 = vmatpush.bf16.msra.mxu0 %v1973
        %2646 = vmatpush.bf16.msra.mxu0 %v1962
        %2647 = vmatpush.bf16.msra.mxu0 %v1951
        %2648 = vmatmul.bf16.gmra.mxu0 %v1124
        %v2649 = vpop.f32.mrf.mxu0
        %v2650 = vadd.f32 %v1385, %v2649
        %v2651 = vpop.f32.mrf.mxu0
        %v2652 = vadd.f32 %v1385, %v2651
        %2653 = vmatmul.bf16.gmra.mxu0 %v1126
        %v2654 = vpop.f32.mrf.mxu0
        %v2655 = vadd.f32 %v1385, %v2654
        %v2656 = vpop.f32.mrf.mxu0
        %v2657 = vadd.f32 %v1385, %v2656
        %2658 = vmatmul.bf16.gmra.mxu0 %v1128
        %v2659 = vpop.f32.mrf.mxu0
        %v2660 = vadd.f32 %v1385, %v2659
        %v2661 = vpop.f32.mrf.mxu0
        %v2662 = vadd.f32 %v1385, %v2661
        %2663 = vmatmul.bf16.gmra.mxu0 %v1130
        %v2664 = vpop.f32.mrf.mxu0
        %v2665 = vadd.f32 %v1385, %v2664
        %v2666 = vpop.f32.mrf.mxu0
        %v2667 = vadd.f32 %v1385, %v2666
        %2668 = vmatmul.bf16.gmra.mxu0 %v1132
        %v2669 = vpop.f32.mrf.mxu0
        %v2670 = vadd.f32 %v1385, %v2669
        %v2671 = vpop.f32.mrf.mxu0
        %v2672 = vadd.f32 %v1385, %v2671
        %2673 = vmatmul.bf16.gmra.mxu0 %v1134
        %v2674 = vpop.f32.mrf.mxu0
        %v2675 = vadd.f32 %v1385, %v2674
        %v2676 = vpop.f32.mrf.mxu0
        %v2677 = vadd.f32 %v1385, %v2676
        %2678 = vmatmul.bf16.gmra.mxu0 %v1136
        %v2679 = vpop.f32.mrf.mxu0
        %v2680 = vadd.f32 %v1385, %v2679
        %v2681 = vpop.f32.mrf.mxu0
        %v2682 = vadd.f32 %v1385, %v2681
        %2683 = vmatmul.bf16.gmra.mxu0 %v1138
        %v2684 = vpop.f32.mrf.mxu0
        %v2685 = vadd.f32 %v1385, %v2684
        %v2686 = vpop.f32.mrf.mxu0
        %v2687 = vadd.f32 %v1385, %v2686
        %2688 = vmatmul.bf16.gmra.mxu0 %v1140
        %v2689 = vpop.f32.mrf.mxu0
        %v2690 = vadd.f32 %v1385, %v2689
        %v2691 = vpop.f32.mrf.mxu0
        %v2692 = vadd.f32 %v1385, %v2691
        %2693 = vmatmul.bf16.gmra.mxu0 %v1142
        %v2694 = vpop.f32.mrf.mxu0
        %v2695 = vadd.f32 %v1385, %v2694
        %v2696 = vpop.f32.mrf.mxu0
        %v2697 = vadd.f32 %v1385, %v2696
        %2698 = vmatmul.bf16.gmra.mxu0 %v1144
        %v2699 = vpop.f32.mrf.mxu0
        %v2700 = vadd.f32 %v1385, %v2699
        %v2701 = vpop.f32.mrf.mxu0
        %v2702 = vadd.f32 %v1385, %v2701
        %2703 = vmatmul.bf16.gmra.mxu0 %v1146
        %v2704 = vpop.f32.mrf.mxu0
        %v2705 = vadd.f32 %v1385, %v2704
        %v2706 = vpop.f32.mrf.mxu0
        %v2707 = vadd.f32 %v1385, %v2706
        %2708 = vmatmul.bf16.gmra.mxu0 %v1148
        %v2709 = vpop.f32.mrf.mxu0
        %v2710 = vadd.f32 %v1385, %v2709
        %v2711 = vpop.f32.mrf.mxu0
        %v2712 = vadd.f32 %v1385, %v2711
        %2713 = vmatmul.bf16.gmra.mxu0 %v1150
        %v2714 = vpop.f32.mrf.mxu0
        %v2715 = vadd.f32 %v1385, %v2714
        %v2716 = vpop.f32.mrf.mxu0
        %v2717 = vadd.f32 %v1385, %v2716
        %2718 = vmatmul.bf16.gmra.mxu0 %v1152
        %v2719 = vpop.f32.mrf.mxu0
        %v2720 = vadd.f32 %v1385, %v2719
        %v2721 = vpop.f32.mrf.mxu0
        %v2722 = vadd.f32 %v1385, %v2721
        %2723 = vmatmul.bf16.gmra.mxu0 %v1154
        %v2724 = vpop.f32.mrf.mxu0
        %v2725 = vadd.f32 %v1385, %v2724
        %v2726 = vpop.f32.mrf.mxu0
        %v2727 = vadd.f32 %v1385, %v2726
        %2728 = vmatmul.bf16.gmra.mxu0 %v1156
        %v2729 = vpop.f32.mrf.mxu0
        %v2730 = vadd.f32 %v1385, %v2729
        %v2731 = vpop.f32.mrf.mxu0
        %v2732 = vadd.f32 %v1385, %v2731
        %2733 = vmatmul.bf16.gmra.mxu0 %v1158
        %v2734 = vpop.f32.mrf.mxu0
        %v2735 = vadd.f32 %v1385, %v2734
        %v2736 = vpop.f32.mrf.mxu0
        %v2737 = vadd.f32 %v1385, %v2736
        %2738 = vmatmul.bf16.gmra.mxu0 %v1160
        %v2739 = vpop.f32.mrf.mxu0
        %v2740 = vadd.f32 %v1385, %v2739
        %v2741 = vpop.f32.mrf.mxu0
        %v2742 = vadd.f32 %v1385, %v2741
        %2743 = vmatmul.bf16.gmra.mxu0 %v1162
        %v2744 = vpop.f32.mrf.mxu0
        %v2745 = vadd.f32 %v1385, %v2744
        %v2746 = vpop.f32.mrf.mxu0
        %v2747 = vadd.f32 %v1385, %v2746
        %2748 = vmatmul.bf16.gmra.mxu0 %v1164
        %v2749 = vpop.f32.mrf.mxu0
        %v2750 = vadd.f32 %v1385, %v2749
        %v2751 = vpop.f32.mrf.mxu0
        %v2752 = vadd.f32 %v1385, %v2751
        %2753 = vmatmul.bf16.gmra.mxu0 %v1166
        %v2754 = vpop.f32.mrf.mxu0
        %v2755 = vadd.f32 %v1385, %v2754
        %v2756 = vpop.f32.mrf.mxu0
        %v2757 = vadd.f32 %v1385, %v2756
        %2758 = vmatmul.bf16.gmra.mxu0 %v1168
        %v2759 = vpop.f32.mrf.mxu0
        %v2760 = vadd.f32 %v1385, %v2759
        %v2761 = vpop.f32.mrf.mxu0
        %v2762 = vadd.f32 %v1385, %v2761
        %2763 = vmatmul.bf16.gmra.mxu0 %v1170
        %v2764 = vpop.f32.mrf.mxu0
        %v2765 = vadd.f32 %v1385, %v2764
        %v2766 = vpop.f32.mrf.mxu0
        %v2767 = vadd.f32 %v1385, %v2766
        %2768 = vmatmul.bf16.gmra.mxu0 %v1172
        %v2769 = vpop.f32.mrf.mxu0
        %v2770 = vadd.f32 %v1385, %v2769
        %v2771 = vpop.f32.mrf.mxu0
        %v2772 = vadd.f32 %v1385, %v2771
        %2773 = vmatmul.bf16.gmra.mxu0 %v1174
        %v2774 = vpop.f32.mrf.mxu0
        %v2775 = vadd.f32 %v1385, %v2774
        %v2776 = vpop.f32.mrf.mxu0
        %v2777 = vadd.f32 %v1385, %v2776
        %2778 = vmatmul.bf16.gmra.mxu0 %v1176
        %v2779 = vpop.f32.mrf.mxu0
        %v2780 = vadd.f32 %v1385, %v2779
        %v2781 = vpop.f32.mrf.mxu0
        %v2782 = vadd.f32 %v1385, %v2781
        %2783 = vmatmul.bf16.gmra.mxu0 %v1178
        %v2784 = vpop.f32.mrf.mxu0
        %v2785 = vadd.f32 %v1385, %v2784
        %v2786 = vpop.f32.mrf.mxu0
        %v2787 = vadd.f32 %v1385, %v2786
        %2788 = vmatmul.bf16.gmra.mxu0 %v1180
        %v2789 = vpop.f32.mrf.mxu0
        %v2790 = vadd.f32 %v1385, %v2789
        %v2791 = vpop.f32.mrf.mxu0
        %v2792 = vadd.f32 %v1385, %v2791
        %2793 = vmatmul.bf16.gmra.mxu0 %v1182
        %v2794 = vpop.f32.mrf.mxu0
        %v2795 = vadd.f32 %v1385, %v2794
        %v2796 = vpop.f32.mrf.mxu0
        %v2797 = vadd.f32 %v1385, %v2796
        %2798 = vmatmul.bf16.gmra.mxu0 %v1184
        %v2799 = vpop.f32.mrf.mxu0
        %v2800 = vadd.f32 %v1385, %v2799
        %v2801 = vpop.f32.mrf.mxu0
        %v2802 = vadd.f32 %v1385, %v2801
        %2803 = vmatmul.bf16.gmra.mxu0 %v1186
        %v2804 = vpop.f32.mrf.mxu0
        %v2805 = vadd.f32 %v1385, %v2804
        %v2806 = vpop.f32.mrf.mxu0
        %v2807 = vadd.f32 %v1385, %v2806
        %2808 = vdwg.mxu0
        %2809 = vmatpush.bf16.msra.mxu0 %v2116
        %2810 = vmatpush.bf16.msra.mxu0 %v2105
        %2811 = vmatpush.bf16.msra.mxu0 %v2094
        %2812 = vmatpush.bf16.msra.mxu0 %v2083
        %2813 = vmatpush.bf16.msra.mxu0 %v2072
        %2814 = vmatpush.bf16.msra.mxu0 %v2061
        %2815 = vmatpush.bf16.msra.mxu0 %v2050
        %2816 = vmatpush.bf16.msra.mxu0 %v2039
        %2817 = vmatmul.bf16.gmra.mxu0 %v1125
        %v2818 = vpop.f32.mrf.mxu0
        %v2819 = vadd.f32 %v2650, %v2818
        %v2820 = vpop.f32.mrf.mxu0
        %v2821 = vadd.f32 %v2652, %v2820
        %2822 = vmatmul.bf16.gmra.mxu0 %v1127
        %v2823 = vpop.f32.mrf.mxu0
        %v2824 = vadd.f32 %v2655, %v2823
        %v2825 = vpop.f32.mrf.mxu0
        %v2826 = vadd.f32 %v2657, %v2825
        %2827 = vmatmul.bf16.gmra.mxu0 %v1129
        %v2828 = vpop.f32.mrf.mxu0
        %v2829 = vadd.f32 %v2660, %v2828
        %v2830 = vpop.f32.mrf.mxu0
        %v2831 = vadd.f32 %v2662, %v2830
        %2832 = vmatmul.bf16.gmra.mxu0 %v1131
        %v2833 = vpop.f32.mrf.mxu0
        %v2834 = vadd.f32 %v2665, %v2833
        %v2835 = vpop.f32.mrf.mxu0
        %v2836 = vadd.f32 %v2667, %v2835
        %2837 = vmatmul.bf16.gmra.mxu0 %v1133
        %v2838 = vpop.f32.mrf.mxu0
        %v2839 = vadd.f32 %v2670, %v2838
        %v2840 = vpop.f32.mrf.mxu0
        %v2841 = vadd.f32 %v2672, %v2840
        %2842 = vmatmul.bf16.gmra.mxu0 %v1135
        %v2843 = vpop.f32.mrf.mxu0
        %v2844 = vadd.f32 %v2675, %v2843
        %v2845 = vpop.f32.mrf.mxu0
        %v2846 = vadd.f32 %v2677, %v2845
        %2847 = vmatmul.bf16.gmra.mxu0 %v1137
        %v2848 = vpop.f32.mrf.mxu0
        %v2849 = vadd.f32 %v2680, %v2848
        %v2850 = vpop.f32.mrf.mxu0
        %v2851 = vadd.f32 %v2682, %v2850
        %2852 = vmatmul.bf16.gmra.mxu0 %v1139
        %v2853 = vpop.f32.mrf.mxu0
        %v2854 = vadd.f32 %v2685, %v2853
        %v2855 = vpop.f32.mrf.mxu0
        %v2856 = vadd.f32 %v2687, %v2855
        %2857 = vmatmul.bf16.gmra.mxu0 %v1141
        %v2858 = vpop.f32.mrf.mxu0
        %v2859 = vadd.f32 %v2690, %v2858
        %v2860 = vpop.f32.mrf.mxu0
        %v2861 = vadd.f32 %v2692, %v2860
        %2862 = vmatmul.bf16.gmra.mxu0 %v1143
        %v2863 = vpop.f32.mrf.mxu0
        %v2864 = vadd.f32 %v2695, %v2863
        %v2865 = vpop.f32.mrf.mxu0
        %v2866 = vadd.f32 %v2697, %v2865
        %2867 = vmatmul.bf16.gmra.mxu0 %v1145
        %v2868 = vpop.f32.mrf.mxu0
        %v2869 = vadd.f32 %v2700, %v2868
        %v2870 = vpop.f32.mrf.mxu0
        %v2871 = vadd.f32 %v2702, %v2870
        %2872 = vmatmul.bf16.gmra.mxu0 %v1147
        %v2873 = vpop.f32.mrf.mxu0
        %v2874 = vadd.f32 %v2705, %v2873
        %v2875 = vpop.f32.mrf.mxu0
        %v2876 = vadd.f32 %v2707, %v2875
        %2877 = vmatmul.bf16.gmra.mxu0 %v1149
        %v2878 = vpop.f32.mrf.mxu0
        %v2879 = vadd.f32 %v2710, %v2878
        %v2880 = vpop.f32.mrf.mxu0
        %v2881 = vadd.f32 %v2712, %v2880
        %2882 = vmatmul.bf16.gmra.mxu0 %v1151
        %v2883 = vpop.f32.mrf.mxu0
        %v2884 = vadd.f32 %v2715, %v2883
        %v2885 = vpop.f32.mrf.mxu0
        %v2886 = vadd.f32 %v2717, %v2885
        %2887 = vmatmul.bf16.gmra.mxu0 %v1153
        %v2888 = vpop.f32.mrf.mxu0
        %v2889 = vadd.f32 %v2720, %v2888
        %v2890 = vpop.f32.mrf.mxu0
        %v2891 = vadd.f32 %v2722, %v2890
        %2892 = vmatmul.bf16.gmra.mxu0 %v1155
        %v2893 = vpop.f32.mrf.mxu0
        %v2894 = vadd.f32 %v2725, %v2893
        %v2895 = vpop.f32.mrf.mxu0
        %v2896 = vadd.f32 %v2727, %v2895
        %2897 = vmatmul.bf16.gmra.mxu0 %v1157
        %v2898 = vpop.f32.mrf.mxu0
        %v2899 = vadd.f32 %v2730, %v2898
        %v2900 = vpop.f32.mrf.mxu0
        %v2901 = vadd.f32 %v2732, %v2900
        %2902 = vmatmul.bf16.gmra.mxu0 %v1159
        %v2903 = vpop.f32.mrf.mxu0
        %v2904 = vadd.f32 %v2735, %v2903
        %v2905 = vpop.f32.mrf.mxu0
        %v2906 = vadd.f32 %v2737, %v2905
        %2907 = vmatmul.bf16.gmra.mxu0 %v1161
        %v2908 = vpop.f32.mrf.mxu0
        %v2909 = vadd.f32 %v2740, %v2908
        %v2910 = vpop.f32.mrf.mxu0
        %v2911 = vadd.f32 %v2742, %v2910
        %2912 = vmatmul.bf16.gmra.mxu0 %v1163
        %v2913 = vpop.f32.mrf.mxu0
        %v2914 = vadd.f32 %v2745, %v2913
        %v2915 = vpop.f32.mrf.mxu0
        %v2916 = vadd.f32 %v2747, %v2915
        %2917 = vmatmul.bf16.gmra.mxu0 %v1165
        %v2918 = vpop.f32.mrf.mxu0
        %v2919 = vadd.f32 %v2750, %v2918
        %v2920 = vpop.f32.mrf.mxu0
        %v2921 = vadd.f32 %v2752, %v2920
        %2922 = vmatmul.bf16.gmra.mxu0 %v1167
        %v2923 = vpop.f32.mrf.mxu0
        %v2924 = vadd.f32 %v2755, %v2923
        %v2925 = vpop.f32.mrf.mxu0
        %v2926 = vadd.f32 %v2757, %v2925
        %2927 = vmatmul.bf16.gmra.mxu0 %v1169
        %v2928 = vpop.f32.mrf.mxu0
        %v2929 = vadd.f32 %v2760, %v2928
        %v2930 = vpop.f32.mrf.mxu0
        %v2931 = vadd.f32 %v2762, %v2930
        %2932 = vmatmul.bf16.gmra.mxu0 %v1171
        %v2933 = vpop.f32.mrf.mxu0
        %v2934 = vadd.f32 %v2765, %v2933
        %v2935 = vpop.f32.mrf.mxu0
        %v2936 = vadd.f32 %v2767, %v2935
        %2937 = vmatmul.bf16.gmra.mxu0 %v1173
        %v2938 = vpop.f32.mrf.mxu0
        %v2939 = vadd.f32 %v2770, %v2938
        %v2940 = vpop.f32.mrf.mxu0
        %v2941 = vadd.f32 %v2772, %v2940
        %2942 = vmatmul.bf16.gmra.mxu0 %v1175
        %v2943 = vpop.f32.mrf.mxu0
        %v2944 = vadd.f32 %v2775, %v2943
        %v2945 = vpop.f32.mrf.mxu0
        %v2946 = vadd.f32 %v2777, %v2945
        %2947 = vmatmul.bf16.gmra.mxu0 %v1177
        %v2948 = vpop.f32.mrf.mxu0
        %v2949 = vadd.f32 %v2780, %v2948
        %v2950 = vpop.f32.mrf.mxu0
        %v2951 = vadd.f32 %v2782, %v2950
        %2952 = vmatmul.bf16.gmra.mxu0 %v1179
        %v2953 = vpop.f32.mrf.mxu0
        %v2954 = vadd.f32 %v2785, %v2953
        %v2955 = vpop.f32.mrf.mxu0
        %v2956 = vadd.f32 %v2787, %v2955
        %2957 = vmatmul.bf16.gmra.mxu0 %v1181
        %v2958 = vpop.f32.mrf.mxu0
        %v2959 = vadd.f32 %v2790, %v2958
        %v2960 = vpop.f32.mrf.mxu0
        %v2961 = vadd.f32 %v2792, %v2960
        %2962 = vmatmul.bf16.gmra.mxu0 %v1183
        %v2963 = vpop.f32.mrf.mxu0
        %v2964 = vadd.f32 %v2795, %v2963
        %v2965 = vpop.f32.mrf.mxu0
        %v2966 = vadd.f32 %v2797, %v2965
        %2967 = vmatmul.bf16.gmra.mxu0 %v1185
        %v2968 = vpop.f32.mrf.mxu0
        %v2969 = vadd.f32 %v2800, %v2968
        %v2970 = vpop.f32.mrf.mxu0
        %v2971 = vadd.f32 %v2802, %v2970
        %2972 = vmatmul.bf16.gmra.mxu0 %v1187
        %v2973 = vpop.f32.mrf.mxu0
        %v2974 = vadd.f32 %v2805, %v2973
        %v2975 = vpop.f32.mrf.mxu0
        %v2976 = vadd.f32 %v2807, %v2975
        %2977 = vdwg.mxu0
        %2978 = vmatpush.bf16.msra.mxu0 %v2029
        %2979 = vmatpush.bf16.msra.mxu0 %v2018
        %2980 = vmatpush.bf16.msra.mxu0 %v2007
        %2981 = vmatpush.bf16.msra.mxu0 %v1996
        %2982 = vmatpush.bf16.msra.mxu0 %v1985
        %2983 = vmatpush.bf16.msra.mxu0 %v1974
        %2984 = vmatpush.bf16.msra.mxu0 %v1963
        %2985 = vmatpush.bf16.msra.mxu0 %v1952
        %2986 = vmatmul.bf16.gmra.mxu0 %v1124
        %v2987 = vpop.f32.mrf.mxu0
        %v2988 = vadd.f32 %v1386, %v2987
        %v2989 = vpop.f32.mrf.mxu0
        %v2990 = vadd.f32 %v1386, %v2989
        %2991 = vmatmul.bf16.gmra.mxu0 %v1126
        %v2992 = vpop.f32.mrf.mxu0
        %v2993 = vadd.f32 %v1386, %v2992
        %v2994 = vpop.f32.mrf.mxu0
        %v2995 = vadd.f32 %v1386, %v2994
        %2996 = vmatmul.bf16.gmra.mxu0 %v1128
        %v2997 = vpop.f32.mrf.mxu0
        %v2998 = vadd.f32 %v1386, %v2997
        %v2999 = vpop.f32.mrf.mxu0
        %v3000 = vadd.f32 %v1386, %v2999
        %3001 = vmatmul.bf16.gmra.mxu0 %v1130
        %v3002 = vpop.f32.mrf.mxu0
        %v3003 = vadd.f32 %v1386, %v3002
        %v3004 = vpop.f32.mrf.mxu0
        %v3005 = vadd.f32 %v1386, %v3004
        %3006 = vmatmul.bf16.gmra.mxu0 %v1132
        %v3007 = vpop.f32.mrf.mxu0
        %v3008 = vadd.f32 %v1386, %v3007
        %v3009 = vpop.f32.mrf.mxu0
        %v3010 = vadd.f32 %v1386, %v3009
        %3011 = vmatmul.bf16.gmra.mxu0 %v1134
        %v3012 = vpop.f32.mrf.mxu0
        %v3013 = vadd.f32 %v1386, %v3012
        %v3014 = vpop.f32.mrf.mxu0
        %v3015 = vadd.f32 %v1386, %v3014
        %3016 = vmatmul.bf16.gmra.mxu0 %v1136
        %v3017 = vpop.f32.mrf.mxu0
        %v3018 = vadd.f32 %v1386, %v3017
        %v3019 = vpop.f32.mrf.mxu0
        %v3020 = vadd.f32 %v1386, %v3019
        %3021 = vmatmul.bf16.gmra.mxu0 %v1138
        %v3022 = vpop.f32.mrf.mxu0
        %v3023 = vadd.f32 %v1386, %v3022
        %v3024 = vpop.f32.mrf.mxu0
        %v3025 = vadd.f32 %v1386, %v3024
        %3026 = vmatmul.bf16.gmra.mxu0 %v1140
        %v3027 = vpop.f32.mrf.mxu0
        %v3028 = vadd.f32 %v1386, %v3027
        %v3029 = vpop.f32.mrf.mxu0
        %v3030 = vadd.f32 %v1386, %v3029
        %3031 = vmatmul.bf16.gmra.mxu0 %v1142
        %v3032 = vpop.f32.mrf.mxu0
        %v3033 = vadd.f32 %v1386, %v3032
        %v3034 = vpop.f32.mrf.mxu0
        %v3035 = vadd.f32 %v1386, %v3034
        %3036 = vmatmul.bf16.gmra.mxu0 %v1144
        %v3037 = vpop.f32.mrf.mxu0
        %v3038 = vadd.f32 %v1386, %v3037
        %v3039 = vpop.f32.mrf.mxu0
        %v3040 = vadd.f32 %v1386, %v3039
        %3041 = vmatmul.bf16.gmra.mxu0 %v1146
        %v3042 = vpop.f32.mrf.mxu0
        %v3043 = vadd.f32 %v1386, %v3042
        %v3044 = vpop.f32.mrf.mxu0
        %v3045 = vadd.f32 %v1386, %v3044
        %3046 = vmatmul.bf16.gmra.mxu0 %v1148
        %v3047 = vpop.f32.mrf.mxu0
        %v3048 = vadd.f32 %v1386, %v3047
        %v3049 = vpop.f32.mrf.mxu0
        %v3050 = vadd.f32 %v1386, %v3049
        %3051 = vmatmul.bf16.gmra.mxu0 %v1150
        %v3052 = vpop.f32.mrf.mxu0
        %v3053 = vadd.f32 %v1386, %v3052
        %v3054 = vpop.f32.mrf.mxu0
        %v3055 = vadd.f32 %v1386, %v3054
        %3056 = vmatmul.bf16.gmra.mxu0 %v1152
        %v3057 = vpop.f32.mrf.mxu0
        %v3058 = vadd.f32 %v1386, %v3057
        %v3059 = vpop.f32.mrf.mxu0
        %v3060 = vadd.f32 %v1386, %v3059
        %3061 = vmatmul.bf16.gmra.mxu0 %v1154
        %v3062 = vpop.f32.mrf.mxu0
        %v3063 = vadd.f32 %v1386, %v3062
        %v3064 = vpop.f32.mrf.mxu0
        %v3065 = vadd.f32 %v1386, %v3064
        %3066 = vmatmul.bf16.gmra.mxu0 %v1156
        %v3067 = vpop.f32.mrf.mxu0
        %v3068 = vadd.f32 %v1386, %v3067
        %v3069 = vpop.f32.mrf.mxu0
        %v3070 = vadd.f32 %v1386, %v3069
        %3071 = vmatmul.bf16.gmra.mxu0 %v1158
        %v3072 = vpop.f32.mrf.mxu0
        %v3073 = vadd.f32 %v1386, %v3072
        %v3074 = vpop.f32.mrf.mxu0
        %v3075 = vadd.f32 %v1386, %v3074
        %3076 = vmatmul.bf16.gmra.mxu0 %v1160
        %v3077 = vpop.f32.mrf.mxu0
        %v3078 = vadd.f32 %v1386, %v3077
        %v3079 = vpop.f32.mrf.mxu0
        %v3080 = vadd.f32 %v1386, %v3079
        %3081 = vmatmul.bf16.gmra.mxu0 %v1162
        %v3082 = vpop.f32.mrf.mxu0
        %v3083 = vadd.f32 %v1386, %v3082
        %v3084 = vpop.f32.mrf.mxu0
        %v3085 = vadd.f32 %v1386, %v3084
        %3086 = vmatmul.bf16.gmra.mxu0 %v1164
        %v3087 = vpop.f32.mrf.mxu0
        %v3088 = vadd.f32 %v1386, %v3087
        %v3089 = vpop.f32.mrf.mxu0
        %v3090 = vadd.f32 %v1386, %v3089
        %3091 = vmatmul.bf16.gmra.mxu0 %v1166
        %v3092 = vpop.f32.mrf.mxu0
        %v3093 = vadd.f32 %v1386, %v3092
        %v3094 = vpop.f32.mrf.mxu0
        %v3095 = vadd.f32 %v1386, %v3094
        %3096 = vmatmul.bf16.gmra.mxu0 %v1168
        %v3097 = vpop.f32.mrf.mxu0
        %v3098 = vadd.f32 %v1386, %v3097
        %v3099 = vpop.f32.mrf.mxu0
        %v3100 = vadd.f32 %v1386, %v3099
        %3101 = vmatmul.bf16.gmra.mxu0 %v1170
        %v3102 = vpop.f32.mrf.mxu0
        %v3103 = vadd.f32 %v1386, %v3102
        %v3104 = vpop.f32.mrf.mxu0
        %v3105 = vadd.f32 %v1386, %v3104
        %3106 = vmatmul.bf16.gmra.mxu0 %v1172
        %v3107 = vpop.f32.mrf.mxu0
        %v3108 = vadd.f32 %v1386, %v3107
        %v3109 = vpop.f32.mrf.mxu0
        %v3110 = vadd.f32 %v1386, %v3109
        %3111 = vmatmul.bf16.gmra.mxu0 %v1174
        %v3112 = vpop.f32.mrf.mxu0
        %v3113 = vadd.f32 %v1386, %v3112
        %v3114 = vpop.f32.mrf.mxu0
        %v3115 = vadd.f32 %v1386, %v3114
        %3116 = vmatmul.bf16.gmra.mxu0 %v1176
        %v3117 = vpop.f32.mrf.mxu0
        %v3118 = vadd.f32 %v1386, %v3117
        %v3119 = vpop.f32.mrf.mxu0
        %v3120 = vadd.f32 %v1386, %v3119
        %3121 = vmatmul.bf16.gmra.mxu0 %v1178
        %v3122 = vpop.f32.mrf.mxu0
        %v3123 = vadd.f32 %v1386, %v3122
        %v3124 = vpop.f32.mrf.mxu0
        %v3125 = vadd.f32 %v1386, %v3124
        %3126 = vmatmul.bf16.gmra.mxu0 %v1180
        %v3127 = vpop.f32.mrf.mxu0
        %v3128 = vadd.f32 %v1386, %v3127
        %v3129 = vpop.f32.mrf.mxu0
        %v3130 = vadd.f32 %v1386, %v3129
        %3131 = vmatmul.bf16.gmra.mxu0 %v1182
        %v3132 = vpop.f32.mrf.mxu0
        %v3133 = vadd.f32 %v1386, %v3132
        %v3134 = vpop.f32.mrf.mxu0
        %v3135 = vadd.f32 %v1386, %v3134
        %3136 = vmatmul.bf16.gmra.mxu0 %v1184
        %v3137 = vpop.f32.mrf.mxu0
        %v3138 = vadd.f32 %v1386, %v3137
        %v3139 = vpop.f32.mrf.mxu0
        %v3140 = vadd.f32 %v1386, %v3139
        %3141 = vmatmul.bf16.gmra.mxu0 %v1186
        %v3142 = vpop.f32.mrf.mxu0
        %v3143 = vadd.f32 %v1386, %v3142
        %v3144 = vpop.f32.mrf.mxu0
        %v3145 = vadd.f32 %v1386, %v3144
        %3146 = vdwg.mxu0
        %3147 = vmatpush.bf16.msra.mxu0 %v2117
        %3148 = vmatpush.bf16.msra.mxu0 %v2106
        %3149 = vmatpush.bf16.msra.mxu0 %v2095
        %3150 = vmatpush.bf16.msra.mxu0 %v2084
        %3151 = vmatpush.bf16.msra.mxu0 %v2073
        %3152 = vmatpush.bf16.msra.mxu0 %v2062
        %3153 = vmatpush.bf16.msra.mxu0 %v2051
        %3154 = vmatpush.bf16.msra.mxu0 %v2040
        %3155 = vmatmul.bf16.gmra.mxu0 %v1125
        %v3156 = vpop.f32.mrf.mxu0
        %v3157 = vadd.f32 %v2988, %v3156
        %v3158 = vpop.f32.mrf.mxu0
        %v3159 = vadd.f32 %v2990, %v3158
        %3160 = vmatmul.bf16.gmra.mxu0 %v1127
        %v3161 = vpop.f32.mrf.mxu0
        %v3162 = vadd.f32 %v2993, %v3161
        %v3163 = vpop.f32.mrf.mxu0
        %v3164 = vadd.f32 %v2995, %v3163
        %3165 = vmatmul.bf16.gmra.mxu0 %v1129
        %v3166 = vpop.f32.mrf.mxu0
        %v3167 = vadd.f32 %v2998, %v3166
        %v3168 = vpop.f32.mrf.mxu0
        %v3169 = vadd.f32 %v3000, %v3168
        %3170 = vmatmul.bf16.gmra.mxu0 %v1131
        %v3171 = vpop.f32.mrf.mxu0
        %v3172 = vadd.f32 %v3003, %v3171
        %v3173 = vpop.f32.mrf.mxu0
        %v3174 = vadd.f32 %v3005, %v3173
        %3175 = vmatmul.bf16.gmra.mxu0 %v1133
        %v3176 = vpop.f32.mrf.mxu0
        %v3177 = vadd.f32 %v3008, %v3176
        %v3178 = vpop.f32.mrf.mxu0
        %v3179 = vadd.f32 %v3010, %v3178
        %3180 = vmatmul.bf16.gmra.mxu0 %v1135
        %v3181 = vpop.f32.mrf.mxu0
        %v3182 = vadd.f32 %v3013, %v3181
        %v3183 = vpop.f32.mrf.mxu0
        %v3184 = vadd.f32 %v3015, %v3183
        %3185 = vmatmul.bf16.gmra.mxu0 %v1137
        %v3186 = vpop.f32.mrf.mxu0
        %v3187 = vadd.f32 %v3018, %v3186
        %v3188 = vpop.f32.mrf.mxu0
        %v3189 = vadd.f32 %v3020, %v3188
        %3190 = vmatmul.bf16.gmra.mxu0 %v1139
        %v3191 = vpop.f32.mrf.mxu0
        %v3192 = vadd.f32 %v3023, %v3191
        %v3193 = vpop.f32.mrf.mxu0
        %v3194 = vadd.f32 %v3025, %v3193
        %3195 = vmatmul.bf16.gmra.mxu0 %v1141
        %v3196 = vpop.f32.mrf.mxu0
        %v3197 = vadd.f32 %v3028, %v3196
        %v3198 = vpop.f32.mrf.mxu0
        %v3199 = vadd.f32 %v3030, %v3198
        %3200 = vmatmul.bf16.gmra.mxu0 %v1143
        %v3201 = vpop.f32.mrf.mxu0
        %v3202 = vadd.f32 %v3033, %v3201
        %v3203 = vpop.f32.mrf.mxu0
        %v3204 = vadd.f32 %v3035, %v3203
        %3205 = vmatmul.bf16.gmra.mxu0 %v1145
        %v3206 = vpop.f32.mrf.mxu0
        %v3207 = vadd.f32 %v3038, %v3206
        %v3208 = vpop.f32.mrf.mxu0
        %v3209 = vadd.f32 %v3040, %v3208
        %3210 = vmatmul.bf16.gmra.mxu0 %v1147
        %v3211 = vpop.f32.mrf.mxu0
        %v3212 = vadd.f32 %v3043, %v3211
        %v3213 = vpop.f32.mrf.mxu0
        %v3214 = vadd.f32 %v3045, %v3213
        %3215 = vmatmul.bf16.gmra.mxu0 %v1149
        %v3216 = vpop.f32.mrf.mxu0
        %v3217 = vadd.f32 %v3048, %v3216
        %v3218 = vpop.f32.mrf.mxu0
        %v3219 = vadd.f32 %v3050, %v3218
        %3220 = vmatmul.bf16.gmra.mxu0 %v1151
        %v3221 = vpop.f32.mrf.mxu0
        %v3222 = vadd.f32 %v3053, %v3221
        %v3223 = vpop.f32.mrf.mxu0
        %v3224 = vadd.f32 %v3055, %v3223
        %3225 = vmatmul.bf16.gmra.mxu0 %v1153
        %v3226 = vpop.f32.mrf.mxu0
        %v3227 = vadd.f32 %v3058, %v3226
        %v3228 = vpop.f32.mrf.mxu0
        %v3229 = vadd.f32 %v3060, %v3228
        %3230 = vmatmul.bf16.gmra.mxu0 %v1155
        %v3231 = vpop.f32.mrf.mxu0
        %v3232 = vadd.f32 %v3063, %v3231
        %v3233 = vpop.f32.mrf.mxu0
        %v3234 = vadd.f32 %v3065, %v3233
        %3235 = vmatmul.bf16.gmra.mxu0 %v1157
        %v3236 = vpop.f32.mrf.mxu0
        %v3237 = vadd.f32 %v3068, %v3236
        %v3238 = vpop.f32.mrf.mxu0
        %v3239 = vadd.f32 %v3070, %v3238
        %3240 = vmatmul.bf16.gmra.mxu0 %v1159
        %v3241 = vpop.f32.mrf.mxu0
        %v3242 = vadd.f32 %v3073, %v3241
        %v3243 = vpop.f32.mrf.mxu0
        %v3244 = vadd.f32 %v3075, %v3243
        %3245 = vmatmul.bf16.gmra.mxu0 %v1161
        %v3246 = vpop.f32.mrf.mxu0
        %v3247 = vadd.f32 %v3078, %v3246
        %v3248 = vpop.f32.mrf.mxu0
        %v3249 = vadd.f32 %v3080, %v3248
        %3250 = vmatmul.bf16.gmra.mxu0 %v1163
        %v3251 = vpop.f32.mrf.mxu0
        %v3252 = vadd.f32 %v3083, %v3251
        %v3253 = vpop.f32.mrf.mxu0
        %v3254 = vadd.f32 %v3085, %v3253
        %3255 = vmatmul.bf16.gmra.mxu0 %v1165
        %v3256 = vpop.f32.mrf.mxu0
        %v3257 = vadd.f32 %v3088, %v3256
        %v3258 = vpop.f32.mrf.mxu0
        %v3259 = vadd.f32 %v3090, %v3258
        %3260 = vmatmul.bf16.gmra.mxu0 %v1167
        %v3261 = vpop.f32.mrf.mxu0
        %v3262 = vadd.f32 %v3093, %v3261
        %v3263 = vpop.f32.mrf.mxu0
        %v3264 = vadd.f32 %v3095, %v3263
        %3265 = vmatmul.bf16.gmra.mxu0 %v1169
        %v3266 = vpop.f32.mrf.mxu0
        %v3267 = vadd.f32 %v3098, %v3266
        %v3268 = vpop.f32.mrf.mxu0
        %v3269 = vadd.f32 %v3100, %v3268
        %3270 = vmatmul.bf16.gmra.mxu0 %v1171
        %v3271 = vpop.f32.mrf.mxu0
        %v3272 = vadd.f32 %v3103, %v3271
        %v3273 = vpop.f32.mrf.mxu0
        %v3274 = vadd.f32 %v3105, %v3273
        %3275 = vmatmul.bf16.gmra.mxu0 %v1173
        %v3276 = vpop.f32.mrf.mxu0
        %v3277 = vadd.f32 %v3108, %v3276
        %v3278 = vpop.f32.mrf.mxu0
        %v3279 = vadd.f32 %v3110, %v3278
        %3280 = vmatmul.bf16.gmra.mxu0 %v1175
        %v3281 = vpop.f32.mrf.mxu0
        %v3282 = vadd.f32 %v3113, %v3281
        %v3283 = vpop.f32.mrf.mxu0
        %v3284 = vadd.f32 %v3115, %v3283
        %3285 = vmatmul.bf16.gmra.mxu0 %v1177
        %v3286 = vpop.f32.mrf.mxu0
        %v3287 = vadd.f32 %v3118, %v3286
        %v3288 = vpop.f32.mrf.mxu0
        %v3289 = vadd.f32 %v3120, %v3288
        %3290 = vmatmul.bf16.gmra.mxu0 %v1179
        %v3291 = vpop.f32.mrf.mxu0
        %v3292 = vadd.f32 %v3123, %v3291
        %v3293 = vpop.f32.mrf.mxu0
        %v3294 = vadd.f32 %v3125, %v3293
        %3295 = vmatmul.bf16.gmra.mxu0 %v1181
        %v3296 = vpop.f32.mrf.mxu0
        %v3297 = vadd.f32 %v3128, %v3296
        %v3298 = vpop.f32.mrf.mxu0
        %v3299 = vadd.f32 %v3130, %v3298
        %3300 = vmatmul.bf16.gmra.mxu0 %v1183
        %v3301 = vpop.f32.mrf.mxu0
        %v3302 = vadd.f32 %v3133, %v3301
        %v3303 = vpop.f32.mrf.mxu0
        %v3304 = vadd.f32 %v3135, %v3303
        %3305 = vmatmul.bf16.gmra.mxu0 %v1185
        %v3306 = vpop.f32.mrf.mxu0
        %v3307 = vadd.f32 %v3138, %v3306
        %v3308 = vpop.f32.mrf.mxu0
        %v3309 = vadd.f32 %v3140, %v3308
        %3310 = vmatmul.bf16.gmra.mxu0 %v1187
        %v3311 = vpop.f32.mrf.mxu0
        %v3312 = vadd.f32 %v3143, %v3311
        %v3313 = vpop.f32.mrf.mxu0
        %v3314 = vadd.f32 %v3145, %v3313
        %3315 = vdwg.mxu0
        %3316 = vmatpush.bf16.msra.mxu0 %v2030
        %3317 = vmatpush.bf16.msra.mxu0 %v2019
        %3318 = vmatpush.bf16.msra.mxu0 %v2008
        %3319 = vmatpush.bf16.msra.mxu0 %v1997
        %3320 = vmatpush.bf16.msra.mxu0 %v1986
        %3321 = vmatpush.bf16.msra.mxu0 %v1975
        %3322 = vmatpush.bf16.msra.mxu0 %v1964
        %3323 = vmatpush.bf16.msra.mxu0 %v1953
        %3324 = vmatmul.bf16.gmra.mxu0 %v1124
        %v3325 = vpop.f32.mrf.mxu0
        %v3326 = vadd.f32 %v1387, %v3325
        %v3327 = vpop.f32.mrf.mxu0
        %v3328 = vadd.f32 %v1387, %v3327
        %3329 = vmatmul.bf16.gmra.mxu0 %v1126
        %v3330 = vpop.f32.mrf.mxu0
        %v3331 = vadd.f32 %v1387, %v3330
        %v3332 = vpop.f32.mrf.mxu0
        %v3333 = vadd.f32 %v1387, %v3332
        %3334 = vmatmul.bf16.gmra.mxu0 %v1128
        %v3335 = vpop.f32.mrf.mxu0
        %v3336 = vadd.f32 %v1387, %v3335
        %v3337 = vpop.f32.mrf.mxu0
        %v3338 = vadd.f32 %v1387, %v3337
        %3339 = vmatmul.bf16.gmra.mxu0 %v1130
        %v3340 = vpop.f32.mrf.mxu0
        %v3341 = vadd.f32 %v1387, %v3340
        %v3342 = vpop.f32.mrf.mxu0
        %v3343 = vadd.f32 %v1387, %v3342
        %3344 = vmatmul.bf16.gmra.mxu0 %v1132
        %v3345 = vpop.f32.mrf.mxu0
        %v3346 = vadd.f32 %v1387, %v3345
        %v3347 = vpop.f32.mrf.mxu0
        %v3348 = vadd.f32 %v1387, %v3347
        %3349 = vmatmul.bf16.gmra.mxu0 %v1134
        %v3350 = vpop.f32.mrf.mxu0
        %v3351 = vadd.f32 %v1387, %v3350
        %v3352 = vpop.f32.mrf.mxu0
        %v3353 = vadd.f32 %v1387, %v3352
        %3354 = vmatmul.bf16.gmra.mxu0 %v1136
        %v3355 = vpop.f32.mrf.mxu0
        %v3356 = vadd.f32 %v1387, %v3355
        %v3357 = vpop.f32.mrf.mxu0
        %v3358 = vadd.f32 %v1387, %v3357
        %3359 = vmatmul.bf16.gmra.mxu0 %v1138
        %v3360 = vpop.f32.mrf.mxu0
        %v3361 = vadd.f32 %v1387, %v3360
        %v3362 = vpop.f32.mrf.mxu0
        %v3363 = vadd.f32 %v1387, %v3362
        %3364 = vmatmul.bf16.gmra.mxu0 %v1140
        %v3365 = vpop.f32.mrf.mxu0
        %v3366 = vadd.f32 %v1387, %v3365
        %v3367 = vpop.f32.mrf.mxu0
        %v3368 = vadd.f32 %v1387, %v3367
        %3369 = vmatmul.bf16.gmra.mxu0 %v1142
        %v3370 = vpop.f32.mrf.mxu0
        %v3371 = vadd.f32 %v1387, %v3370
        %v3372 = vpop.f32.mrf.mxu0
        %v3373 = vadd.f32 %v1387, %v3372
        %3374 = vmatmul.bf16.gmra.mxu0 %v1144
        %v3375 = vpop.f32.mrf.mxu0
        %v3376 = vadd.f32 %v1387, %v3375
        %v3377 = vpop.f32.mrf.mxu0
        %v3378 = vadd.f32 %v1387, %v3377
        %3379 = vmatmul.bf16.gmra.mxu0 %v1146
        %v3380 = vpop.f32.mrf.mxu0
        %v3381 = vadd.f32 %v1387, %v3380
        %v3382 = vpop.f32.mrf.mxu0
        %v3383 = vadd.f32 %v1387, %v3382
        %3384 = vmatmul.bf16.gmra.mxu0 %v1148
        %v3385 = vpop.f32.mrf.mxu0
        %v3386 = vadd.f32 %v1387, %v3385
        %v3387 = vpop.f32.mrf.mxu0
        %v3388 = vadd.f32 %v1387, %v3387
        %3389 = vmatmul.bf16.gmra.mxu0 %v1150
        %v3390 = vpop.f32.mrf.mxu0
        %v3391 = vadd.f32 %v1387, %v3390
        %v3392 = vpop.f32.mrf.mxu0
        %v3393 = vadd.f32 %v1387, %v3392
        %3394 = vmatmul.bf16.gmra.mxu0 %v1152
        %v3395 = vpop.f32.mrf.mxu0
        %v3396 = vadd.f32 %v1387, %v3395
        %v3397 = vpop.f32.mrf.mxu0
        %v3398 = vadd.f32 %v1387, %v3397
        %3399 = vmatmul.bf16.gmra.mxu0 %v1154
        %v3400 = vpop.f32.mrf.mxu0
        %v3401 = vadd.f32 %v1387, %v3400
        %v3402 = vpop.f32.mrf.mxu0
        %v3403 = vadd.f32 %v1387, %v3402
        %3404 = vmatmul.bf16.gmra.mxu0 %v1156
        %v3405 = vpop.f32.mrf.mxu0
        %v3406 = vadd.f32 %v1387, %v3405
        %v3407 = vpop.f32.mrf.mxu0
        %v3408 = vadd.f32 %v1387, %v3407
        %3409 = vmatmul.bf16.gmra.mxu0 %v1158
        %v3410 = vpop.f32.mrf.mxu0
        %v3411 = vadd.f32 %v1387, %v3410
        %v3412 = vpop.f32.mrf.mxu0
        %v3413 = vadd.f32 %v1387, %v3412
        %3414 = vmatmul.bf16.gmra.mxu0 %v1160
        %v3415 = vpop.f32.mrf.mxu0
        %v3416 = vadd.f32 %v1387, %v3415
        %v3417 = vpop.f32.mrf.mxu0
        %v3418 = vadd.f32 %v1387, %v3417
        %3419 = vmatmul.bf16.gmra.mxu0 %v1162
        %v3420 = vpop.f32.mrf.mxu0
        %v3421 = vadd.f32 %v1387, %v3420
        %v3422 = vpop.f32.mrf.mxu0
        %v3423 = vadd.f32 %v1387, %v3422
        %3424 = vmatmul.bf16.gmra.mxu0 %v1164
        %v3425 = vpop.f32.mrf.mxu0
        %v3426 = vadd.f32 %v1387, %v3425
        %v3427 = vpop.f32.mrf.mxu0
        %v3428 = vadd.f32 %v1387, %v3427
        %3429 = vmatmul.bf16.gmra.mxu0 %v1166
        %v3430 = vpop.f32.mrf.mxu0
        %v3431 = vadd.f32 %v1387, %v3430
        %v3432 = vpop.f32.mrf.mxu0
        %v3433 = vadd.f32 %v1387, %v3432
        %3434 = vmatmul.bf16.gmra.mxu0 %v1168
        %v3435 = vpop.f32.mrf.mxu0
        %v3436 = vadd.f32 %v1387, %v3435
        %v3437 = vpop.f32.mrf.mxu0
        %v3438 = vadd.f32 %v1387, %v3437
        %3439 = vmatmul.bf16.gmra.mxu0 %v1170
        %v3440 = vpop.f32.mrf.mxu0
        %v3441 = vadd.f32 %v1387, %v3440
        %v3442 = vpop.f32.mrf.mxu0
        %v3443 = vadd.f32 %v1387, %v3442
        %3444 = vmatmul.bf16.gmra.mxu0 %v1172
        %v3445 = vpop.f32.mrf.mxu0
        %v3446 = vadd.f32 %v1387, %v3445
        %v3447 = vpop.f32.mrf.mxu0
        %v3448 = vadd.f32 %v1387, %v3447
        %3449 = vmatmul.bf16.gmra.mxu0 %v1174
        %v3450 = vpop.f32.mrf.mxu0
        %v3451 = vadd.f32 %v1387, %v3450
        %v3452 = vpop.f32.mrf.mxu0
        %v3453 = vadd.f32 %v1387, %v3452
        %3454 = vmatmul.bf16.gmra.mxu0 %v1176
        %v3455 = vpop.f32.mrf.mxu0
        %v3456 = vadd.f32 %v1387, %v3455
        %v3457 = vpop.f32.mrf.mxu0
        %v3458 = vadd.f32 %v1387, %v3457
        %3459 = vmatmul.bf16.gmra.mxu0 %v1178
        %v3460 = vpop.f32.mrf.mxu0
        %v3461 = vadd.f32 %v1387, %v3460
        %v3462 = vpop.f32.mrf.mxu0
        %v3463 = vadd.f32 %v1387, %v3462
        %3464 = vmatmul.bf16.gmra.mxu0 %v1180
        %v3465 = vpop.f32.mrf.mxu0
        %v3466 = vadd.f32 %v1387, %v3465
        %v3467 = vpop.f32.mrf.mxu0
        %v3468 = vadd.f32 %v1387, %v3467
        %3469 = vmatmul.bf16.gmra.mxu0 %v1182
        %v3470 = vpop.f32.mrf.mxu0
        %v3471 = vadd.f32 %v1387, %v3470
        %v3472 = vpop.f32.mrf.mxu0
        %v3473 = vadd.f32 %v1387, %v3472
        %3474 = vmatmul.bf16.gmra.mxu0 %v1184
        %v3475 = vpop.f32.mrf.mxu0
        %v3476 = vadd.f32 %v1387, %v3475
        %v3477 = vpop.f32.mrf.mxu0
        %v3478 = vadd.f32 %v1387, %v3477
        %3479 = vmatmul.bf16.gmra.mxu0 %v1186
        %v3480 = vpop.f32.mrf.mxu0
        %v3481 = vadd.f32 %v1387, %v3480
        %v3482 = vpop.f32.mrf.mxu0
        %v3483 = vadd.f32 %v1387, %v3482
        %3484 = vdwg.mxu0
        %3485 = vmatpush.bf16.msra.mxu0 %v2118
        %3486 = vmatpush.bf16.msra.mxu0 %v2107
        %3487 = vmatpush.bf16.msra.mxu0 %v2096
        %3488 = vmatpush.bf16.msra.mxu0 %v2085
        %3489 = vmatpush.bf16.msra.mxu0 %v2074
        %3490 = vmatpush.bf16.msra.mxu0 %v2063
        %3491 = vmatpush.bf16.msra.mxu0 %v2052
        %3492 = vmatpush.bf16.msra.mxu0 %v2041
        %3493 = vmatmul.bf16.gmra.mxu0 %v1125
        %v3494 = vpop.f32.mrf.mxu0
        %v3495 = vadd.f32 %v3326, %v3494
        %v3496 = vpop.f32.mrf.mxu0
        %v3497 = vadd.f32 %v3328, %v3496
        %3498 = vmatmul.bf16.gmra.mxu0 %v1127
        %v3499 = vpop.f32.mrf.mxu0
        %v3500 = vadd.f32 %v3331, %v3499
        %v3501 = vpop.f32.mrf.mxu0
        %v3502 = vadd.f32 %v3333, %v3501
        %3503 = vmatmul.bf16.gmra.mxu0 %v1129
        %v3504 = vpop.f32.mrf.mxu0
        %v3505 = vadd.f32 %v3336, %v3504
        %v3506 = vpop.f32.mrf.mxu0
        %v3507 = vadd.f32 %v3338, %v3506
        %3508 = vmatmul.bf16.gmra.mxu0 %v1131
        %v3509 = vpop.f32.mrf.mxu0
        %v3510 = vadd.f32 %v3341, %v3509
        %v3511 = vpop.f32.mrf.mxu0
        %v3512 = vadd.f32 %v3343, %v3511
        %3513 = vmatmul.bf16.gmra.mxu0 %v1133
        %v3514 = vpop.f32.mrf.mxu0
        %v3515 = vadd.f32 %v3346, %v3514
        %v3516 = vpop.f32.mrf.mxu0
        %v3517 = vadd.f32 %v3348, %v3516
        %3518 = vmatmul.bf16.gmra.mxu0 %v1135
        %v3519 = vpop.f32.mrf.mxu0
        %v3520 = vadd.f32 %v3351, %v3519
        %v3521 = vpop.f32.mrf.mxu0
        %v3522 = vadd.f32 %v3353, %v3521
        %3523 = vmatmul.bf16.gmra.mxu0 %v1137
        %v3524 = vpop.f32.mrf.mxu0
        %v3525 = vadd.f32 %v3356, %v3524
        %v3526 = vpop.f32.mrf.mxu0
        %v3527 = vadd.f32 %v3358, %v3526
        %3528 = vmatmul.bf16.gmra.mxu0 %v1139
        %v3529 = vpop.f32.mrf.mxu0
        %v3530 = vadd.f32 %v3361, %v3529
        %v3531 = vpop.f32.mrf.mxu0
        %v3532 = vadd.f32 %v3363, %v3531
        %3533 = vmatmul.bf16.gmra.mxu0 %v1141
        %v3534 = vpop.f32.mrf.mxu0
        %v3535 = vadd.f32 %v3366, %v3534
        %v3536 = vpop.f32.mrf.mxu0
        %v3537 = vadd.f32 %v3368, %v3536
        %3538 = vmatmul.bf16.gmra.mxu0 %v1143
        %v3539 = vpop.f32.mrf.mxu0
        %v3540 = vadd.f32 %v3371, %v3539
        %v3541 = vpop.f32.mrf.mxu0
        %v3542 = vadd.f32 %v3373, %v3541
        %3543 = vmatmul.bf16.gmra.mxu0 %v1145
        %v3544 = vpop.f32.mrf.mxu0
        %v3545 = vadd.f32 %v3376, %v3544
        %v3546 = vpop.f32.mrf.mxu0
        %v3547 = vadd.f32 %v3378, %v3546
        %3548 = vmatmul.bf16.gmra.mxu0 %v1147
        %v3549 = vpop.f32.mrf.mxu0
        %v3550 = vadd.f32 %v3381, %v3549
        %v3551 = vpop.f32.mrf.mxu0
        %v3552 = vadd.f32 %v3383, %v3551
        %3553 = vmatmul.bf16.gmra.mxu0 %v1149
        %v3554 = vpop.f32.mrf.mxu0
        %v3555 = vadd.f32 %v3386, %v3554
        %v3556 = vpop.f32.mrf.mxu0
        %v3557 = vadd.f32 %v3388, %v3556
        %3558 = vmatmul.bf16.gmra.mxu0 %v1151
        %v3559 = vpop.f32.mrf.mxu0
        %v3560 = vadd.f32 %v3391, %v3559
        %v3561 = vpop.f32.mrf.mxu0
        %v3562 = vadd.f32 %v3393, %v3561
        %3563 = vmatmul.bf16.gmra.mxu0 %v1153
        %v3564 = vpop.f32.mrf.mxu0
        %v3565 = vadd.f32 %v3396, %v3564
        %v3566 = vpop.f32.mrf.mxu0
        %v3567 = vadd.f32 %v3398, %v3566
        %3568 = vmatmul.bf16.gmra.mxu0 %v1155
        %v3569 = vpop.f32.mrf.mxu0
        %v3570 = vadd.f32 %v3401, %v3569
        %v3571 = vpop.f32.mrf.mxu0
        %v3572 = vadd.f32 %v3403, %v3571
        %3573 = vmatmul.bf16.gmra.mxu0 %v1157
        %v3574 = vpop.f32.mrf.mxu0
        %v3575 = vadd.f32 %v3406, %v3574
        %v3576 = vpop.f32.mrf.mxu0
        %v3577 = vadd.f32 %v3408, %v3576
        %3578 = vmatmul.bf16.gmra.mxu0 %v1159
        %v3579 = vpop.f32.mrf.mxu0
        %v3580 = vadd.f32 %v3411, %v3579
        %v3581 = vpop.f32.mrf.mxu0
        %v3582 = vadd.f32 %v3413, %v3581
        %3583 = vmatmul.bf16.gmra.mxu0 %v1161
        %v3584 = vpop.f32.mrf.mxu0
        %v3585 = vadd.f32 %v3416, %v3584
        %v3586 = vpop.f32.mrf.mxu0
        %v3587 = vadd.f32 %v3418, %v3586
        %3588 = vmatmul.bf16.gmra.mxu0 %v1163
        %v3589 = vpop.f32.mrf.mxu0
        %v3590 = vadd.f32 %v3421, %v3589
        %v3591 = vpop.f32.mrf.mxu0
        %v3592 = vadd.f32 %v3423, %v3591
        %3593 = vmatmul.bf16.gmra.mxu0 %v1165
        %v3594 = vpop.f32.mrf.mxu0
        %v3595 = vadd.f32 %v3426, %v3594
        %v3596 = vpop.f32.mrf.mxu0
        %v3597 = vadd.f32 %v3428, %v3596
        %3598 = vmatmul.bf16.gmra.mxu0 %v1167
        %v3599 = vpop.f32.mrf.mxu0
        %v3600 = vadd.f32 %v3431, %v3599
        %v3601 = vpop.f32.mrf.mxu0
        %v3602 = vadd.f32 %v3433, %v3601
        %3603 = vmatmul.bf16.gmra.mxu0 %v1169
        %v3604 = vpop.f32.mrf.mxu0
        %v3605 = vadd.f32 %v3436, %v3604
        %v3606 = vpop.f32.mrf.mxu0
        %v3607 = vadd.f32 %v3438, %v3606
        %3608 = vmatmul.bf16.gmra.mxu0 %v1171
        %v3609 = vpop.f32.mrf.mxu0
        %v3610 = vadd.f32 %v3441, %v3609
        %v3611 = vpop.f32.mrf.mxu0
        %v3612 = vadd.f32 %v3443, %v3611
        %3613 = vmatmul.bf16.gmra.mxu0 %v1173
        %v3614 = vpop.f32.mrf.mxu0
        %v3615 = vadd.f32 %v3446, %v3614
        %v3616 = vpop.f32.mrf.mxu0
        %v3617 = vadd.f32 %v3448, %v3616
        %3618 = vmatmul.bf16.gmra.mxu0 %v1175
        %v3619 = vpop.f32.mrf.mxu0
        %v3620 = vadd.f32 %v3451, %v3619
        %v3621 = vpop.f32.mrf.mxu0
        %v3622 = vadd.f32 %v3453, %v3621
        %3623 = vmatmul.bf16.gmra.mxu0 %v1177
        %v3624 = vpop.f32.mrf.mxu0
        %v3625 = vadd.f32 %v3456, %v3624
        %v3626 = vpop.f32.mrf.mxu0
        %v3627 = vadd.f32 %v3458, %v3626
        %3628 = vmatmul.bf16.gmra.mxu0 %v1179
        %v3629 = vpop.f32.mrf.mxu0
        %v3630 = vadd.f32 %v3461, %v3629
        %v3631 = vpop.f32.mrf.mxu0
        %v3632 = vadd.f32 %v3463, %v3631
        %3633 = vmatmul.bf16.gmra.mxu0 %v1181
        %v3634 = vpop.f32.mrf.mxu0
        %v3635 = vadd.f32 %v3466, %v3634
        %v3636 = vpop.f32.mrf.mxu0
        %v3637 = vadd.f32 %v3468, %v3636
        %3638 = vmatmul.bf16.gmra.mxu0 %v1183
        %v3639 = vpop.f32.mrf.mxu0
        %v3640 = vadd.f32 %v3471, %v3639
        %v3641 = vpop.f32.mrf.mxu0
        %v3642 = vadd.f32 %v3473, %v3641
        %3643 = vmatmul.bf16.gmra.mxu0 %v1185
        %v3644 = vpop.f32.mrf.mxu0
        %v3645 = vadd.f32 %v3476, %v3644
        %v3646 = vpop.f32.mrf.mxu0
        %v3647 = vadd.f32 %v3478, %v3646
        %3648 = vmatmul.bf16.gmra.mxu0 %v1187
        %v3649 = vpop.f32.mrf.mxu0
        %v3650 = vadd.f32 %v3481, %v3649
        %v3651 = vpop.f32.mrf.mxu0
        %v3652 = vadd.f32 %v3483, %v3651
        %3653 = vdwg.mxu0
        %3654 = vmatpush.bf16.msra.mxu0 %v2031
        %3655 = vmatpush.bf16.msra.mxu0 %v2020
        %3656 = vmatpush.bf16.msra.mxu0 %v2009
        %3657 = vmatpush.bf16.msra.mxu0 %v1998
        %3658 = vmatpush.bf16.msra.mxu0 %v1987
        %3659 = vmatpush.bf16.msra.mxu0 %v1976
        %3660 = vmatpush.bf16.msra.mxu0 %v1965
        %3661 = vmatpush.bf16.msra.mxu0 %v1954
        %3662 = vmatmul.bf16.gmra.mxu0 %v1124
        %v3663 = vpop.f32.mrf.mxu0
        %v3664 = vadd.f32 %v1388, %v3663
        %v3665 = vpop.f32.mrf.mxu0
        %v3666 = vadd.f32 %v1388, %v3665
        %3667 = vmatmul.bf16.gmra.mxu0 %v1126
        %v3668 = vpop.f32.mrf.mxu0
        %v3669 = vadd.f32 %v1388, %v3668
        %v3670 = vpop.f32.mrf.mxu0
        %v3671 = vadd.f32 %v1388, %v3670
        %3672 = vmatmul.bf16.gmra.mxu0 %v1128
        %v3673 = vpop.f32.mrf.mxu0
        %v3674 = vadd.f32 %v1388, %v3673
        %v3675 = vpop.f32.mrf.mxu0
        %v3676 = vadd.f32 %v1388, %v3675
        %3677 = vmatmul.bf16.gmra.mxu0 %v1130
        %v3678 = vpop.f32.mrf.mxu0
        %v3679 = vadd.f32 %v1388, %v3678
        %v3680 = vpop.f32.mrf.mxu0
        %v3681 = vadd.f32 %v1388, %v3680
        %3682 = vmatmul.bf16.gmra.mxu0 %v1132
        %v3683 = vpop.f32.mrf.mxu0
        %v3684 = vadd.f32 %v1388, %v3683
        %v3685 = vpop.f32.mrf.mxu0
        %v3686 = vadd.f32 %v1388, %v3685
        %3687 = vmatmul.bf16.gmra.mxu0 %v1134
        %v3688 = vpop.f32.mrf.mxu0
        %v3689 = vadd.f32 %v1388, %v3688
        %v3690 = vpop.f32.mrf.mxu0
        %v3691 = vadd.f32 %v1388, %v3690
        %3692 = vmatmul.bf16.gmra.mxu0 %v1136
        %v3693 = vpop.f32.mrf.mxu0
        %v3694 = vadd.f32 %v1388, %v3693
        %v3695 = vpop.f32.mrf.mxu0
        %v3696 = vadd.f32 %v1388, %v3695
        %3697 = vmatmul.bf16.gmra.mxu0 %v1138
        %v3698 = vpop.f32.mrf.mxu0
        %v3699 = vadd.f32 %v1388, %v3698
        %v3700 = vpop.f32.mrf.mxu0
        %v3701 = vadd.f32 %v1388, %v3700
        %3702 = vmatmul.bf16.gmra.mxu0 %v1140
        %v3703 = vpop.f32.mrf.mxu0
        %v3704 = vadd.f32 %v1388, %v3703
        %v3705 = vpop.f32.mrf.mxu0
        %v3706 = vadd.f32 %v1388, %v3705
        %3707 = vmatmul.bf16.gmra.mxu0 %v1142
        %v3708 = vpop.f32.mrf.mxu0
        %v3709 = vadd.f32 %v1388, %v3708
        %v3710 = vpop.f32.mrf.mxu0
        %v3711 = vadd.f32 %v1388, %v3710
        %3712 = vmatmul.bf16.gmra.mxu0 %v1144
        %v3713 = vpop.f32.mrf.mxu0
        %v3714 = vadd.f32 %v1388, %v3713
        %v3715 = vpop.f32.mrf.mxu0
        %v3716 = vadd.f32 %v1388, %v3715
        %3717 = vmatmul.bf16.gmra.mxu0 %v1146
        %v3718 = vpop.f32.mrf.mxu0
        %v3719 = vadd.f32 %v1388, %v3718
        %v3720 = vpop.f32.mrf.mxu0
        %v3721 = vadd.f32 %v1388, %v3720
        %3722 = vmatmul.bf16.gmra.mxu0 %v1148
        %v3723 = vpop.f32.mrf.mxu0
        %v3724 = vadd.f32 %v1388, %v3723
        %v3725 = vpop.f32.mrf.mxu0
        %v3726 = vadd.f32 %v1388, %v3725
        %3727 = vmatmul.bf16.gmra.mxu0 %v1150
        %v3728 = vpop.f32.mrf.mxu0
        %v3729 = vadd.f32 %v1388, %v3728
        %v3730 = vpop.f32.mrf.mxu0
        %v3731 = vadd.f32 %v1388, %v3730
        %3732 = vmatmul.bf16.gmra.mxu0 %v1152
        %v3733 = vpop.f32.mrf.mxu0
        %v3734 = vadd.f32 %v1388, %v3733
        %v3735 = vpop.f32.mrf.mxu0
        %v3736 = vadd.f32 %v1388, %v3735
        %3737 = vmatmul.bf16.gmra.mxu0 %v1154
        %v3738 = vpop.f32.mrf.mxu0
        %v3739 = vadd.f32 %v1388, %v3738
        %v3740 = vpop.f32.mrf.mxu0
        %v3741 = vadd.f32 %v1388, %v3740
        %3742 = vmatmul.bf16.gmra.mxu0 %v1156
        %v3743 = vpop.f32.mrf.mxu0
        %v3744 = vadd.f32 %v1388, %v3743
        %v3745 = vpop.f32.mrf.mxu0
        %v3746 = vadd.f32 %v1388, %v3745
        %3747 = vmatmul.bf16.gmra.mxu0 %v1158
        %v3748 = vpop.f32.mrf.mxu0
        %v3749 = vadd.f32 %v1388, %v3748
        %v3750 = vpop.f32.mrf.mxu0
        %v3751 = vadd.f32 %v1388, %v3750
        %3752 = vmatmul.bf16.gmra.mxu0 %v1160
        %v3753 = vpop.f32.mrf.mxu0
        %v3754 = vadd.f32 %v1388, %v3753
        %v3755 = vpop.f32.mrf.mxu0
        %v3756 = vadd.f32 %v1388, %v3755
        %3757 = vmatmul.bf16.gmra.mxu0 %v1162
        %v3758 = vpop.f32.mrf.mxu0
        %v3759 = vadd.f32 %v1388, %v3758
        %v3760 = vpop.f32.mrf.mxu0
        %v3761 = vadd.f32 %v1388, %v3760
        %3762 = vmatmul.bf16.gmra.mxu0 %v1164
        %v3763 = vpop.f32.mrf.mxu0
        %v3764 = vadd.f32 %v1388, %v3763
        %v3765 = vpop.f32.mrf.mxu0
        %v3766 = vadd.f32 %v1388, %v3765
        %3767 = vmatmul.bf16.gmra.mxu0 %v1166
        %v3768 = vpop.f32.mrf.mxu0
        %v3769 = vadd.f32 %v1388, %v3768
        %v3770 = vpop.f32.mrf.mxu0
        %v3771 = vadd.f32 %v1388, %v3770
        %3772 = vmatmul.bf16.gmra.mxu0 %v1168
        %v3773 = vpop.f32.mrf.mxu0
        %v3774 = vadd.f32 %v1388, %v3773
        %v3775 = vpop.f32.mrf.mxu0
        %v3776 = vadd.f32 %v1388, %v3775
        %3777 = vmatmul.bf16.gmra.mxu0 %v1170
        %v3778 = vpop.f32.mrf.mxu0
        %v3779 = vadd.f32 %v1388, %v3778
        %v3780 = vpop.f32.mrf.mxu0
        %v3781 = vadd.f32 %v1388, %v3780
        %3782 = vmatmul.bf16.gmra.mxu0 %v1172
        %v3783 = vpop.f32.mrf.mxu0
        %v3784 = vadd.f32 %v1388, %v3783
        %v3785 = vpop.f32.mrf.mxu0
        %v3786 = vadd.f32 %v1388, %v3785
        %3787 = vmatmul.bf16.gmra.mxu0 %v1174
        %v3788 = vpop.f32.mrf.mxu0
        %v3789 = vadd.f32 %v1388, %v3788
        %v3790 = vpop.f32.mrf.mxu0
        %v3791 = vadd.f32 %v1388, %v3790
        %3792 = vmatmul.bf16.gmra.mxu0 %v1176
        %v3793 = vpop.f32.mrf.mxu0
        %v3794 = vadd.f32 %v1388, %v3793
        %v3795 = vpop.f32.mrf.mxu0
        %v3796 = vadd.f32 %v1388, %v3795
        %3797 = vmatmul.bf16.gmra.mxu0 %v1178
        %v3798 = vpop.f32.mrf.mxu0
        %v3799 = vadd.f32 %v1388, %v3798
        %v3800 = vpop.f32.mrf.mxu0
        %v3801 = vadd.f32 %v1388, %v3800
        %3802 = vmatmul.bf16.gmra.mxu0 %v1180
        %v3803 = vpop.f32.mrf.mxu0
        %v3804 = vadd.f32 %v1388, %v3803
        %v3805 = vpop.f32.mrf.mxu0
        %v3806 = vadd.f32 %v1388, %v3805
        %3807 = vmatmul.bf16.gmra.mxu0 %v1182
        %v3808 = vpop.f32.mrf.mxu0
        %v3809 = vadd.f32 %v1388, %v3808
        %v3810 = vpop.f32.mrf.mxu0
        %v3811 = vadd.f32 %v1388, %v3810
        %3812 = vmatmul.bf16.gmra.mxu0 %v1184
        %v3813 = vpop.f32.mrf.mxu0
        %v3814 = vadd.f32 %v1388, %v3813
        %v3815 = vpop.f32.mrf.mxu0
        %v3816 = vadd.f32 %v1388, %v3815
        %3817 = vmatmul.bf16.gmra.mxu0 %v1186
        %v3818 = vpop.f32.mrf.mxu0
        %v3819 = vadd.f32 %v1388, %v3818
        %v3820 = vpop.f32.mrf.mxu0
        %v3821 = vadd.f32 %v1388, %v3820
        %3822 = vdwg.mxu0
        %3823 = vmatpush.bf16.msra.mxu0 %v2119
        %3824 = vmatpush.bf16.msra.mxu0 %v2108
        %3825 = vmatpush.bf16.msra.mxu0 %v2097
        %3826 = vmatpush.bf16.msra.mxu0 %v2086
        %3827 = vmatpush.bf16.msra.mxu0 %v2075
        %3828 = vmatpush.bf16.msra.mxu0 %v2064
        %3829 = vmatpush.bf16.msra.mxu0 %v2053
        %3830 = vmatpush.bf16.msra.mxu0 %v2042
        %3831 = vmatmul.bf16.gmra.mxu0 %v1125
        %v3832 = vpop.f32.mrf.mxu0
        %v3833 = vadd.f32 %v3664, %v3832
        %v3834 = vpop.f32.mrf.mxu0
        %v3835 = vadd.f32 %v3666, %v3834
        %3836 = vmatmul.bf16.gmra.mxu0 %v1127
        %v3837 = vpop.f32.mrf.mxu0
        %v3838 = vadd.f32 %v3669, %v3837
        %v3839 = vpop.f32.mrf.mxu0
        %v3840 = vadd.f32 %v3671, %v3839
        %3841 = vmatmul.bf16.gmra.mxu0 %v1129
        %v3842 = vpop.f32.mrf.mxu0
        %v3843 = vadd.f32 %v3674, %v3842
        %v3844 = vpop.f32.mrf.mxu0
        %v3845 = vadd.f32 %v3676, %v3844
        %3846 = vmatmul.bf16.gmra.mxu0 %v1131
        %v3847 = vpop.f32.mrf.mxu0
        %v3848 = vadd.f32 %v3679, %v3847
        %v3849 = vpop.f32.mrf.mxu0
        %v3850 = vadd.f32 %v3681, %v3849
        %3851 = vmatmul.bf16.gmra.mxu0 %v1133
        %v3852 = vpop.f32.mrf.mxu0
        %v3853 = vadd.f32 %v3684, %v3852
        %v3854 = vpop.f32.mrf.mxu0
        %v3855 = vadd.f32 %v3686, %v3854
        %3856 = vmatmul.bf16.gmra.mxu0 %v1135
        %v3857 = vpop.f32.mrf.mxu0
        %v3858 = vadd.f32 %v3689, %v3857
        %v3859 = vpop.f32.mrf.mxu0
        %v3860 = vadd.f32 %v3691, %v3859
        %3861 = vmatmul.bf16.gmra.mxu0 %v1137
        %v3862 = vpop.f32.mrf.mxu0
        %v3863 = vadd.f32 %v3694, %v3862
        %v3864 = vpop.f32.mrf.mxu0
        %v3865 = vadd.f32 %v3696, %v3864
        %3866 = vmatmul.bf16.gmra.mxu0 %v1139
        %v3867 = vpop.f32.mrf.mxu0
        %v3868 = vadd.f32 %v3699, %v3867
        %v3869 = vpop.f32.mrf.mxu0
        %v3870 = vadd.f32 %v3701, %v3869
        %3871 = vmatmul.bf16.gmra.mxu0 %v1141
        %v3872 = vpop.f32.mrf.mxu0
        %v3873 = vadd.f32 %v3704, %v3872
        %v3874 = vpop.f32.mrf.mxu0
        %v3875 = vadd.f32 %v3706, %v3874
        %3876 = vmatmul.bf16.gmra.mxu0 %v1143
        %v3877 = vpop.f32.mrf.mxu0
        %v3878 = vadd.f32 %v3709, %v3877
        %v3879 = vpop.f32.mrf.mxu0
        %v3880 = vadd.f32 %v3711, %v3879
        %3881 = vmatmul.bf16.gmra.mxu0 %v1145
        %v3882 = vpop.f32.mrf.mxu0
        %v3883 = vadd.f32 %v3714, %v3882
        %v3884 = vpop.f32.mrf.mxu0
        %v3885 = vadd.f32 %v3716, %v3884
        %3886 = vmatmul.bf16.gmra.mxu0 %v1147
        %v3887 = vpop.f32.mrf.mxu0
        %v3888 = vadd.f32 %v3719, %v3887
        %v3889 = vpop.f32.mrf.mxu0
        %v3890 = vadd.f32 %v3721, %v3889
        %3891 = vmatmul.bf16.gmra.mxu0 %v1149
        %v3892 = vpop.f32.mrf.mxu0
        %v3893 = vadd.f32 %v3724, %v3892
        %v3894 = vpop.f32.mrf.mxu0
        %v3895 = vadd.f32 %v3726, %v3894
        %3896 = vmatmul.bf16.gmra.mxu0 %v1151
        %v3897 = vpop.f32.mrf.mxu0
        %v3898 = vadd.f32 %v3729, %v3897
        %v3899 = vpop.f32.mrf.mxu0
        %v3900 = vadd.f32 %v3731, %v3899
        %3901 = vmatmul.bf16.gmra.mxu0 %v1153
        %v3902 = vpop.f32.mrf.mxu0
        %v3903 = vadd.f32 %v3734, %v3902
        %v3904 = vpop.f32.mrf.mxu0
        %v3905 = vadd.f32 %v3736, %v3904
        %3906 = vmatmul.bf16.gmra.mxu0 %v1155
        %v3907 = vpop.f32.mrf.mxu0
        %v3908 = vadd.f32 %v3739, %v3907
        %v3909 = vpop.f32.mrf.mxu0
        %v3910 = vadd.f32 %v3741, %v3909
        %3911 = vmatmul.bf16.gmra.mxu0 %v1157
        %v3912 = vpop.f32.mrf.mxu0
        %v3913 = vadd.f32 %v3744, %v3912
        %v3914 = vpop.f32.mrf.mxu0
        %v3915 = vadd.f32 %v3746, %v3914
        %3916 = vmatmul.bf16.gmra.mxu0 %v1159
        %v3917 = vpop.f32.mrf.mxu0
        %v3918 = vadd.f32 %v3749, %v3917
        %v3919 = vpop.f32.mrf.mxu0
        %v3920 = vadd.f32 %v3751, %v3919
        %3921 = vmatmul.bf16.gmra.mxu0 %v1161
        %v3922 = vpop.f32.mrf.mxu0
        %v3923 = vadd.f32 %v3754, %v3922
        %v3924 = vpop.f32.mrf.mxu0
        %v3925 = vadd.f32 %v3756, %v3924
        %3926 = vmatmul.bf16.gmra.mxu0 %v1163
        %v3927 = vpop.f32.mrf.mxu0
        %v3928 = vadd.f32 %v3759, %v3927
        %v3929 = vpop.f32.mrf.mxu0
        %v3930 = vadd.f32 %v3761, %v3929
        %3931 = vmatmul.bf16.gmra.mxu0 %v1165
        %v3932 = vpop.f32.mrf.mxu0
        %v3933 = vadd.f32 %v3764, %v3932
        %v3934 = vpop.f32.mrf.mxu0
        %v3935 = vadd.f32 %v3766, %v3934
        %3936 = vmatmul.bf16.gmra.mxu0 %v1167
        %v3937 = vpop.f32.mrf.mxu0
        %v3938 = vadd.f32 %v3769, %v3937
        %v3939 = vpop.f32.mrf.mxu0
        %v3940 = vadd.f32 %v3771, %v3939
        %3941 = vmatmul.bf16.gmra.mxu0 %v1169
        %v3942 = vpop.f32.mrf.mxu0
        %v3943 = vadd.f32 %v3774, %v3942
        %v3944 = vpop.f32.mrf.mxu0
        %v3945 = vadd.f32 %v3776, %v3944
        %3946 = vmatmul.bf16.gmra.mxu0 %v1171
        %v3947 = vpop.f32.mrf.mxu0
        %v3948 = vadd.f32 %v3779, %v3947
        %v3949 = vpop.f32.mrf.mxu0
        %v3950 = vadd.f32 %v3781, %v3949
        %3951 = vmatmul.bf16.gmra.mxu0 %v1173
        %v3952 = vpop.f32.mrf.mxu0
        %v3953 = vadd.f32 %v3784, %v3952
        %v3954 = vpop.f32.mrf.mxu0
        %v3955 = vadd.f32 %v3786, %v3954
        %3956 = vmatmul.bf16.gmra.mxu0 %v1175
        %v3957 = vpop.f32.mrf.mxu0
        %v3958 = vadd.f32 %v3789, %v3957
        %v3959 = vpop.f32.mrf.mxu0
        %v3960 = vadd.f32 %v3791, %v3959
        %3961 = vmatmul.bf16.gmra.mxu0 %v1177
        %v3962 = vpop.f32.mrf.mxu0
        %v3963 = vadd.f32 %v3794, %v3962
        %v3964 = vpop.f32.mrf.mxu0
        %v3965 = vadd.f32 %v3796, %v3964
        %3966 = vmatmul.bf16.gmra.mxu0 %v1179
        %v3967 = vpop.f32.mrf.mxu0
        %v3968 = vadd.f32 %v3799, %v3967
        %v3969 = vpop.f32.mrf.mxu0
        %v3970 = vadd.f32 %v3801, %v3969
        %3971 = vmatmul.bf16.gmra.mxu0 %v1181
        %v3972 = vpop.f32.mrf.mxu0
        %v3973 = vadd.f32 %v3804, %v3972
        %v3974 = vpop.f32.mrf.mxu0
        %v3975 = vadd.f32 %v3806, %v3974
        %3976 = vmatmul.bf16.gmra.mxu0 %v1183
        %v3977 = vpop.f32.mrf.mxu0
        %v3978 = vadd.f32 %v3809, %v3977
        %v3979 = vpop.f32.mrf.mxu0
        %v3980 = vadd.f32 %v3811, %v3979
        %3981 = vmatmul.bf16.gmra.mxu0 %v1185
        %v3982 = vpop.f32.mrf.mxu0
        %v3983 = vadd.f32 %v3814, %v3982
        %v3984 = vpop.f32.mrf.mxu0
        %v3985 = vadd.f32 %v3816, %v3984
        %3986 = vmatmul.bf16.gmra.mxu0 %v1187
        %v3987 = vpop.f32.mrf.mxu0
        %v3988 = vadd.f32 %v3819, %v3987
        %v3989 = vpop.f32.mrf.mxu0
        %v3990 = vadd.f32 %v3821, %v3989
        %3991 = vdwg.mxu0
        %3992 = vmatpush.bf16.msra.mxu0 %v2032
        %3993 = vmatpush.bf16.msra.mxu0 %v2021
        %3994 = vmatpush.bf16.msra.mxu0 %v2010
        %3995 = vmatpush.bf16.msra.mxu0 %v1999
        %3996 = vmatpush.bf16.msra.mxu0 %v1988
        %3997 = vmatpush.bf16.msra.mxu0 %v1977
        %3998 = vmatpush.bf16.msra.mxu0 %v1966
        %3999 = vmatpush.bf16.msra.mxu0 %v1955
        %4000 = vmatmul.bf16.gmra.mxu0 %v1124
        %v4001 = vpop.f32.mrf.mxu0
        %v4002 = vadd.f32 %v1389, %v4001
        %v4003 = vpop.f32.mrf.mxu0
        %v4004 = vadd.f32 %v1389, %v4003
        %4005 = vmatmul.bf16.gmra.mxu0 %v1126
        %v4006 = vpop.f32.mrf.mxu0
        %v4007 = vadd.f32 %v1389, %v4006
        %v4008 = vpop.f32.mrf.mxu0
        %v4009 = vadd.f32 %v1389, %v4008
        %4010 = vmatmul.bf16.gmra.mxu0 %v1128
        %v4011 = vpop.f32.mrf.mxu0
        %v4012 = vadd.f32 %v1389, %v4011
        %v4013 = vpop.f32.mrf.mxu0
        %v4014 = vadd.f32 %v1389, %v4013
        %4015 = vmatmul.bf16.gmra.mxu0 %v1130
        %v4016 = vpop.f32.mrf.mxu0
        %v4017 = vadd.f32 %v1389, %v4016
        %v4018 = vpop.f32.mrf.mxu0
        %v4019 = vadd.f32 %v1389, %v4018
        %4020 = vmatmul.bf16.gmra.mxu0 %v1132
        %v4021 = vpop.f32.mrf.mxu0
        %v4022 = vadd.f32 %v1389, %v4021
        %v4023 = vpop.f32.mrf.mxu0
        %v4024 = vadd.f32 %v1389, %v4023
        %4025 = vmatmul.bf16.gmra.mxu0 %v1134
        %v4026 = vpop.f32.mrf.mxu0
        %v4027 = vadd.f32 %v1389, %v4026
        %v4028 = vpop.f32.mrf.mxu0
        %v4029 = vadd.f32 %v1389, %v4028
        %4030 = vmatmul.bf16.gmra.mxu0 %v1136
        %v4031 = vpop.f32.mrf.mxu0
        %v4032 = vadd.f32 %v1389, %v4031
        %v4033 = vpop.f32.mrf.mxu0
        %v4034 = vadd.f32 %v1389, %v4033
        %4035 = vmatmul.bf16.gmra.mxu0 %v1138
        %v4036 = vpop.f32.mrf.mxu0
        %v4037 = vadd.f32 %v1389, %v4036
        %v4038 = vpop.f32.mrf.mxu0
        %v4039 = vadd.f32 %v1389, %v4038
        %4040 = vmatmul.bf16.gmra.mxu0 %v1140
        %v4041 = vpop.f32.mrf.mxu0
        %v4042 = vadd.f32 %v1389, %v4041
        %v4043 = vpop.f32.mrf.mxu0
        %v4044 = vadd.f32 %v1389, %v4043
        %4045 = vmatmul.bf16.gmra.mxu0 %v1142
        %v4046 = vpop.f32.mrf.mxu0
        %v4047 = vadd.f32 %v1389, %v4046
        %v4048 = vpop.f32.mrf.mxu0
        %v4049 = vadd.f32 %v1389, %v4048
        %4050 = vmatmul.bf16.gmra.mxu0 %v1144
        %v4051 = vpop.f32.mrf.mxu0
        %v4052 = vadd.f32 %v1389, %v4051
        %v4053 = vpop.f32.mrf.mxu0
        %v4054 = vadd.f32 %v1389, %v4053
        %4055 = vmatmul.bf16.gmra.mxu0 %v1146
        %v4056 = vpop.f32.mrf.mxu0
        %v4057 = vadd.f32 %v1389, %v4056
        %v4058 = vpop.f32.mrf.mxu0
        %v4059 = vadd.f32 %v1389, %v4058
        %4060 = vmatmul.bf16.gmra.mxu0 %v1148
        %v4061 = vpop.f32.mrf.mxu0
        %v4062 = vadd.f32 %v1389, %v4061
        %v4063 = vpop.f32.mrf.mxu0
        %v4064 = vadd.f32 %v1389, %v4063
        %4065 = vmatmul.bf16.gmra.mxu0 %v1150
        %v4066 = vpop.f32.mrf.mxu0
        %v4067 = vadd.f32 %v1389, %v4066
        %v4068 = vpop.f32.mrf.mxu0
        %v4069 = vadd.f32 %v1389, %v4068
        %4070 = vmatmul.bf16.gmra.mxu0 %v1152
        %v4071 = vpop.f32.mrf.mxu0
        %v4072 = vadd.f32 %v1389, %v4071
        %v4073 = vpop.f32.mrf.mxu0
        %v4074 = vadd.f32 %v1389, %v4073
        %4075 = vmatmul.bf16.gmra.mxu0 %v1154
        %v4076 = vpop.f32.mrf.mxu0
        %v4077 = vadd.f32 %v1389, %v4076
        %v4078 = vpop.f32.mrf.mxu0
        %v4079 = vadd.f32 %v1389, %v4078
        %4080 = vmatmul.bf16.gmra.mxu0 %v1156
        %v4081 = vpop.f32.mrf.mxu0
        %v4082 = vadd.f32 %v1389, %v4081
        %v4083 = vpop.f32.mrf.mxu0
        %v4084 = vadd.f32 %v1389, %v4083
        %4085 = vmatmul.bf16.gmra.mxu0 %v1158
        %v4086 = vpop.f32.mrf.mxu0
        %v4087 = vadd.f32 %v1389, %v4086
        %v4088 = vpop.f32.mrf.mxu0
        %v4089 = vadd.f32 %v1389, %v4088
        %4090 = vmatmul.bf16.gmra.mxu0 %v1160
        %v4091 = vpop.f32.mrf.mxu0
        %v4092 = vadd.f32 %v1389, %v4091
        %v4093 = vpop.f32.mrf.mxu0
        %v4094 = vadd.f32 %v1389, %v4093
        %4095 = vmatmul.bf16.gmra.mxu0 %v1162
        %v4096 = vpop.f32.mrf.mxu0
        %v4097 = vadd.f32 %v1389, %v4096
        %v4098 = vpop.f32.mrf.mxu0
        %v4099 = vadd.f32 %v1389, %v4098
        %4100 = vmatmul.bf16.gmra.mxu0 %v1164
        %v4101 = vpop.f32.mrf.mxu0
        %v4102 = vadd.f32 %v1389, %v4101
        %v4103 = vpop.f32.mrf.mxu0
        %v4104 = vadd.f32 %v1389, %v4103
        %4105 = vmatmul.bf16.gmra.mxu0 %v1166
        %v4106 = vpop.f32.mrf.mxu0
        %v4107 = vadd.f32 %v1389, %v4106
        %v4108 = vpop.f32.mrf.mxu0
        %v4109 = vadd.f32 %v1389, %v4108
        %4110 = vmatmul.bf16.gmra.mxu0 %v1168
        %v4111 = vpop.f32.mrf.mxu0
        %v4112 = vadd.f32 %v1389, %v4111
        %v4113 = vpop.f32.mrf.mxu0
        %v4114 = vadd.f32 %v1389, %v4113
        %4115 = vmatmul.bf16.gmra.mxu0 %v1170
        %v4116 = vpop.f32.mrf.mxu0
        %v4117 = vadd.f32 %v1389, %v4116
        %v4118 = vpop.f32.mrf.mxu0
        %v4119 = vadd.f32 %v1389, %v4118
        %4120 = vmatmul.bf16.gmra.mxu0 %v1172
        %v4121 = vpop.f32.mrf.mxu0
        %v4122 = vadd.f32 %v1389, %v4121
        %v4123 = vpop.f32.mrf.mxu0
        %v4124 = vadd.f32 %v1389, %v4123
        %4125 = vmatmul.bf16.gmra.mxu0 %v1174
        %v4126 = vpop.f32.mrf.mxu0
        %v4127 = vadd.f32 %v1389, %v4126
        %v4128 = vpop.f32.mrf.mxu0
        %v4129 = vadd.f32 %v1389, %v4128
        %4130 = vmatmul.bf16.gmra.mxu0 %v1176
        %v4131 = vpop.f32.mrf.mxu0
        %v4132 = vadd.f32 %v1389, %v4131
        %v4133 = vpop.f32.mrf.mxu0
        %v4134 = vadd.f32 %v1389, %v4133
        %4135 = vmatmul.bf16.gmra.mxu0 %v1178
        %v4136 = vpop.f32.mrf.mxu0
        %v4137 = vadd.f32 %v1389, %v4136
        %v4138 = vpop.f32.mrf.mxu0
        %v4139 = vadd.f32 %v1389, %v4138
        %4140 = vmatmul.bf16.gmra.mxu0 %v1180
        %v4141 = vpop.f32.mrf.mxu0
        %v4142 = vadd.f32 %v1389, %v4141
        %v4143 = vpop.f32.mrf.mxu0
        %v4144 = vadd.f32 %v1389, %v4143
        %4145 = vmatmul.bf16.gmra.mxu0 %v1182
        %v4146 = vpop.f32.mrf.mxu0
        %v4147 = vadd.f32 %v1389, %v4146
        %v4148 = vpop.f32.mrf.mxu0
        %v4149 = vadd.f32 %v1389, %v4148
        %4150 = vmatmul.bf16.gmra.mxu0 %v1184
        %v4151 = vpop.f32.mrf.mxu0
        %v4152 = vadd.f32 %v1389, %v4151
        %v4153 = vpop.f32.mrf.mxu0
        %v4154 = vadd.f32 %v1389, %v4153
        %4155 = vmatmul.bf16.gmra.mxu0 %v1186
        %v4156 = vpop.f32.mrf.mxu0
        %v4157 = vadd.f32 %v1389, %v4156
        %v4158 = vpop.f32.mrf.mxu0
        %v4159 = vadd.f32 %v1389, %v4158
        %4160 = vdwg.mxu0
        %4161 = vmatpush.bf16.msra.mxu0 %v2120
        %4162 = vmatpush.bf16.msra.mxu0 %v2109
        %4163 = vmatpush.bf16.msra.mxu0 %v2098
        %4164 = vmatpush.bf16.msra.mxu0 %v2087
        %4165 = vmatpush.bf16.msra.mxu0 %v2076
        %4166 = vmatpush.bf16.msra.mxu0 %v2065
        %4167 = vmatpush.bf16.msra.mxu0 %v2054
        %4168 = vmatpush.bf16.msra.mxu0 %v2043
        %4169 = vmatmul.bf16.gmra.mxu0 %v1125
        %v4170 = vpop.f32.mrf.mxu0
        %v4171 = vadd.f32 %v4002, %v4170
        %v4172 = vpop.f32.mrf.mxu0
        %v4173 = vadd.f32 %v4004, %v4172
        %4174 = vmatmul.bf16.gmra.mxu0 %v1127
        %v4175 = vpop.f32.mrf.mxu0
        %v4176 = vadd.f32 %v4007, %v4175
        %v4177 = vpop.f32.mrf.mxu0
        %v4178 = vadd.f32 %v4009, %v4177
        %4179 = vmatmul.bf16.gmra.mxu0 %v1129
        %v4180 = vpop.f32.mrf.mxu0
        %v4181 = vadd.f32 %v4012, %v4180
        %v4182 = vpop.f32.mrf.mxu0
        %v4183 = vadd.f32 %v4014, %v4182
        %4184 = vmatmul.bf16.gmra.mxu0 %v1131
        %v4185 = vpop.f32.mrf.mxu0
        %v4186 = vadd.f32 %v4017, %v4185
        %v4187 = vpop.f32.mrf.mxu0
        %v4188 = vadd.f32 %v4019, %v4187
        %4189 = vmatmul.bf16.gmra.mxu0 %v1133
        %v4190 = vpop.f32.mrf.mxu0
        %v4191 = vadd.f32 %v4022, %v4190
        %v4192 = vpop.f32.mrf.mxu0
        %v4193 = vadd.f32 %v4024, %v4192
        %4194 = vmatmul.bf16.gmra.mxu0 %v1135
        %v4195 = vpop.f32.mrf.mxu0
        %v4196 = vadd.f32 %v4027, %v4195
        %v4197 = vpop.f32.mrf.mxu0
        %v4198 = vadd.f32 %v4029, %v4197
        %4199 = vmatmul.bf16.gmra.mxu0 %v1137
        %v4200 = vpop.f32.mrf.mxu0
        %v4201 = vadd.f32 %v4032, %v4200
        %v4202 = vpop.f32.mrf.mxu0
        %v4203 = vadd.f32 %v4034, %v4202
        %4204 = vmatmul.bf16.gmra.mxu0 %v1139
        %v4205 = vpop.f32.mrf.mxu0
        %v4206 = vadd.f32 %v4037, %v4205
        %v4207 = vpop.f32.mrf.mxu0
        %v4208 = vadd.f32 %v4039, %v4207
        %4209 = vmatmul.bf16.gmra.mxu0 %v1141
        %v4210 = vpop.f32.mrf.mxu0
        %v4211 = vadd.f32 %v4042, %v4210
        %v4212 = vpop.f32.mrf.mxu0
        %v4213 = vadd.f32 %v4044, %v4212
        %4214 = vmatmul.bf16.gmra.mxu0 %v1143
        %v4215 = vpop.f32.mrf.mxu0
        %v4216 = vadd.f32 %v4047, %v4215
        %v4217 = vpop.f32.mrf.mxu0
        %v4218 = vadd.f32 %v4049, %v4217
        %4219 = vmatmul.bf16.gmra.mxu0 %v1145
        %v4220 = vpop.f32.mrf.mxu0
        %v4221 = vadd.f32 %v4052, %v4220
        %v4222 = vpop.f32.mrf.mxu0
        %v4223 = vadd.f32 %v4054, %v4222
        %4224 = vmatmul.bf16.gmra.mxu0 %v1147
        %v4225 = vpop.f32.mrf.mxu0
        %v4226 = vadd.f32 %v4057, %v4225
        %v4227 = vpop.f32.mrf.mxu0
        %v4228 = vadd.f32 %v4059, %v4227
        %4229 = vmatmul.bf16.gmra.mxu0 %v1149
        %v4230 = vpop.f32.mrf.mxu0
        %v4231 = vadd.f32 %v4062, %v4230
        %v4232 = vpop.f32.mrf.mxu0
        %v4233 = vadd.f32 %v4064, %v4232
        %4234 = vmatmul.bf16.gmra.mxu0 %v1151
        %v4235 = vpop.f32.mrf.mxu0
        %v4236 = vadd.f32 %v4067, %v4235
        %v4237 = vpop.f32.mrf.mxu0
        %v4238 = vadd.f32 %v4069, %v4237
        %4239 = vmatmul.bf16.gmra.mxu0 %v1153
        %v4240 = vpop.f32.mrf.mxu0
        %v4241 = vadd.f32 %v4072, %v4240
        %v4242 = vpop.f32.mrf.mxu0
        %v4243 = vadd.f32 %v4074, %v4242
        %4244 = vmatmul.bf16.gmra.mxu0 %v1155
        %v4245 = vpop.f32.mrf.mxu0
        %v4246 = vadd.f32 %v4077, %v4245
        %v4247 = vpop.f32.mrf.mxu0
        %v4248 = vadd.f32 %v4079, %v4247
        %4249 = vmatmul.bf16.gmra.mxu0 %v1157
        %v4250 = vpop.f32.mrf.mxu0
        %v4251 = vadd.f32 %v4082, %v4250
        %v4252 = vpop.f32.mrf.mxu0
        %v4253 = vadd.f32 %v4084, %v4252
        %4254 = vmatmul.bf16.gmra.mxu0 %v1159
        %v4255 = vpop.f32.mrf.mxu0
        %v4256 = vadd.f32 %v4087, %v4255
        %v4257 = vpop.f32.mrf.mxu0
        %v4258 = vadd.f32 %v4089, %v4257
        %4259 = vmatmul.bf16.gmra.mxu0 %v1161
        %v4260 = vpop.f32.mrf.mxu0
        %v4261 = vadd.f32 %v4092, %v4260
        %v4262 = vpop.f32.mrf.mxu0
        %v4263 = vadd.f32 %v4094, %v4262
        %4264 = vmatmul.bf16.gmra.mxu0 %v1163
        %v4265 = vpop.f32.mrf.mxu0
        %v4266 = vadd.f32 %v4097, %v4265
        %v4267 = vpop.f32.mrf.mxu0
        %v4268 = vadd.f32 %v4099, %v4267
        %4269 = vmatmul.bf16.gmra.mxu0 %v1165
        %v4270 = vpop.f32.mrf.mxu0
        %v4271 = vadd.f32 %v4102, %v4270
        %v4272 = vpop.f32.mrf.mxu0
        %v4273 = vadd.f32 %v4104, %v4272
        %4274 = vmatmul.bf16.gmra.mxu0 %v1167
        %v4275 = vpop.f32.mrf.mxu0
        %v4276 = vadd.f32 %v4107, %v4275
        %v4277 = vpop.f32.mrf.mxu0
        %v4278 = vadd.f32 %v4109, %v4277
        %4279 = vmatmul.bf16.gmra.mxu0 %v1169
        %v4280 = vpop.f32.mrf.mxu0
        %v4281 = vadd.f32 %v4112, %v4280
        %v4282 = vpop.f32.mrf.mxu0
        %v4283 = vadd.f32 %v4114, %v4282
        %4284 = vmatmul.bf16.gmra.mxu0 %v1171
        %v4285 = vpop.f32.mrf.mxu0
        %v4286 = vadd.f32 %v4117, %v4285
        %v4287 = vpop.f32.mrf.mxu0
        %v4288 = vadd.f32 %v4119, %v4287
        %4289 = vmatmul.bf16.gmra.mxu0 %v1173
        %v4290 = vpop.f32.mrf.mxu0
        %v4291 = vadd.f32 %v4122, %v4290
        %v4292 = vpop.f32.mrf.mxu0
        %v4293 = vadd.f32 %v4124, %v4292
        %4294 = vmatmul.bf16.gmra.mxu0 %v1175
        %v4295 = vpop.f32.mrf.mxu0
        %v4296 = vadd.f32 %v4127, %v4295
        %v4297 = vpop.f32.mrf.mxu0
        %v4298 = vadd.f32 %v4129, %v4297
        %4299 = vmatmul.bf16.gmra.mxu0 %v1177
        %v4300 = vpop.f32.mrf.mxu0
        %v4301 = vadd.f32 %v4132, %v4300
        %v4302 = vpop.f32.mrf.mxu0
        %v4303 = vadd.f32 %v4134, %v4302
        %4304 = vmatmul.bf16.gmra.mxu0 %v1179
        %v4305 = vpop.f32.mrf.mxu0
        %v4306 = vadd.f32 %v4137, %v4305
        %v4307 = vpop.f32.mrf.mxu0
        %v4308 = vadd.f32 %v4139, %v4307
        %4309 = vmatmul.bf16.gmra.mxu0 %v1181
        %v4310 = vpop.f32.mrf.mxu0
        %v4311 = vadd.f32 %v4142, %v4310
        %v4312 = vpop.f32.mrf.mxu0
        %v4313 = vadd.f32 %v4144, %v4312
        %4314 = vmatmul.bf16.gmra.mxu0 %v1183
        %v4315 = vpop.f32.mrf.mxu0
        %v4316 = vadd.f32 %v4147, %v4315
        %v4317 = vpop.f32.mrf.mxu0
        %v4318 = vadd.f32 %v4149, %v4317
        %4319 = vmatmul.bf16.gmra.mxu0 %v1185
        %v4320 = vpop.f32.mrf.mxu0
        %v4321 = vadd.f32 %v4152, %v4320
        %v4322 = vpop.f32.mrf.mxu0
        %v4323 = vadd.f32 %v4154, %v4322
        %4324 = vmatmul.bf16.gmra.mxu0 %v1187
        %v4325 = vpop.f32.mrf.mxu0
        %v4326 = vadd.f32 %v4157, %v4325
        %v4327 = vpop.f32.mrf.mxu0
        %v4328 = vadd.f32 %v4159, %v4327
        %4329 = vdwg.mxu0
        %4330 = vmatpush.bf16.msra.mxu0 %v2033
        %4331 = vmatpush.bf16.msra.mxu0 %v2022
        %4332 = vmatpush.bf16.msra.mxu0 %v2011
        %4333 = vmatpush.bf16.msra.mxu0 %v2000
        %4334 = vmatpush.bf16.msra.mxu0 %v1989
        %4335 = vmatpush.bf16.msra.mxu0 %v1978
        %4336 = vmatpush.bf16.msra.mxu0 %v1967
        %4337 = vmatpush.bf16.msra.mxu0 %v1956
        %4338 = vmatmul.bf16.gmra.mxu0 %v1124
        %v4339 = vpop.f32.mrf.mxu0
        %v4340 = vadd.f32 %v1390, %v4339
        %v4341 = vpop.f32.mrf.mxu0
        %v4342 = vadd.f32 %v1390, %v4341
        %4343 = vmatmul.bf16.gmra.mxu0 %v1126
        %v4344 = vpop.f32.mrf.mxu0
        %v4345 = vadd.f32 %v1390, %v4344
        %v4346 = vpop.f32.mrf.mxu0
        %v4347 = vadd.f32 %v1390, %v4346
        %4348 = vmatmul.bf16.gmra.mxu0 %v1128
        %v4349 = vpop.f32.mrf.mxu0
        %v4350 = vadd.f32 %v1390, %v4349
        %v4351 = vpop.f32.mrf.mxu0
        %v4352 = vadd.f32 %v1390, %v4351
        %4353 = vmatmul.bf16.gmra.mxu0 %v1130
        %v4354 = vpop.f32.mrf.mxu0
        %v4355 = vadd.f32 %v1390, %v4354
        %v4356 = vpop.f32.mrf.mxu0
        %v4357 = vadd.f32 %v1390, %v4356
        %4358 = vmatmul.bf16.gmra.mxu0 %v1132
        %v4359 = vpop.f32.mrf.mxu0
        %v4360 = vadd.f32 %v1390, %v4359
        %v4361 = vpop.f32.mrf.mxu0
        %v4362 = vadd.f32 %v1390, %v4361
        %4363 = vmatmul.bf16.gmra.mxu0 %v1134
        %v4364 = vpop.f32.mrf.mxu0
        %v4365 = vadd.f32 %v1390, %v4364
        %v4366 = vpop.f32.mrf.mxu0
        %v4367 = vadd.f32 %v1390, %v4366
        %4368 = vmatmul.bf16.gmra.mxu0 %v1136
        %v4369 = vpop.f32.mrf.mxu0
        %v4370 = vadd.f32 %v1390, %v4369
        %v4371 = vpop.f32.mrf.mxu0
        %v4372 = vadd.f32 %v1390, %v4371
        %4373 = vmatmul.bf16.gmra.mxu0 %v1138
        %v4374 = vpop.f32.mrf.mxu0
        %v4375 = vadd.f32 %v1390, %v4374
        %v4376 = vpop.f32.mrf.mxu0
        %v4377 = vadd.f32 %v1390, %v4376
        %4378 = vmatmul.bf16.gmra.mxu0 %v1140
        %v4379 = vpop.f32.mrf.mxu0
        %v4380 = vadd.f32 %v1390, %v4379
        %v4381 = vpop.f32.mrf.mxu0
        %v4382 = vadd.f32 %v1390, %v4381
        %4383 = vmatmul.bf16.gmra.mxu0 %v1142
        %v4384 = vpop.f32.mrf.mxu0
        %v4385 = vadd.f32 %v1390, %v4384
        %v4386 = vpop.f32.mrf.mxu0
        %v4387 = vadd.f32 %v1390, %v4386
        %4388 = vmatmul.bf16.gmra.mxu0 %v1144
        %v4389 = vpop.f32.mrf.mxu0
        %v4390 = vadd.f32 %v1390, %v4389
        %v4391 = vpop.f32.mrf.mxu0
        %v4392 = vadd.f32 %v1390, %v4391
        %4393 = vmatmul.bf16.gmra.mxu0 %v1146
        %v4394 = vpop.f32.mrf.mxu0
        %v4395 = vadd.f32 %v1390, %v4394
        %v4396 = vpop.f32.mrf.mxu0
        %v4397 = vadd.f32 %v1390, %v4396
        %4398 = vmatmul.bf16.gmra.mxu0 %v1148
        %v4399 = vpop.f32.mrf.mxu0
        %v4400 = vadd.f32 %v1390, %v4399
        %v4401 = vpop.f32.mrf.mxu0
        %v4402 = vadd.f32 %v1390, %v4401
        %4403 = vmatmul.bf16.gmra.mxu0 %v1150
        %v4404 = vpop.f32.mrf.mxu0
        %v4405 = vadd.f32 %v1390, %v4404
        %v4406 = vpop.f32.mrf.mxu0
        %v4407 = vadd.f32 %v1390, %v4406
        %4408 = vmatmul.bf16.gmra.mxu0 %v1152
        %v4409 = vpop.f32.mrf.mxu0
        %v4410 = vadd.f32 %v1390, %v4409
        %v4411 = vpop.f32.mrf.mxu0
        %v4412 = vadd.f32 %v1390, %v4411
        %4413 = vmatmul.bf16.gmra.mxu0 %v1154
        %v4414 = vpop.f32.mrf.mxu0
        %v4415 = vadd.f32 %v1390, %v4414
        %v4416 = vpop.f32.mrf.mxu0
        %v4417 = vadd.f32 %v1390, %v4416
        %4418 = vmatmul.bf16.gmra.mxu0 %v1156
        %v4419 = vpop.f32.mrf.mxu0
        %v4420 = vadd.f32 %v1390, %v4419
        %v4421 = vpop.f32.mrf.mxu0
        %v4422 = vadd.f32 %v1390, %v4421
        %4423 = vmatmul.bf16.gmra.mxu0 %v1158
        %v4424 = vpop.f32.mrf.mxu0
        %v4425 = vadd.f32 %v1390, %v4424
        %v4426 = vpop.f32.mrf.mxu0
        %v4427 = vadd.f32 %v1390, %v4426
        %4428 = vmatmul.bf16.gmra.mxu0 %v1160
        %v4429 = vpop.f32.mrf.mxu0
        %v4430 = vadd.f32 %v1390, %v4429
        %v4431 = vpop.f32.mrf.mxu0
        %v4432 = vadd.f32 %v1390, %v4431
        %4433 = vmatmul.bf16.gmra.mxu0 %v1162
        %v4434 = vpop.f32.mrf.mxu0
        %v4435 = vadd.f32 %v1390, %v4434
        %v4436 = vpop.f32.mrf.mxu0
        %v4437 = vadd.f32 %v1390, %v4436
        %4438 = vmatmul.bf16.gmra.mxu0 %v1164
        %v4439 = vpop.f32.mrf.mxu0
        %v4440 = vadd.f32 %v1390, %v4439
        %v4441 = vpop.f32.mrf.mxu0
        %v4442 = vadd.f32 %v1390, %v4441
        %4443 = vmatmul.bf16.gmra.mxu0 %v1166
        %v4444 = vpop.f32.mrf.mxu0
        %v4445 = vadd.f32 %v1390, %v4444
        %v4446 = vpop.f32.mrf.mxu0
        %v4447 = vadd.f32 %v1390, %v4446
        %4448 = vmatmul.bf16.gmra.mxu0 %v1168
        %v4449 = vpop.f32.mrf.mxu0
        %v4450 = vadd.f32 %v1390, %v4449
        %v4451 = vpop.f32.mrf.mxu0
        %v4452 = vadd.f32 %v1390, %v4451
        %4453 = vmatmul.bf16.gmra.mxu0 %v1170
        %v4454 = vpop.f32.mrf.mxu0
        %v4455 = vadd.f32 %v1390, %v4454
        %v4456 = vpop.f32.mrf.mxu0
        %v4457 = vadd.f32 %v1390, %v4456
        %4458 = vmatmul.bf16.gmra.mxu0 %v1172
        %v4459 = vpop.f32.mrf.mxu0
        %v4460 = vadd.f32 %v1390, %v4459
        %v4461 = vpop.f32.mrf.mxu0
        %v4462 = vadd.f32 %v1390, %v4461
        %4463 = vmatmul.bf16.gmra.mxu0 %v1174
        %v4464 = vpop.f32.mrf.mxu0
        %v4465 = vadd.f32 %v1390, %v4464
        %v4466 = vpop.f32.mrf.mxu0
        %v4467 = vadd.f32 %v1390, %v4466
        %4468 = vmatmul.bf16.gmra.mxu0 %v1176
        %v4469 = vpop.f32.mrf.mxu0
        %v4470 = vadd.f32 %v1390, %v4469
        %v4471 = vpop.f32.mrf.mxu0
        %v4472 = vadd.f32 %v1390, %v4471
        %4473 = vmatmul.bf16.gmra.mxu0 %v1178
        %v4474 = vpop.f32.mrf.mxu0
        %v4475 = vadd.f32 %v1390, %v4474
        %v4476 = vpop.f32.mrf.mxu0
        %v4477 = vadd.f32 %v1390, %v4476
        %4478 = vmatmul.bf16.gmra.mxu0 %v1180
        %v4479 = vpop.f32.mrf.mxu0
        %v4480 = vadd.f32 %v1390, %v4479
        %v4481 = vpop.f32.mrf.mxu0
        %v4482 = vadd.f32 %v1390, %v4481
        %4483 = vmatmul.bf16.gmra.mxu0 %v1182
        %v4484 = vpop.f32.mrf.mxu0
        %v4485 = vadd.f32 %v1390, %v4484
        %v4486 = vpop.f32.mrf.mxu0
        %v4487 = vadd.f32 %v1390, %v4486
        %4488 = vmatmul.bf16.gmra.mxu0 %v1184
        %v4489 = vpop.f32.mrf.mxu0
        %v4490 = vadd.f32 %v1390, %v4489
        %v4491 = vpop.f32.mrf.mxu0
        %v4492 = vadd.f32 %v1390, %v4491
        %4493 = vmatmul.bf16.gmra.mxu0 %v1186
        %v4494 = vpop.f32.mrf.mxu0
        %v4495 = vadd.f32 %v1390, %v4494
        %v4496 = vpop.f32.mrf.mxu0
        %v4497 = vadd.f32 %v1390, %v4496
        %4498 = vdwg.mxu0
        %4499 = vmatpush.bf16.msra.mxu0 %v2121
        %4500 = vmatpush.bf16.msra.mxu0 %v2110
        %4501 = vmatpush.bf16.msra.mxu0 %v2099
        %4502 = vmatpush.bf16.msra.mxu0 %v2088
        %4503 = vmatpush.bf16.msra.mxu0 %v2077
        %4504 = vmatpush.bf16.msra.mxu0 %v2066
        %4505 = vmatpush.bf16.msra.mxu0 %v2055
        %4506 = vmatpush.bf16.msra.mxu0 %v2044
        %4507 = vmatmul.bf16.gmra.mxu0 %v1125
        %v4508 = vpop.f32.mrf.mxu0
        %v4509 = vadd.f32 %v4340, %v4508
        %v4510 = vpop.f32.mrf.mxu0
        %v4511 = vadd.f32 %v4342, %v4510
        %4512 = vmatmul.bf16.gmra.mxu0 %v1127
        %v4513 = vpop.f32.mrf.mxu0
        %v4514 = vadd.f32 %v4345, %v4513
        %v4515 = vpop.f32.mrf.mxu0
        %v4516 = vadd.f32 %v4347, %v4515
        %4517 = vmatmul.bf16.gmra.mxu0 %v1129
        %v4518 = vpop.f32.mrf.mxu0
        %v4519 = vadd.f32 %v4350, %v4518
        %v4520 = vpop.f32.mrf.mxu0
        %v4521 = vadd.f32 %v4352, %v4520
        %4522 = vmatmul.bf16.gmra.mxu0 %v1131
        %v4523 = vpop.f32.mrf.mxu0
        %v4524 = vadd.f32 %v4355, %v4523
        %v4525 = vpop.f32.mrf.mxu0
        %v4526 = vadd.f32 %v4357, %v4525
        %4527 = vmatmul.bf16.gmra.mxu0 %v1133
        %v4528 = vpop.f32.mrf.mxu0
        %v4529 = vadd.f32 %v4360, %v4528
        %v4530 = vpop.f32.mrf.mxu0
        %v4531 = vadd.f32 %v4362, %v4530
        %4532 = vmatmul.bf16.gmra.mxu0 %v1135
        %v4533 = vpop.f32.mrf.mxu0
        %v4534 = vadd.f32 %v4365, %v4533
        %v4535 = vpop.f32.mrf.mxu0
        %v4536 = vadd.f32 %v4367, %v4535
        %4537 = vmatmul.bf16.gmra.mxu0 %v1137
        %v4538 = vpop.f32.mrf.mxu0
        %v4539 = vadd.f32 %v4370, %v4538
        %v4540 = vpop.f32.mrf.mxu0
        %v4541 = vadd.f32 %v4372, %v4540
        %4542 = vmatmul.bf16.gmra.mxu0 %v1139
        %v4543 = vpop.f32.mrf.mxu0
        %v4544 = vadd.f32 %v4375, %v4543
        %v4545 = vpop.f32.mrf.mxu0
        %v4546 = vadd.f32 %v4377, %v4545
        %4547 = vmatmul.bf16.gmra.mxu0 %v1141
        %v4548 = vpop.f32.mrf.mxu0
        %v4549 = vadd.f32 %v4380, %v4548
        %v4550 = vpop.f32.mrf.mxu0
        %v4551 = vadd.f32 %v4382, %v4550
        %4552 = vmatmul.bf16.gmra.mxu0 %v1143
        %v4553 = vpop.f32.mrf.mxu0
        %v4554 = vadd.f32 %v4385, %v4553
        %v4555 = vpop.f32.mrf.mxu0
        %v4556 = vadd.f32 %v4387, %v4555
        %4557 = vmatmul.bf16.gmra.mxu0 %v1145
        %v4558 = vpop.f32.mrf.mxu0
        %v4559 = vadd.f32 %v4390, %v4558
        %v4560 = vpop.f32.mrf.mxu0
        %v4561 = vadd.f32 %v4392, %v4560
        %4562 = vmatmul.bf16.gmra.mxu0 %v1147
        %v4563 = vpop.f32.mrf.mxu0
        %v4564 = vadd.f32 %v4395, %v4563
        %v4565 = vpop.f32.mrf.mxu0
        %v4566 = vadd.f32 %v4397, %v4565
        %4567 = vmatmul.bf16.gmra.mxu0 %v1149
        %v4568 = vpop.f32.mrf.mxu0
        %v4569 = vadd.f32 %v4400, %v4568
        %v4570 = vpop.f32.mrf.mxu0
        %v4571 = vadd.f32 %v4402, %v4570
        %4572 = vmatmul.bf16.gmra.mxu0 %v1151
        %v4573 = vpop.f32.mrf.mxu0
        %v4574 = vadd.f32 %v4405, %v4573
        %v4575 = vpop.f32.mrf.mxu0
        %v4576 = vadd.f32 %v4407, %v4575
        %4577 = vmatmul.bf16.gmra.mxu0 %v1153
        %v4578 = vpop.f32.mrf.mxu0
        %v4579 = vadd.f32 %v4410, %v4578
        %v4580 = vpop.f32.mrf.mxu0
        %v4581 = vadd.f32 %v4412, %v4580
        %4582 = vmatmul.bf16.gmra.mxu0 %v1155
        %v4583 = vpop.f32.mrf.mxu0
        %v4584 = vadd.f32 %v4415, %v4583
        %v4585 = vpop.f32.mrf.mxu0
        %v4586 = vadd.f32 %v4417, %v4585
        %4587 = vmatmul.bf16.gmra.mxu0 %v1157
        %v4588 = vpop.f32.mrf.mxu0
        %v4589 = vadd.f32 %v4420, %v4588
        %v4590 = vpop.f32.mrf.mxu0
        %v4591 = vadd.f32 %v4422, %v4590
        %4592 = vmatmul.bf16.gmra.mxu0 %v1159
        %v4593 = vpop.f32.mrf.mxu0
        %v4594 = vadd.f32 %v4425, %v4593
        %v4595 = vpop.f32.mrf.mxu0
        %v4596 = vadd.f32 %v4427, %v4595
        %4597 = vmatmul.bf16.gmra.mxu0 %v1161
        %v4598 = vpop.f32.mrf.mxu0
        %v4599 = vadd.f32 %v4430, %v4598
        %v4600 = vpop.f32.mrf.mxu0
        %v4601 = vadd.f32 %v4432, %v4600
        %4602 = vmatmul.bf16.gmra.mxu0 %v1163
        %v4603 = vpop.f32.mrf.mxu0
        %v4604 = vadd.f32 %v4435, %v4603
        %v4605 = vpop.f32.mrf.mxu0
        %v4606 = vadd.f32 %v4437, %v4605
        %4607 = vmatmul.bf16.gmra.mxu0 %v1165
        %v4608 = vpop.f32.mrf.mxu0
        %v4609 = vadd.f32 %v4440, %v4608
        %v4610 = vpop.f32.mrf.mxu0
        %v4611 = vadd.f32 %v4442, %v4610
        %4612 = vmatmul.bf16.gmra.mxu0 %v1167
        %v4613 = vpop.f32.mrf.mxu0
        %v4614 = vadd.f32 %v4445, %v4613
        %v4615 = vpop.f32.mrf.mxu0
        %v4616 = vadd.f32 %v4447, %v4615
        %4617 = vmatmul.bf16.gmra.mxu0 %v1169
        %v4618 = vpop.f32.mrf.mxu0
        %v4619 = vadd.f32 %v4450, %v4618
        %v4620 = vpop.f32.mrf.mxu0
        %v4621 = vadd.f32 %v4452, %v4620
        %4622 = vmatmul.bf16.gmra.mxu0 %v1171
        %v4623 = vpop.f32.mrf.mxu0
        %v4624 = vadd.f32 %v4455, %v4623
        %v4625 = vpop.f32.mrf.mxu0
        %v4626 = vadd.f32 %v4457, %v4625
        %4627 = vmatmul.bf16.gmra.mxu0 %v1173
        %v4628 = vpop.f32.mrf.mxu0
        %v4629 = vadd.f32 %v4460, %v4628
        %v4630 = vpop.f32.mrf.mxu0
        %v4631 = vadd.f32 %v4462, %v4630
        %4632 = vmatmul.bf16.gmra.mxu0 %v1175
        %v4633 = vpop.f32.mrf.mxu0
        %v4634 = vadd.f32 %v4465, %v4633
        %v4635 = vpop.f32.mrf.mxu0
        %v4636 = vadd.f32 %v4467, %v4635
        %4637 = vmatmul.bf16.gmra.mxu0 %v1177
        %v4638 = vpop.f32.mrf.mxu0
        %v4639 = vadd.f32 %v4470, %v4638
        %v4640 = vpop.f32.mrf.mxu0
        %v4641 = vadd.f32 %v4472, %v4640
        %4642 = vmatmul.bf16.gmra.mxu0 %v1179
        %v4643 = vpop.f32.mrf.mxu0
        %v4644 = vadd.f32 %v4475, %v4643
        %v4645 = vpop.f32.mrf.mxu0
        %v4646 = vadd.f32 %v4477, %v4645
        %4647 = vmatmul.bf16.gmra.mxu0 %v1181
        %v4648 = vpop.f32.mrf.mxu0
        %v4649 = vadd.f32 %v4480, %v4648
        %v4650 = vpop.f32.mrf.mxu0
        %v4651 = vadd.f32 %v4482, %v4650
        %4652 = vmatmul.bf16.gmra.mxu0 %v1183
        %v4653 = vpop.f32.mrf.mxu0
        %v4654 = vadd.f32 %v4485, %v4653
        %v4655 = vpop.f32.mrf.mxu0
        %v4656 = vadd.f32 %v4487, %v4655
        %4657 = vmatmul.bf16.gmra.mxu0 %v1185
        %v4658 = vpop.f32.mrf.mxu0
        %v4659 = vadd.f32 %v4490, %v4658
        %v4660 = vpop.f32.mrf.mxu0
        %v4661 = vadd.f32 %v4492, %v4660
        %4662 = vmatmul.bf16.gmra.mxu0 %v1187
        %v4663 = vpop.f32.mrf.mxu0
        %v4664 = vadd.f32 %v4495, %v4663
        %v4665 = vpop.f32.mrf.mxu0
        %v4666 = vadd.f32 %v4497, %v4665
        %4667 = vdwg.mxu0
        %4668 = vmatpush.bf16.msra.mxu0 %v2034
        %4669 = vmatpush.bf16.msra.mxu0 %v2023
        %4670 = vmatpush.bf16.msra.mxu0 %v2012
        %4671 = vmatpush.bf16.msra.mxu0 %v2001
        %4672 = vmatpush.bf16.msra.mxu0 %v1990
        %4673 = vmatpush.bf16.msra.mxu0 %v1979
        %4674 = vmatpush.bf16.msra.mxu0 %v1968
        %4675 = vmatpush.bf16.msra.mxu0 %v1957
        %4676 = vmatmul.bf16.gmra.mxu0 %v1124
        %v4677 = vpop.f32.mrf.mxu0
        %v4678 = vadd.f32 %v1391, %v4677
        %v4679 = vpop.f32.mrf.mxu0
        %v4680 = vadd.f32 %v1391, %v4679
        %4681 = vmatmul.bf16.gmra.mxu0 %v1126
        %v4682 = vpop.f32.mrf.mxu0
        %v4683 = vadd.f32 %v1391, %v4682
        %v4684 = vpop.f32.mrf.mxu0
        %v4685 = vadd.f32 %v1391, %v4684
        %4686 = vmatmul.bf16.gmra.mxu0 %v1128
        %v4687 = vpop.f32.mrf.mxu0
        %v4688 = vadd.f32 %v1391, %v4687
        %v4689 = vpop.f32.mrf.mxu0
        %v4690 = vadd.f32 %v1391, %v4689
        %4691 = vmatmul.bf16.gmra.mxu0 %v1130
        %v4692 = vpop.f32.mrf.mxu0
        %v4693 = vadd.f32 %v1391, %v4692
        %v4694 = vpop.f32.mrf.mxu0
        %v4695 = vadd.f32 %v1391, %v4694
        %4696 = vmatmul.bf16.gmra.mxu0 %v1132
        %v4697 = vpop.f32.mrf.mxu0
        %v4698 = vadd.f32 %v1391, %v4697
        %v4699 = vpop.f32.mrf.mxu0
        %v4700 = vadd.f32 %v1391, %v4699
        %4701 = vmatmul.bf16.gmra.mxu0 %v1134
        %v4702 = vpop.f32.mrf.mxu0
        %v4703 = vadd.f32 %v1391, %v4702
        %v4704 = vpop.f32.mrf.mxu0
        %v4705 = vadd.f32 %v1391, %v4704
        %4706 = vmatmul.bf16.gmra.mxu0 %v1136
        %v4707 = vpop.f32.mrf.mxu0
        %v4708 = vadd.f32 %v1391, %v4707
        %v4709 = vpop.f32.mrf.mxu0
        %v4710 = vadd.f32 %v1391, %v4709
        %4711 = vmatmul.bf16.gmra.mxu0 %v1138
        %v4712 = vpop.f32.mrf.mxu0
        %v4713 = vadd.f32 %v1391, %v4712
        %v4714 = vpop.f32.mrf.mxu0
        %v4715 = vadd.f32 %v1391, %v4714
        %4716 = vmatmul.bf16.gmra.mxu0 %v1140
        %v4717 = vpop.f32.mrf.mxu0
        %v4718 = vadd.f32 %v1391, %v4717
        %v4719 = vpop.f32.mrf.mxu0
        %v4720 = vadd.f32 %v1391, %v4719
        %4721 = vmatmul.bf16.gmra.mxu0 %v1142
        %v4722 = vpop.f32.mrf.mxu0
        %v4723 = vadd.f32 %v1391, %v4722
        %v4724 = vpop.f32.mrf.mxu0
        %v4725 = vadd.f32 %v1391, %v4724
        %4726 = vmatmul.bf16.gmra.mxu0 %v1144
        %v4727 = vpop.f32.mrf.mxu0
        %v4728 = vadd.f32 %v1391, %v4727
        %v4729 = vpop.f32.mrf.mxu0
        %v4730 = vadd.f32 %v1391, %v4729
        %4731 = vmatmul.bf16.gmra.mxu0 %v1146
        %v4732 = vpop.f32.mrf.mxu0
        %v4733 = vadd.f32 %v1391, %v4732
        %v4734 = vpop.f32.mrf.mxu0
        %v4735 = vadd.f32 %v1391, %v4734
        %4736 = vmatmul.bf16.gmra.mxu0 %v1148
        %v4737 = vpop.f32.mrf.mxu0
        %v4738 = vadd.f32 %v1391, %v4737
        %v4739 = vpop.f32.mrf.mxu0
        %v4740 = vadd.f32 %v1391, %v4739
        %4741 = vmatmul.bf16.gmra.mxu0 %v1150
        %v4742 = vpop.f32.mrf.mxu0
        %v4743 = vadd.f32 %v1391, %v4742
        %v4744 = vpop.f32.mrf.mxu0
        %v4745 = vadd.f32 %v1391, %v4744
        %4746 = vmatmul.bf16.gmra.mxu0 %v1152
        %v4747 = vpop.f32.mrf.mxu0
        %v4748 = vadd.f32 %v1391, %v4747
        %v4749 = vpop.f32.mrf.mxu0
        %v4750 = vadd.f32 %v1391, %v4749
        %4751 = vmatmul.bf16.gmra.mxu0 %v1154
        %v4752 = vpop.f32.mrf.mxu0
        %v4753 = vadd.f32 %v1391, %v4752
        %v4754 = vpop.f32.mrf.mxu0
        %v4755 = vadd.f32 %v1391, %v4754
        %4756 = vmatmul.bf16.gmra.mxu0 %v1156
        %v4757 = vpop.f32.mrf.mxu0
        %v4758 = vadd.f32 %v1391, %v4757
        %v4759 = vpop.f32.mrf.mxu0
        %v4760 = vadd.f32 %v1391, %v4759
        %4761 = vmatmul.bf16.gmra.mxu0 %v1158
        %v4762 = vpop.f32.mrf.mxu0
        %v4763 = vadd.f32 %v1391, %v4762
        %v4764 = vpop.f32.mrf.mxu0
        %v4765 = vadd.f32 %v1391, %v4764
        %4766 = vmatmul.bf16.gmra.mxu0 %v1160
        %v4767 = vpop.f32.mrf.mxu0
        %v4768 = vadd.f32 %v1391, %v4767
        %v4769 = vpop.f32.mrf.mxu0
        %v4770 = vadd.f32 %v1391, %v4769
        %4771 = vmatmul.bf16.gmra.mxu0 %v1162
        %v4772 = vpop.f32.mrf.mxu0
        %v4773 = vadd.f32 %v1391, %v4772
        %v4774 = vpop.f32.mrf.mxu0
        %v4775 = vadd.f32 %v1391, %v4774
        %4776 = vmatmul.bf16.gmra.mxu0 %v1164
        %v4777 = vpop.f32.mrf.mxu0
        %v4778 = vadd.f32 %v1391, %v4777
        %v4779 = vpop.f32.mrf.mxu0
        %v4780 = vadd.f32 %v1391, %v4779
        %4781 = vmatmul.bf16.gmra.mxu0 %v1166
        %v4782 = vpop.f32.mrf.mxu0
        %v4783 = vadd.f32 %v1391, %v4782
        %v4784 = vpop.f32.mrf.mxu0
        %v4785 = vadd.f32 %v1391, %v4784
        %4786 = vmatmul.bf16.gmra.mxu0 %v1168
        %v4787 = vpop.f32.mrf.mxu0
        %v4788 = vadd.f32 %v1391, %v4787
        %v4789 = vpop.f32.mrf.mxu0
        %v4790 = vadd.f32 %v1391, %v4789
        %4791 = vmatmul.bf16.gmra.mxu0 %v1170
        %v4792 = vpop.f32.mrf.mxu0
        %v4793 = vadd.f32 %v1391, %v4792
        %v4794 = vpop.f32.mrf.mxu0
        %v4795 = vadd.f32 %v1391, %v4794
        %4796 = vmatmul.bf16.gmra.mxu0 %v1172
        %v4797 = vpop.f32.mrf.mxu0
        %v4798 = vadd.f32 %v1391, %v4797
        %v4799 = vpop.f32.mrf.mxu0
        %v4800 = vadd.f32 %v1391, %v4799
        %4801 = vmatmul.bf16.gmra.mxu0 %v1174
        %v4802 = vpop.f32.mrf.mxu0
        %v4803 = vadd.f32 %v1391, %v4802
        %v4804 = vpop.f32.mrf.mxu0
        %v4805 = vadd.f32 %v1391, %v4804
        %4806 = vmatmul.bf16.gmra.mxu0 %v1176
        %v4807 = vpop.f32.mrf.mxu0
        %v4808 = vadd.f32 %v1391, %v4807
        %v4809 = vpop.f32.mrf.mxu0
        %v4810 = vadd.f32 %v1391, %v4809
        %4811 = vmatmul.bf16.gmra.mxu0 %v1178
        %v4812 = vpop.f32.mrf.mxu0
        %v4813 = vadd.f32 %v1391, %v4812
        %v4814 = vpop.f32.mrf.mxu0
        %v4815 = vadd.f32 %v1391, %v4814
        %4816 = vmatmul.bf16.gmra.mxu0 %v1180
        %v4817 = vpop.f32.mrf.mxu0
        %v4818 = vadd.f32 %v1391, %v4817
        %v4819 = vpop.f32.mrf.mxu0
        %v4820 = vadd.f32 %v1391, %v4819
        %4821 = vmatmul.bf16.gmra.mxu0 %v1182
        %v4822 = vpop.f32.mrf.mxu0
        %v4823 = vadd.f32 %v1391, %v4822
        %v4824 = vpop.f32.mrf.mxu0
        %v4825 = vadd.f32 %v1391, %v4824
        %4826 = vmatmul.bf16.gmra.mxu0 %v1184
        %v4827 = vpop.f32.mrf.mxu0
        %v4828 = vadd.f32 %v1391, %v4827
        %v4829 = vpop.f32.mrf.mxu0
        %v4830 = vadd.f32 %v1391, %v4829
        %4831 = vmatmul.bf16.gmra.mxu0 %v1186
        %v4832 = vpop.f32.mrf.mxu0
        %v4833 = vadd.f32 %v1391, %v4832
        %v4834 = vpop.f32.mrf.mxu0
        %v4835 = vadd.f32 %v1391, %v4834
        %4836 = vdwg.mxu0
        %4837 = vmatpush.bf16.msra.mxu0 %v2122
        %4838 = vmatpush.bf16.msra.mxu0 %v2111
        %4839 = vmatpush.bf16.msra.mxu0 %v2100
        %4840 = vmatpush.bf16.msra.mxu0 %v2089
        %4841 = vmatpush.bf16.msra.mxu0 %v2078
        %4842 = vmatpush.bf16.msra.mxu0 %v2067
        %4843 = vmatpush.bf16.msra.mxu0 %v2056
        %4844 = vmatpush.bf16.msra.mxu0 %v2045
        %4845 = vmatmul.bf16.gmra.mxu0 %v1125
        %v4846 = vpop.f32.mrf.mxu0
        %v4847 = vadd.f32 %v4678, %v4846
        %v4848 = vpop.f32.mrf.mxu0
        %v4849 = vadd.f32 %v4680, %v4848
        %4850 = vmatmul.bf16.gmra.mxu0 %v1127
        %v4851 = vpop.f32.mrf.mxu0
        %v4852 = vadd.f32 %v4683, %v4851
        %v4853 = vpop.f32.mrf.mxu0
        %v4854 = vadd.f32 %v4685, %v4853
        %4855 = vmatmul.bf16.gmra.mxu0 %v1129
        %v4856 = vpop.f32.mrf.mxu0
        %v4857 = vadd.f32 %v4688, %v4856
        %v4858 = vpop.f32.mrf.mxu0
        %v4859 = vadd.f32 %v4690, %v4858
        %4860 = vmatmul.bf16.gmra.mxu0 %v1131
        %v4861 = vpop.f32.mrf.mxu0
        %v4862 = vadd.f32 %v4693, %v4861
        %v4863 = vpop.f32.mrf.mxu0
        %v4864 = vadd.f32 %v4695, %v4863
        %4865 = vmatmul.bf16.gmra.mxu0 %v1133
        %v4866 = vpop.f32.mrf.mxu0
        %v4867 = vadd.f32 %v4698, %v4866
        %v4868 = vpop.f32.mrf.mxu0
        %v4869 = vadd.f32 %v4700, %v4868
        %4870 = vmatmul.bf16.gmra.mxu0 %v1135
        %v4871 = vpop.f32.mrf.mxu0
        %v4872 = vadd.f32 %v4703, %v4871
        %v4873 = vpop.f32.mrf.mxu0
        %v4874 = vadd.f32 %v4705, %v4873
        %4875 = vmatmul.bf16.gmra.mxu0 %v1137
        %v4876 = vpop.f32.mrf.mxu0
        %v4877 = vadd.f32 %v4708, %v4876
        %v4878 = vpop.f32.mrf.mxu0
        %v4879 = vadd.f32 %v4710, %v4878
        %4880 = vmatmul.bf16.gmra.mxu0 %v1139
        %v4881 = vpop.f32.mrf.mxu0
        %v4882 = vadd.f32 %v4713, %v4881
        %v4883 = vpop.f32.mrf.mxu0
        %v4884 = vadd.f32 %v4715, %v4883
        %4885 = vmatmul.bf16.gmra.mxu0 %v1141
        %v4886 = vpop.f32.mrf.mxu0
        %v4887 = vadd.f32 %v4718, %v4886
        %v4888 = vpop.f32.mrf.mxu0
        %v4889 = vadd.f32 %v4720, %v4888
        %4890 = vmatmul.bf16.gmra.mxu0 %v1143
        %v4891 = vpop.f32.mrf.mxu0
        %v4892 = vadd.f32 %v4723, %v4891
        %v4893 = vpop.f32.mrf.mxu0
        %v4894 = vadd.f32 %v4725, %v4893
        %4895 = vmatmul.bf16.gmra.mxu0 %v1145
        %v4896 = vpop.f32.mrf.mxu0
        %v4897 = vadd.f32 %v4728, %v4896
        %v4898 = vpop.f32.mrf.mxu0
        %v4899 = vadd.f32 %v4730, %v4898
        %4900 = vmatmul.bf16.gmra.mxu0 %v1147
        %v4901 = vpop.f32.mrf.mxu0
        %v4902 = vadd.f32 %v4733, %v4901
        %v4903 = vpop.f32.mrf.mxu0
        %v4904 = vadd.f32 %v4735, %v4903
        %4905 = vmatmul.bf16.gmra.mxu0 %v1149
        %v4906 = vpop.f32.mrf.mxu0
        %v4907 = vadd.f32 %v4738, %v4906
        %v4908 = vpop.f32.mrf.mxu0
        %v4909 = vadd.f32 %v4740, %v4908
        %4910 = vmatmul.bf16.gmra.mxu0 %v1151
        %v4911 = vpop.f32.mrf.mxu0
        %v4912 = vadd.f32 %v4743, %v4911
        %v4913 = vpop.f32.mrf.mxu0
        %v4914 = vadd.f32 %v4745, %v4913
        %4915 = vmatmul.bf16.gmra.mxu0 %v1153
        %v4916 = vpop.f32.mrf.mxu0
        %v4917 = vadd.f32 %v4748, %v4916
        %v4918 = vpop.f32.mrf.mxu0
        %v4919 = vadd.f32 %v4750, %v4918
        %4920 = vmatmul.bf16.gmra.mxu0 %v1155
        %v4921 = vpop.f32.mrf.mxu0
        %v4922 = vadd.f32 %v4753, %v4921
        %v4923 = vpop.f32.mrf.mxu0
        %v4924 = vadd.f32 %v4755, %v4923
        %4925 = vmatmul.bf16.gmra.mxu0 %v1157
        %v4926 = vpop.f32.mrf.mxu0
        %v4927 = vadd.f32 %v4758, %v4926
        %v4928 = vpop.f32.mrf.mxu0
        %v4929 = vadd.f32 %v4760, %v4928
        %4930 = vmatmul.bf16.gmra.mxu0 %v1159
        %v4931 = vpop.f32.mrf.mxu0
        %v4932 = vadd.f32 %v4763, %v4931
        %v4933 = vpop.f32.mrf.mxu0
        %v4934 = vadd.f32 %v4765, %v4933
        %4935 = vmatmul.bf16.gmra.mxu0 %v1161
        %v4936 = vpop.f32.mrf.mxu0
        %v4937 = vadd.f32 %v4768, %v4936
        %v4938 = vpop.f32.mrf.mxu0
        %v4939 = vadd.f32 %v4770, %v4938
        %4940 = vmatmul.bf16.gmra.mxu0 %v1163
        %v4941 = vpop.f32.mrf.mxu0
        %v4942 = vadd.f32 %v4773, %v4941
        %v4943 = vpop.f32.mrf.mxu0
        %v4944 = vadd.f32 %v4775, %v4943
        %4945 = vmatmul.bf16.gmra.mxu0 %v1165
        %v4946 = vpop.f32.mrf.mxu0
        %v4947 = vadd.f32 %v4778, %v4946
        %v4948 = vpop.f32.mrf.mxu0
        %v4949 = vadd.f32 %v4780, %v4948
        %4950 = vmatmul.bf16.gmra.mxu0 %v1167
        %v4951 = vpop.f32.mrf.mxu0
        %v4952 = vadd.f32 %v4783, %v4951
        %v4953 = vpop.f32.mrf.mxu0
        %v4954 = vadd.f32 %v4785, %v4953
        %4955 = vmatmul.bf16.gmra.mxu0 %v1169
        %v4956 = vpop.f32.mrf.mxu0
        %v4957 = vadd.f32 %v4788, %v4956
        %v4958 = vpop.f32.mrf.mxu0
        %v4959 = vadd.f32 %v4790, %v4958
        %4960 = vmatmul.bf16.gmra.mxu0 %v1171
        %v4961 = vpop.f32.mrf.mxu0
        %v4962 = vadd.f32 %v4793, %v4961
        %v4963 = vpop.f32.mrf.mxu0
        %v4964 = vadd.f32 %v4795, %v4963
        %4965 = vmatmul.bf16.gmra.mxu0 %v1173
        %v4966 = vpop.f32.mrf.mxu0
        %v4967 = vadd.f32 %v4798, %v4966
        %v4968 = vpop.f32.mrf.mxu0
        %v4969 = vadd.f32 %v4800, %v4968
        %4970 = vmatmul.bf16.gmra.mxu0 %v1175
        %v4971 = vpop.f32.mrf.mxu0
        %v4972 = vadd.f32 %v4803, %v4971
        %v4973 = vpop.f32.mrf.mxu0
        %v4974 = vadd.f32 %v4805, %v4973
        %4975 = vmatmul.bf16.gmra.mxu0 %v1177
        %v4976 = vpop.f32.mrf.mxu0
        %v4977 = vadd.f32 %v4808, %v4976
        %v4978 = vpop.f32.mrf.mxu0
        %v4979 = vadd.f32 %v4810, %v4978
        %4980 = vmatmul.bf16.gmra.mxu0 %v1179
        %v4981 = vpop.f32.mrf.mxu0
        %v4982 = vadd.f32 %v4813, %v4981
        %v4983 = vpop.f32.mrf.mxu0
        %v4984 = vadd.f32 %v4815, %v4983
        %4985 = vmatmul.bf16.gmra.mxu0 %v1181
        %v4986 = vpop.f32.mrf.mxu0
        %v4987 = vadd.f32 %v4818, %v4986
        %v4988 = vpop.f32.mrf.mxu0
        %v4989 = vadd.f32 %v4820, %v4988
        %4990 = vmatmul.bf16.gmra.mxu0 %v1183
        %v4991 = vpop.f32.mrf.mxu0
        %v4992 = vadd.f32 %v4823, %v4991
        %v4993 = vpop.f32.mrf.mxu0
        %v4994 = vadd.f32 %v4825, %v4993
        %4995 = vmatmul.bf16.gmra.mxu0 %v1185
        %v4996 = vpop.f32.mrf.mxu0
        %v4997 = vadd.f32 %v4828, %v4996
        %v4998 = vpop.f32.mrf.mxu0
        %v4999 = vadd.f32 %v4830, %v4998
        %5000 = vmatmul.bf16.gmra.mxu0 %v1187
        %v5001 = vpop.f32.mrf.mxu0
        %v5002 = vadd.f32 %v4833, %v5001
        %v5003 = vpop.f32.mrf.mxu0
        %v5004 = vadd.f32 %v4835, %v5003
        %5005 = vdwg.mxu0
        %5006 = vmatpush.bf16.msra.mxu0 %v2035
        %5007 = vmatpush.bf16.msra.mxu0 %v2024
        %5008 = vmatpush.bf16.msra.mxu0 %v2013
        %5009 = vmatpush.bf16.msra.mxu0 %v2002
        %5010 = vmatpush.bf16.msra.mxu0 %v1991
        %5011 = vmatpush.bf16.msra.mxu0 %v1980
        %5012 = vmatpush.bf16.msra.mxu0 %v1969
        %5013 = vmatpush.bf16.msra.mxu0 %v1958
        %5014 = vmatmul.bf16.gmra.mxu0 %v1124
        %v5015 = vpop.f32.mrf.mxu0
        %v5016 = vadd.f32 %v1392, %v5015
        %v5017 = vpop.f32.mrf.mxu0
        %v5018 = vadd.f32 %v1392, %v5017
        %5019 = vmatmul.bf16.gmra.mxu0 %v1126
        %v5020 = vpop.f32.mrf.mxu0
        %v5021 = vadd.f32 %v1392, %v5020
        %v5022 = vpop.f32.mrf.mxu0
        %v5023 = vadd.f32 %v1392, %v5022
        %5024 = vmatmul.bf16.gmra.mxu0 %v1128
        %v5025 = vpop.f32.mrf.mxu0
        %v5026 = vadd.f32 %v1392, %v5025
        %v5027 = vpop.f32.mrf.mxu0
        %v5028 = vadd.f32 %v1392, %v5027
        %5029 = vmatmul.bf16.gmra.mxu0 %v1130
        %v5030 = vpop.f32.mrf.mxu0
        %v5031 = vadd.f32 %v1392, %v5030
        %v5032 = vpop.f32.mrf.mxu0
        %v5033 = vadd.f32 %v1392, %v5032
        %5034 = vmatmul.bf16.gmra.mxu0 %v1132
        %v5035 = vpop.f32.mrf.mxu0
        %v5036 = vadd.f32 %v1392, %v5035
        %v5037 = vpop.f32.mrf.mxu0
        %v5038 = vadd.f32 %v1392, %v5037
        %5039 = vmatmul.bf16.gmra.mxu0 %v1134
        %v5040 = vpop.f32.mrf.mxu0
        %v5041 = vadd.f32 %v1392, %v5040
        %v5042 = vpop.f32.mrf.mxu0
        %v5043 = vadd.f32 %v1392, %v5042
        %5044 = vmatmul.bf16.gmra.mxu0 %v1136
        %v5045 = vpop.f32.mrf.mxu0
        %v5046 = vadd.f32 %v1392, %v5045
        %v5047 = vpop.f32.mrf.mxu0
        %v5048 = vadd.f32 %v1392, %v5047
        %5049 = vmatmul.bf16.gmra.mxu0 %v1138
        %v5050 = vpop.f32.mrf.mxu0
        %v5051 = vadd.f32 %v1392, %v5050
        %v5052 = vpop.f32.mrf.mxu0
        %v5053 = vadd.f32 %v1392, %v5052
        %5054 = vmatmul.bf16.gmra.mxu0 %v1140
        %v5055 = vpop.f32.mrf.mxu0
        %v5056 = vadd.f32 %v1392, %v5055
        %v5057 = vpop.f32.mrf.mxu0
        %v5058 = vadd.f32 %v1392, %v5057
        %5059 = vmatmul.bf16.gmra.mxu0 %v1142
        %v5060 = vpop.f32.mrf.mxu0
        %v5061 = vadd.f32 %v1392, %v5060
        %v5062 = vpop.f32.mrf.mxu0
        %v5063 = vadd.f32 %v1392, %v5062
        %5064 = vmatmul.bf16.gmra.mxu0 %v1144
        %v5065 = vpop.f32.mrf.mxu0
        %v5066 = vadd.f32 %v1392, %v5065
        %v5067 = vpop.f32.mrf.mxu0
        %v5068 = vadd.f32 %v1392, %v5067
        %5069 = vmatmul.bf16.gmra.mxu0 %v1146
        %v5070 = vpop.f32.mrf.mxu0
        %v5071 = vadd.f32 %v1392, %v5070
        %v5072 = vpop.f32.mrf.mxu0
        %v5073 = vadd.f32 %v1392, %v5072
        %5074 = vmatmul.bf16.gmra.mxu0 %v1148
        %v5075 = vpop.f32.mrf.mxu0
        %v5076 = vadd.f32 %v1392, %v5075
        %v5077 = vpop.f32.mrf.mxu0
        %v5078 = vadd.f32 %v1392, %v5077
        %5079 = vmatmul.bf16.gmra.mxu0 %v1150
        %v5080 = vpop.f32.mrf.mxu0
        %v5081 = vadd.f32 %v1392, %v5080
        %v5082 = vpop.f32.mrf.mxu0
        %v5083 = vadd.f32 %v1392, %v5082
        %5084 = vmatmul.bf16.gmra.mxu0 %v1152
        %v5085 = vpop.f32.mrf.mxu0
        %v5086 = vadd.f32 %v1392, %v5085
        %v5087 = vpop.f32.mrf.mxu0
        %v5088 = vadd.f32 %v1392, %v5087
        %5089 = vmatmul.bf16.gmra.mxu0 %v1154
        %v5090 = vpop.f32.mrf.mxu0
        %v5091 = vadd.f32 %v1392, %v5090
        %v5092 = vpop.f32.mrf.mxu0
        %v5093 = vadd.f32 %v1392, %v5092
        %5094 = vmatmul.bf16.gmra.mxu0 %v1156
        %v5095 = vpop.f32.mrf.mxu0
        %v5096 = vadd.f32 %v1392, %v5095
        %v5097 = vpop.f32.mrf.mxu0
        %v5098 = vadd.f32 %v1392, %v5097
        %5099 = vmatmul.bf16.gmra.mxu0 %v1158
        %v5100 = vpop.f32.mrf.mxu0
        %v5101 = vadd.f32 %v1392, %v5100
        %v5102 = vpop.f32.mrf.mxu0
        %v5103 = vadd.f32 %v1392, %v5102
        %5104 = vmatmul.bf16.gmra.mxu0 %v1160
        %v5105 = vpop.f32.mrf.mxu0
        %v5106 = vadd.f32 %v1392, %v5105
        %v5107 = vpop.f32.mrf.mxu0
        %v5108 = vadd.f32 %v1392, %v5107
        %5109 = vmatmul.bf16.gmra.mxu0 %v1162
        %v5110 = vpop.f32.mrf.mxu0
        %v5111 = vadd.f32 %v1392, %v5110
        %v5112 = vpop.f32.mrf.mxu0
        %v5113 = vadd.f32 %v1392, %v5112
        %5114 = vmatmul.bf16.gmra.mxu0 %v1164
        %v5115 = vpop.f32.mrf.mxu0
        %v5116 = vadd.f32 %v1392, %v5115
        %v5117 = vpop.f32.mrf.mxu0
        %v5118 = vadd.f32 %v1392, %v5117
        %5119 = vmatmul.bf16.gmra.mxu0 %v1166
        %v5120 = vpop.f32.mrf.mxu0
        %v5121 = vadd.f32 %v1392, %v5120
        %v5122 = vpop.f32.mrf.mxu0
        %v5123 = vadd.f32 %v1392, %v5122
        %5124 = vmatmul.bf16.gmra.mxu0 %v1168
        %v5125 = vpop.f32.mrf.mxu0
        %v5126 = vadd.f32 %v1392, %v5125
        %v5127 = vpop.f32.mrf.mxu0
        %v5128 = vadd.f32 %v1392, %v5127
        %5129 = vmatmul.bf16.gmra.mxu0 %v1170
        %v5130 = vpop.f32.mrf.mxu0
        %v5131 = vadd.f32 %v1392, %v5130
        %v5132 = vpop.f32.mrf.mxu0
        %v5133 = vadd.f32 %v1392, %v5132
        %5134 = vmatmul.bf16.gmra.mxu0 %v1172
        %v5135 = vpop.f32.mrf.mxu0
        %v5136 = vadd.f32 %v1392, %v5135
        %v5137 = vpop.f32.mrf.mxu0
        %v5138 = vadd.f32 %v1392, %v5137
        %5139 = vmatmul.bf16.gmra.mxu0 %v1174
        %v5140 = vpop.f32.mrf.mxu0
        %v5141 = vadd.f32 %v1392, %v5140
        %v5142 = vpop.f32.mrf.mxu0
        %v5143 = vadd.f32 %v1392, %v5142
        %5144 = vmatmul.bf16.gmra.mxu0 %v1176
        %v5145 = vpop.f32.mrf.mxu0
        %v5146 = vadd.f32 %v1392, %v5145
        %v5147 = vpop.f32.mrf.mxu0
        %v5148 = vadd.f32 %v1392, %v5147
        %5149 = vmatmul.bf16.gmra.mxu0 %v1178
        %v5150 = vpop.f32.mrf.mxu0
        %v5151 = vadd.f32 %v1392, %v5150
        %v5152 = vpop.f32.mrf.mxu0
        %v5153 = vadd.f32 %v1392, %v5152
        %5154 = vmatmul.bf16.gmra.mxu0 %v1180
        %v5155 = vpop.f32.mrf.mxu0
        %v5156 = vadd.f32 %v1392, %v5155
        %v5157 = vpop.f32.mrf.mxu0
        %v5158 = vadd.f32 %v1392, %v5157
        %5159 = vmatmul.bf16.gmra.mxu0 %v1182
        %v5160 = vpop.f32.mrf.mxu0
        %v5161 = vadd.f32 %v1392, %v5160
        %v5162 = vpop.f32.mrf.mxu0
        %v5163 = vadd.f32 %v1392, %v5162
        %5164 = vmatmul.bf16.gmra.mxu0 %v1184
        %v5165 = vpop.f32.mrf.mxu0
        %v5166 = vadd.f32 %v1392, %v5165
        %v5167 = vpop.f32.mrf.mxu0
        %v5168 = vadd.f32 %v1392, %v5167
        %5169 = vmatmul.bf16.gmra.mxu0 %v1186
        %v5170 = vpop.f32.mrf.mxu0
        %v5171 = vadd.f32 %v1392, %v5170
        %v5172 = vpop.f32.mrf.mxu0
        %v5173 = vadd.f32 %v1392, %v5172
        %5174 = vdwg.mxu0
        %5175 = vmatpush.bf16.msra.mxu0 %v2123
        %5176 = vmatpush.bf16.msra.mxu0 %v2112
        %5177 = vmatpush.bf16.msra.mxu0 %v2101
        %5178 = vmatpush.bf16.msra.mxu0 %v2090
        %5179 = vmatpush.bf16.msra.mxu0 %v2079
        %5180 = vmatpush.bf16.msra.mxu0 %v2068
        %5181 = vmatpush.bf16.msra.mxu0 %v2057
        %5182 = vmatpush.bf16.msra.mxu0 %v2046
        %5183 = vmatmul.bf16.gmra.mxu0 %v1125
        %v5184 = vpop.f32.mrf.mxu0
        %v5185 = vadd.f32 %v5016, %v5184
        %v5186 = vpop.f32.mrf.mxu0
        %v5187 = vadd.f32 %v5018, %v5186
        %5188 = vmatmul.bf16.gmra.mxu0 %v1127
        %v5189 = vpop.f32.mrf.mxu0
        %v5190 = vadd.f32 %v5021, %v5189
        %v5191 = vpop.f32.mrf.mxu0
        %v5192 = vadd.f32 %v5023, %v5191
        %5193 = vmatmul.bf16.gmra.mxu0 %v1129
        %v5194 = vpop.f32.mrf.mxu0
        %v5195 = vadd.f32 %v5026, %v5194
        %v5196 = vpop.f32.mrf.mxu0
        %v5197 = vadd.f32 %v5028, %v5196
        %5198 = vmatmul.bf16.gmra.mxu0 %v1131
        %v5199 = vpop.f32.mrf.mxu0
        %v5200 = vadd.f32 %v5031, %v5199
        %v5201 = vpop.f32.mrf.mxu0
        %v5202 = vadd.f32 %v5033, %v5201
        %5203 = vmatmul.bf16.gmra.mxu0 %v1133
        %v5204 = vpop.f32.mrf.mxu0
        %v5205 = vadd.f32 %v5036, %v5204
        %v5206 = vpop.f32.mrf.mxu0
        %v5207 = vadd.f32 %v5038, %v5206
        %5208 = vmatmul.bf16.gmra.mxu0 %v1135
        %v5209 = vpop.f32.mrf.mxu0
        %v5210 = vadd.f32 %v5041, %v5209
        %v5211 = vpop.f32.mrf.mxu0
        %v5212 = vadd.f32 %v5043, %v5211
        %5213 = vmatmul.bf16.gmra.mxu0 %v1137
        %v5214 = vpop.f32.mrf.mxu0
        %v5215 = vadd.f32 %v5046, %v5214
        %v5216 = vpop.f32.mrf.mxu0
        %v5217 = vadd.f32 %v5048, %v5216
        %5218 = vmatmul.bf16.gmra.mxu0 %v1139
        %v5219 = vpop.f32.mrf.mxu0
        %v5220 = vadd.f32 %v5051, %v5219
        %v5221 = vpop.f32.mrf.mxu0
        %v5222 = vadd.f32 %v5053, %v5221
        %5223 = vmatmul.bf16.gmra.mxu0 %v1141
        %v5224 = vpop.f32.mrf.mxu0
        %v5225 = vadd.f32 %v5056, %v5224
        %v5226 = vpop.f32.mrf.mxu0
        %v5227 = vadd.f32 %v5058, %v5226
        %5228 = vmatmul.bf16.gmra.mxu0 %v1143
        %v5229 = vpop.f32.mrf.mxu0
        %v5230 = vadd.f32 %v5061, %v5229
        %v5231 = vpop.f32.mrf.mxu0
        %v5232 = vadd.f32 %v5063, %v5231
        %5233 = vmatmul.bf16.gmra.mxu0 %v1145
        %v5234 = vpop.f32.mrf.mxu0
        %v5235 = vadd.f32 %v5066, %v5234
        %v5236 = vpop.f32.mrf.mxu0
        %v5237 = vadd.f32 %v5068, %v5236
        %5238 = vmatmul.bf16.gmra.mxu0 %v1147
        %v5239 = vpop.f32.mrf.mxu0
        %v5240 = vadd.f32 %v5071, %v5239
        %v5241 = vpop.f32.mrf.mxu0
        %v5242 = vadd.f32 %v5073, %v5241
        %5243 = vmatmul.bf16.gmra.mxu0 %v1149
        %v5244 = vpop.f32.mrf.mxu0
        %v5245 = vadd.f32 %v5076, %v5244
        %v5246 = vpop.f32.mrf.mxu0
        %v5247 = vadd.f32 %v5078, %v5246
        %5248 = vmatmul.bf16.gmra.mxu0 %v1151
        %v5249 = vpop.f32.mrf.mxu0
        %v5250 = vadd.f32 %v5081, %v5249
        %v5251 = vpop.f32.mrf.mxu0
        %v5252 = vadd.f32 %v5083, %v5251
        %5253 = vmatmul.bf16.gmra.mxu0 %v1153
        %v5254 = vpop.f32.mrf.mxu0
        %v5255 = vadd.f32 %v5086, %v5254
        %v5256 = vpop.f32.mrf.mxu0
        %v5257 = vadd.f32 %v5088, %v5256
        %5258 = vmatmul.bf16.gmra.mxu0 %v1155
        %v5259 = vpop.f32.mrf.mxu0
        %v5260 = vadd.f32 %v5091, %v5259
        %v5261 = vpop.f32.mrf.mxu0
        %v5262 = vadd.f32 %v5093, %v5261
        %5263 = vmatmul.bf16.gmra.mxu0 %v1157
        %v5264 = vpop.f32.mrf.mxu0
        %v5265 = vadd.f32 %v5096, %v5264
        %v5266 = vpop.f32.mrf.mxu0
        %v5267 = vadd.f32 %v5098, %v5266
        %5268 = vmatmul.bf16.gmra.mxu0 %v1159
        %v5269 = vpop.f32.mrf.mxu0
        %v5270 = vadd.f32 %v5101, %v5269
        %v5271 = vpop.f32.mrf.mxu0
        %v5272 = vadd.f32 %v5103, %v5271
        %5273 = vmatmul.bf16.gmra.mxu0 %v1161
        %v5274 = vpop.f32.mrf.mxu0
        %v5275 = vadd.f32 %v5106, %v5274
        %v5276 = vpop.f32.mrf.mxu0
        %v5277 = vadd.f32 %v5108, %v5276
        %5278 = vmatmul.bf16.gmra.mxu0 %v1163
        %v5279 = vpop.f32.mrf.mxu0
        %v5280 = vadd.f32 %v5111, %v5279
        %v5281 = vpop.f32.mrf.mxu0
        %v5282 = vadd.f32 %v5113, %v5281
        %5283 = vmatmul.bf16.gmra.mxu0 %v1165
        %v5284 = vpop.f32.mrf.mxu0
        %v5285 = vadd.f32 %v5116, %v5284
        %v5286 = vpop.f32.mrf.mxu0
        %v5287 = vadd.f32 %v5118, %v5286
        %5288 = vmatmul.bf16.gmra.mxu0 %v1167
        %v5289 = vpop.f32.mrf.mxu0
        %v5290 = vadd.f32 %v5121, %v5289
        %v5291 = vpop.f32.mrf.mxu0
        %v5292 = vadd.f32 %v5123, %v5291
        %5293 = vmatmul.bf16.gmra.mxu0 %v1169
        %v5294 = vpop.f32.mrf.mxu0
        %v5295 = vadd.f32 %v5126, %v5294
        %v5296 = vpop.f32.mrf.mxu0
        %v5297 = vadd.f32 %v5128, %v5296
        %5298 = vmatmul.bf16.gmra.mxu0 %v1171
        %v5299 = vpop.f32.mrf.mxu0
        %v5300 = vadd.f32 %v5131, %v5299
        %v5301 = vpop.f32.mrf.mxu0
        %v5302 = vadd.f32 %v5133, %v5301
        %5303 = vmatmul.bf16.gmra.mxu0 %v1173
        %v5304 = vpop.f32.mrf.mxu0
        %v5305 = vadd.f32 %v5136, %v5304
        %v5306 = vpop.f32.mrf.mxu0
        %v5307 = vadd.f32 %v5138, %v5306
        %5308 = vmatmul.bf16.gmra.mxu0 %v1175
        %v5309 = vpop.f32.mrf.mxu0
        %v5310 = vadd.f32 %v5141, %v5309
        %v5311 = vpop.f32.mrf.mxu0
        %v5312 = vadd.f32 %v5143, %v5311
        %5313 = vmatmul.bf16.gmra.mxu0 %v1177
        %v5314 = vpop.f32.mrf.mxu0
        %v5315 = vadd.f32 %v5146, %v5314
        %v5316 = vpop.f32.mrf.mxu0
        %v5317 = vadd.f32 %v5148, %v5316
        %5318 = vmatmul.bf16.gmra.mxu0 %v1179
        %v5319 = vpop.f32.mrf.mxu0
        %v5320 = vadd.f32 %v5151, %v5319
        %v5321 = vpop.f32.mrf.mxu0
        %v5322 = vadd.f32 %v5153, %v5321
        %5323 = vmatmul.bf16.gmra.mxu0 %v1181
        %v5324 = vpop.f32.mrf.mxu0
        %v5325 = vadd.f32 %v5156, %v5324
        %v5326 = vpop.f32.mrf.mxu0
        %v5327 = vadd.f32 %v5158, %v5326
        %5328 = vmatmul.bf16.gmra.mxu0 %v1183
        %v5329 = vpop.f32.mrf.mxu0
        %v5330 = vadd.f32 %v5161, %v5329
        %v5331 = vpop.f32.mrf.mxu0
        %v5332 = vadd.f32 %v5163, %v5331
        %5333 = vmatmul.bf16.gmra.mxu0 %v1185
        %v5334 = vpop.f32.mrf.mxu0
        %v5335 = vadd.f32 %v5166, %v5334
        %v5336 = vpop.f32.mrf.mxu0
        %v5337 = vadd.f32 %v5168, %v5336
        %5338 = vmatmul.bf16.gmra.mxu0 %v1187
        %v5339 = vpop.f32.mrf.mxu0
        %v5340 = vadd.f32 %v5171, %v5339
        %v5341 = vpop.f32.mrf.mxu0
        %v5342 = vadd.f32 %v5173, %v5341
        %5343 = vdwg.mxu0
        %5344 = vmatpush.bf16.msra.mxu0 %v2036
        %5345 = vmatpush.bf16.msra.mxu0 %v2025
        %5346 = vmatpush.bf16.msra.mxu0 %v2014
        %5347 = vmatpush.bf16.msra.mxu0 %v2003
        %5348 = vmatpush.bf16.msra.mxu0 %v1992
        %5349 = vmatpush.bf16.msra.mxu0 %v1981
        %5350 = vmatpush.bf16.msra.mxu0 %v1970
        %5351 = vmatpush.bf16.msra.mxu0 %v1959
        %5352 = vmatmul.bf16.gmra.mxu0 %v1124
        %v5353 = vpop.f32.mrf.mxu0
        %v5354 = vadd.f32 %v1393, %v5353
        %v5355 = vpop.f32.mrf.mxu0
        %v5356 = vadd.f32 %v1393, %v5355
        %5357 = vmatmul.bf16.gmra.mxu0 %v1126
        %v5358 = vpop.f32.mrf.mxu0
        %v5359 = vadd.f32 %v1393, %v5358
        %v5360 = vpop.f32.mrf.mxu0
        %v5361 = vadd.f32 %v1393, %v5360
        %5362 = vmatmul.bf16.gmra.mxu0 %v1128
        %v5363 = vpop.f32.mrf.mxu0
        %v5364 = vadd.f32 %v1393, %v5363
        %v5365 = vpop.f32.mrf.mxu0
        %v5366 = vadd.f32 %v1393, %v5365
        %5367 = vmatmul.bf16.gmra.mxu0 %v1130
        %v5368 = vpop.f32.mrf.mxu0
        %v5369 = vadd.f32 %v1393, %v5368
        %v5370 = vpop.f32.mrf.mxu0
        %v5371 = vadd.f32 %v1393, %v5370
        %5372 = vmatmul.bf16.gmra.mxu0 %v1132
        %v5373 = vpop.f32.mrf.mxu0
        %v5374 = vadd.f32 %v1393, %v5373
        %v5375 = vpop.f32.mrf.mxu0
        %v5376 = vadd.f32 %v1393, %v5375
        %5377 = vmatmul.bf16.gmra.mxu0 %v1134
        %v5378 = vpop.f32.mrf.mxu0
        %v5379 = vadd.f32 %v1393, %v5378
        %v5380 = vpop.f32.mrf.mxu0
        %v5381 = vadd.f32 %v1393, %v5380
        %5382 = vmatmul.bf16.gmra.mxu0 %v1136
        %v5383 = vpop.f32.mrf.mxu0
        %v5384 = vadd.f32 %v1393, %v5383
        %v5385 = vpop.f32.mrf.mxu0
        %v5386 = vadd.f32 %v1393, %v5385
        %5387 = vmatmul.bf16.gmra.mxu0 %v1138
        %v5388 = vpop.f32.mrf.mxu0
        %v5389 = vadd.f32 %v1393, %v5388
        %v5390 = vpop.f32.mrf.mxu0
        %v5391 = vadd.f32 %v1393, %v5390
        %5392 = vmatmul.bf16.gmra.mxu0 %v1140
        %v5393 = vpop.f32.mrf.mxu0
        %v5394 = vadd.f32 %v1393, %v5393
        %v5395 = vpop.f32.mrf.mxu0
        %v5396 = vadd.f32 %v1393, %v5395
        %5397 = vmatmul.bf16.gmra.mxu0 %v1142
        %v5398 = vpop.f32.mrf.mxu0
        %v5399 = vadd.f32 %v1393, %v5398
        %v5400 = vpop.f32.mrf.mxu0
        %v5401 = vadd.f32 %v1393, %v5400
        %5402 = vmatmul.bf16.gmra.mxu0 %v1144
        %v5403 = vpop.f32.mrf.mxu0
        %v5404 = vadd.f32 %v1393, %v5403
        %v5405 = vpop.f32.mrf.mxu0
        %v5406 = vadd.f32 %v1393, %v5405
        %5407 = vmatmul.bf16.gmra.mxu0 %v1146
        %v5408 = vpop.f32.mrf.mxu0
        %v5409 = vadd.f32 %v1393, %v5408
        %v5410 = vpop.f32.mrf.mxu0
        %v5411 = vadd.f32 %v1393, %v5410
        %5412 = vmatmul.bf16.gmra.mxu0 %v1148
        %v5413 = vpop.f32.mrf.mxu0
        %v5414 = vadd.f32 %v1393, %v5413
        %v5415 = vpop.f32.mrf.mxu0
        %v5416 = vadd.f32 %v1393, %v5415
        %5417 = vmatmul.bf16.gmra.mxu0 %v1150
        %v5418 = vpop.f32.mrf.mxu0
        %v5419 = vadd.f32 %v1393, %v5418
        %v5420 = vpop.f32.mrf.mxu0
        %v5421 = vadd.f32 %v1393, %v5420
        %5422 = vmatmul.bf16.gmra.mxu0 %v1152
        %v5423 = vpop.f32.mrf.mxu0
        %v5424 = vadd.f32 %v1393, %v5423
        %v5425 = vpop.f32.mrf.mxu0
        %v5426 = vadd.f32 %v1393, %v5425
        %5427 = vmatmul.bf16.gmra.mxu0 %v1154
        %v5428 = vpop.f32.mrf.mxu0
        %v5429 = vadd.f32 %v1393, %v5428
        %v5430 = vpop.f32.mrf.mxu0
        %v5431 = vadd.f32 %v1393, %v5430
        %5432 = vmatmul.bf16.gmra.mxu0 %v1156
        %v5433 = vpop.f32.mrf.mxu0
        %v5434 = vadd.f32 %v1393, %v5433
        %v5435 = vpop.f32.mrf.mxu0
        %v5436 = vadd.f32 %v1393, %v5435
        %5437 = vmatmul.bf16.gmra.mxu0 %v1158
        %v5438 = vpop.f32.mrf.mxu0
        %v5439 = vadd.f32 %v1393, %v5438
        %v5440 = vpop.f32.mrf.mxu0
        %v5441 = vadd.f32 %v1393, %v5440
        %5442 = vmatmul.bf16.gmra.mxu0 %v1160
        %v5443 = vpop.f32.mrf.mxu0
        %v5444 = vadd.f32 %v1393, %v5443
        %v5445 = vpop.f32.mrf.mxu0
        %v5446 = vadd.f32 %v1393, %v5445
        %5447 = vmatmul.bf16.gmra.mxu0 %v1162
        %v5448 = vpop.f32.mrf.mxu0
        %v5449 = vadd.f32 %v1393, %v5448
        %v5450 = vpop.f32.mrf.mxu0
        %v5451 = vadd.f32 %v1393, %v5450
        %5452 = vmatmul.bf16.gmra.mxu0 %v1164
        %v5453 = vpop.f32.mrf.mxu0
        %v5454 = vadd.f32 %v1393, %v5453
        %v5455 = vpop.f32.mrf.mxu0
        %v5456 = vadd.f32 %v1393, %v5455
        %5457 = vmatmul.bf16.gmra.mxu0 %v1166
        %v5458 = vpop.f32.mrf.mxu0
        %v5459 = vadd.f32 %v1393, %v5458
        %v5460 = vpop.f32.mrf.mxu0
        %v5461 = vadd.f32 %v1393, %v5460
        %5462 = vmatmul.bf16.gmra.mxu0 %v1168
        %v5463 = vpop.f32.mrf.mxu0
        %v5464 = vadd.f32 %v1393, %v5463
        %v5465 = vpop.f32.mrf.mxu0
        %v5466 = vadd.f32 %v1393, %v5465
        %5467 = vmatmul.bf16.gmra.mxu0 %v1170
        %v5468 = vpop.f32.mrf.mxu0
        %v5469 = vadd.f32 %v1393, %v5468
        %v5470 = vpop.f32.mrf.mxu0
        %v5471 = vadd.f32 %v1393, %v5470
        %5472 = vmatmul.bf16.gmra.mxu0 %v1172
        %v5473 = vpop.f32.mrf.mxu0
        %v5474 = vadd.f32 %v1393, %v5473
        %v5475 = vpop.f32.mrf.mxu0
        %v5476 = vadd.f32 %v1393, %v5475
        %5477 = vmatmul.bf16.gmra.mxu0 %v1174
        %v5478 = vpop.f32.mrf.mxu0
        %v5479 = vadd.f32 %v1393, %v5478
        %v5480 = vpop.f32.mrf.mxu0
        %v5481 = vadd.f32 %v1393, %v5480
        %5482 = vmatmul.bf16.gmra.mxu0 %v1176
        %v5483 = vpop.f32.mrf.mxu0
        %v5484 = vadd.f32 %v1393, %v5483
        %v5485 = vpop.f32.mrf.mxu0
        %v5486 = vadd.f32 %v1393, %v5485
        %5487 = vmatmul.bf16.gmra.mxu0 %v1178
        %v5488 = vpop.f32.mrf.mxu0
        %v5489 = vadd.f32 %v1393, %v5488
        %v5490 = vpop.f32.mrf.mxu0
        %v5491 = vadd.f32 %v1393, %v5490
        %5492 = vmatmul.bf16.gmra.mxu0 %v1180
        %v5493 = vpop.f32.mrf.mxu0
        %v5494 = vadd.f32 %v1393, %v5493
        %v5495 = vpop.f32.mrf.mxu0
        %v5496 = vadd.f32 %v1393, %v5495
        %5497 = vmatmul.bf16.gmra.mxu0 %v1182
        %v5498 = vpop.f32.mrf.mxu0
        %v5499 = vadd.f32 %v1393, %v5498
        %v5500 = vpop.f32.mrf.mxu0
        %v5501 = vadd.f32 %v1393, %v5500
        %5502 = vmatmul.bf16.gmra.mxu0 %v1184
        %v5503 = vpop.f32.mrf.mxu0
        %v5504 = vadd.f32 %v1393, %v5503
        %v5505 = vpop.f32.mrf.mxu0
        %v5506 = vadd.f32 %v1393, %v5505
        %5507 = vmatmul.bf16.gmra.mxu0 %v1186
        %v5508 = vpop.f32.mrf.mxu0
        %v5509 = vadd.f32 %v1393, %v5508
        %v5510 = vpop.f32.mrf.mxu0
        %v5511 = vadd.f32 %v1393, %v5510
        %5512 = vdwg.mxu0
        %5513 = vmatpush.bf16.msra.mxu0 %v2124
        %5514 = vmatpush.bf16.msra.mxu0 %v2113
        %5515 = vmatpush.bf16.msra.mxu0 %v2102
        %5516 = vmatpush.bf16.msra.mxu0 %v2091
        %5517 = vmatpush.bf16.msra.mxu0 %v2080
        %5518 = vmatpush.bf16.msra.mxu0 %v2069
        %5519 = vmatpush.bf16.msra.mxu0 %v2058
        %5520 = vmatpush.bf16.msra.mxu0 %v2047
        %5521 = vmatmul.bf16.gmra.mxu0 %v1125
        %v5522 = vpop.f32.mrf.mxu0
        %v5523 = vadd.f32 %v5354, %v5522
        %v5524 = vpop.f32.mrf.mxu0
        %v5525 = vadd.f32 %v5356, %v5524
        %5526 = vmatmul.bf16.gmra.mxu0 %v1127
        %v5527 = vpop.f32.mrf.mxu0
        %v5528 = vadd.f32 %v5359, %v5527
        %v5529 = vpop.f32.mrf.mxu0
        %v5530 = vadd.f32 %v5361, %v5529
        %5531 = vmatmul.bf16.gmra.mxu0 %v1129
        %v5532 = vpop.f32.mrf.mxu0
        %v5533 = vadd.f32 %v5364, %v5532
        %v5534 = vpop.f32.mrf.mxu0
        %v5535 = vadd.f32 %v5366, %v5534
        %5536 = vmatmul.bf16.gmra.mxu0 %v1131
        %v5537 = vpop.f32.mrf.mxu0
        %v5538 = vadd.f32 %v5369, %v5537
        %v5539 = vpop.f32.mrf.mxu0
        %v5540 = vadd.f32 %v5371, %v5539
        %5541 = vmatmul.bf16.gmra.mxu0 %v1133
        %v5542 = vpop.f32.mrf.mxu0
        %v5543 = vadd.f32 %v5374, %v5542
        %v5544 = vpop.f32.mrf.mxu0
        %v5545 = vadd.f32 %v5376, %v5544
        %5546 = vmatmul.bf16.gmra.mxu0 %v1135
        %v5547 = vpop.f32.mrf.mxu0
        %v5548 = vadd.f32 %v5379, %v5547
        %v5549 = vpop.f32.mrf.mxu0
        %v5550 = vadd.f32 %v5381, %v5549
        %5551 = vmatmul.bf16.gmra.mxu0 %v1137
        %v5552 = vpop.f32.mrf.mxu0
        %v5553 = vadd.f32 %v5384, %v5552
        %v5554 = vpop.f32.mrf.mxu0
        %v5555 = vadd.f32 %v5386, %v5554
        %5556 = vmatmul.bf16.gmra.mxu0 %v1139
        %v5557 = vpop.f32.mrf.mxu0
        %v5558 = vadd.f32 %v5389, %v5557
        %v5559 = vpop.f32.mrf.mxu0
        %v5560 = vadd.f32 %v5391, %v5559
        %5561 = vmatmul.bf16.gmra.mxu0 %v1141
        %v5562 = vpop.f32.mrf.mxu0
        %v5563 = vadd.f32 %v5394, %v5562
        %v5564 = vpop.f32.mrf.mxu0
        %v5565 = vadd.f32 %v5396, %v5564
        %5566 = vmatmul.bf16.gmra.mxu0 %v1143
        %v5567 = vpop.f32.mrf.mxu0
        %v5568 = vadd.f32 %v5399, %v5567
        %v5569 = vpop.f32.mrf.mxu0
        %v5570 = vadd.f32 %v5401, %v5569
        %5571 = vmatmul.bf16.gmra.mxu0 %v1145
        %v5572 = vpop.f32.mrf.mxu0
        %v5573 = vadd.f32 %v5404, %v5572
        %v5574 = vpop.f32.mrf.mxu0
        %v5575 = vadd.f32 %v5406, %v5574
        %5576 = vmatmul.bf16.gmra.mxu0 %v1147
        %v5577 = vpop.f32.mrf.mxu0
        %v5578 = vadd.f32 %v5409, %v5577
        %v5579 = vpop.f32.mrf.mxu0
        %v5580 = vadd.f32 %v5411, %v5579
        %5581 = vmatmul.bf16.gmra.mxu0 %v1149
        %v5582 = vpop.f32.mrf.mxu0
        %v5583 = vadd.f32 %v5414, %v5582
        %v5584 = vpop.f32.mrf.mxu0
        %v5585 = vadd.f32 %v5416, %v5584
        %5586 = vmatmul.bf16.gmra.mxu0 %v1151
        %v5587 = vpop.f32.mrf.mxu0
        %v5588 = vadd.f32 %v5419, %v5587
        %v5589 = vpop.f32.mrf.mxu0
        %v5590 = vadd.f32 %v5421, %v5589
        %5591 = vmatmul.bf16.gmra.mxu0 %v1153
        %v5592 = vpop.f32.mrf.mxu0
        %v5593 = vadd.f32 %v5424, %v5592
        %v5594 = vpop.f32.mrf.mxu0
        %v5595 = vadd.f32 %v5426, %v5594
        %5596 = vmatmul.bf16.gmra.mxu0 %v1155
        %v5597 = vpop.f32.mrf.mxu0
        %v5598 = vadd.f32 %v5429, %v5597
        %v5599 = vpop.f32.mrf.mxu0
        %v5600 = vadd.f32 %v5431, %v5599
        %5601 = vmatmul.bf16.gmra.mxu0 %v1157
        %v5602 = vpop.f32.mrf.mxu0
        %v5603 = vadd.f32 %v5434, %v5602
        %v5604 = vpop.f32.mrf.mxu0
        %v5605 = vadd.f32 %v5436, %v5604
        %5606 = vmatmul.bf16.gmra.mxu0 %v1159
        %v5607 = vpop.f32.mrf.mxu0
        %v5608 = vadd.f32 %v5439, %v5607
        %v5609 = vpop.f32.mrf.mxu0
        %v5610 = vadd.f32 %v5441, %v5609
        %5611 = vmatmul.bf16.gmra.mxu0 %v1161
        %v5612 = vpop.f32.mrf.mxu0
        %v5613 = vadd.f32 %v5444, %v5612
        %v5614 = vpop.f32.mrf.mxu0
        %v5615 = vadd.f32 %v5446, %v5614
        %5616 = vmatmul.bf16.gmra.mxu0 %v1163
        %v5617 = vpop.f32.mrf.mxu0
        %v5618 = vadd.f32 %v5449, %v5617
        %v5619 = vpop.f32.mrf.mxu0
        %v5620 = vadd.f32 %v5451, %v5619
        %5621 = vmatmul.bf16.gmra.mxu0 %v1165
        %v5622 = vpop.f32.mrf.mxu0
        %v5623 = vadd.f32 %v5454, %v5622
        %v5624 = vpop.f32.mrf.mxu0
        %v5625 = vadd.f32 %v5456, %v5624
        %5626 = vmatmul.bf16.gmra.mxu0 %v1167
        %v5627 = vpop.f32.mrf.mxu0
        %v5628 = vadd.f32 %v5459, %v5627
        %v5629 = vpop.f32.mrf.mxu0
        %v5630 = vadd.f32 %v5461, %v5629
        %5631 = vmatmul.bf16.gmra.mxu0 %v1169
        %v5632 = vpop.f32.mrf.mxu0
        %v5633 = vadd.f32 %v5464, %v5632
        %v5634 = vpop.f32.mrf.mxu0
        %v5635 = vadd.f32 %v5466, %v5634
        %5636 = vmatmul.bf16.gmra.mxu0 %v1171
        %v5637 = vpop.f32.mrf.mxu0
        %v5638 = vadd.f32 %v5469, %v5637
        %v5639 = vpop.f32.mrf.mxu0
        %v5640 = vadd.f32 %v5471, %v5639
        %5641 = vmatmul.bf16.gmra.mxu0 %v1173
        %v5642 = vpop.f32.mrf.mxu0
        %v5643 = vadd.f32 %v5474, %v5642
        %v5644 = vpop.f32.mrf.mxu0
        %v5645 = vadd.f32 %v5476, %v5644
        %5646 = vmatmul.bf16.gmra.mxu0 %v1175
        %v5647 = vpop.f32.mrf.mxu0
        %v5648 = vadd.f32 %v5479, %v5647
        %v5649 = vpop.f32.mrf.mxu0
        %v5650 = vadd.f32 %v5481, %v5649
        %5651 = vmatmul.bf16.gmra.mxu0 %v1177
        %v5652 = vpop.f32.mrf.mxu0
        %v5653 = vadd.f32 %v5484, %v5652
        %v5654 = vpop.f32.mrf.mxu0
        %v5655 = vadd.f32 %v5486, %v5654
        %5656 = vmatmul.bf16.gmra.mxu0 %v1179
        %v5657 = vpop.f32.mrf.mxu0
        %v5658 = vadd.f32 %v5489, %v5657
        %v5659 = vpop.f32.mrf.mxu0
        %v5660 = vadd.f32 %v5491, %v5659
        %5661 = vmatmul.bf16.gmra.mxu0 %v1181
        %v5662 = vpop.f32.mrf.mxu0
        %v5663 = vadd.f32 %v5494, %v5662
        %v5664 = vpop.f32.mrf.mxu0
        %v5665 = vadd.f32 %v5496, %v5664
        %5666 = vmatmul.bf16.gmra.mxu0 %v1183
        %v5667 = vpop.f32.mrf.mxu0
        %v5668 = vadd.f32 %v5499, %v5667
        %v5669 = vpop.f32.mrf.mxu0
        %v5670 = vadd.f32 %v5501, %v5669
        %5671 = vmatmul.bf16.gmra.mxu0 %v1185
        %v5672 = vpop.f32.mrf.mxu0
        %v5673 = vadd.f32 %v5504, %v5672
        %v5674 = vpop.f32.mrf.mxu0
        %v5675 = vadd.f32 %v5506, %v5674
        %5676 = vmatmul.bf16.gmra.mxu0 %v1187
        %v5677 = vpop.f32.mrf.mxu0
        %v5678 = vadd.f32 %v5509, %v5677
        %v5679 = vpop.f32.mrf.mxu0
        %v5680 = vadd.f32 %v5511, %v5679
        %5681 = vdwg.mxu0
        %5682 = vmatpush.bf16.msra.mxu0 %v2037
        %5683 = vmatpush.bf16.msra.mxu0 %v2026
        %5684 = vmatpush.bf16.msra.mxu0 %v2015
        %5685 = vmatpush.bf16.msra.mxu0 %v2004
        %5686 = vmatpush.bf16.msra.mxu0 %v1993
        %5687 = vmatpush.bf16.msra.mxu0 %v1982
        %5688 = vmatpush.bf16.msra.mxu0 %v1971
        %5689 = vmatpush.bf16.msra.mxu0 %v1960
        %5690 = vmatmul.bf16.gmra.mxu0 %v1124
        %v5691 = vpop.f32.mrf.mxu0
        %v5692 = vadd.f32 %v1394, %v5691
        %v5693 = vpop.f32.mrf.mxu0
        %v5694 = vadd.f32 %v1394, %v5693
        %5695 = vmatmul.bf16.gmra.mxu0 %v1126
        %v5696 = vpop.f32.mrf.mxu0
        %v5697 = vadd.f32 %v1394, %v5696
        %v5698 = vpop.f32.mrf.mxu0
        %v5699 = vadd.f32 %v1394, %v5698
        %5700 = vmatmul.bf16.gmra.mxu0 %v1128
        %v5701 = vpop.f32.mrf.mxu0
        %v5702 = vadd.f32 %v1394, %v5701
        %v5703 = vpop.f32.mrf.mxu0
        %v5704 = vadd.f32 %v1394, %v5703
        %5705 = vmatmul.bf16.gmra.mxu0 %v1130
        %v5706 = vpop.f32.mrf.mxu0
        %v5707 = vadd.f32 %v1394, %v5706
        %v5708 = vpop.f32.mrf.mxu0
        %v5709 = vadd.f32 %v1394, %v5708
        %5710 = vmatmul.bf16.gmra.mxu0 %v1132
        %v5711 = vpop.f32.mrf.mxu0
        %v5712 = vadd.f32 %v1394, %v5711
        %v5713 = vpop.f32.mrf.mxu0
        %v5714 = vadd.f32 %v1394, %v5713
        %5715 = vmatmul.bf16.gmra.mxu0 %v1134
        %v5716 = vpop.f32.mrf.mxu0
        %v5717 = vadd.f32 %v1394, %v5716
        %v5718 = vpop.f32.mrf.mxu0
        %v5719 = vadd.f32 %v1394, %v5718
        %5720 = vmatmul.bf16.gmra.mxu0 %v1136
        %v5721 = vpop.f32.mrf.mxu0
        %v5722 = vadd.f32 %v1394, %v5721
        %v5723 = vpop.f32.mrf.mxu0
        %v5724 = vadd.f32 %v1394, %v5723
        %5725 = vmatmul.bf16.gmra.mxu0 %v1138
        %v5726 = vpop.f32.mrf.mxu0
        %v5727 = vadd.f32 %v1394, %v5726
        %v5728 = vpop.f32.mrf.mxu0
        %v5729 = vadd.f32 %v1394, %v5728
        %5730 = vmatmul.bf16.gmra.mxu0 %v1140
        %v5731 = vpop.f32.mrf.mxu0
        %v5732 = vadd.f32 %v1394, %v5731
        %v5733 = vpop.f32.mrf.mxu0
        %v5734 = vadd.f32 %v1394, %v5733
        %5735 = vmatmul.bf16.gmra.mxu0 %v1142
        %v5736 = vpop.f32.mrf.mxu0
        %v5737 = vadd.f32 %v1394, %v5736
        %v5738 = vpop.f32.mrf.mxu0
        %v5739 = vadd.f32 %v1394, %v5738
        %5740 = vmatmul.bf16.gmra.mxu0 %v1144
        %v5741 = vpop.f32.mrf.mxu0
        %v5742 = vadd.f32 %v1394, %v5741
        %v5743 = vpop.f32.mrf.mxu0
        %v5744 = vadd.f32 %v1394, %v5743
        %5745 = vmatmul.bf16.gmra.mxu0 %v1146
        %v5746 = vpop.f32.mrf.mxu0
        %v5747 = vadd.f32 %v1394, %v5746
        %v5748 = vpop.f32.mrf.mxu0
        %v5749 = vadd.f32 %v1394, %v5748
        %5750 = vmatmul.bf16.gmra.mxu0 %v1148
        %v5751 = vpop.f32.mrf.mxu0
        %v5752 = vadd.f32 %v1394, %v5751
        %v5753 = vpop.f32.mrf.mxu0
        %v5754 = vadd.f32 %v1394, %v5753
        %5755 = vmatmul.bf16.gmra.mxu0 %v1150
        %v5756 = vpop.f32.mrf.mxu0
        %v5757 = vadd.f32 %v1394, %v5756
        %v5758 = vpop.f32.mrf.mxu0
        %v5759 = vadd.f32 %v1394, %v5758
        %5760 = vmatmul.bf16.gmra.mxu0 %v1152
        %v5761 = vpop.f32.mrf.mxu0
        %v5762 = vadd.f32 %v1394, %v5761
        %v5763 = vpop.f32.mrf.mxu0
        %v5764 = vadd.f32 %v1394, %v5763
        %5765 = vmatmul.bf16.gmra.mxu0 %v1154
        %v5766 = vpop.f32.mrf.mxu0
        %v5767 = vadd.f32 %v1394, %v5766
        %v5768 = vpop.f32.mrf.mxu0
        %v5769 = vadd.f32 %v1394, %v5768
        %5770 = vmatmul.bf16.gmra.mxu0 %v1156
        %v5771 = vpop.f32.mrf.mxu0
        %v5772 = vadd.f32 %v1394, %v5771
        %v5773 = vpop.f32.mrf.mxu0
        %v5774 = vadd.f32 %v1394, %v5773
        %5775 = vmatmul.bf16.gmra.mxu0 %v1158
        %v5776 = vpop.f32.mrf.mxu0
        %v5777 = vadd.f32 %v1394, %v5776
        %v5778 = vpop.f32.mrf.mxu0
        %v5779 = vadd.f32 %v1394, %v5778
        %5780 = vmatmul.bf16.gmra.mxu0 %v1160
        %v5781 = vpop.f32.mrf.mxu0
        %v5782 = vadd.f32 %v1394, %v5781
        %v5783 = vpop.f32.mrf.mxu0
        %v5784 = vadd.f32 %v1394, %v5783
        %5785 = vmatmul.bf16.gmra.mxu0 %v1162
        %v5786 = vpop.f32.mrf.mxu0
        %v5787 = vadd.f32 %v1394, %v5786
        %v5788 = vpop.f32.mrf.mxu0
        %v5789 = vadd.f32 %v1394, %v5788
        %5790 = vmatmul.bf16.gmra.mxu0 %v1164
        %v5791 = vpop.f32.mrf.mxu0
        %v5792 = vadd.f32 %v1394, %v5791
        %v5793 = vpop.f32.mrf.mxu0
        %v5794 = vadd.f32 %v1394, %v5793
        %5795 = vmatmul.bf16.gmra.mxu0 %v1166
        %v5796 = vpop.f32.mrf.mxu0
        %v5797 = vadd.f32 %v1394, %v5796
        %v5798 = vpop.f32.mrf.mxu0
        %v5799 = vadd.f32 %v1394, %v5798
        %5800 = vmatmul.bf16.gmra.mxu0 %v1168
        %v5801 = vpop.f32.mrf.mxu0
        %v5802 = vadd.f32 %v1394, %v5801
        %v5803 = vpop.f32.mrf.mxu0
        %v5804 = vadd.f32 %v1394, %v5803
        %5805 = vmatmul.bf16.gmra.mxu0 %v1170
        %v5806 = vpop.f32.mrf.mxu0
        %v5807 = vadd.f32 %v1394, %v5806
        %v5808 = vpop.f32.mrf.mxu0
        %v5809 = vadd.f32 %v1394, %v5808
        %5810 = vmatmul.bf16.gmra.mxu0 %v1172
        %v5811 = vpop.f32.mrf.mxu0
        %v5812 = vadd.f32 %v1394, %v5811
        %v5813 = vpop.f32.mrf.mxu0
        %v5814 = vadd.f32 %v1394, %v5813
        %5815 = vmatmul.bf16.gmra.mxu0 %v1174
        %v5816 = vpop.f32.mrf.mxu0
        %v5817 = vadd.f32 %v1394, %v5816
        %v5818 = vpop.f32.mrf.mxu0
        %v5819 = vadd.f32 %v1394, %v5818
        %5820 = vmatmul.bf16.gmra.mxu0 %v1176
        %v5821 = vpop.f32.mrf.mxu0
        %v5822 = vadd.f32 %v1394, %v5821
        %v5823 = vpop.f32.mrf.mxu0
        %v5824 = vadd.f32 %v1394, %v5823
        %5825 = vmatmul.bf16.gmra.mxu0 %v1178
        %v5826 = vpop.f32.mrf.mxu0
        %v5827 = vadd.f32 %v1394, %v5826
        %v5828 = vpop.f32.mrf.mxu0
        %v5829 = vadd.f32 %v1394, %v5828
        %5830 = vmatmul.bf16.gmra.mxu0 %v1180
        %v5831 = vpop.f32.mrf.mxu0
        %v5832 = vadd.f32 %v1394, %v5831
        %v5833 = vpop.f32.mrf.mxu0
        %v5834 = vadd.f32 %v1394, %v5833
        %5835 = vmatmul.bf16.gmra.mxu0 %v1182
        %v5836 = vpop.f32.mrf.mxu0
        %v5837 = vadd.f32 %v1394, %v5836
        %v5838 = vpop.f32.mrf.mxu0
        %v5839 = vadd.f32 %v1394, %v5838
        %5840 = vmatmul.bf16.gmra.mxu0 %v1184
        %v5841 = vpop.f32.mrf.mxu0
        %v5842 = vadd.f32 %v1394, %v5841
        %v5843 = vpop.f32.mrf.mxu0
        %v5844 = vadd.f32 %v1394, %v5843
        %5845 = vmatmul.bf16.gmra.mxu0 %v1186
        %v5846 = vpop.f32.mrf.mxu0
        %v5847 = vadd.f32 %v1394, %v5846
        %v5848 = vpop.f32.mrf.mxu0
        %v5849 = vadd.f32 %v1394, %v5848
        %5850 = vdwg.mxu0
        %5851 = vmatpush.bf16.msra.mxu0 %v2125
        %5852 = vmatpush.bf16.msra.mxu0 %v2114
        %5853 = vmatpush.bf16.msra.mxu0 %v2103
        %5854 = vmatpush.bf16.msra.mxu0 %v2092
        %5855 = vmatpush.bf16.msra.mxu0 %v2081
        %5856 = vmatpush.bf16.msra.mxu0 %v2070
        %5857 = vmatpush.bf16.msra.mxu0 %v2059
        %5858 = vmatpush.bf16.msra.mxu0 %v2048
        %5859 = vmatmul.bf16.gmra.mxu0 %v1125
        %v5860 = vpop.f32.mrf.mxu0
        %v5861 = vadd.f32 %v5692, %v5860
        %v5862 = vpop.f32.mrf.mxu0
        %v5863 = vadd.f32 %v5694, %v5862
        %5864 = vmatmul.bf16.gmra.mxu0 %v1127
        %v5865 = vpop.f32.mrf.mxu0
        %v5866 = vadd.f32 %v5697, %v5865
        %v5867 = vpop.f32.mrf.mxu0
        %v5868 = vadd.f32 %v5699, %v5867
        %5869 = vmatmul.bf16.gmra.mxu0 %v1129
        %v5870 = vpop.f32.mrf.mxu0
        %v5871 = vadd.f32 %v5702, %v5870
        %v5872 = vpop.f32.mrf.mxu0
        %v5873 = vadd.f32 %v5704, %v5872
        %5874 = vmatmul.bf16.gmra.mxu0 %v1131
        %v5875 = vpop.f32.mrf.mxu0
        %v5876 = vadd.f32 %v5707, %v5875
        %v5877 = vpop.f32.mrf.mxu0
        %v5878 = vadd.f32 %v5709, %v5877
        %5879 = vmatmul.bf16.gmra.mxu0 %v1133
        %v5880 = vpop.f32.mrf.mxu0
        %v5881 = vadd.f32 %v5712, %v5880
        %v5882 = vpop.f32.mrf.mxu0
        %v5883 = vadd.f32 %v5714, %v5882
        %5884 = vmatmul.bf16.gmra.mxu0 %v1135
        %v5885 = vpop.f32.mrf.mxu0
        %v5886 = vadd.f32 %v5717, %v5885
        %v5887 = vpop.f32.mrf.mxu0
        %v5888 = vadd.f32 %v5719, %v5887
        %5889 = vmatmul.bf16.gmra.mxu0 %v1137
        %v5890 = vpop.f32.mrf.mxu0
        %v5891 = vadd.f32 %v5722, %v5890
        %v5892 = vpop.f32.mrf.mxu0
        %v5893 = vadd.f32 %v5724, %v5892
        %5894 = vmatmul.bf16.gmra.mxu0 %v1139
        %v5895 = vpop.f32.mrf.mxu0
        %v5896 = vadd.f32 %v5727, %v5895
        %v5897 = vpop.f32.mrf.mxu0
        %v5898 = vadd.f32 %v5729, %v5897
        %5899 = vmatmul.bf16.gmra.mxu0 %v1141
        %v5900 = vpop.f32.mrf.mxu0
        %v5901 = vadd.f32 %v5732, %v5900
        %v5902 = vpop.f32.mrf.mxu0
        %v5903 = vadd.f32 %v5734, %v5902
        %5904 = vmatmul.bf16.gmra.mxu0 %v1143
        %v5905 = vpop.f32.mrf.mxu0
        %v5906 = vadd.f32 %v5737, %v5905
        %v5907 = vpop.f32.mrf.mxu0
        %v5908 = vadd.f32 %v5739, %v5907
        %5909 = vmatmul.bf16.gmra.mxu0 %v1145
        %v5910 = vpop.f32.mrf.mxu0
        %v5911 = vadd.f32 %v5742, %v5910
        %v5912 = vpop.f32.mrf.mxu0
        %v5913 = vadd.f32 %v5744, %v5912
        %5914 = vmatmul.bf16.gmra.mxu0 %v1147
        %v5915 = vpop.f32.mrf.mxu0
        %v5916 = vadd.f32 %v5747, %v5915
        %v5917 = vpop.f32.mrf.mxu0
        %v5918 = vadd.f32 %v5749, %v5917
        %5919 = vmatmul.bf16.gmra.mxu0 %v1149
        %v5920 = vpop.f32.mrf.mxu0
        %v5921 = vadd.f32 %v5752, %v5920
        %v5922 = vpop.f32.mrf.mxu0
        %v5923 = vadd.f32 %v5754, %v5922
        %5924 = vmatmul.bf16.gmra.mxu0 %v1151
        %v5925 = vpop.f32.mrf.mxu0
        %v5926 = vadd.f32 %v5757, %v5925
        %v5927 = vpop.f32.mrf.mxu0
        %v5928 = vadd.f32 %v5759, %v5927
        %5929 = vmatmul.bf16.gmra.mxu0 %v1153
        %v5930 = vpop.f32.mrf.mxu0
        %v5931 = vadd.f32 %v5762, %v5930
        %v5932 = vpop.f32.mrf.mxu0
        %v5933 = vadd.f32 %v5764, %v5932
        %5934 = vmatmul.bf16.gmra.mxu0 %v1155
        %v5935 = vpop.f32.mrf.mxu0
        %v5936 = vadd.f32 %v5767, %v5935
        %v5937 = vpop.f32.mrf.mxu0
        %v5938 = vadd.f32 %v5769, %v5937
        %5939 = vmatmul.bf16.gmra.mxu0 %v1157
        %v5940 = vpop.f32.mrf.mxu0
        %v5941 = vadd.f32 %v5772, %v5940
        %v5942 = vpop.f32.mrf.mxu0
        %v5943 = vadd.f32 %v5774, %v5942
        %5944 = vmatmul.bf16.gmra.mxu0 %v1159
        %v5945 = vpop.f32.mrf.mxu0
        %v5946 = vadd.f32 %v5777, %v5945
        %v5947 = vpop.f32.mrf.mxu0
        %v5948 = vadd.f32 %v5779, %v5947
        %5949 = vmatmul.bf16.gmra.mxu0 %v1161
        %v5950 = vpop.f32.mrf.mxu0
        %v5951 = vadd.f32 %v5782, %v5950
        %v5952 = vpop.f32.mrf.mxu0
        %v5953 = vadd.f32 %v5784, %v5952
        %5954 = vmatmul.bf16.gmra.mxu0 %v1163
        %v5955 = vpop.f32.mrf.mxu0
        %v5956 = vadd.f32 %v5787, %v5955
        %v5957 = vpop.f32.mrf.mxu0
        %v5958 = vadd.f32 %v5789, %v5957
        %5959 = vmatmul.bf16.gmra.mxu0 %v1165
        %v5960 = vpop.f32.mrf.mxu0
        %v5961 = vadd.f32 %v5792, %v5960
        %v5962 = vpop.f32.mrf.mxu0
        %v5963 = vadd.f32 %v5794, %v5962
        %5964 = vmatmul.bf16.gmra.mxu0 %v1167
        %v5965 = vpop.f32.mrf.mxu0
        %v5966 = vadd.f32 %v5797, %v5965
        %v5967 = vpop.f32.mrf.mxu0
        %v5968 = vadd.f32 %v5799, %v5967
        %5969 = vmatmul.bf16.gmra.mxu0 %v1169
        %v5970 = vpop.f32.mrf.mxu0
        %v5971 = vadd.f32 %v5802, %v5970
        %v5972 = vpop.f32.mrf.mxu0
        %v5973 = vadd.f32 %v5804, %v5972
        %5974 = vmatmul.bf16.gmra.mxu0 %v1171
        %v5975 = vpop.f32.mrf.mxu0
        %v5976 = vadd.f32 %v5807, %v5975
        %v5977 = vpop.f32.mrf.mxu0
        %v5978 = vadd.f32 %v5809, %v5977
        %5979 = vmatmul.bf16.gmra.mxu0 %v1173
        %v5980 = vpop.f32.mrf.mxu0
        %v5981 = vadd.f32 %v5812, %v5980
        %v5982 = vpop.f32.mrf.mxu0
        %v5983 = vadd.f32 %v5814, %v5982
        %5984 = vmatmul.bf16.gmra.mxu0 %v1175
        %v5985 = vpop.f32.mrf.mxu0
        %v5986 = vadd.f32 %v5817, %v5985
        %v5987 = vpop.f32.mrf.mxu0
        %v5988 = vadd.f32 %v5819, %v5987
        %5989 = vmatmul.bf16.gmra.mxu0 %v1177
        %v5990 = vpop.f32.mrf.mxu0
        %v5991 = vadd.f32 %v5822, %v5990
        %v5992 = vpop.f32.mrf.mxu0
        %v5993 = vadd.f32 %v5824, %v5992
        %5994 = vmatmul.bf16.gmra.mxu0 %v1179
        %v5995 = vpop.f32.mrf.mxu0
        %v5996 = vadd.f32 %v5827, %v5995
        %v5997 = vpop.f32.mrf.mxu0
        %v5998 = vadd.f32 %v5829, %v5997
        %5999 = vmatmul.bf16.gmra.mxu0 %v1181
        %v6000 = vpop.f32.mrf.mxu0
        %v6001 = vadd.f32 %v5832, %v6000
        %v6002 = vpop.f32.mrf.mxu0
        %v6003 = vadd.f32 %v5834, %v6002
        %6004 = vmatmul.bf16.gmra.mxu0 %v1183
        %v6005 = vpop.f32.mrf.mxu0
        %v6006 = vadd.f32 %v5837, %v6005
        %v6007 = vpop.f32.mrf.mxu0
        %v6008 = vadd.f32 %v5839, %v6007
        %6009 = vmatmul.bf16.gmra.mxu0 %v1185
        %v6010 = vpop.f32.mrf.mxu0
        %v6011 = vadd.f32 %v5842, %v6010
        %v6012 = vpop.f32.mrf.mxu0
        %v6013 = vadd.f32 %v5844, %v6012
        %6014 = vmatmul.bf16.gmra.mxu0 %v1187
        %v6015 = vpop.f32.mrf.mxu0
        %v6016 = vadd.f32 %v5847, %v6015
        %v6017 = vpop.f32.mrf.mxu0
        %v6018 = vadd.f32 %v5849, %v6017
        %6019 = vdwg.mxu0
        %6020 = vst [vmem:[%s276] sm:$0xff] %v2481
        %6021 = vst [vmem:[%s276 + $0x8] sm:$0xff] %v2819
        %6022 = vst [vmem:[%s276 + $0x10] sm:$0xff] %v3157
        %6023 = vst [vmem:[%s276 + $0x18] sm:$0xff] %v2483
        %6024 = vst [vmem:[%s276 + $0x20] sm:$0xff] %v2821
        %6025 = vst [vmem:[%s276 + $0x28] sm:$0xff] %v3159
        %6026 = vst [vmem:[%s276 + $0x30] sm:$0xff] %v2486
        %6027 = vst [vmem:[%s276 + $0x38] sm:$0xff] %v2824
        %6028 = vst [vmem:[%s276 + $0x40] sm:$0xff] %v3162
        %6029 = vst [vmem:[%s276 + $0x48] sm:$0xff] %v2488
        %6030 = vst [vmem:[%s276 + $0x50] sm:$0xff] %v2826
        %6031 = vst [vmem:[%s276 + $0x58] sm:$0xff] %v3164
        %6032 = vst [vmem:[%s276 + $0x60] sm:$0xff] %v2491
        %6033 = vst [vmem:[%s276 + $0x68] sm:$0xff] %v2829
        %6034 = vst [vmem:[%s276 + $0x70] sm:$0xff] %v3167
        %6035 = vst [vmem:[%s276 + $0x78] sm:$0xff] %v2493
        %6036 = vst [vmem:[%s276 + $0x80] sm:$0xff] %v2831
        %6037 = vst [vmem:[%s276 + $0x88] sm:$0xff] %v3169
        %6038 = vst [vmem:[%s276 + $0x90] sm:$0xff] %v2496
        %6039 = vst [vmem:[%s276 + $0x98] sm:$0xff] %v2834
        %6040 = vst [vmem:[%s276 + $0xa0] sm:$0xff] %v3172
        %6041 = vst [vmem:[%s276 + $0xa8] sm:$0xff] %v2498
        %6042 = vst [vmem:[%s276 + $0xb0] sm:$0xff] %v2836
        %6043 = vst [vmem:[%s276 + $0xb8] sm:$0xff] %v3174
        %6044 = vst [vmem:[%s276 + $0xc0] sm:$0xff] %v2501
        %6045 = vst [vmem:[%s276 + $0xc8] sm:$0xff] %v2839
        %6046 = vst [vmem:[%s276 + $0xd0] sm:$0xff] %v3177
        %6047 = vst [vmem:[%s276 + $0xd8] sm:$0xff] %v2503
        %6048 = vst [vmem:[%s276 + $0xe0] sm:$0xff] %v2841
        %6049 = vst [vmem:[%s276 + $0xe8] sm:$0xff] %v3179
        %6050 = vst [vmem:[%s276 + $0xf0] sm:$0xff] %v2506
        %6051 = vst [vmem:[%s276 + $0xf8] sm:$0xff] %v2844
        %6052 = vst [vmem:[%s276 + $0x100] sm:$0xff] %v3182
        %6053 = vst [vmem:[%s276 + $0x108] sm:$0xff] %v2508
        %6054 = vst [vmem:[%s276 + $0x110] sm:$0xff] %v2846
        %6055 = vst [vmem:[%s276 + $0x118] sm:$0xff] %v3184
        %6056 = vst [vmem:[%s276 + $0x120] sm:$0xff] %v2511
        %6057 = vst [vmem:[%s276 + $0x128] sm:$0xff] %v2849
        %6058 = vst [vmem:[%s276 + $0x130] sm:$0xff] %v3187
        %6059 = vst [vmem:[%s276 + $0x138] sm:$0xff] %v2513
        %6060 = vst [vmem:[%s276 + $0x140] sm:$0xff] %v2851
        %6061 = vst [vmem:[%s276 + $0x148] sm:$0xff] %v3189
        %6062 = vst [vmem:[%s276 + $0x150] sm:$0xff] %v2516
        %6063 = vst [vmem:[%s276 + $0x158] sm:$0xff] %v2854
        %6064 = vst [vmem:[%s276 + $0x160] sm:$0xff] %v3192
        %6065 = vst [vmem:[%s276 + $0x168] sm:$0xff] %v2518
        %6066 = vst [vmem:[%s276 + $0x170] sm:$0xff] %v2856
        %6067 = vst [vmem:[%s276 + $0x178] sm:$0xff] %v3194
        %6068 = vst [vmem:[%s276 + $0x180] sm:$0xff] %v2521
        %6069 = vst [vmem:[%s276 + $0x188] sm:$0xff] %v2859
        %6070 = vst [vmem:[%s276 + $0x190] sm:$0xff] %v3197
        %6071 = vst [vmem:[%s276 + $0x198] sm:$0xff] %v2523
        %6072 = vst [vmem:[%s276 + $0x1a0] sm:$0xff] %v2861
        %6073 = vst [vmem:[%s276 + $0x1a8] sm:$0xff] %v3199
        %6074 = vst [vmem:[%s276 + $0x1b0] sm:$0xff] %v2526
        %6075 = vst [vmem:[%s276 + $0x1b8] sm:$0xff] %v2864
        %6076 = vst [vmem:[%s276 + $0x1c0] sm:$0xff] %v3202
        %6077 = vst [vmem:[%s276 + $0x1c8] sm:$0xff] %v2528
        %6078 = vst [vmem:[%s276 + $0x1d0] sm:$0xff] %v2866
        %6079 = vst [vmem:[%s276 + $0x1d8] sm:$0xff] %v3204
        %6080 = vst [vmem:[%s276 + $0x1e0] sm:$0xff] %v2531
        %6081 = vst [vmem:[%s276 + $0x1e8] sm:$0xff] %v2869
        %6082 = vst [vmem:[%s276 + $0x1f0] sm:$0xff] %v3207
        %6083 = vst [vmem:[%s276 + $0x1f8] sm:$0xff] %v2533
        %6084 = vst [vmem:[%s276 + $0x200] sm:$0xff] %v2871
        %6085 = vst [vmem:[%s276 + $0x208] sm:$0xff] %v3209
        %6086 = vst [vmem:[%s276 + $0x210] sm:$0xff] %v2536
        %6087 = vst [vmem:[%s276 + $0x218] sm:$0xff] %v2874
        %6088 = vst [vmem:[%s276 + $0x220] sm:$0xff] %v3212
        %6089 = vst [vmem:[%s276 + $0x228] sm:$0xff] %v2538
        %6090 = vst [vmem:[%s276 + $0x230] sm:$0xff] %v2876
        %6091 = vst [vmem:[%s276 + $0x238] sm:$0xff] %v3214
        %6092 = vst [vmem:[%s276 + $0x240] sm:$0xff] %v2541
        %6093 = vst [vmem:[%s276 + $0x248] sm:$0xff] %v2879
        %6094 = vst [vmem:[%s276 + $0x250] sm:$0xff] %v3217
        %6095 = vst [vmem:[%s276 + $0x258] sm:$0xff] %v2543
        %6096 = vst [vmem:[%s276 + $0x260] sm:$0xff] %v2881
        %6097 = vst [vmem:[%s276 + $0x268] sm:$0xff] %v3219
        %6098 = vst [vmem:[%s276 + $0x270] sm:$0xff] %v2546
        %6099 = vst [vmem:[%s276 + $0x278] sm:$0xff] %v2884
        %6100 = vst [vmem:[%s276 + $0x280] sm:$0xff] %v3222
        %6101 = vst [vmem:[%s276 + $0x288] sm:$0xff] %v2548
        %6102 = vst [vmem:[%s276 + $0x290] sm:$0xff] %v2886
        %6103 = vst [vmem:[%s276 + $0x298] sm:$0xff] %v3224
        %6104 = vst [vmem:[%s276 + $0x2a0] sm:$0xff] %v2551
        %6105 = vst [vmem:[%s276 + $0x2a8] sm:$0xff] %v2889
        %6106 = vst [vmem:[%s276 + $0x2b0] sm:$0xff] %v3227
        %6107 = vst [vmem:[%s276 + $0x2b8] sm:$0xff] %v2553
        %6108 = vst [vmem:[%s276 + $0x2c0] sm:$0xff] %v2891
        %6109 = vst [vmem:[%s276 + $0x2c8] sm:$0xff] %v3229
        %6110 = vst [vmem:[%s276 + $0x2d0] sm:$0xff] %v2556
        %6111 = vst [vmem:[%s276 + $0x2d8] sm:$0xff] %v2894
        %6112 = vst [vmem:[%s276 + $0x2e0] sm:$0xff] %v3232
        %6113 = vst [vmem:[%s276 + $0x2e8] sm:$0xff] %v2558
        %6114 = vst [vmem:[%s276 + $0x2f0] sm:$0xff] %v2896
        %6115 = vst [vmem:[%s276 + $0x2f8] sm:$0xff] %v3234
        %6116 = vst [vmem:[%s276 + $0x300] sm:$0xff] %v2561
        %6117 = vst [vmem:[%s276 + $0x308] sm:$0xff] %v2899
        %6118 = vst [vmem:[%s276 + $0x310] sm:$0xff] %v3237
        %6119 = vst [vmem:[%s276 + $0x318] sm:$0xff] %v2563
        %6120 = vst [vmem:[%s276 + $0x320] sm:$0xff] %v2901
        %6121 = vst [vmem:[%s276 + $0x328] sm:$0xff] %v3239
        %6122 = vst [vmem:[%s276 + $0x330] sm:$0xff] %v2566
        %6123 = vst [vmem:[%s276 + $0x338] sm:$0xff] %v2904
        %6124 = vst [vmem:[%s276 + $0x340] sm:$0xff] %v3242
        %6125 = vst [vmem:[%s276 + $0x348] sm:$0xff] %v2568
        %6126 = vst [vmem:[%s276 + $0x350] sm:$0xff] %v2906
        %6127 = vst [vmem:[%s276 + $0x358] sm:$0xff] %v3244
        %6128 = vst [vmem:[%s276 + $0x360] sm:$0xff] %v2571
        %6129 = vst [vmem:[%s276 + $0x368] sm:$0xff] %v2909
        %6130 = vst [vmem:[%s276 + $0x370] sm:$0xff] %v3247
        %6131 = vst [vmem:[%s276 + $0x378] sm:$0xff] %v2573
        %6132 = vst [vmem:[%s276 + $0x380] sm:$0xff] %v2911
        %6133 = vst [vmem:[%s276 + $0x388] sm:$0xff] %v3249
        %6134 = vst [vmem:[%s276 + $0x390] sm:$0xff] %v2576
        %6135 = vst [vmem:[%s276 + $0x398] sm:$0xff] %v2914
        %6136 = vst [vmem:[%s276 + $0x3a0] sm:$0xff] %v3252
        %6137 = vst [vmem:[%s276 + $0x3a8] sm:$0xff] %v2578
        %6138 = vst [vmem:[%s276 + $0x3b0] sm:$0xff] %v2916
        %6139 = vst [vmem:[%s276 + $0x3b8] sm:$0xff] %v3254
        %6140 = vst [vmem:[%s276 + $0x3c0] sm:$0xff] %v2581
        %6141 = vst [vmem:[%s276 + $0x3c8] sm:$0xff] %v2919
        %6142 = vst [vmem:[%s276 + $0x3d0] sm:$0xff] %v3257
        %6143 = vst [vmem:[%s276 + $0x3d8] sm:$0xff] %v2583
        %6144 = vst [vmem:[%s276 + $0x3e0] sm:$0xff] %v2921
        %6145 = vst [vmem:[%s276 + $0x3e8] sm:$0xff] %v3259
        %6146 = vst [vmem:[%s276 + $0x3f0] sm:$0xff] %v2586
        %6147 = vst [vmem:[%s276 + $0x3f8] sm:$0xff] %v2924
        %6148 = vst [vmem:[%s276 + $0x400] sm:$0xff] %v3262
        %6149 = vst [vmem:[%s276 + $0x408] sm:$0xff] %v2588
        %6150 = vst [vmem:[%s276 + $0x410] sm:$0xff] %v2926
        %6151 = vst [vmem:[%s276 + $0x418] sm:$0xff] %v3264
        %6152 = vst [vmem:[%s276 + $0x420] sm:$0xff] %v2591
        %6153 = vst [vmem:[%s276 + $0x428] sm:$0xff] %v2929
        %6154 = vst [vmem:[%s276 + $0x430] sm:$0xff] %v3267
        %6155 = vst [vmem:[%s276 + $0x438] sm:$0xff] %v2593
        %6156 = vst [vmem:[%s276 + $0x440] sm:$0xff] %v2931
        %6157 = vst [vmem:[%s276 + $0x448] sm:$0xff] %v3269
        %6158 = vst [vmem:[%s276 + $0x450] sm:$0xff] %v2596
        %6159 = vst [vmem:[%s276 + $0x458] sm:$0xff] %v2934
        %6160 = vst [vmem:[%s276 + $0x460] sm:$0xff] %v3272
        %6161 = vst [vmem:[%s276 + $0x468] sm:$0xff] %v2598
        %6162 = vst [vmem:[%s276 + $0x470] sm:$0xff] %v2936
        %6163 = vst [vmem:[%s276 + $0x478] sm:$0xff] %v3274
        %6164 = vst [vmem:[%s276 + $0x480] sm:$0xff] %v2601
        %6165 = vst [vmem:[%s276 + $0x488] sm:$0xff] %v2939
        %6166 = vst [vmem:[%s276 + $0x490] sm:$0xff] %v3277
        %6167 = vst [vmem:[%s276 + $0x498] sm:$0xff] %v2603
        %6168 = vst [vmem:[%s276 + $0x4a0] sm:$0xff] %v2941
        %6169 = vst [vmem:[%s276 + $0x4a8] sm:$0xff] %v3279
        %6170 = vst [vmem:[%s276 + $0x4b0] sm:$0xff] %v2606
        %6171 = vst [vmem:[%s276 + $0x4b8] sm:$0xff] %v2944
        %6172 = vst [vmem:[%s276 + $0x4c0] sm:$0xff] %v3282
        %6173 = vst [vmem:[%s276 + $0x4c8] sm:$0xff] %v2608
        %6174 = vst [vmem:[%s276 + $0x4d0] sm:$0xff] %v2946
        %6175 = vst [vmem:[%s276 + $0x4d8] sm:$0xff] %v3284
        %6176 = vst [vmem:[%s276 + $0x4e0] sm:$0xff] %v2611
        %6177 = vst [vmem:[%s276 + $0x4e8] sm:$0xff] %v2949
        %6178 = vst [vmem:[%s276 + $0x4f0] sm:$0xff] %v3287
        %6179 = vst [vmem:[%s276 + $0x4f8] sm:$0xff] %v2613
        %6180 = vst [vmem:[%s276 + $0x500] sm:$0xff] %v2951
        %6181 = vst [vmem:[%s276 + $0x508] sm:$0xff] %v3289
        %6182 = vst [vmem:[%s276 + $0x510] sm:$0xff] %v2616
        %6183 = vst [vmem:[%s276 + $0x518] sm:$0xff] %v2954
        %6184 = vst [vmem:[%s276 + $0x520] sm:$0xff] %v3292
        %6185 = vst [vmem:[%s276 + $0x528] sm:$0xff] %v2618
        %6186 = vst [vmem:[%s276 + $0x530] sm:$0xff] %v2956
        %6187 = vst [vmem:[%s276 + $0x538] sm:$0xff] %v3294
        %6188 = vst [vmem:[%s276 + $0x540] sm:$0xff] %v2621
        %6189 = vst [vmem:[%s276 + $0x548] sm:$0xff] %v2959
        %6190 = vst [vmem:[%s276 + $0x550] sm:$0xff] %v3297
        %6191 = vst [vmem:[%s276 + $0x558] sm:$0xff] %v2623
        %6192 = vst [vmem:[%s276 + $0x560] sm:$0xff] %v2961
        %6193 = vst [vmem:[%s276 + $0x568] sm:$0xff] %v3299
        %6194 = vst [vmem:[%s276 + $0x570] sm:$0xff] %v2626
        %6195 = vst [vmem:[%s276 + $0x578] sm:$0xff] %v2964
        %6196 = vst [vmem:[%s276 + $0x580] sm:$0xff] %v3302
        %6197 = vst [vmem:[%s276 + $0x588] sm:$0xff] %v2628
        %6198 = vst [vmem:[%s276 + $0x590] sm:$0xff] %v2966
        %6199 = vst [vmem:[%s276 + $0x598] sm:$0xff] %v3304
        %6200 = vst [vmem:[%s276 + $0x5a0] sm:$0xff] %v2631
        %6201 = vst [vmem:[%s276 + $0x5a8] sm:$0xff] %v2969
        %6202 = vst [vmem:[%s276 + $0x5b0] sm:$0xff] %v3307
        %6203 = vst [vmem:[%s276 + $0x5b8] sm:$0xff] %v2633
        %6204 = vst [vmem:[%s276 + $0x5c0] sm:$0xff] %v2971
        %6205 = vst [vmem:[%s276 + $0x5c8] sm:$0xff] %v3309
        %6206 = vst [vmem:[%s276 + $0x5d0] sm:$0xff] %v2636
        %6207 = vst [vmem:[%s276 + $0x5d8] sm:$0xff] %v2974
        %6208 = vst [vmem:[%s276 + $0x5e0] sm:$0xff] %v3312
        %6209 = vst [vmem:[%s276 + $0x5e8] sm:$0xff] %v2638
        %6210 = vst [vmem:[%s276 + $0x5f0] sm:$0xff] %v2976
        %6211 = vst [vmem:[%s276 + $0x5f8] sm:$0xff] %v3314
        %6212 = vst [vmem:[%s290] sm:$0xff] %v3495
        %6213 = vst [vmem:[%s290 + $0x8] sm:$0xff] %v3833
        %6214 = vst [vmem:[%s290 + $0x10] sm:$0xff] %v4171
        %6215 = vst [vmem:[%s290 + $0x18] sm:$0xff] %v4509
        %6216 = vst [vmem:[%s290 + $0x20] sm:$0xff] %v4847
        %6217 = vst [vmem:[%s290 + $0x28] sm:$0xff] %v5185
        %6218 = vst [vmem:[%s290 + $0x30] sm:$0xff] %v3497
        %6219 = vst [vmem:[%s290 + $0x38] sm:$0xff] %v3835
        %6220 = vst [vmem:[%s290 + $0x40] sm:$0xff] %v4173
        %6221 = vst [vmem:[%s290 + $0x48] sm:$0xff] %v4511
        %6222 = vst [vmem:[%s290 + $0x50] sm:$0xff] %v4849
        %6223 = vst [vmem:[%s290 + $0x58] sm:$0xff] %v5187
        %6224 = vst [vmem:[%s290 + $0x60] sm:$0xff] %v3500
        %6225 = vst [vmem:[%s290 + $0x68] sm:$0xff] %v3838
        %6226 = vst [vmem:[%s290 + $0x70] sm:$0xff] %v4176
        %6227 = vst [vmem:[%s290 + $0x78] sm:$0xff] %v4514
        %6228 = vst [vmem:[%s290 + $0x80] sm:$0xff] %v4852
        %6229 = vst [vmem:[%s290 + $0x88] sm:$0xff] %v5190
        %6230 = vst [vmem:[%s290 + $0x90] sm:$0xff] %v3502
        %6231 = vst [vmem:[%s290 + $0x98] sm:$0xff] %v3840
        %6232 = vst [vmem:[%s290 + $0xa0] sm:$0xff] %v4178
        %6233 = vst [vmem:[%s290 + $0xa8] sm:$0xff] %v4516
        %6234 = vst [vmem:[%s290 + $0xb0] sm:$0xff] %v4854
        %6235 = vst [vmem:[%s290 + $0xb8] sm:$0xff] %v5192
        %6236 = vst [vmem:[%s290 + $0xc0] sm:$0xff] %v3505
        %6237 = vst [vmem:[%s290 + $0xc8] sm:$0xff] %v3843
        %6238 = vst [vmem:[%s290 + $0xd0] sm:$0xff] %v4181
        %6239 = vst [vmem:[%s290 + $0xd8] sm:$0xff] %v4519
        %6240 = vst [vmem:[%s290 + $0xe0] sm:$0xff] %v4857
        %6241 = vst [vmem:[%s290 + $0xe8] sm:$0xff] %v5195
        %6242 = vst [vmem:[%s290 + $0xf0] sm:$0xff] %v3507
        %6243 = vst [vmem:[%s290 + $0xf8] sm:$0xff] %v3845
        %6244 = vst [vmem:[%s290 + $0x100] sm:$0xff] %v4183
        %6245 = vst [vmem:[%s290 + $0x108] sm:$0xff] %v4521
        %6246 = vst [vmem:[%s290 + $0x110] sm:$0xff] %v4859
        %6247 = vst [vmem:[%s290 + $0x118] sm:$0xff] %v5197
        %6248 = vst [vmem:[%s290 + $0x120] sm:$0xff] %v3510
        %6249 = vst [vmem:[%s290 + $0x128] sm:$0xff] %v3848
        %6250 = vst [vmem:[%s290 + $0x130] sm:$0xff] %v4186
        %6251 = vst [vmem:[%s290 + $0x138] sm:$0xff] %v4524
        %6252 = vst [vmem:[%s290 + $0x140] sm:$0xff] %v4862
        %6253 = vst [vmem:[%s290 + $0x148] sm:$0xff] %v5200
        %6254 = vst [vmem:[%s290 + $0x150] sm:$0xff] %v3512
        %6255 = vst [vmem:[%s290 + $0x158] sm:$0xff] %v3850
        %6256 = vst [vmem:[%s290 + $0x160] sm:$0xff] %v4188
        %6257 = vst [vmem:[%s290 + $0x168] sm:$0xff] %v4526
        %6258 = vst [vmem:[%s290 + $0x170] sm:$0xff] %v4864
        %6259 = vst [vmem:[%s290 + $0x178] sm:$0xff] %v5202
        %6260 = vst [vmem:[%s290 + $0x180] sm:$0xff] %v3515
        %6261 = vst [vmem:[%s290 + $0x188] sm:$0xff] %v3853
        %6262 = vst [vmem:[%s290 + $0x190] sm:$0xff] %v4191
        %6263 = vst [vmem:[%s290 + $0x198] sm:$0xff] %v4529
        %6264 = vst [vmem:[%s290 + $0x1a0] sm:$0xff] %v4867
        %6265 = vst [vmem:[%s290 + $0x1a8] sm:$0xff] %v5205
        %6266 = vst [vmem:[%s290 + $0x1b0] sm:$0xff] %v3517
        %6267 = vst [vmem:[%s290 + $0x1b8] sm:$0xff] %v3855
        %6268 = vst [vmem:[%s290 + $0x1c0] sm:$0xff] %v4193
        %6269 = vst [vmem:[%s290 + $0x1c8] sm:$0xff] %v4531
        %6270 = vst [vmem:[%s290 + $0x1d0] sm:$0xff] %v4869
        %6271 = vst [vmem:[%s290 + $0x1d8] sm:$0xff] %v5207
        %6272 = vst [vmem:[%s290 + $0x1e0] sm:$0xff] %v3520
        %6273 = vst [vmem:[%s290 + $0x1e8] sm:$0xff] %v3858
        %6274 = vst [vmem:[%s290 + $0x1f0] sm:$0xff] %v4196
        %6275 = vst [vmem:[%s290 + $0x1f8] sm:$0xff] %v4534
        %6276 = vst [vmem:[%s290 + $0x200] sm:$0xff] %v4872
        %6277 = vst [vmem:[%s290 + $0x208] sm:$0xff] %v5210
        %6278 = vst [vmem:[%s290 + $0x210] sm:$0xff] %v3522
        %6279 = vst [vmem:[%s290 + $0x218] sm:$0xff] %v3860
        %6280 = vst [vmem:[%s290 + $0x220] sm:$0xff] %v4198
        %6281 = vst [vmem:[%s290 + $0x228] sm:$0xff] %v4536
        %6282 = vst [vmem:[%s290 + $0x230] sm:$0xff] %v4874
        %6283 = vst [vmem:[%s290 + $0x238] sm:$0xff] %v5212
        %6284 = vst [vmem:[%s290 + $0x240] sm:$0xff] %v3525
        %6285 = vst [vmem:[%s290 + $0x248] sm:$0xff] %v3863
        %6286 = vst [vmem:[%s290 + $0x250] sm:$0xff] %v4201
        %6287 = vst [vmem:[%s290 + $0x258] sm:$0xff] %v4539
        %6288 = vst [vmem:[%s290 + $0x260] sm:$0xff] %v4877
        %6289 = vst [vmem:[%s290 + $0x268] sm:$0xff] %v5215
        %6290 = vst [vmem:[%s290 + $0x270] sm:$0xff] %v3527
        %6291 = vst [vmem:[%s290 + $0x278] sm:$0xff] %v3865
        %6292 = vst [vmem:[%s290 + $0x280] sm:$0xff] %v4203
        %6293 = vst [vmem:[%s290 + $0x288] sm:$0xff] %v4541
        %6294 = vst [vmem:[%s290 + $0x290] sm:$0xff] %v4879
        %6295 = vst [vmem:[%s290 + $0x298] sm:$0xff] %v5217
        %6296 = vst [vmem:[%s290 + $0x2a0] sm:$0xff] %v3530
        %6297 = vst [vmem:[%s290 + $0x2a8] sm:$0xff] %v3868
        %6298 = vst [vmem:[%s290 + $0x2b0] sm:$0xff] %v4206
        %6299 = vst [vmem:[%s290 + $0x2b8] sm:$0xff] %v4544
        %6300 = vst [vmem:[%s290 + $0x2c0] sm:$0xff] %v4882
        %6301 = vst [vmem:[%s290 + $0x2c8] sm:$0xff] %v5220
        %6302 = vst [vmem:[%s290 + $0x2d0] sm:$0xff] %v3532
        %6303 = vst [vmem:[%s290 + $0x2d8] sm:$0xff] %v3870
        %6304 = vst [vmem:[%s290 + $0x2e0] sm:$0xff] %v4208
        %6305 = vst [vmem:[%s290 + $0x2e8] sm:$0xff] %v4546
        %6306 = vst [vmem:[%s290 + $0x2f0] sm:$0xff] %v4884
        %6307 = vst [vmem:[%s290 + $0x2f8] sm:$0xff] %v5222
        %6308 = vst [vmem:[%s290 + $0x300] sm:$0xff] %v3535
        %6309 = vst [vmem:[%s290 + $0x308] sm:$0xff] %v3873
        %6310 = vst [vmem:[%s290 + $0x310] sm:$0xff] %v4211
        %6311 = vst [vmem:[%s290 + $0x318] sm:$0xff] %v4549
        %6312 = vst [vmem:[%s290 + $0x320] sm:$0xff] %v4887
        %6313 = vst [vmem:[%s290 + $0x328] sm:$0xff] %v5225
        %6314 = vst [vmem:[%s290 + $0x330] sm:$0xff] %v3537
        %6315 = vst [vmem:[%s290 + $0x338] sm:$0xff] %v3875
        %6316 = vst [vmem:[%s290 + $0x340] sm:$0xff] %v4213
        %6317 = vst [vmem:[%s290 + $0x348] sm:$0xff] %v4551
        %6318 = vst [vmem:[%s290 + $0x350] sm:$0xff] %v4889
        %6319 = vst [vmem:[%s290 + $0x358] sm:$0xff] %v5227
        %6320 = vst [vmem:[%s290 + $0x360] sm:$0xff] %v3540
        %6321 = vst [vmem:[%s290 + $0x368] sm:$0xff] %v3878
        %6322 = vst [vmem:[%s290 + $0x370] sm:$0xff] %v4216
        %6323 = vst [vmem:[%s290 + $0x378] sm:$0xff] %v4554
        %6324 = vst [vmem:[%s290 + $0x380] sm:$0xff] %v4892
        %6325 = vst [vmem:[%s290 + $0x388] sm:$0xff] %v5230
        %6326 = vst [vmem:[%s290 + $0x390] sm:$0xff] %v3542
        %6327 = vst [vmem:[%s290 + $0x398] sm:$0xff] %v3880
        %6328 = vst [vmem:[%s290 + $0x3a0] sm:$0xff] %v4218
        %6329 = vst [vmem:[%s290 + $0x3a8] sm:$0xff] %v4556
        %6330 = vst [vmem:[%s290 + $0x3b0] sm:$0xff] %v4894
        %6331 = vst [vmem:[%s290 + $0x3b8] sm:$0xff] %v5232
        %6332 = vst [vmem:[%s290 + $0x3c0] sm:$0xff] %v3545
        %6333 = vst [vmem:[%s290 + $0x3c8] sm:$0xff] %v3883
        %6334 = vst [vmem:[%s290 + $0x3d0] sm:$0xff] %v4221
        %6335 = vst [vmem:[%s290 + $0x3d8] sm:$0xff] %v4559
        %6336 = vst [vmem:[%s290 + $0x3e0] sm:$0xff] %v4897
        %6337 = vst [vmem:[%s290 + $0x3e8] sm:$0xff] %v5235
        %6338 = vst [vmem:[%s290 + $0x3f0] sm:$0xff] %v3547
        %6339 = vst [vmem:[%s290 + $0x3f8] sm:$0xff] %v3885
        %6340 = vst [vmem:[%s290 + $0x400] sm:$0xff] %v4223
        %6341 = vst [vmem:[%s290 + $0x408] sm:$0xff] %v4561
        %6342 = vst [vmem:[%s290 + $0x410] sm:$0xff] %v4899
        %6343 = vst [vmem:[%s290 + $0x418] sm:$0xff] %v5237
        %6344 = vst [vmem:[%s290 + $0x420] sm:$0xff] %v3550
        %6345 = vst [vmem:[%s290 + $0x428] sm:$0xff] %v3888
        %6346 = vst [vmem:[%s290 + $0x430] sm:$0xff] %v4226
        %6347 = vst [vmem:[%s290 + $0x438] sm:$0xff] %v4564
        %6348 = vst [vmem:[%s290 + $0x440] sm:$0xff] %v4902
        %6349 = vst [vmem:[%s290 + $0x448] sm:$0xff] %v5240
        %6350 = vst [vmem:[%s290 + $0x450] sm:$0xff] %v3552
        %6351 = vst [vmem:[%s290 + $0x458] sm:$0xff] %v3890
        %6352 = vst [vmem:[%s290 + $0x460] sm:$0xff] %v4228
        %6353 = vst [vmem:[%s290 + $0x468] sm:$0xff] %v4566
        %6354 = vst [vmem:[%s290 + $0x470] sm:$0xff] %v4904
        %6355 = vst [vmem:[%s290 + $0x478] sm:$0xff] %v5242
        %6356 = vst [vmem:[%s290 + $0x480] sm:$0xff] %v3555
        %6357 = vst [vmem:[%s290 + $0x488] sm:$0xff] %v3893
        %6358 = vst [vmem:[%s290 + $0x490] sm:$0xff] %v4231
        %6359 = vst [vmem:[%s290 + $0x498] sm:$0xff] %v4569
        %6360 = vst [vmem:[%s290 + $0x4a0] sm:$0xff] %v4907
        %6361 = vst [vmem:[%s290 + $0x4a8] sm:$0xff] %v5245
        %6362 = vst [vmem:[%s290 + $0x4b0] sm:$0xff] %v3557
        %6363 = vst [vmem:[%s290 + $0x4b8] sm:$0xff] %v3895
        %6364 = vst [vmem:[%s290 + $0x4c0] sm:$0xff] %v4233
        %6365 = vst [vmem:[%s290 + $0x4c8] sm:$0xff] %v4571
        %6366 = vst [vmem:[%s290 + $0x4d0] sm:$0xff] %v4909
        %6367 = vst [vmem:[%s290 + $0x4d8] sm:$0xff] %v5247
        %6368 = vst [vmem:[%s290 + $0x4e0] sm:$0xff] %v3560
        %6369 = vst [vmem:[%s290 + $0x4e8] sm:$0xff] %v3898
        %6370 = vst [vmem:[%s290 + $0x4f0] sm:$0xff] %v4236
        %6371 = vst [vmem:[%s290 + $0x4f8] sm:$0xff] %v4574
        %6372 = vst [vmem:[%s290 + $0x500] sm:$0xff] %v4912
        %6373 = vst [vmem:[%s290 + $0x508] sm:$0xff] %v5250
        %6374 = vst [vmem:[%s290 + $0x510] sm:$0xff] %v3562
        %6375 = vst [vmem:[%s290 + $0x518] sm:$0xff] %v3900
        %6376 = vst [vmem:[%s290 + $0x520] sm:$0xff] %v4238
        %6377 = vst [vmem:[%s290 + $0x528] sm:$0xff] %v4576
        %6378 = vst [vmem:[%s290 + $0x530] sm:$0xff] %v4914
        %6379 = vst [vmem:[%s290 + $0x538] sm:$0xff] %v5252
        %6380 = vst [vmem:[%s290 + $0x540] sm:$0xff] %v3565
        %6381 = vst [vmem:[%s290 + $0x548] sm:$0xff] %v3903
        %6382 = vst [vmem:[%s290 + $0x550] sm:$0xff] %v4241
        %6383 = vst [vmem:[%s290 + $0x558] sm:$0xff] %v4579
        %6384 = vst [vmem:[%s290 + $0x560] sm:$0xff] %v4917
        %6385 = vst [vmem:[%s290 + $0x568] sm:$0xff] %v5255
        %6386 = vst [vmem:[%s290 + $0x570] sm:$0xff] %v3567
        %6387 = vst [vmem:[%s290 + $0x578] sm:$0xff] %v3905
        %6388 = vst [vmem:[%s290 + $0x580] sm:$0xff] %v4243
        %6389 = vst [vmem:[%s290 + $0x588] sm:$0xff] %v4581
        %6390 = vst [vmem:[%s290 + $0x590] sm:$0xff] %v4919
        %6391 = vst [vmem:[%s290 + $0x598] sm:$0xff] %v5257
        %6392 = vst [vmem:[%s290 + $0x5a0] sm:$0xff] %v3570
        %6393 = vst [vmem:[%s290 + $0x5a8] sm:$0xff] %v3908
        %6394 = vst [vmem:[%s290 + $0x5b0] sm:$0xff] %v4246
        %6395 = vst [vmem:[%s290 + $0x5b8] sm:$0xff] %v4584
        %6396 = vst [vmem:[%s290 + $0x5c0] sm:$0xff] %v4922
        %6397 = vst [vmem:[%s290 + $0x5c8] sm:$0xff] %v5260
        %6398 = vst [vmem:[%s290 + $0x5d0] sm:$0xff] %v3572
        %6399 = vst [vmem:[%s290 + $0x5d8] sm:$0xff] %v3910
        %6400 = vst [vmem:[%s290 + $0x5e0] sm:$0xff] %v4248
        %6401 = vst [vmem:[%s290 + $0x5e8] sm:$0xff] %v4586
        %6402 = vst [vmem:[%s290 + $0x5f0] sm:$0xff] %v4924
        %6403 = vst [vmem:[%s290 + $0x5f8] sm:$0xff] %v5262
        %6404 = vst [vmem:[%s290 + $0x600] sm:$0xff] %v3575
        %6405 = vst [vmem:[%s290 + $0x608] sm:$0xff] %v3913
        %6406 = vst [vmem:[%s290 + $0x610] sm:$0xff] %v4251
        %6407 = vst [vmem:[%s290 + $0x618] sm:$0xff] %v4589
        %6408 = vst [vmem:[%s290 + $0x620] sm:$0xff] %v4927
        %6409 = vst [vmem:[%s290 + $0x628] sm:$0xff] %v5265
        %6410 = vst [vmem:[%s290 + $0x630] sm:$0xff] %v3577
        %6411 = vst [vmem:[%s290 + $0x638] sm:$0xff] %v3915
        %6412 = vst [vmem:[%s290 + $0x640] sm:$0xff] %v4253
        %6413 = vst [vmem:[%s290 + $0x648] sm:$0xff] %v4591
        %6414 = vst [vmem:[%s290 + $0x650] sm:$0xff] %v4929
        %6415 = vst [vmem:[%s290 + $0x658] sm:$0xff] %v5267
        %6416 = vst [vmem:[%s290 + $0x660] sm:$0xff] %v3580
        %6417 = vst [vmem:[%s290 + $0x668] sm:$0xff] %v3918
        %6418 = vst [vmem:[%s290 + $0x670] sm:$0xff] %v4256
        %6419 = vst [vmem:[%s290 + $0x678] sm:$0xff] %v4594
        %6420 = vst [vmem:[%s290 + $0x680] sm:$0xff] %v4932
        %6421 = vst [vmem:[%s290 + $0x688] sm:$0xff] %v5270
        %6422 = vst [vmem:[%s290 + $0x690] sm:$0xff] %v3582
        %6423 = vst [vmem:[%s290 + $0x698] sm:$0xff] %v3920
        %6424 = vst [vmem:[%s290 + $0x6a0] sm:$0xff] %v4258
        %6425 = vst [vmem:[%s290 + $0x6a8] sm:$0xff] %v4596
        %6426 = vst [vmem:[%s290 + $0x6b0] sm:$0xff] %v4934
        %6427 = vst [vmem:[%s290 + $0x6b8] sm:$0xff] %v5272
        %6428 = vst [vmem:[%s290 + $0x6c0] sm:$0xff] %v3585
        %6429 = vst [vmem:[%s290 + $0x6c8] sm:$0xff] %v3923
        %6430 = vst [vmem:[%s290 + $0x6d0] sm:$0xff] %v4261
        %6431 = vst [vmem:[%s290 + $0x6d8] sm:$0xff] %v4599
        %6432 = vst [vmem:[%s290 + $0x6e0] sm:$0xff] %v4937
        %6433 = vst [vmem:[%s290 + $0x6e8] sm:$0xff] %v5275
        %6434 = vst [vmem:[%s290 + $0x6f0] sm:$0xff] %v3587
        %6435 = vst [vmem:[%s290 + $0x6f8] sm:$0xff] %v3925
        %6436 = vst [vmem:[%s290 + $0x700] sm:$0xff] %v4263
        %6437 = vst [vmem:[%s290 + $0x708] sm:$0xff] %v4601
        %6438 = vst [vmem:[%s290 + $0x710] sm:$0xff] %v4939
        %6439 = vst [vmem:[%s290 + $0x718] sm:$0xff] %v5277
        %6440 = vst [vmem:[%s290 + $0x720] sm:$0xff] %v3590
        %6441 = vst [vmem:[%s290 + $0x728] sm:$0xff] %v3928
        %6442 = vst [vmem:[%s290 + $0x730] sm:$0xff] %v4266
        %6443 = vst [vmem:[%s290 + $0x738] sm:$0xff] %v4604
        %6444 = vst [vmem:[%s290 + $0x740] sm:$0xff] %v4942
        %6445 = vst [vmem:[%s290 + $0x748] sm:$0xff] %v5280
        %6446 = vst [vmem:[%s290 + $0x750] sm:$0xff] %v3592
        %6447 = vst [vmem:[%s290 + $0x758] sm:$0xff] %v3930
        %6448 = vst [vmem:[%s290 + $0x760] sm:$0xff] %v4268
        %6449 = vst [vmem:[%s290 + $0x768] sm:$0xff] %v4606
        %6450 = vst [vmem:[%s290 + $0x770] sm:$0xff] %v4944
        %6451 = vst [vmem:[%s290 + $0x778] sm:$0xff] %v5282
        %6452 = vst [vmem:[%s290 + $0x780] sm:$0xff] %v3595
        %6453 = vst [vmem:[%s290 + $0x788] sm:$0xff] %v3933
        %6454 = vst [vmem:[%s290 + $0x790] sm:$0xff] %v4271
        %6455 = vst [vmem:[%s290 + $0x798] sm:$0xff] %v4609
        %6456 = vst [vmem:[%s290 + $0x7a0] sm:$0xff] %v4947
        %6457 = vst [vmem:[%s290 + $0x7a8] sm:$0xff] %v5285
        %6458 = vst [vmem:[%s290 + $0x7b0] sm:$0xff] %v3597
        %6459 = vst [vmem:[%s290 + $0x7b8] sm:$0xff] %v3935
        %6460 = vst [vmem:[%s290 + $0x7c0] sm:$0xff] %v4273
        %6461 = vst [vmem:[%s290 + $0x7c8] sm:$0xff] %v4611
        %6462 = vst [vmem:[%s290 + $0x7d0] sm:$0xff] %v4949
        %6463 = vst [vmem:[%s290 + $0x7d8] sm:$0xff] %v5287
        %6464 = vst [vmem:[%s290 + $0x7e0] sm:$0xff] %v3600
        %6465 = vst [vmem:[%s290 + $0x7e8] sm:$0xff] %v3938
        %6466 = vst [vmem:[%s290 + $0x7f0] sm:$0xff] %v4276
        %6467 = vst [vmem:[%s290 + $0x7f8] sm:$0xff] %v4614
        %6468 = vst [vmem:[%s290 + $0x800] sm:$0xff] %v4952
        %6469 = vst [vmem:[%s290 + $0x808] sm:$0xff] %v5290
        %6470 = vst [vmem:[%s290 + $0x810] sm:$0xff] %v3602
        %6471 = vst [vmem:[%s290 + $0x818] sm:$0xff] %v3940
        %6472 = vst [vmem:[%s290 + $0x820] sm:$0xff] %v4278
        %6473 = vst [vmem:[%s290 + $0x828] sm:$0xff] %v4616
        %6474 = vst [vmem:[%s290 + $0x830] sm:$0xff] %v4954
        %6475 = vst [vmem:[%s290 + $0x838] sm:$0xff] %v5292
        %6476 = vst [vmem:[%s290 + $0x840] sm:$0xff] %v3605
        %6477 = vst [vmem:[%s290 + $0x848] sm:$0xff] %v3943
        %6478 = vst [vmem:[%s290 + $0x850] sm:$0xff] %v4281
        %6479 = vst [vmem:[%s290 + $0x858] sm:$0xff] %v4619
        %6480 = vst [vmem:[%s290 + $0x860] sm:$0xff] %v4957
        %6481 = vst [vmem:[%s290 + $0x868] sm:$0xff] %v5295
        %6482 = vst [vmem:[%s290 + $0x870] sm:$0xff] %v3607
        %6483 = vst [vmem:[%s290 + $0x878] sm:$0xff] %v3945
        %6484 = vst [vmem:[%s290 + $0x880] sm:$0xff] %v4283
        %6485 = vst [vmem:[%s290 + $0x888] sm:$0xff] %v4621
        %6486 = vst [vmem:[%s290 + $0x890] sm:$0xff] %v4959
        %6487 = vst [vmem:[%s290 + $0x898] sm:$0xff] %v5297
        %6488 = vst [vmem:[%s290 + $0x8a0] sm:$0xff] %v3610
        %6489 = vst [vmem:[%s290 + $0x8a8] sm:$0xff] %v3948
        %6490 = vst [vmem:[%s290 + $0x8b0] sm:$0xff] %v4286
        %6491 = vst [vmem:[%s290 + $0x8b8] sm:$0xff] %v4624
        %6492 = vst [vmem:[%s290 + $0x8c0] sm:$0xff] %v4962
        %6493 = vst [vmem:[%s290 + $0x8c8] sm:$0xff] %v5300
        %6494 = vst [vmem:[%s290 + $0x8d0] sm:$0xff] %v3612
        %6495 = vst [vmem:[%s290 + $0x8d8] sm:$0xff] %v3950
        %6496 = vst [vmem:[%s290 + $0x8e0] sm:$0xff] %v4288
        %6497 = vst [vmem:[%s290 + $0x8e8] sm:$0xff] %v4626
        %6498 = vst [vmem:[%s290 + $0x8f0] sm:$0xff] %v4964
        %6499 = vst [vmem:[%s290 + $0x8f8] sm:$0xff] %v5302
        %6500 = vst [vmem:[%s290 + $0x900] sm:$0xff] %v3615
        %6501 = vst [vmem:[%s290 + $0x908] sm:$0xff] %v3953
        %6502 = vst [vmem:[%s290 + $0x910] sm:$0xff] %v4291
        %6503 = vst [vmem:[%s290 + $0x918] sm:$0xff] %v4629
        %6504 = vst [vmem:[%s290 + $0x920] sm:$0xff] %v4967
        %6505 = vst [vmem:[%s290 + $0x928] sm:$0xff] %v5305
        %6506 = vst [vmem:[%s290 + $0x930] sm:$0xff] %v3617
        %6507 = vst [vmem:[%s290 + $0x938] sm:$0xff] %v3955
        %6508 = vst [vmem:[%s290 + $0x940] sm:$0xff] %v4293
        %6509 = vst [vmem:[%s290 + $0x948] sm:$0xff] %v4631
        %6510 = vst [vmem:[%s290 + $0x950] sm:$0xff] %v4969
        %6511 = vst [vmem:[%s290 + $0x958] sm:$0xff] %v5307
        %6512 = vst [vmem:[%s290 + $0x960] sm:$0xff] %v3620
        %6513 = vst [vmem:[%s290 + $0x968] sm:$0xff] %v3958
        %6514 = vst [vmem:[%s290 + $0x970] sm:$0xff] %v4296
        %6515 = vst [vmem:[%s290 + $0x978] sm:$0xff] %v4634
        %6516 = vst [vmem:[%s290 + $0x980] sm:$0xff] %v4972
        %6517 = vst [vmem:[%s290 + $0x988] sm:$0xff] %v5310
        %6518 = vst [vmem:[%s290 + $0x990] sm:$0xff] %v3622
        %6519 = vst [vmem:[%s290 + $0x998] sm:$0xff] %v3960
        %6520 = vst [vmem:[%s290 + $0x9a0] sm:$0xff] %v4298
        %6521 = vst [vmem:[%s290 + $0x9a8] sm:$0xff] %v4636
        %6522 = vst [vmem:[%s290 + $0x9b0] sm:$0xff] %v4974
        %6523 = vst [vmem:[%s290 + $0x9b8] sm:$0xff] %v5312
        %6524 = vst [vmem:[%s290 + $0x9c0] sm:$0xff] %v3625
        %6525 = vst [vmem:[%s290 + $0x9c8] sm:$0xff] %v3963
        %6526 = vst [vmem:[%s290 + $0x9d0] sm:$0xff] %v4301
        %6527 = vst [vmem:[%s290 + $0x9d8] sm:$0xff] %v4639
        %6528 = vst [vmem:[%s290 + $0x9e0] sm:$0xff] %v4977
        %6529 = vst [vmem:[%s290 + $0x9e8] sm:$0xff] %v5315
        %6530 = vst [vmem:[%s290 + $0x9f0] sm:$0xff] %v3627
        %6531 = vst [vmem:[%s290 + $0x9f8] sm:$0xff] %v3965
        %6532 = vst [vmem:[%s290 + $0xa00] sm:$0xff] %v4303
        %6533 = vst [vmem:[%s290 + $0xa08] sm:$0xff] %v4641
        %6534 = vst [vmem:[%s290 + $0xa10] sm:$0xff] %v4979
        %6535 = vst [vmem:[%s290 + $0xa18] sm:$0xff] %v5317
        %6536 = vst [vmem:[%s290 + $0xa20] sm:$0xff] %v3630
        %6537 = vst [vmem:[%s290 + $0xa28] sm:$0xff] %v3968
        %6538 = vst [vmem:[%s290 + $0xa30] sm:$0xff] %v4306
        %6539 = vst [vmem:[%s290 + $0xa38] sm:$0xff] %v4644
        %6540 = vst [vmem:[%s290 + $0xa40] sm:$0xff] %v4982
        %6541 = vst [vmem:[%s290 + $0xa48] sm:$0xff] %v5320
        %6542 = vst [vmem:[%s290 + $0xa50] sm:$0xff] %v3632
        %6543 = vst [vmem:[%s290 + $0xa58] sm:$0xff] %v3970
        %6544 = vst [vmem:[%s290 + $0xa60] sm:$0xff] %v4308
        %6545 = vst [vmem:[%s290 + $0xa68] sm:$0xff] %v4646
        %6546 = vst [vmem:[%s290 + $0xa70] sm:$0xff] %v4984
        %6547 = vst [vmem:[%s290 + $0xa78] sm:$0xff] %v5322
        %6548 = vst [vmem:[%s290 + $0xa80] sm:$0xff] %v3635
        %6549 = vst [vmem:[%s290 + $0xa88] sm:$0xff] %v3973
        %6550 = vst [vmem:[%s290 + $0xa90] sm:$0xff] %v4311
        %6551 = vst [vmem:[%s290 + $0xa98] sm:$0xff] %v4649
        %6552 = vst [vmem:[%s290 + $0xaa0] sm:$0xff] %v4987
        %6553 = vst [vmem:[%s290 + $0xaa8] sm:$0xff] %v5325
        %6554 = vst [vmem:[%s290 + $0xab0] sm:$0xff] %v3637
        %6555 = vst [vmem:[%s290 + $0xab8] sm:$0xff] %v3975
        %6556 = vst [vmem:[%s290 + $0xac0] sm:$0xff] %v4313
        %6557 = vst [vmem:[%s290 + $0xac8] sm:$0xff] %v4651
        %6558 = vst [vmem:[%s290 + $0xad0] sm:$0xff] %v4989
        %6559 = vst [vmem:[%s290 + $0xad8] sm:$0xff] %v5327
        %6560 = vst [vmem:[%s290 + $0xae0] sm:$0xff] %v3640
        %6561 = vst [vmem:[%s290 + $0xae8] sm:$0xff] %v3978
        %6562 = vst [vmem:[%s290 + $0xaf0] sm:$0xff] %v4316
        %6563 = vst [vmem:[%s290 + $0xaf8] sm:$0xff] %v4654
        %6564 = vst [vmem:[%s290 + $0xb00] sm:$0xff] %v4992
        %6565 = vst [vmem:[%s290 + $0xb08] sm:$0xff] %v5330
        %6566 = vst [vmem:[%s290 + $0xb10] sm:$0xff] %v3642
        %6567 = vst [vmem:[%s290 + $0xb18] sm:$0xff] %v3980
        %6568 = vst [vmem:[%s290 + $0xb20] sm:$0xff] %v4318
        %6569 = vst [vmem:[%s290 + $0xb28] sm:$0xff] %v4656
        %6570 = vst [vmem:[%s290 + $0xb30] sm:$0xff] %v4994
        %6571 = vst [vmem:[%s290 + $0xb38] sm:$0xff] %v5332
        %6572 = vst [vmem:[%s290 + $0xb40] sm:$0xff] %v3645
        %6573 = vst [vmem:[%s290 + $0xb48] sm:$0xff] %v3983
        %6574 = vst [vmem:[%s290 + $0xb50] sm:$0xff] %v4321
        %6575 = vst [vmem:[%s290 + $0xb58] sm:$0xff] %v4659
        %6576 = vst [vmem:[%s290 + $0xb60] sm:$0xff] %v4997
        %6577 = vst [vmem:[%s290 + $0xb68] sm:$0xff] %v5335
        %6578 = vst [vmem:[%s290 + $0xb70] sm:$0xff] %v3647
        %6579 = vst [vmem:[%s290 + $0xb78] sm:$0xff] %v3985
        %6580 = vst [vmem:[%s290 + $0xb80] sm:$0xff] %v4323
        %6581 = vst [vmem:[%s290 + $0xb88] sm:$0xff] %v4661
        %6582 = vst [vmem:[%s290 + $0xb90] sm:$0xff] %v4999
        %6583 = vst [vmem:[%s290 + $0xb98] sm:$0xff] %v5337
        %6584 = vst [vmem:[%s290 + $0xba0] sm:$0xff] %v3650
        %6585 = vst [vmem:[%s290 + $0xba8] sm:$0xff] %v3988
        %6586 = vst [vmem:[%s290 + $0xbb0] sm:$0xff] %v4326
        %6587 = vst [vmem:[%s290 + $0xbb8] sm:$0xff] %v4664
        %6588 = vst [vmem:[%s290 + $0xbc0] sm:$0xff] %v5002
        %6589 = vst [vmem:[%s290 + $0xbc8] sm:$0xff] %v5340
        %6590 = vst [vmem:[%s290 + $0xbd0] sm:$0xff] %v3652
        %6591 = vst [vmem:[%s290 + $0xbd8] sm:$0xff] %v3990
        %6592 = vst [vmem:[%s290 + $0xbe0] sm:$0xff] %v4328
        %6593 = vst [vmem:[%s290 + $0xbe8] sm:$0xff] %v4666
        %6594 = vst [vmem:[%s290 + $0xbf0] sm:$0xff] %v5004
        %6595 = vst [vmem:[%s290 + $0xbf8] sm:$0xff] %v5342
        %6596 = vst [vmem:[%s283] sm:$0xff] %v5523
        %6597 = vst [vmem:[%s283 + $0x8] sm:$0xff] %v5861
        %6598 = vst [vmem:[%s283 + $0x10] sm:$0xff] %v5525
        %6599 = vst [vmem:[%s283 + $0x18] sm:$0xff] %v5863
        %6600 = vst [vmem:[%s283 + $0x20] sm:$0xff] %v5528
        %6601 = vst [vmem:[%s283 + $0x28] sm:$0xff] %v5866
        %6602 = vst [vmem:[%s283 + $0x30] sm:$0xff] %v5530
        %6603 = vst [vmem:[%s283 + $0x38] sm:$0xff] %v5868
        %6604 = vst [vmem:[%s283 + $0x40] sm:$0xff] %v5533
        %6605 = vst [vmem:[%s283 + $0x48] sm:$0xff] %v5871
        %6606 = vst [vmem:[%s283 + $0x50] sm:$0xff] %v5535
        %6607 = vst [vmem:[%s283 + $0x58] sm:$0xff] %v5873
        %6608 = vst [vmem:[%s283 + $0x60] sm:$0xff] %v5538
        %6609 = vst [vmem:[%s283 + $0x68] sm:$0xff] %v5876
        %6610 = vst [vmem:[%s283 + $0x70] sm:$0xff] %v5540
        %6611 = vst [vmem:[%s283 + $0x78] sm:$0xff] %v5878
        %6612 = vst [vmem:[%s283 + $0x80] sm:$0xff] %v5543
        %6613 = vst [vmem:[%s283 + $0x88] sm:$0xff] %v5881
        %6614 = vst [vmem:[%s283 + $0x90] sm:$0xff] %v5545
        %6615 = vst [vmem:[%s283 + $0x98] sm:$0xff] %v5883
        %6616 = vst [vmem:[%s283 + $0xa0] sm:$0xff] %v5548
        %6617 = vst [vmem:[%s283 + $0xa8] sm:$0xff] %v5886
        %6618 = vst [vmem:[%s283 + $0xb0] sm:$0xff] %v5550
        %6619 = vst [vmem:[%s283 + $0xb8] sm:$0xff] %v5888
        %6620 = vst [vmem:[%s283 + $0xc0] sm:$0xff] %v5553
        %6621 = vst [vmem:[%s283 + $0xc8] sm:$0xff] %v5891
        %6622 = vst [vmem:[%s283 + $0xd0] sm:$0xff] %v5555
        %6623 = vst [vmem:[%s283 + $0xd8] sm:$0xff] %v5893
        %6624 = vst [vmem:[%s283 + $0xe0] sm:$0xff] %v5558
        %6625 = vst [vmem:[%s283 + $0xe8] sm:$0xff] %v5896
        %6626 = vst [vmem:[%s283 + $0xf0] sm:$0xff] %v5560
        %6627 = vst [vmem:[%s283 + $0xf8] sm:$0xff] %v5898
        %6628 = vst [vmem:[%s283 + $0x100] sm:$0xff] %v5563
        %6629 = vst [vmem:[%s283 + $0x108] sm:$0xff] %v5901
        %6630 = vst [vmem:[%s283 + $0x110] sm:$0xff] %v5565
        %6631 = vst [vmem:[%s283 + $0x118] sm:$0xff] %v5903
        %6632 = vst [vmem:[%s283 + $0x120] sm:$0xff] %v5568
        %6633 = vst [vmem:[%s283 + $0x128] sm:$0xff] %v5906
        %6634 = vst [vmem:[%s283 + $0x130] sm:$0xff] %v5570
        %6635 = vst [vmem:[%s283 + $0x138] sm:$0xff] %v5908
        %6636 = vst [vmem:[%s283 + $0x140] sm:$0xff] %v5573
        %6637 = vst [vmem:[%s283 + $0x148] sm:$0xff] %v5911
        %6638 = vst [vmem:[%s283 + $0x150] sm:$0xff] %v5575
        %6639 = vst [vmem:[%s283 + $0x158] sm:$0xff] %v5913
        %6640 = vst [vmem:[%s283 + $0x160] sm:$0xff] %v5578
        %6641 = vst [vmem:[%s283 + $0x168] sm:$0xff] %v5916
        %6642 = vst [vmem:[%s283 + $0x170] sm:$0xff] %v5580
        %6643 = vst [vmem:[%s283 + $0x178] sm:$0xff] %v5918
        %6644 = vst [vmem:[%s283 + $0x180] sm:$0xff] %v5583
        %6645 = vst [vmem:[%s283 + $0x188] sm:$0xff] %v5921
        %6646 = vst [vmem:[%s283 + $0x190] sm:$0xff] %v5585
        %6647 = vst [vmem:[%s283 + $0x198] sm:$0xff] %v5923
        %6648 = vst [vmem:[%s283 + $0x1a0] sm:$0xff] %v5588
        %6649 = vst [vmem:[%s283 + $0x1a8] sm:$0xff] %v5926
        %6650 = vst [vmem:[%s283 + $0x1b0] sm:$0xff] %v5590
        %6651 = vst [vmem:[%s283 + $0x1b8] sm:$0xff] %v5928
        %6652 = vst [vmem:[%s283 + $0x1c0] sm:$0xff] %v5593
        %6653 = vst [vmem:[%s283 + $0x1c8] sm:$0xff] %v5931
        %6654 = vst [vmem:[%s283 + $0x1d0] sm:$0xff] %v5595
        %6655 = vst [vmem:[%s283 + $0x1d8] sm:$0xff] %v5933
        %6656 = vst [vmem:[%s283 + $0x1e0] sm:$0xff] %v5598
        %6657 = vst [vmem:[%s283 + $0x1e8] sm:$0xff] %v5936
        %6658 = vst [vmem:[%s283 + $0x1f0] sm:$0xff] %v5600
        %6659 = vst [vmem:[%s283 + $0x1f8] sm:$0xff] %v5938
        %6660 = vst [vmem:[%s283 + $0x200] sm:$0xff] %v5603
        %6661 = vst [vmem:[%s283 + $0x208] sm:$0xff] %v5941
        %6662 = vst [vmem:[%s283 + $0x210] sm:$0xff] %v5605
        %6663 = vst [vmem:[%s283 + $0x218] sm:$0xff] %v5943
        %6664 = vst [vmem:[%s283 + $0x220] sm:$0xff] %v5608
        %6665 = vst [vmem:[%s283 + $0x228] sm:$0xff] %v5946
        %6666 = vst [vmem:[%s283 + $0x230] sm:$0xff] %v5610
        %6667 = vst [vmem:[%s283 + $0x238] sm:$0xff] %v5948
        %6668 = vst [vmem:[%s283 + $0x240] sm:$0xff] %v5613
        %6669 = vst [vmem:[%s283 + $0x248] sm:$0xff] %v5951
        %6670 = vst [vmem:[%s283 + $0x250] sm:$0xff] %v5615
        %6671 = vst [vmem:[%s283 + $0x258] sm:$0xff] %v5953
        %6672 = vst [vmem:[%s283 + $0x260] sm:$0xff] %v5618
        %6673 = vst [vmem:[%s283 + $0x268] sm:$0xff] %v5956
        %6674 = vst [vmem:[%s283 + $0x270] sm:$0xff] %v5620
        %6675 = vst [vmem:[%s283 + $0x278] sm:$0xff] %v5958
        %6676 = vst [vmem:[%s283 + $0x280] sm:$0xff] %v5623
        %6677 = vst [vmem:[%s283 + $0x288] sm:$0xff] %v5961
        %6678 = vst [vmem:[%s283 + $0x290] sm:$0xff] %v5625
        %6679 = vst [vmem:[%s283 + $0x298] sm:$0xff] %v5963
        %6680 = vst [vmem:[%s283 + $0x2a0] sm:$0xff] %v5628
        %6681 = vst [vmem:[%s283 + $0x2a8] sm:$0xff] %v5966
        %6682 = vst [vmem:[%s283 + $0x2b0] sm:$0xff] %v5630
        %6683 = vst [vmem:[%s283 + $0x2b8] sm:$0xff] %v5968
        %6684 = vst [vmem:[%s283 + $0x2c0] sm:$0xff] %v5633
        %6685 = vst [vmem:[%s283 + $0x2c8] sm:$0xff] %v5971
        %6686 = vst [vmem:[%s283 + $0x2d0] sm:$0xff] %v5635
        %6687 = vst [vmem:[%s283 + $0x2d8] sm:$0xff] %v5973
        %6688 = vst [vmem:[%s283 + $0x2e0] sm:$0xff] %v5638
        %6689 = vst [vmem:[%s283 + $0x2e8] sm:$0xff] %v5976
        %6690 = vst [vmem:[%s283 + $0x2f0] sm:$0xff] %v5640
        %6691 = vst [vmem:[%s283 + $0x2f8] sm:$0xff] %v5978
        %6692 = vst [vmem:[%s283 + $0x300] sm:$0xff] %v5643
        %6693 = vst [vmem:[%s283 + $0x308] sm:$0xff] %v5981
        %6694 = vst [vmem:[%s283 + $0x310] sm:$0xff] %v5645
        %6695 = vst [vmem:[%s283 + $0x318] sm:$0xff] %v5983
        %6696 = vst [vmem:[%s283 + $0x320] sm:$0xff] %v5648
        %6697 = vst [vmem:[%s283 + $0x328] sm:$0xff] %v5986
        %6698 = vst [vmem:[%s283 + $0x330] sm:$0xff] %v5650
        %6699 = vst [vmem:[%s283 + $0x338] sm:$0xff] %v5988
        %6700 = vst [vmem:[%s283 + $0x340] sm:$0xff] %v5653
        %6701 = vst [vmem:[%s283 + $0x348] sm:$0xff] %v5991
        %6702 = vst [vmem:[%s283 + $0x350] sm:$0xff] %v5655
        %6703 = vst [vmem:[%s283 + $0x358] sm:$0xff] %v5993
        %6704 = vst [vmem:[%s283 + $0x360] sm:$0xff] %v5658
        %6705 = vst [vmem:[%s283 + $0x368] sm:$0xff] %v5996
        %6706 = vst [vmem:[%s283 + $0x370] sm:$0xff] %v5660
        %6707 = vst [vmem:[%s283 + $0x378] sm:$0xff] %v5998
        %6708 = vst [vmem:[%s283 + $0x380] sm:$0xff] %v5663
        %6709 = vst [vmem:[%s283 + $0x388] sm:$0xff] %v6001
        %6710 = vst [vmem:[%s283 + $0x390] sm:$0xff] %v5665
        %6711 = vst [vmem:[%s283 + $0x398] sm:$0xff] %v6003
        %6712 = vst [vmem:[%s283 + $0x3a0] sm:$0xff] %v5668
        %6713 = vst [vmem:[%s283 + $0x3a8] sm:$0xff] %v6006
        %6714 = vst [vmem:[%s283 + $0x3b0] sm:$0xff] %v5670
        %6715 = vst [vmem:[%s283 + $0x3b8] sm:$0xff] %v6008
        %6716 = vst [vmem:[%s283 + $0x3c0] sm:$0xff] %v5673
        %6717 = vst [vmem:[%s283 + $0x3c8] sm:$0xff] %v6011
        %6718 = vst [vmem:[%s283 + $0x3d0] sm:$0xff] %v5675
        %6719 = vst [vmem:[%s283 + $0x3d8] sm:$0xff] %v6013
        %6720 = vst [vmem:[%s283 + $0x3e0] sm:$0xff] %v5678
        %6721 = vst [vmem:[%s283 + $0x3e8] sm:$0xff] %v6016
        %6722 = vst [vmem:[%s283 + $0x3f0] sm:$0xff] %v5680
        %6723 = vst [vmem:[%s283 + $0x3f8] sm:$0xff] %v6018
        %s6724 = sand.u32 %s143, 1
        %s6725 = scalar_lea.sflag [#allocation3], %s6724
        %s6726 = sand.u32 %s143, 1
        %s6727 = smul.addr %s6726, 1536
        %s6728 = scalar_lea.vmem [#allocation2], %s6727
        %s6729 = sand.u32 %s25, 1
        %s6730 = scalar_lea.sflag [#allocation5], %s6729
        %s6731 = sand.u32 %s169, 1
        %s6732 = smul.addr %s6731, 1024
        %s6733 = scalar_lea.vmem [#allocation4], %s6732
        %s6734 = sand.u32 %s25, 1
        %s6735 = scalar_lea.sflag [#allocation5], %s6734
        %s6736 = sand.u32 %s195, 1
        %s6737 = smul.addr %s6736, 3072
        %s6738 = scalar_lea.vmem [#allocation6], %s6737
        // Predicated region
        $region41: #{skip_feat_class_decoder_fwd_flat.1} parent=39 // pred_check
          %p6739 = pneg %p153
        $region42: #{skip_feat_class_decoder_fwd_flat.1} parent=39 // pred_check_branch
          %6741 = sbr.rel (%p6739) target = $region44
        $region43: #{skip_feat_class_decoder_fwd_flat.1} parent=39 // pred_region
          %s6742 = smul.u32 64, %s25
          %6744 = vsyncadd %s6725, 0
          %s6745 = smul.addr %s6742, 3
          %s6746 = smul.addr %s6745, 8
          %s6747 = scalar_lea.hbm %s5, %s6746
          %s6748 = sshll.u32 %s6728, 4
          %s6749 = int_to_ptr.vmem [resolvable:$true] %s6748
          %s6750 = sshll.u32 %s6747, 4
          %s6751 = int_to_ptr.hbm [resolvable:$true] %s6750
          %6756 = dma.vmem_to_hbm [thread:$0]  %s6749, 24576, %s6751, %s6725, 384, 384, 24
        $region44: #{skip_feat_class_decoder_fwd_flat.1} parent=39 // pred_fallthru
          _
        // Predicated region
        $region45: #{skip_feat_class_decoder_fwd_flat.1} parent=39 // pred_check
          %p6757 = pneg %p179
        $region46: #{skip_feat_class_decoder_fwd_flat.1} parent=39 // pred_check_branch
          %6759 = sbr.rel (%p6757) target = $region48
        $region47: #{skip_feat_class_decoder_fwd_flat.1} parent=39 // pred_region
          %s6760 = smul.u32 64, %s25
          %6762 = vsyncadd %s6730, 0
          %s6763 = smul.addr %s6760, 2
          %s6764 = smul.addr %s6763, 8
          %s6765 = scalar_lea.hbm %s6, %s6764
          %s6766 = sshll.u32 %s6733, 4
          %s6767 = int_to_ptr.vmem [resolvable:$true] %s6766
          %s6768 = sshll.u32 %s6765, 4
          %s6769 = int_to_ptr.hbm [resolvable:$true] %s6768
          %6774 = dma.vmem_to_hbm [thread:$0]  %s6767, 16384, %s6769, %s6730, 256, 256, 16
        $region48: #{skip_feat_class_decoder_fwd_flat.1} parent=39 // pred_fallthru
          _
        // Predicated region
        $region49: #{skip_feat_class_decoder_fwd_flat.1} parent=39 // pred_check
          %p6775 = pneg %p205
        $region50: #{skip_feat_class_decoder_fwd_flat.1} parent=39 // pred_check_branch
          %6777 = sbr.rel (%p6775) target = $region52
        $region51: #{skip_feat_class_decoder_fwd_flat.1} parent=39 // pred_region
          %s6778 = smul.u32 64, %s25
          %6780 = vsyncadd %s6735, 0
          %s6781 = smul.addr %s6778, 6
          %s6782 = smul.addr %s6781, 8
          %s6783 = scalar_lea.hbm %s7, %s6782
          %s6784 = sshll.u32 %s6738, 4
          %s6785 = int_to_ptr.vmem [resolvable:$true] %s6784
          %s6786 = sshll.u32 %s6783, 4
          %s6787 = int_to_ptr.hbm [resolvable:$true] %s6786
          %6792 = dma.vmem_to_hbm [thread:$0]  %s6785, 49152, %s6787, %s6735, 768, 768, 48
        $region52: #{skip_feat_class_decoder_fwd_flat.1} parent=39 // pred_fallthru
          _
      $region40: #{skip_feat_class_decoder_fwd_flat.1} parent=5 // pred_fallthru
        _
      %p6793 = scmp.le.s32.totalorder 2, %s20
      // Predicated region
      $region53: #{skip_feat_class_decoder_fwd_flat.1} parent=5 // pred_check
        %p6794 = pneg %p6793
      $region54: #{skip_feat_class_decoder_fwd_flat.1} parent=5 // pred_check_branch
        %6796 = sbr.rel (%p6794) target = $region56
      $region55: #{skip_feat_class_decoder_fwd_flat.1} parent=5 // pred_region
        %s6797 = ssub.s32 %s20, 2
        // Predicated region
        $region57: #{skip_feat_class_decoder_fwd_flat.1} parent=55 // pred_check
          %p6798 = pneg %p159
        $region58: #{skip_feat_class_decoder_fwd_flat.1} parent=55 // pred_check_branch
          %6800 = sbr.rel (%p6798) target = $region60
        $region59: #{skip_feat_class_decoder_fwd_flat.1} parent=55 // pred_region
          %s6801 = sand.u32 %s144, 1
          %s6802 = scalar_lea.sflag [#allocation3], %s6801
          %s6803 = sand.u32 %s144, 1
          %s6804 = smul.addr %s6803, 1536
          %s6805 = scalar_lea.vmem [#allocation2], %s6804
          %6807 = dma.done %s6802, 24576
        $region60: #{skip_feat_class_decoder_fwd_flat.1} parent=55 // pred_fallthru
          _
        // Predicated region
        $region61: #{skip_feat_class_decoder_fwd_flat.1} parent=55 // pred_check
          %p6808 = pneg %p185
        $region62: #{skip_feat_class_decoder_fwd_flat.1} parent=55 // pred_check_branch
          %6810 = sbr.rel (%p6808) target = $region64
        $region63: #{skip_feat_class_decoder_fwd_flat.1} parent=55 // pred_region
          %s6811 = sand.u32 %s26, 1
          %s6812 = scalar_lea.sflag [#allocation5], %s6811
          %s6813 = sand.u32 %s170, 1
          %s6814 = smul.addr %s6813, 1024
          %s6815 = scalar_lea.vmem [#allocation4], %s6814
          %6817 = dma.done %s6812, 16384
        $region64: #{skip_feat_class_decoder_fwd_flat.1} parent=55 // pred_fallthru
          _
        // Predicated region
        $region65: #{skip_feat_class_decoder_fwd_flat.1} parent=55 // pred_check
          %p6818 = pneg %p211
        $region66: #{skip_feat_class_decoder_fwd_flat.1} parent=55 // pred_check_branch
          %6820 = sbr.rel (%p6818) target = $region68
        $region67: #{skip_feat_class_decoder_fwd_flat.1} parent=55 // pred_region
          %s6821 = sand.u32 %s26, 1
          %s6822 = scalar_lea.sflag [#allocation5], %s6821
          %s6823 = sand.u32 %s196, 1
          %s6824 = smul.addr %s6823, 3072
          %s6825 = scalar_lea.vmem [#allocation6], %s6824
          %6827 = dma.done %s6822, 49152
        $region68: #{skip_feat_class_decoder_fwd_flat.1} parent=55 // pred_fallthru
          _
      $region56: #{skip_feat_class_decoder_fwd_flat.1} parent=5 // pred_fallthru
        _
    $region6: #{skip_feat_class_decoder_fwd_flat.1} parent=1 // loop_footer
      %s24 = sadd.s32 1, %s20
    $region7: #{skip_feat_class_decoder_fwd_flat.1} parent=1 // loop_footer_branch
      %19 = sbr.rel target = $region3
    $region8: #{skip_feat_class_decoder_fwd_flat.1} parent=1 // loop_exit
      _
    %6828 = vsyncpa [#allocation3], 1
    %s6829 = scalar_lea.sflag [#allocation3], 1
    %6830 = vsyncpa %s6829, 1
    %6831 = vsyncpa [#allocation5], 1
    %s6832 = scalar_lea.sflag [#allocation5], 1
    %6833 = vsyncpa %s6832, 1

</llo_original>
